<compile_context>
chip_gen: v6e
topology: v6e:2x2x1
jax: 0.10.0
libtpu: 0.0.40
codegen_flags: <defaults>
</compile_context>

<pallas_src>
import jax
import jax.numpy as jnp
from jax.experimental import pallas as pl
from jax.experimental.pallas import tpu as pltpu

IN_FEATS = 263
IN_PAD = 264            # 263 padded up to a multiple of 8 for clean vreg tiling
HIDDIM = 256
N_LAYERS = 15


def deep_gravity_kernel(x_ref, w_in_ref, b_in_ref, w_h_ref, b_h_ref,
                        w_out_ref, b_out_ref, o_ref, *act_refs):
    """act_refs: 1 or 2 VMEM scratch refs of shape (rows, HIDDIM); their dtype is the
    residual-carry dtype (f32 on v5e, bf16 on v6e/v7x)."""
    act_dtype = act_refs[0].dtype
    n_sub = len(act_refs)
    rows = act_refs[0].shape[0]

    # ---- linear_in: (rows, 264) @ (264, 256) + (1, 256); bf16 MXU, f32 accum.
    w_in = w_in_ref[...]                       # bf16, resident
    b_in = b_in_ref[...]                       # f32
    for s in range(n_sub):
        xs = x_ref[s * rows:(s + 1) * rows, :]  # bf16 rows of the batch tile
        act_refs[s][...] = (
            jnp.dot(xs, w_in, preferred_element_type=jnp.float32) + b_in
        ).astype(act_dtype)

    # ---- 15 residual blocks: x = relu(x @ W_i + b_i) + x
    # Fully unrolled; the two sub-blocks (when present) are independent, so the LLO
    # scheduler can overlap one sub-block's epilogue with the other's matmul.
    for i in range(N_LAYERS):
        w_i = w_h_ref[i]                       # (256, 256) bf16, shared by sub-blocks
        b_i = b_h_ref[i]                       # (1, 256) f32
        for s in range(n_sub):
            x = act_refs[s][...]
            h = (jnp.dot(x.astype(jnp.bfloat16), w_i,
                         preferred_element_type=jnp.float32) + b_i)   # f32 transient
            hb = h.astype(act_dtype)
            act_refs[s][...] = jnp.maximum(hb, 0.0) + x               # relu + residual

    # ---- linear_out + tanh.  A 256->1 matmul wastes the MXU; do it as a VPU
    # multiply + XLU cross-lane reduce (w_out stored as a (1, 256) row), in f32.
    w_out = w_out_ref[...]
    b_out = b_out_ref[...]
    for s in range(n_sub):
        xf = act_refs[s][...].astype(jnp.float32)
        out = jnp.sum(xf * w_out, axis=-1, keepdims=True) + b_out
        o_ref[s * rows:(s + 1) * rows, :] = jnp.tanh(out)


def _chip_flags():
    """(is_v5e, has_two_tensorcores) from the local device kind; safe fallbacks."""
    try:
        kind = jax.devices()[0].device_kind.lower()
    except Exception:
        kind = ""
    is_v5e = ("v5 lite" in kind) or ("v5e" in kind) or ("v5lite" in kind)
    two_cores = ("v4" in kind) or ("v7" in kind) or ("tpu7" in kind)
    return is_v5e, two_cores


def _choose_tile(n, max_tile, two_cores):
    """Largest ladder tile with <=15% batch-padding waste; otherwise a single tile
    that just covers n.  On 2-TC chips, shrink until the grid has >= 2 steps."""
    ladder = [t for t in (1024, 512, 256, 128) if t <= max_tile]
    if not ladder:
        ladder = [max(8, (max_tile // 8) * 8)]
    tm = None
    for t in ladder:
        n_pad = pl.cdiv(n, t) * t
        if (n_pad - n) * 100 <= 15 * n_pad:
            tm = t
            break
    if tm is None:
        tm = min(ladder[0], ((n + 7) // 8) * 8)
    if two_cores:
        while tm > 8 and pl.cdiv(n, tm) < 2:
            tm = max(8, ((tm // 2 + 7) // 8) * 8)
    return max(8, tm)


def deep_gravity(x, params, *, max_tile=1024, act_dtype=None, interleave=None):
    """x: (N, 263) float.  Returns (N, 1) float32.

    params = (w_in (263,256), b_in (1,256), w_h (15,256,256), b_h (15,1,256),
              w_out (1,256), b_out (1,1)), any float dtype.
    """
    n = x.shape[0]
    assert x.shape[1] == IN_FEATS
    w_in, b_in, w_h, b_h, w_out, b_out = params

    is_v5e, two_cores = _chip_flags()
    if act_dtype is None:
        # v6e/v7x are epilogue(VPU/vst)-bound -> bf16 carry; v5e is MXU-bound and has
        # no bf16 VALU -> keep the f32 carry there.
        act_dtype = jnp.float32 if is_v5e else jnp.bfloat16

    # Dtype policy: bf16 operands for the MXU matmuls, f32 accumulation, f32 biases.
    x = x.astype(jnp.float32)
    x = jnp.pad(x, ((0, 0), (0, IN_PAD - IN_FEATS))).astype(jnp.bfloat16)
    w_in = jnp.pad(w_in.astype(jnp.float32),
                   ((0, IN_PAD - IN_FEATS), (0, 0))).astype(jnp.bfloat16)
    w_h = w_h.astype(jnp.bfloat16)
    b_in = b_in.astype(jnp.float32)
    b_h = b_h.astype(jnp.float32)
    w_out = w_out.astype(jnp.float32)
    b_out = b_out.astype(jnp.float32)

    # Batch tile + padding.
    tm = _choose_tile(n, max_tile, two_cores)
    n_pad = pl.cdiv(n, tm) * tm
    if n_pad != n:
        x = jnp.pad(x, ((0, n_pad - n), (0, 0)))

    if interleave is None:
        interleave = (not is_v5e) and (tm % 16 == 0) and tm >= 32
    n_split = 2 if interleave else 1
    rows = tm // n_split

    grid = (n_pad // tm,)
    out = pl.pallas_call(
        deep_gravity_kernel,
        out_shape=jax.ShapeDtypeStruct((n_pad, 1), jnp.float32),
        grid_spec=pltpu.PrefetchScalarGridSpec(
            num_scalar_prefetch=0,
            grid=grid,
            in_specs=[
                pl.BlockSpec((tm, IN_PAD), lambda i: (i, 0)),               # x tile (bf16)
                pl.BlockSpec((IN_PAD, HIDDIM), lambda i: (0, 0)),           # W_in (bf16)
                pl.BlockSpec((1, HIDDIM), lambda i: (0, 0)),                # b_in
                pl.BlockSpec((N_LAYERS, HIDDIM, HIDDIM),
                             lambda i: (0, 0, 0)),                          # W_h stack (bf16)
                pl.BlockSpec((N_LAYERS, 1, HIDDIM), lambda i: (0, 0, 0)),   # b_h stack
                pl.BlockSpec((1, HIDDIM), lambda i: (0, 0)),                # W_out row
                pl.BlockSpec((1, 1), lambda i: (0, 0)),                     # b_out
            ],
            out_specs=pl.BlockSpec((tm, 1), lambda i: (i, 0)),
            scratch_shapes=[pltpu.VMEM((rows, HIDDIM), act_dtype)
                            for _ in range(n_split)],                       # activation carry
        ),
        compiler_params=pltpu.CompilerParams(
            dimension_semantics=("parallel",),
            vmem_limit_bytes=32 << 20,   # footprint ~5 MiB even at tm=1024
        ),
    )(x, w_in, b_in, w_h, b_h, w_out, b_out)
    return out[:n]


def init_params(key):
    """PyTorch nn.Linear default init: U(-1/sqrt(fan_in), 1/sqrt(fan_in))."""
    ks = jax.random.split(key, 6)

    def uni(k, shape, fan_in):
        bound = 1.0 / jnp.sqrt(fan_in)
        return jax.random.uniform(k, shape, jnp.float32, -bound, bound)

    w_in = uni(ks[0], (IN_FEATS, HIDDIM), IN_FEATS)
    b_in = uni(ks[1], (1, HIDDIM), IN_FEATS)
    w_h = uni(ks[2], (N_LAYERS, HIDDIM, HIDDIM), HIDDIM)
    b_h = uni(ks[3], (N_LAYERS, 1, HIDDIM), HIDDIM)
    w_out = uni(ks[4], (1, HIDDIM), HIDDIM)
    b_out = uni(ks[5], (1, 1), HIDDIM)
    return (w_in, b_in, w_h, b_h, w_out, b_out)


def deep_gravity_ref(x, params, act_dtype=jnp.float32):
    """Pure-JAX reference mirroring the kernel's dtype policy (bf16 MXU operands,
    f32 accumulation, residual carry in `act_dtype`), matching the PyTorch graph."""
    w_in, b_in, w_h, b_h, w_out, b_out = params
    h = (jnp.dot(x.astype(jnp.bfloat16), w_in.astype(jnp.bfloat16),
                 preferred_element_type=jnp.float32) + b_in).astype(act_dtype)
    for i in range(N_LAYERS):
        z = jnp.dot(h.astype(jnp.bfloat16), w_h[i].astype(jnp.bfloat16),
                    preferred_element_type=jnp.float32) + b_h[i]
        h = jnp.maximum(z.astype(act_dtype), 0.0) + h
    hf = h.astype(jnp.float32)
    out = jnp.sum(hf * w_out, axis=-1, keepdims=True) + b_out
    return jnp.tanh(out)


if __name__ == "__main__":
    key = jax.random.PRNGKey(0)
    k_params, k_x = jax.random.split(key)

    params = init_params(k_params)
    batch = 64
    x = jax.random.normal(k_x, (batch, IN_FEATS), jnp.float32)

    out = jax.block_until_ready(deep_gravity(x, params))

    is_v5e, _ = _chip_flags()
    carry_dtype = jnp.float32 if is_v5e else jnp.bfloat16
    ref = deep_gravity_ref(x, params, act_dtype=carry_dtype)

    assert out.shape == (batch, 1)
    max_err = float(jnp.max(jnp.abs(out - ref)))
    assert max_err < 2e-3, max_err

    print("KERNEL_OK")
</pallas_src>

<mosaic_0001>
module attributes {stable_mosaic.version = 11 : i64} {
  func.func @deep_gravity_kernel(%arg0: i32, %arg1: memref<64x264xbf16, #tpu.memory_space<vmem>>, %arg2: memref<264x256xbf16, #tpu.memory_space<vmem>>, %arg3: memref<1x256xf32, #tpu.memory_space<vmem>>, %arg4: memref<15x256x256xbf16, #tpu.memory_space<vmem>>, %arg5: memref<15x1x256xf32, #tpu.memory_space<vmem>>, %arg6: memref<1x256xf32, #tpu.memory_space<vmem>>, %arg7: memref<1x1xf32, #tpu.memory_space<vmem>>, %arg8: memref<64x1xf32, #tpu.memory_space<vmem>>, %arg9: memref<32x256xbf16, #tpu.memory_space<vmem>>, %arg10: memref<32x256xbf16, #tpu.memory_space<vmem>>) attributes {dimension_semantics = [#tpu.dimension_semantics<parallel>], iteration_bounds = array<i64: 1>, scalar_prefetch = 0 : i64, scratch_operands = 2 : i64, tpu.core_type = #tpu.core_type<tc>, window_params = [{transform_indices = @transform_0, window_bounds = array<i64: 64, 264>}, {pipeline_mode = #tpu.pipeline_mode<synchronous>, transform_indices = @transform_1, window_bounds = array<i64: 264, 256>}, {pipeline_mode = #tpu.pipeline_mode<synchronous>, transform_indices = @transform_2, window_bounds = array<i64: 1, 256>}, {pipeline_mode = #tpu.pipeline_mode<synchronous>, transform_indices = @transform_3, window_bounds = array<i64: 15, 256, 256>}, {pipeline_mode = #tpu.pipeline_mode<synchronous>, transform_indices = @transform_4, window_bounds = array<i64: 15, 1, 256>}, {pipeline_mode = #tpu.pipeline_mode<synchronous>, transform_indices = @transform_5, window_bounds = array<i64: 1, 256>}, {pipeline_mode = #tpu.pipeline_mode<synchronous>, transform_indices = @transform_6, window_bounds = array<i64: 1, 1>}, {transform_indices = @transform_7, window_bounds = array<i64: 64, 1>}]} {
    %c0 = arith.constant 0 : index
    %c0_0 = arith.constant 0 : index
    %0 = vector.load %arg2[%c0, %c0_0] : memref<264x256xbf16, #tpu.memory_space<vmem>>, vector<264x256xbf16>
    %c0_1 = arith.constant 0 : index
    %c0_2 = arith.constant 0 : index
    %1 = vector.load %arg3[%c0_1, %c0_2] : memref<1x256xf32, #tpu.memory_space<vmem>>, vector<1x256xf32>
    %c0_3 = arith.constant 0 : index
    %c0_4 = arith.constant 0 : index
    %2 = vector.load %arg1[%c0_3, %c0_4] : memref<64x264xbf16, #tpu.memory_space<vmem>>, vector<32x264xbf16>
    %cst = arith.constant dense<0.000000e+00> : vector<32x256xf32>
    %3 = tpu.matmul %2, %0, %cst {dimension_numbers = #tpu.dot_dimension_numbers<[1], [0], [0], [1], [0, 0, 1, 1], [], []>} : vector<32x264xbf16>, vector<264x256xbf16>, vector<32x256xf32> -> vector<32x256xf32>
    %4 = vector.broadcast %1 : vector<1x256xf32> to vector<32x256xf32>
    %5 = arith.addf %3, %4 : vector<32x256xf32>
    %6 = arith.truncf %5 : vector<32x256xf32> to vector<32x256xbf16>
    %c0_5 = arith.constant 0 : index
    %c0_6 = arith.constant 0 : index
    %7 = vector.load %arg9[%c0_5, %c0_6] : memref<32x256xbf16, #tpu.memory_space<vmem>>, vector<32x256xbf16>
    tpu.vector_store %arg9[%c0_5, %c0_6], %6 {strides = array<i32>} : memref<32x256xbf16, #tpu.memory_space<vmem>>, vector<32x256xbf16>,
    %c32 = arith.constant 32 : index
    %c0_7 = arith.constant 0 : index
    %8 = vector.load %arg1[%c32, %c0_7] : memref<64x264xbf16, #tpu.memory_space<vmem>>, vector<32x264xbf16>
    %cst_8 = arith.constant dense<0.000000e+00> : vector<32x256xf32>
    %9 = tpu.matmul %8, %0, %cst_8 {dimension_numbers = #tpu.dot_dimension_numbers<[1], [0], [0], [1], [0, 0, 1, 1], [], []>} : vector<32x264xbf16>, vector<264x256xbf16>, vector<32x256xf32> -> vector<32x256xf32>
    %10 = vector.broadcast %1 : vector<1x256xf32> to vector<32x256xf32>
    %11 = arith.addf %9, %10 : vector<32x256xf32>
    %12 = arith.truncf %11 : vector<32x256xf32> to vector<32x256xbf16>
    %c0_9 = arith.constant 0 : index
    %c0_10 = arith.constant 0 : index
    %13 = vector.load %arg10[%c0_9, %c0_10] : memref<32x256xbf16, #tpu.memory_space<vmem>>, vector<32x256xbf16>
    tpu.vector_store %arg10[%c0_9, %c0_10], %12 {strides = array<i32>} : memref<32x256xbf16, #tpu.memory_space<vmem>>, vector<32x256xbf16>,
    %c0_11 = arith.constant 0 : index
    %c0_12 = arith.constant 0 : index
    %c0_13 = arith.constant 0 : index
    %14 = vector.load %arg4[%c0_11, %c0_12, %c0_13] : memref<15x256x256xbf16, #tpu.memory_space<vmem>>, vector<1x256x256xbf16>
    %15 = vector.shape_cast %14 : vector<1x256x256xbf16> to vector<256x256xbf16>
    %c0_14 = arith.constant 0 : index
    %c0_15 = arith.constant 0 : index
    %c0_16 = arith.constant 0 : index
    %16 = vector.load %arg5[%c0_14, %c0_15, %c0_16] : memref<15x1x256xf32, #tpu.memory_space<vmem>>, vector<1x1x256xf32>
    %17 = vector.shape_cast %16 : vector<1x1x256xf32> to vector<1x256xf32>
    %c0_17 = arith.constant 0 : index
    %c0_18 = arith.constant 0 : index
    %18 = vector.load %arg9[%c0_17, %c0_18] : memref<32x256xbf16, #tpu.memory_space<vmem>>, vector<32x256xbf16>
    %cst_19 = arith.constant dense<0.000000e+00> : vector<32x256xf32>
    %19 = tpu.matmul %18, %15, %cst_19 {dimension_numbers = #tpu.dot_dimension_numbers<[1], [0], [0], [1], [0, 0, 1, 1], [], []>} : vector<32x256xbf16>, vector<256x256xbf16>, vector<32x256xf32> -> vector<32x256xf32>
    %20 = vector.broadcast %17 : vector<1x256xf32> to vector<32x256xf32>
    %21 = arith.addf %19, %20 : vector<32x256xf32>
    %22 = arith.truncf %21 : vector<32x256xf32> to vector<32x256xbf16>
    %cst_20 = arith.constant 0.000000e+00 : bf16
    %23 = vector.broadcast %cst_20 : bf16 to vector<32x256xbf16>
    %24 = arith.maximumf %22, %23 : vector<32x256xbf16>
    %25 = arith.addf %24, %18 : vector<32x256xbf16>
    %c0_21 = arith.constant 0 : index
    %c0_22 = arith.constant 0 : index
    %26 = vector.load %arg9[%c0_21, %c0_22] : memref<32x256xbf16, #tpu.memory_space<vmem>>, vector<32x256xbf16>
    tpu.vector_store %arg9[%c0_21, %c0_22], %25 {strides = array<i32>} : memref<32x256xbf16, #tpu.memory_space<vmem>>, vector<32x256xbf16>,
    %c0_23 = arith.constant 0 : index
    %c0_24 = arith.constant 0 : index
    %27 = vector.load %arg10[%c0_23, %c0_24] : memref<32x256xbf16, #tpu.memory_space<vmem>>, vector<32x256xbf16>
    %cst_25 = arith.constant dense<0.000000e+00> : vector<32x256xf32>
    %28 = tpu.matmul %27, %15, %cst_25 {dimension_numbers = #tpu.dot_dimension_numbers<[1], [0], [0], [1], [0, 0, 1, 1], [], []>} : vector<32x256xbf16>, vector<256x256xbf16>, vector<32x256xf32> -> vector<32x256xf32>
    %29 = vector.broadcast %17 : vector<1x256xf32> to vector<32x256xf32>
    %30 = arith.addf %28, %29 : vector<32x256xf32>
    %31 = arith.truncf %30 : vector<32x256xf32> to vector<32x256xbf16>
    %cst_26 = arith.constant 0.000000e+00 : bf16
    %32 = vector.broadcast %cst_26 : bf16 to vector<32x256xbf16>
    %33 = arith.maximumf %31, %32 : vector<32x256xbf16>
    %34 = arith.addf %33, %27 : vector<32x256xbf16>
    %c0_27 = arith.constant 0 : index
    %c0_28 = arith.constant 0 : index
    %35 = vector.load %arg10[%c0_27, %c0_28] : memref<32x256xbf16, #tpu.memory_space<vmem>>, vector<32x256xbf16>
    tpu.vector_store %arg10[%c0_27, %c0_28], %34 {strides = array<i32>} : memref<32x256xbf16, #tpu.memory_space<vmem>>, vector<32x256xbf16>,
    %c1 = arith.constant 1 : index
    %c0_29 = arith.constant 0 : index
    %c0_30 = arith.constant 0 : index
    %36 = vector.load %arg4[%c1, %c0_29, %c0_30] : memref<15x256x256xbf16, #tpu.memory_space<vmem>>, vector<1x256x256xbf16>
    %37 = vector.shape_cast %36 : vector<1x256x256xbf16> to vector<256x256xbf16>
    %c1_31 = arith.constant 1 : index
    %c0_32 = arith.constant 0 : index
    %c0_33 = arith.constant 0 : index
    %38 = vector.load %arg5[%c1_31, %c0_32, %c0_33] : memref<15x1x256xf32, #tpu.memory_space<vmem>>, vector<1x1x256xf32>
    %39 = vector.shape_cast %38 : vector<1x1x256xf32> to vector<1x256xf32>
    %c0_34 = arith.constant 0 : index
    %c0_35 = arith.constant 0 : index
    %40 = vector.load %arg9[%c0_34, %c0_35] : memref<32x256xbf16, #tpu.memory_space<vmem>>, vector<32x256xbf16>
    %cst_36 = arith.constant dense<0.000000e+00> : vector<32x256xf32>
    %41 = tpu.matmul %40, %37, %cst_36 {dimension_numbers = #tpu.dot_dimension_numbers<[1], [0], [0], [1], [0, 0, 1, 1], [], []>} : vector<32x256xbf16>, vector<256x256xbf16>, vector<32x256xf32> -> vector<32x256xf32>
    %42 = vector.broadcast %39 : vector<1x256xf32> to vector<32x256xf32>
    %43 = arith.addf %41, %42 : vector<32x256xf32>
    %44 = arith.truncf %43 : vector<32x256xf32> to vector<32x256xbf16>
    %cst_37 = arith.constant 0.000000e+00 : bf16
    %45 = vector.broadcast %cst_37 : bf16 to vector<32x256xbf16>
    %46 = arith.maximumf %44, %45 : vector<32x256xbf16>
    %47 = arith.addf %46, %40 : vector<32x256xbf16>
    %c0_38 = arith.constant 0 : index
    %c0_39 = arith.constant 0 : index
    %48 = vector.load %arg9[%c0_38, %c0_39] : memref<32x256xbf16, #tpu.memory_space<vmem>>, vector<32x256xbf16>
    tpu.vector_store %arg9[%c0_38, %c0_39], %47 {strides = array<i32>} : memref<32x256xbf16, #tpu.memory_space<vmem>>, vector<32x256xbf16>,
    %c0_40 = arith.constant 0 : index
    %c0_41 = arith.constant 0 : index
    %49 = vector.load %arg10[%c0_40, %c0_41] : memref<32x256xbf16, #tpu.memory_space<vmem>>, vector<32x256xbf16>
    %cst_42 = arith.constant dense<0.000000e+00> : vector<32x256xf32>
    %50 = tpu.matmul %49, %37, %cst_42 {dimension_numbers = #tpu.dot_dimension_numbers<[1], [0], [0], [1], [0, 0, 1, 1], [], []>} : vector<32x256xbf16>, vector<256x256xbf16>, vector<32x256xf32> -> vector<32x256xf32>
    %51 = vector.broadcast %39 : vector<1x256xf32> to vector<32x256xf32>
    %52 = arith.addf %50, %51 : vector<32x256xf32>
    %53 = arith.truncf %52 : vector<32x256xf32> to vector<32x256xbf16>
    %cst_43 = arith.constant 0.000000e+00 : bf16
    %54 = vector.broadcast %cst_43 : bf16 to vector<32x256xbf16>
    %55 = arith.maximumf %53, %54 : vector<32x256xbf16>
    %56 = arith.addf %55, %49 : vector<32x256xbf16>
    %c0_44 = arith.constant 0 : index
    %c0_45 = arith.constant 0 : index
    %57 = vector.load %arg10[%c0_44, %c0_45] : memref<32x256xbf16, #tpu.memory_space<vmem>>, vector<32x256xbf16>
    tpu.vector_store %arg10[%c0_44, %c0_45], %56 {strides = array<i32>} : memref<32x256xbf16, #tpu.memory_space<vmem>>, vector<32x256xbf16>,
    %c2 = arith.constant 2 : index
    %c0_46 = arith.constant 0 : index
    %c0_47 = arith.constant 0 : index
    %58 = vector.load %arg4[%c2, %c0_46, %c0_47] : memref<15x256x256xbf16, #tpu.memory_space<vmem>>, vector<1x256x256xbf16>
    %59 = vector.shape_cast %58 : vector<1x256x256xbf16> to vector<256x256xbf16>
    %c2_48 = arith.constant 2 : index
    %c0_49 = arith.constant 0 : index
    %c0_50 = arith.constant 0 : index
    %60 = vector.load %arg5[%c2_48, %c0_49, %c0_50] : memref<15x1x256xf32, #tpu.memory_space<vmem>>, vector<1x1x256xf32>
    %61 = vector.shape_cast %60 : vector<1x1x256xf32> to vector<1x256xf32>
    %c0_51 = arith.constant 0 : index
    %c0_52 = arith.constant 0 : index
    %62 = vector.load %arg9[%c0_51, %c0_52] : memref<32x256xbf16, #tpu.memory_space<vmem>>, vector<32x256xbf16>
    %cst_53 = arith.constant dense<0.000000e+00> : vector<32x256xf32>
    %63 = tpu.matmul %62, %59, %cst_53 {dimension_numbers = #tpu.dot_dimension_numbers<[1], [0], [0], [1], [0, 0, 1, 1], [], []>} : vector<32x256xbf16>, vector<256x256xbf16>, vector<32x256xf32> -> vector<32x256xf32>
    %64 = vector.broadcast %61 : vector<1x256xf32> to vector<32x256xf32>
    %65 = arith.addf %63, %64 : vector<32x256xf32>
    %66 = arith.truncf %65 : vector<32x256xf32> to vector<32x256xbf16>
    %cst_54 = arith.constant 0.000000e+00 : bf16
    %67 = vector.broadcast %cst_54 : bf16 to vector<32x256xbf16>
    %68 = arith.maximumf %66, %67 : vector<32x256xbf16>
    %69 = arith.addf %68, %62 : vector<32x256xbf16>
    %c0_55 = arith.constant 0 : index
    %c0_56 = arith.constant 0 : index
    %70 = vector.load %arg9[%c0_55, %c0_56] : memref<32x256xbf16, #tpu.memory_space<vmem>>, vector<32x256xbf16>
    tpu.vector_store %arg9[%c0_55, %c0_56], %69 {strides = array<i32>} : memref<32x256xbf16, #tpu.memory_space<vmem>>, vector<32x256xbf16>,
    %c0_57 = arith.constant 0 : index
    %c0_58 = arith.constant 0 : index
    %71 = vector.load %arg10[%c0_57, %c0_58] : memref<32x256xbf16, #tpu.memory_space<vmem>>, vector<32x256xbf16>
    %cst_59 = arith.constant dense<0.000000e+00> : vector<32x256xf32>
    %72 = tpu.matmul %71, %59, %cst_59 {dimension_numbers = #tpu.dot_dimension_numbers<[1], [0], [0], [1], [0, 0, 1, 1], [], []>} : vector<32x256xbf16>, vector<256x256xbf16>, vector<32x256xf32> -> vector<32x256xf32>
    %73 = vector.broadcast %61 : vector<1x256xf32> to vector<32x256xf32>
    %74 = arith.addf %72, %73 : vector<32x256xf32>
    %75 = arith.truncf %74 : vector<32x256xf32> to vector<32x256xbf16>
    %cst_60 = arith.constant 0.000000e+00 : bf16
    %76 = vector.broadcast %cst_60 : bf16 to vector<32x256xbf16>
    %77 = arith.maximumf %75, %76 : vector<32x256xbf16>
    %78 = arith.addf %77, %71 : vector<32x256xbf16>
    %c0_61 = arith.constant 0 : index
    %c0_62 = arith.constant 0 : index
    %79 = vector.load %arg10[%c0_61, %c0_62] : memref<32x256xbf16, #tpu.memory_space<vmem>>, vector<32x256xbf16>
    tpu.vector_store %arg10[%c0_61, %c0_62], %78 {strides = array<i32>} : memref<32x256xbf16, #tpu.memory_space<vmem>>, vector<32x256xbf16>,
    %c3 = arith.constant 3 : index
    %c0_63 = arith.constant 0 : index
    %c0_64 = arith.constant 0 : index
    %80 = vector.load %arg4[%c3, %c0_63, %c0_64] : memref<15x256x256xbf16, #tpu.memory_space<vmem>>, vector<1x256x256xbf16>
    %81 = vector.shape_cast %80 : vector<1x256x256xbf16> to vector<256x256xbf16>
    %c3_65 = arith.constant 3 : index
    %c0_66 = arith.constant 0 : index
    %c0_67 = arith.constant 0 : index
    %82 = vector.load %arg5[%c3_65, %c0_66, %c0_67] : memref<15x1x256xf32, #tpu.memory_space<vmem>>, vector<1x1x256xf32>
    %83 = vector.shape_cast %82 : vector<1x1x256xf32> to vector<1x256xf32>
    %c0_68 = arith.constant 0 : index
    %c0_69 = arith.constant 0 : index
    %84 = vector.load %arg9[%c0_68, %c0_69] : memref<32x256xbf16, #tpu.memory_space<vmem>>, vector<32x256xbf16>
    %cst_70 = arith.constant dense<0.000000e+00> : vector<32x256xf32>
    %85 = tpu.matmul %84, %81, %cst_70 {dimension_numbers = #tpu.dot_dimension_numbers<[1], [0], [0], [1], [0, 0, 1, 1], [], []>} : vector<32x256xbf16>, vector<256x256xbf16>, vector<32x256xf32> -> vector<32x256xf32>
    %86 = vector.broadcast %83 : vector<1x256xf32> to vector<32x256xf32>
    %87 = arith.addf %85, %86 : vector<32x256xf32>
    %88 = arith.truncf %87 : vector<32x256xf32> to vector<32x256xbf16>
    %cst_71 = arith.constant 0.000000e+00 : bf16
    %89 = vector.broadcast %cst_71 : bf16 to vector<32x256xbf16>
    %90 = arith.maximumf %88, %89 : vector<32x256xbf16>
    %91 = arith.addf %90, %84 : vector<32x256xbf16>
    %c0_72 = arith.constant 0 : index
    %c0_73 = arith.constant 0 : index
    %92 = vector.load %arg9[%c0_72, %c0_73] : memref<32x256xbf16, #tpu.memory_space<vmem>>, vector<32x256xbf16>
    tpu.vector_store %arg9[%c0_72, %c0_73], %91 {strides = array<i32>} : memref<32x256xbf16, #tpu.memory_space<vmem>>, vector<32x256xbf16>,
    %c0_74 = arith.constant 0 : index
    %c0_75 = arith.constant 0 : index
    %93 = vector.load %arg10[%c0_74, %c0_75] : memref<32x256xbf16, #tpu.memory_space<vmem>>, vector<32x256xbf16>
    %cst_76 = arith.constant dense<0.000000e+00> : vector<32x256xf32>
    %94 = tpu.matmul %93, %81, %cst_76 {dimension_numbers = #tpu.dot_dimension_numbers<[1], [0], [0], [1], [0, 0, 1, 1], [], []>} : vector<32x256xbf16>, vector<256x256xbf16>, vector<32x256xf32> -> vector<32x256xf32>
    %95 = vector.broadcast %83 : vector<1x256xf32> to vector<32x256xf32>
    %96 = arith.addf %94, %95 : vector<32x256xf32>
    %97 = arith.truncf %96 : vector<32x256xf32> to vector<32x256xbf16>
    %cst_77 = arith.constant 0.000000e+00 : bf16
    %98 = vector.broadcast %cst_77 : bf16 to vector<32x256xbf16>
    %99 = arith.maximumf %97, %98 : vector<32x256xbf16>
    %100 = arith.addf %99, %93 : vector<32x256xbf16>
    %c0_78 = arith.constant 0 : index
    %c0_79 = arith.constant 0 : index
    %101 = vector.load %arg10[%c0_78, %c0_79] : memref<32x256xbf16, #tpu.memory_space<vmem>>, vector<32x256xbf16>
    tpu.vector_store %arg10[%c0_78, %c0_79], %100 {strides = array<i32>} : memref<32x256xbf16, #tpu.memory_space<vmem>>, vector<32x256xbf16>,
    %c4 = arith.constant 4 : index
    %c0_80 = arith.constant 0 : index
    %c0_81 = arith.constant 0 : index
    %102 = vector.load %arg4[%c4, %c0_80, %c0_81] : memref<15x256x256xbf16, #tpu.memory_space<vmem>>, vector<1x256x256xbf16>
    %103 = vector.shape_cast %102 : vector<1x256x256xbf16> to vector<256x256xbf16>
    %c4_82 = arith.constant 4 : index
    %c0_83 = arith.constant 0 : index
    %c0_84 = arith.constant 0 : index
    %104 = vector.load %arg5[%c4_82, %c0_83, %c0_84] : memref<15x1x256xf32, #tpu.memory_space<vmem>>, vector<1x1x256xf32>
    %105 = vector.shape_cast %104 : vector<1x1x256xf32> to vector<1x256xf32>
    %c0_85 = arith.constant 0 : index
    %c0_86 = arith.constant 0 : index
    %106 = vector.load %arg9[%c0_85, %c0_86] : memref<32x256xbf16, #tpu.memory_space<vmem>>, vector<32x256xbf16>
    %cst_87 = arith.constant dense<0.000000e+00> : vector<32x256xf32>
    %107 = tpu.matmul %106, %103, %cst_87 {dimension_numbers = #tpu.dot_dimension_numbers<[1], [0], [0], [1], [0, 0, 1, 1], [], []>} : vector<32x256xbf16>, vector<256x256xbf16>, vector<32x256xf32> -> vector<32x256xf32>
    %108 = vector.broadcast %105 : vector<1x256xf32> to vector<32x256xf32>
    %109 = arith.addf %107, %108 : vector<32x256xf32>
    %110 = arith.truncf %109 : vector<32x256xf32> to vector<32x256xbf16>
    %cst_88 = arith.constant 0.000000e+00 : bf16
    %111 = vector.broadcast %cst_88 : bf16 to vector<32x256xbf16>
    %112 = arith.maximumf %110, %111 : vector<32x256xbf16>
    %113 = arith.addf %112, %106 : vector<32x256xbf16>
    %c0_89 = arith.constant 0 : index
    %c0_90 = arith.constant 0 : index
    %114 = vector.load %arg9[%c0_89, %c0_90] : memref<32x256xbf16, #tpu.memory_space<vmem>>, vector<32x256xbf16>
    tpu.vector_store %arg9[%c0_89, %c0_90], %113 {strides = array<i32>} : memref<32x256xbf16, #tpu.memory_space<vmem>>, vector<32x256xbf16>,
    %c0_91 = arith.constant 0 : index
    %c0_92 = arith.constant 0 : index
    %115 = vector.load %arg10[%c0_91, %c0_92] : memref<32x256xbf16, #tpu.memory_space<vmem>>, vector<32x256xbf16>
    %cst_93 = arith.constant dense<0.000000e+00> : vector<32x256xf32>
    %116 = tpu.matmul %115, %103, %cst_93 {dimension_numbers = #tpu.dot_dimension_numbers<[1], [0], [0], [1], [0, 0, 1, 1], [], []>} : vector<32x256xbf16>, vector<256x256xbf16>, vector<32x256xf32> -> vector<32x256xf32>
    %117 = vector.broadcast %105 : vector<1x256xf32> to vector<32x256xf32>
    %118 = arith.addf %116, %117 : vector<32x256xf32>
    %119 = arith.truncf %118 : vector<32x256xf32> to vector<32x256xbf16>
    %cst_94 = arith.constant 0.000000e+00 : bf16
    %120 = vector.broadcast %cst_94 : bf16 to vector<32x256xbf16>
    %121 = arith.maximumf %119, %120 : vector<32x256xbf16>
    %122 = arith.addf %121, %115 : vector<32x256xbf16>
    %c0_95 = arith.constant 0 : index
    %c0_96 = arith.constant 0 : index
    %123 = vector.load %arg10[%c0_95, %c0_96] : memref<32x256xbf16, #tpu.memory_space<vmem>>, vector<32x256xbf16>
    tpu.vector_store %arg10[%c0_95, %c0_96], %122 {strides = array<i32>} : memref<32x256xbf16, #tpu.memory_space<vmem>>, vector<32x256xbf16>,
    %c5 = arith.constant 5 : index
    %c0_97 = arith.constant 0 : index
    %c0_98 = arith.constant 0 : index
    %124 = vector.load %arg4[%c5, %c0_97, %c0_98] : memref<15x256x256xbf16, #tpu.memory_space<vmem>>, vector<1x256x256xbf16>
    %125 = vector.shape_cast %124 : vector<1x256x256xbf16> to vector<256x256xbf16>
    %c5_99 = arith.constant 5 : index
    %c0_100 = arith.constant 0 : index
    %c0_101 = arith.constant 0 : index
    %126 = vector.load %arg5[%c5_99, %c0_100, %c0_101] : memref<15x1x256xf32, #tpu.memory_space<vmem>>, vector<1x1x256xf32>
    %127 = vector.shape_cast %126 : vector<1x1x256xf32> to vector<1x256xf32>
    %c0_102 = arith.constant 0 : index
    %c0_103 = arith.constant 0 : index
    %128 = vector.load %arg9[%c0_102, %c0_103] : memref<32x256xbf16, #tpu.memory_space<vmem>>, vector<32x256xbf16>
    %cst_104 = arith.constant dense<0.000000e+00> : vector<32x256xf32>
    %129 = tpu.matmul %128, %125, %cst_104 {dimension_numbers = #tpu.dot_dimension_numbers<[1], [0], [0], [1], [0, 0, 1, 1], [], []>} : vector<32x256xbf16>, vector<256x256xbf16>, vector<32x256xf32> -> vector<32x256xf32>
    %130 = vector.broadcast %127 : vector<1x256xf32> to vector<32x256xf32>
    %131 = arith.addf %129, %130 : vector<32x256xf32>
    %132 = arith.truncf %131 : vector<32x256xf32> to vector<32x256xbf16>
    %cst_105 = arith.constant 0.000000e+00 : bf16
    %133 = vector.broadcast %cst_105 : bf16 to vector<32x256xbf16>
    %134 = arith.maximumf %132, %133 : vector<32x256xbf16>
    %135 = arith.addf %134, %128 : vector<32x256xbf16>
    %c0_106 = arith.constant 0 : index
    %c0_107 = arith.constant 0 : index
    %136 = vector.load %arg9[%c0_106, %c0_107] : memref<32x256xbf16, #tpu.memory_space<vmem>>, vector<32x256xbf16>
    tpu.vector_store %arg9[%c0_106, %c0_107], %135 {strides = array<i32>} : memref<32x256xbf16, #tpu.memory_space<vmem>>, vector<32x256xbf16>,
    %c0_108 = arith.constant 0 : index
    %c0_109 = arith.constant 0 : index
    %137 = vector.load %arg10[%c0_108, %c0_109] : memref<32x256xbf16, #tpu.memory_space<vmem>>, vector<32x256xbf16>
    %cst_110 = arith.constant dense<0.000000e+00> : vector<32x256xf32>
    %138 = tpu.matmul %137, %125, %cst_110 {dimension_numbers = #tpu.dot_dimension_numbers<[1], [0], [0], [1], [0, 0, 1, 1], [], []>} : vector<32x256xbf16>, vector<256x256xbf16>, vector<32x256xf32> -> vector<32x256xf32>
    %139 = vector.broadcast %127 : vector<1x256xf32> to vector<32x256xf32>
    %140 = arith.addf %138, %139 : vector<32x256xf32>
    %141 = arith.truncf %140 : vector<32x256xf32> to vector<32x256xbf16>
    %cst_111 = arith.constant 0.000000e+00 : bf16
    %142 = vector.broadcast %cst_111 : bf16 to vector<32x256xbf16>
    %143 = arith.maximumf %141, %142 : vector<32x256xbf16>
    %144 = arith.addf %143, %137 : vector<32x256xbf16>
    %c0_112 = arith.constant 0 : index
    %c0_113 = arith.constant 0 : index
    %145 = vector.load %arg10[%c0_112, %c0_113] : memref<32x256xbf16, #tpu.memory_space<vmem>>, vector<32x256xbf16>
    tpu.vector_store %arg10[%c0_112, %c0_113], %144 {strides = array<i32>} : memref<32x256xbf16, #tpu.memory_space<vmem>>, vector<32x256xbf16>,
    %c6 = arith.constant 6 : index
    %c0_114 = arith.constant 0 : index
    %c0_115 = arith.constant 0 : index
    %146 = vector.load %arg4[%c6, %c0_114, %c0_115] : memref<15x256x256xbf16, #tpu.memory_space<vmem>>, vector<1x256x256xbf16>
    %147 = vector.shape_cast %146 : vector<1x256x256xbf16> to vector<256x256xbf16>
    %c6_116 = arith.constant 6 : index
    %c0_117 = arith.constant 0 : index
    %c0_118 = arith.constant 0 : index
    %148 = vector.load %arg5[%c6_116, %c0_117, %c0_118] : memref<15x1x256xf32, #tpu.memory_space<vmem>>, vector<1x1x256xf32>
    %149 = vector.shape_cast %148 : vector<1x1x256xf32> to vector<1x256xf32>
    %c0_119 = arith.constant 0 : index
    %c0_120 = arith.constant 0 : index
    %150 = vector.load %arg9[%c0_119, %c0_120] : memref<32x256xbf16, #tpu.memory_space<vmem>>, vector<32x256xbf16>
    %cst_121 = arith.constant dense<0.000000e+00> : vector<32x256xf32>
    %151 = tpu.matmul %150, %147, %cst_121 {dimension_numbers = #tpu.dot_dimension_numbers<[1], [0], [0], [1], [0, 0, 1, 1], [], []>} : vector<32x256xbf16>, vector<256x256xbf16>, vector<32x256xf32> -> vector<32x256xf32>
    %152 = vector.broadcast %149 : vector<1x256xf32> to vector<32x256xf32>
    %153 = arith.addf %151, %152 : vector<32x256xf32>
    %154 = arith.truncf %153 : vector<32x256xf32> to vector<32x256xbf16>
    %cst_122 = arith.constant 0.000000e+00 : bf16
    %155 = vector.broadcast %cst_122 : bf16 to vector<32x256xbf16>
    %156 = arith.maximumf %154, %155 : vector<32x256xbf16>
    %157 = arith.addf %156, %150 : vector<32x256xbf16>
    %c0_123 = arith.constant 0 : index
    %c0_124 = arith.constant 0 : index
    %158 = vector.load %arg9[%c0_123, %c0_124] : memref<32x256xbf16, #tpu.memory_space<vmem>>, vector<32x256xbf16>
    tpu.vector_store %arg9[%c0_123, %c0_124], %157 {strides = array<i32>} : memref<32x256xbf16, #tpu.memory_space<vmem>>, vector<32x256xbf16>,
    %c0_125 = arith.constant 0 : index
    %c0_126 = arith.constant 0 : index
    %159 = vector.load %arg10[%c0_125, %c0_126] : memref<32x256xbf16, #tpu.memory_space<vmem>>, vector<32x256xbf16>
    %cst_127 = arith.constant dense<0.000000e+00> : vector<32x256xf32>
    %160 = tpu.matmul %159, %147, %cst_127 {dimension_numbers = #tpu.dot_dimension_numbers<[1], [0], [0], [1], [0, 0, 1, 1], [], []>} : vector<32x256xbf16>, vector<256x256xbf16>, vector<32x256xf32> -> vector<32x256xf32>
    %161 = vector.broadcast %149 : vector<1x256xf32> to vector<32x256xf32>
    %162 = arith.addf %160, %161 : vector<32x256xf32>
    %163 = arith.truncf %162 : vector<32x256xf32> to vector<32x256xbf16>
    %cst_128 = arith.constant 0.000000e+00 : bf16
    %164 = vector.broadcast %cst_128 : bf16 to vector<32x256xbf16>
    %165 = arith.maximumf %163, %164 : vector<32x256xbf16>
    %166 = arith.addf %165, %159 : vector<32x256xbf16>
    %c0_129 = arith.constant 0 : index
    %c0_130 = arith.constant 0 : index
    %167 = vector.load %arg10[%c0_129, %c0_130] : memref<32x256xbf16, #tpu.memory_space<vmem>>, vector<32x256xbf16>
    tpu.vector_store %arg10[%c0_129, %c0_130], %166 {strides = array<i32>} : memref<32x256xbf16, #tpu.memory_space<vmem>>, vector<32x256xbf16>,
    %c7 = arith.constant 7 : index
    %c0_131 = arith.constant 0 : index
    %c0_132 = arith.constant 0 : index
    %168 = vector.load %arg4[%c7, %c0_131, %c0_132] : memref<15x256x256xbf16, #tpu.memory_space<vmem>>, vector<1x256x256xbf16>
    %169 = vector.shape_cast %168 : vector<1x256x256xbf16> to vector<256x256xbf16>
    %c7_133 = arith.constant 7 : index
    %c0_134 = arith.constant 0 : index
    %c0_135 = arith.constant 0 : index
    %170 = vector.load %arg5[%c7_133, %c0_134, %c0_135] : memref<15x1x256xf32, #tpu.memory_space<vmem>>, vector<1x1x256xf32>
    %171 = vector.shape_cast %170 : vector<1x1x256xf32> to vector<1x256xf32>
    %c0_136 = arith.constant 0 : index
    %c0_137 = arith.constant 0 : index
    %172 = vector.load %arg9[%c0_136, %c0_137] : memref<32x256xbf16, #tpu.memory_space<vmem>>, vector<32x256xbf16>
    %cst_138 = arith.constant dense<0.000000e+00> : vector<32x256xf32>
    %173 = tpu.matmul %172, %169, %cst_138 {dimension_numbers = #tpu.dot_dimension_numbers<[1], [0], [0], [1], [0, 0, 1, 1], [], []>} : vector<32x256xbf16>, vector<256x256xbf16>, vector<32x256xf32> -> vector<32x256xf32>
    %174 = vector.broadcast %171 : vector<1x256xf32> to vector<32x256xf32>
    %175 = arith.addf %173, %174 : vector<32x256xf32>
    %176 = arith.truncf %175 : vector<32x256xf32> to vector<32x256xbf16>
    %cst_139 = arith.constant 0.000000e+00 : bf16
    %177 = vector.broadcast %cst_139 : bf16 to vector<32x256xbf16>
    %178 = arith.maximumf %176, %177 : vector<32x256xbf16>
    %179 = arith.addf %178, %172 : vector<32x256xbf16>
    %c0_140 = arith.constant 0 : index
    %c0_141 = arith.constant 0 : index
    %180 = vector.load %arg9[%c0_140, %c0_141] : memref<32x256xbf16, #tpu.memory_space<vmem>>, vector<32x256xbf16>
    tpu.vector_store %arg9[%c0_140, %c0_141], %179 {strides = array<i32>} : memref<32x256xbf16, #tpu.memory_space<vmem>>, vector<32x256xbf16>,
    %c0_142 = arith.constant 0 : index
    %c0_143 = arith.constant 0 : index
    %181 = vector.load %arg10[%c0_142, %c0_143] : memref<32x256xbf16, #tpu.memory_space<vmem>>, vector<32x256xbf16>
    %cst_144 = arith.constant dense<0.000000e+00> : vector<32x256xf32>
    %182 = tpu.matmul %181, %169, %cst_144 {dimension_numbers = #tpu.dot_dimension_numbers<[1], [0], [0], [1], [0, 0, 1, 1], [], []>} : vector<32x256xbf16>, vector<256x256xbf16>, vector<32x256xf32> -> vector<32x256xf32>
    %183 = vector.broadcast %171 : vector<1x256xf32> to vector<32x256xf32>
    %184 = arith.addf %182, %183 : vector<32x256xf32>
    %185 = arith.truncf %184 : vector<32x256xf32> to vector<32x256xbf16>
    %cst_145 = arith.constant 0.000000e+00 : bf16
    %186 = vector.broadcast %cst_145 : bf16 to vector<32x256xbf16>
    %187 = arith.maximumf %185, %186 : vector<32x256xbf16>
    %188 = arith.addf %187, %181 : vector<32x256xbf16>
    %c0_146 = arith.constant 0 : index
    %c0_147 = arith.constant 0 : index
    %189 = vector.load %arg10[%c0_146, %c0_147] : memref<32x256xbf16, #tpu.memory_space<vmem>>, vector<32x256xbf16>
    tpu.vector_store %arg10[%c0_146, %c0_147], %188 {strides = array<i32>} : memref<32x256xbf16, #tpu.memory_space<vmem>>, vector<32x256xbf16>,
    %c8 = arith.constant 8 : index
    %c0_148 = arith.constant 0 : index
    %c0_149 = arith.constant 0 : index
    %190 = vector.load %arg4[%c8, %c0_148, %c0_149] : memref<15x256x256xbf16, #tpu.memory_space<vmem>>, vector<1x256x256xbf16>
    %191 = vector.shape_cast %190 : vector<1x256x256xbf16> to vector<256x256xbf16>
    %c8_150 = arith.constant 8 : index
    %c0_151 = arith.constant 0 : index
    %c0_152 = arith.constant 0 : index
    %192 = vector.load %arg5[%c8_150, %c0_151, %c0_152] : memref<15x1x256xf32, #tpu.memory_space<vmem>>, vector<1x1x256xf32>
    %193 = vector.shape_cast %192 : vector<1x1x256xf32> to vector<1x256xf32>
    %c0_153 = arith.constant 0 : index
    %c0_154 = arith.constant 0 : index
    %194 = vector.load %arg9[%c0_153, %c0_154] : memref<32x256xbf16, #tpu.memory_space<vmem>>, vector<32x256xbf16>
    %cst_155 = arith.constant dense<0.000000e+00> : vector<32x256xf32>
    %195 = tpu.matmul %194, %191, %cst_155 {dimension_numbers = #tpu.dot_dimension_numbers<[1], [0], [0], [1], [0, 0, 1, 1], [], []>} : vector<32x256xbf16>, vector<256x256xbf16>, vector<32x256xf32> -> vector<32x256xf32>
    %196 = vector.broadcast %193 : vector<1x256xf32> to vector<32x256xf32>
    %197 = arith.addf %195, %196 : vector<32x256xf32>
    %198 = arith.truncf %197 : vector<32x256xf32> to vector<32x256xbf16>
    %cst_156 = arith.constant 0.000000e+00 : bf16
    %199 = vector.broadcast %cst_156 : bf16 to vector<32x256xbf16>
    %200 = arith.maximumf %198, %199 : vector<32x256xbf16>
    %201 = arith.addf %200, %194 : vector<32x256xbf16>
    %c0_157 = arith.constant 0 : index
    %c0_158 = arith.constant 0 : index
    %202 = vector.load %arg9[%c0_157, %c0_158] : memref<32x256xbf16, #tpu.memory_space<vmem>>, vector<32x256xbf16>
    tpu.vector_store %arg9[%c0_157, %c0_158], %201 {strides = array<i32>} : memref<32x256xbf16, #tpu.memory_space<vmem>>, vector<32x256xbf16>,
    %c0_159 = arith.constant 0 : index
    %c0_160 = arith.constant 0 : index
    %203 = vector.load %arg10[%c0_159, %c0_160] : memref<32x256xbf16, #tpu.memory_space<vmem>>, vector<32x256xbf16>
    %cst_161 = arith.constant dense<0.000000e+00> : vector<32x256xf32>
    %204 = tpu.matmul %203, %191, %cst_161 {dimension_numbers = #tpu.dot_dimension_numbers<[1], [0], [0], [1], [0, 0, 1, 1], [], []>} : vector<32x256xbf16>, vector<256x256xbf16>, vector<32x256xf32> -> vector<32x256xf32>
    %205 = vector.broadcast %193 : vector<1x256xf32> to vector<32x256xf32>
    %206 = arith.addf %204, %205 : vector<32x256xf32>
    %207 = arith.truncf %206 : vector<32x256xf32> to vector<32x256xbf16>
    %cst_162 = arith.constant 0.000000e+00 : bf16
    %208 = vector.broadcast %cst_162 : bf16 to vector<32x256xbf16>
    %209 = arith.maximumf %207, %208 : vector<32x256xbf16>
    %210 = arith.addf %209, %203 : vector<32x256xbf16>
    %c0_163 = arith.constant 0 : index
    %c0_164 = arith.constant 0 : index
    %211 = vector.load %arg10[%c0_163, %c0_164] : memref<32x256xbf16, #tpu.memory_space<vmem>>, vector<32x256xbf16>
    tpu.vector_store %arg10[%c0_163, %c0_164], %210 {strides = array<i32>} : memref<32x256xbf16, #tpu.memory_space<vmem>>, vector<32x256xbf16>,
    %c9 = arith.constant 9 : index
    %c0_165 = arith.constant 0 : index
    %c0_166 = arith.constant 0 : index
    %212 = vector.load %arg4[%c9, %c0_165, %c0_166] : memref<15x256x256xbf16, #tpu.memory_space<vmem>>, vector<1x256x256xbf16>
    %213 = vector.shape_cast %212 : vector<1x256x256xbf16> to vector<256x256xbf16>
    %c9_167 = arith.constant 9 : index
    %c0_168 = arith.constant 0 : index
    %c0_169 = arith.constant 0 : index
    %214 = vector.load %arg5[%c9_167, %c0_168, %c0_169] : memref<15x1x256xf32, #tpu.memory_space<vmem>>, vector<1x1x256xf32>
    %215 = vector.shape_cast %214 : vector<1x1x256xf32> to vector<1x256xf32>
    %c0_170 = arith.constant 0 : index
    %c0_171 = arith.constant 0 : index
    %216 = vector.load %arg9[%c0_170, %c0_171] : memref<32x256xbf16, #tpu.memory_space<vmem>>, vector<32x256xbf16>
    %cst_172 = arith.constant dense<0.000000e+00> : vector<32x256xf32>
    %217 = tpu.matmul %216, %213, %cst_172 {dimension_numbers = #tpu.dot_dimension_numbers<[1], [0], [0], [1], [0, 0, 1, 1], [], []>} : vector<32x256xbf16>, vector<256x256xbf16>, vector<32x256xf32> -> vector<32x256xf32>
    %218 = vector.broadcast %215 : vector<1x256xf32> to vector<32x256xf32>
    %219 = arith.addf %217, %218 : vector<32x256xf32>
    %220 = arith.truncf %219 : vector<32x256xf32> to vector<32x256xbf16>
    %cst_173 = arith.constant 0.000000e+00 : bf16
    %221 = vector.broadcast %cst_173 : bf16 to vector<32x256xbf16>
    %222 = arith.maximumf %220, %221 : vector<32x256xbf16>
    %223 = arith.addf %222, %216 : vector<32x256xbf16>
    %c0_174 = arith.constant 0 : index
    %c0_175 = arith.constant 0 : index
    %224 = vector.load %arg9[%c0_174, %c0_175] : memref<32x256xbf16, #tpu.memory_space<vmem>>, vector<32x256xbf16>
    tpu.vector_store %arg9[%c0_174, %c0_175], %223 {strides = array<i32>} : memref<32x256xbf16, #tpu.memory_space<vmem>>, vector<32x256xbf16>,
    %c0_176 = arith.constant 0 : index
    %c0_177 = arith.constant 0 : index
    %225 = vector.load %arg10[%c0_176, %c0_177] : memref<32x256xbf16, #tpu.memory_space<vmem>>, vector<32x256xbf16>
    %cst_178 = arith.constant dense<0.000000e+00> : vector<32x256xf32>
    %226 = tpu.matmul %225, %213, %cst_178 {dimension_numbers = #tpu.dot_dimension_numbers<[1], [0], [0], [1], [0, 0, 1, 1], [], []>} : vector<32x256xbf16>, vector<256x256xbf16>, vector<32x256xf32> -> vector<32x256xf32>
    %227 = vector.broadcast %215 : vector<1x256xf32> to vector<32x256xf32>
    %228 = arith.addf %226, %227 : vector<32x256xf32>
    %229 = arith.truncf %228 : vector<32x256xf32> to vector<32x256xbf16>
    %cst_179 = arith.constant 0.000000e+00 : bf16
    %230 = vector.broadcast %cst_179 : bf16 to vector<32x256xbf16>
    %231 = arith.maximumf %229, %230 : vector<32x256xbf16>
    %232 = arith.addf %231, %225 : vector<32x256xbf16>
    %c0_180 = arith.constant 0 : index
    %c0_181 = arith.constant 0 : index
    %233 = vector.load %arg10[%c0_180, %c0_181] : memref<32x256xbf16, #tpu.memory_space<vmem>>, vector<32x256xbf16>
    tpu.vector_store %arg10[%c0_180, %c0_181], %232 {strides = array<i32>} : memref<32x256xbf16, #tpu.memory_space<vmem>>, vector<32x256xbf16>,
    %c10 = arith.constant 10 : index
    %c0_182 = arith.constant 0 : index
    %c0_183 = arith.constant 0 : index
    %234 = vector.load %arg4[%c10, %c0_182, %c0_183] : memref<15x256x256xbf16, #tpu.memory_space<vmem>>, vector<1x256x256xbf16>
    %235 = vector.shape_cast %234 : vector<1x256x256xbf16> to vector<256x256xbf16>
    %c10_184 = arith.constant 10 : index
    %c0_185 = arith.constant 0 : index
    %c0_186 = arith.constant 0 : index
    %236 = vector.load %arg5[%c10_184, %c0_185, %c0_186] : memref<15x1x256xf32, #tpu.memory_space<vmem>>, vector<1x1x256xf32>
    %237 = vector.shape_cast %236 : vector<1x1x256xf32> to vector<1x256xf32>
    %c0_187 = arith.constant 0 : index
    %c0_188 = arith.constant 0 : index
    %238 = vector.load %arg9[%c0_187, %c0_188] : memref<32x256xbf16, #tpu.memory_space<vmem>>, vector<32x256xbf16>
    %cst_189 = arith.constant dense<0.000000e+00> : vector<32x256xf32>
    %239 = tpu.matmul %238, %235, %cst_189 {dimension_numbers = #tpu.dot_dimension_numbers<[1], [0], [0], [1], [0, 0, 1, 1], [], []>} : vector<32x256xbf16>, vector<256x256xbf16>, vector<32x256xf32> -> vector<32x256xf32>
    %240 = vector.broadcast %237 : vector<1x256xf32> to vector<32x256xf32>
    %241 = arith.addf %239, %240 : vector<32x256xf32>
    %242 = arith.truncf %241 : vector<32x256xf32> to vector<32x256xbf16>
    %cst_190 = arith.constant 0.000000e+00 : bf16
    %243 = vector.broadcast %cst_190 : bf16 to vector<32x256xbf16>
    %244 = arith.maximumf %242, %243 : vector<32x256xbf16>
    %245 = arith.addf %244, %238 : vector<32x256xbf16>
    %c0_191 = arith.constant 0 : index
    %c0_192 = arith.constant 0 : index
    %246 = vector.load %arg9[%c0_191, %c0_192] : memref<32x256xbf16, #tpu.memory_space<vmem>>, vector<32x256xbf16>
    tpu.vector_store %arg9[%c0_191, %c0_192], %245 {strides = array<i32>} : memref<32x256xbf16, #tpu.memory_space<vmem>>, vector<32x256xbf16>,
    %c0_193 = arith.constant 0 : index
    %c0_194 = arith.constant 0 : index
    %247 = vector.load %arg10[%c0_193, %c0_194] : memref<32x256xbf16, #tpu.memory_space<vmem>>, vector<32x256xbf16>
    %cst_195 = arith.constant dense<0.000000e+00> : vector<32x256xf32>
    %248 = tpu.matmul %247, %235, %cst_195 {dimension_numbers = #tpu.dot_dimension_numbers<[1], [0], [0], [1], [0, 0, 1, 1], [], []>} : vector<32x256xbf16>, vector<256x256xbf16>, vector<32x256xf32> -> vector<32x256xf32>
    %249 = vector.broadcast %237 : vector<1x256xf32> to vector<32x256xf32>
    %250 = arith.addf %248, %249 : vector<32x256xf32>
    %251 = arith.truncf %250 : vector<32x256xf32> to vector<32x256xbf16>
    %cst_196 = arith.constant 0.000000e+00 : bf16
    %252 = vector.broadcast %cst_196 : bf16 to vector<32x256xbf16>
    %253 = arith.maximumf %251, %252 : vector<32x256xbf16>
    %254 = arith.addf %253, %247 : vector<32x256xbf16>
    %c0_197 = arith.constant 0 : index
    %c0_198 = arith.constant 0 : index
    %255 = vector.load %arg10[%c0_197, %c0_198] : memref<32x256xbf16, #tpu.memory_space<vmem>>, vector<32x256xbf16>
    tpu.vector_store %arg10[%c0_197, %c0_198], %254 {strides = array<i32>} : memref<32x256xbf16, #tpu.memory_space<vmem>>, vector<32x256xbf16>,
    %c11 = arith.constant 11 : index
    %c0_199 = arith.constant 0 : index
    %c0_200 = arith.constant 0 : index
    %256 = vector.load %arg4[%c11, %c0_199, %c0_200] : memref<15x256x256xbf16, #tpu.memory_space<vmem>>, vector<1x256x256xbf16>
    %257 = vector.shape_cast %256 : vector<1x256x256xbf16> to vector<256x256xbf16>
    %c11_201 = arith.constant 11 : index
    %c0_202 = arith.constant 0 : index
    %c0_203 = arith.constant 0 : index
    %258 = vector.load %arg5[%c11_201, %c0_202, %c0_203] : memref<15x1x256xf32, #tpu.memory_space<vmem>>, vector<1x1x256xf32>
    %259 = vector.shape_cast %258 : vector<1x1x256xf32> to vector<1x256xf32>
    %c0_204 = arith.constant 0 : index
    %c0_205 = arith.constant 0 : index
    %260 = vector.load %arg9[%c0_204, %c0_205] : memref<32x256xbf16, #tpu.memory_space<vmem>>, vector<32x256xbf16>
    %cst_206 = arith.constant dense<0.000000e+00> : vector<32x256xf32>
    %261 = tpu.matmul %260, %257, %cst_206 {dimension_numbers = #tpu.dot_dimension_numbers<[1], [0], [0], [1], [0, 0, 1, 1], [], []>} : vector<32x256xbf16>, vector<256x256xbf16>, vector<32x256xf32> -> vector<32x256xf32>
    %262 = vector.broadcast %259 : vector<1x256xf32> to vector<32x256xf32>
    %263 = arith.addf %261, %262 : vector<32x256xf32>
    %264 = arith.truncf %263 : vector<32x256xf32> to vector<32x256xbf16>
    %cst_207 = arith.constant 0.000000e+00 : bf16
    %265 = vector.broadcast %cst_207 : bf16 to vector<32x256xbf16>
    %266 = arith.maximumf %264, %265 : vector<32x256xbf16>
    %267 = arith.addf %266, %260 : vector<32x256xbf16>
    %c0_208 = arith.constant 0 : index
    %c0_209 = arith.constant 0 : index
    %268 = vector.load %arg9[%c0_208, %c0_209] : memref<32x256xbf16, #tpu.memory_space<vmem>>, vector<32x256xbf16>
    tpu.vector_store %arg9[%c0_208, %c0_209], %267 {strides = array<i32>} : memref<32x256xbf16, #tpu.memory_space<vmem>>, vector<32x256xbf16>,
    %c0_210 = arith.constant 0 : index
    %c0_211 = arith.constant 0 : index
    %269 = vector.load %arg10[%c0_210, %c0_211] : memref<32x256xbf16, #tpu.memory_space<vmem>>, vector<32x256xbf16>
    %cst_212 = arith.constant dense<0.000000e+00> : vector<32x256xf32>
    %270 = tpu.matmul %269, %257, %cst_212 {dimension_numbers = #tpu.dot_dimension_numbers<[1], [0], [0], [1], [0, 0, 1, 1], [], []>} : vector<32x256xbf16>, vector<256x256xbf16>, vector<32x256xf32> -> vector<32x256xf32>
    %271 = vector.broadcast %259 : vector<1x256xf32> to vector<32x256xf32>
    %272 = arith.addf %270, %271 : vector<32x256xf32>
    %273 = arith.truncf %272 : vector<32x256xf32> to vector<32x256xbf16>
    %cst_213 = arith.constant 0.000000e+00 : bf16
    %274 = vector.broadcast %cst_213 : bf16 to vector<32x256xbf16>
    %275 = arith.maximumf %273, %274 : vector<32x256xbf16>
    %276 = arith.addf %275, %269 : vector<32x256xbf16>
    %c0_214 = arith.constant 0 : index
    %c0_215 = arith.constant 0 : index
    %277 = vector.load %arg10[%c0_214, %c0_215] : memref<32x256xbf16, #tpu.memory_space<vmem>>, vector<32x256xbf16>
    tpu.vector_store %arg10[%c0_214, %c0_215], %276 {strides = array<i32>} : memref<32x256xbf16, #tpu.memory_space<vmem>>, vector<32x256xbf16>,
    %c12 = arith.constant 12 : index
    %c0_216 = arith.constant 0 : index
    %c0_217 = arith.constant 0 : index
    %278 = vector.load %arg4[%c12, %c0_216, %c0_217] : memref<15x256x256xbf16, #tpu.memory_space<vmem>>, vector<1x256x256xbf16>
    %279 = vector.shape_cast %278 : vector<1x256x256xbf16> to vector<256x256xbf16>
    %c12_218 = arith.constant 12 : index
    %c0_219 = arith.constant 0 : index
    %c0_220 = arith.constant 0 : index
    %280 = vector.load %arg5[%c12_218, %c0_219, %c0_220] : memref<15x1x256xf32, #tpu.memory_space<vmem>>, vector<1x1x256xf32>
    %281 = vector.shape_cast %280 : vector<1x1x256xf32> to vector<1x256xf32>
    %c0_221 = arith.constant 0 : index
    %c0_222 = arith.constant 0 : index
    %282 = vector.load %arg9[%c0_221, %c0_222] : memref<32x256xbf16, #tpu.memory_space<vmem>>, vector<32x256xbf16>
    %cst_223 = arith.constant dense<0.000000e+00> : vector<32x256xf32>
    %283 = tpu.matmul %282, %279, %cst_223 {dimension_numbers = #tpu.dot_dimension_numbers<[1], [0], [0], [1], [0, 0, 1, 1], [], []>} : vector<32x256xbf16>, vector<256x256xbf16>, vector<32x256xf32> -> vector<32x256xf32>
    %284 = vector.broadcast %281 : vector<1x256xf32> to vector<32x256xf32>
    %285 = arith.addf %283, %284 : vector<32x256xf32>
    %286 = arith.truncf %285 : vector<32x256xf32> to vector<32x256xbf16>
    %cst_224 = arith.constant 0.000000e+00 : bf16
    %287 = vector.broadcast %cst_224 : bf16 to vector<32x256xbf16>
    %288 = arith.maximumf %286, %287 : vector<32x256xbf16>
    %289 = arith.addf %288, %282 : vector<32x256xbf16>
    %c0_225 = arith.constant 0 : index
    %c0_226 = arith.constant 0 : index
    %290 = vector.load %arg9[%c0_225, %c0_226] : memref<32x256xbf16, #tpu.memory_space<vmem>>, vector<32x256xbf16>
    tpu.vector_store %arg9[%c0_225, %c0_226], %289 {strides = array<i32>} : memref<32x256xbf16, #tpu.memory_space<vmem>>, vector<32x256xbf16>,
    %c0_227 = arith.constant 0 : index
    %c0_228 = arith.constant 0 : index
    %291 = vector.load %arg10[%c0_227, %c0_228] : memref<32x256xbf16, #tpu.memory_space<vmem>>, vector<32x256xbf16>
    %cst_229 = arith.constant dense<0.000000e+00> : vector<32x256xf32>
    %292 = tpu.matmul %291, %279, %cst_229 {dimension_numbers = #tpu.dot_dimension_numbers<[1], [0], [0], [1], [0, 0, 1, 1], [], []>} : vector<32x256xbf16>, vector<256x256xbf16>, vector<32x256xf32> -> vector<32x256xf32>
    %293 = vector.broadcast %281 : vector<1x256xf32> to vector<32x256xf32>
    %294 = arith.addf %292, %293 : vector<32x256xf32>
    %295 = arith.truncf %294 : vector<32x256xf32> to vector<32x256xbf16>
    %cst_230 = arith.constant 0.000000e+00 : bf16
    %296 = vector.broadcast %cst_230 : bf16 to vector<32x256xbf16>
    %297 = arith.maximumf %295, %296 : vector<32x256xbf16>
    %298 = arith.addf %297, %291 : vector<32x256xbf16>
    %c0_231 = arith.constant 0 : index
    %c0_232 = arith.constant 0 : index
    %299 = vector.load %arg10[%c0_231, %c0_232] : memref<32x256xbf16, #tpu.memory_space<vmem>>, vector<32x256xbf16>
    tpu.vector_store %arg10[%c0_231, %c0_232], %298 {strides = array<i32>} : memref<32x256xbf16, #tpu.memory_space<vmem>>, vector<32x256xbf16>,
    %c13 = arith.constant 13 : index
    %c0_233 = arith.constant 0 : index
    %c0_234 = arith.constant 0 : index
    %300 = vector.load %arg4[%c13, %c0_233, %c0_234] : memref<15x256x256xbf16, #tpu.memory_space<vmem>>, vector<1x256x256xbf16>
    %301 = vector.shape_cast %300 : vector<1x256x256xbf16> to vector<256x256xbf16>
    %c13_235 = arith.constant 13 : index
    %c0_236 = arith.constant 0 : index
    %c0_237 = arith.constant 0 : index
    %302 = vector.load %arg5[%c13_235, %c0_236, %c0_237] : memref<15x1x256xf32, #tpu.memory_space<vmem>>, vector<1x1x256xf32>
    %303 = vector.shape_cast %302 : vector<1x1x256xf32> to vector<1x256xf32>
    %c0_238 = arith.constant 0 : index
    %c0_239 = arith.constant 0 : index
    %304 = vector.load %arg9[%c0_238, %c0_239] : memref<32x256xbf16, #tpu.memory_space<vmem>>, vector<32x256xbf16>
    %cst_240 = arith.constant dense<0.000000e+00> : vector<32x256xf32>
    %305 = tpu.matmul %304, %301, %cst_240 {dimension_numbers = #tpu.dot_dimension_numbers<[1], [0], [0], [1], [0, 0, 1, 1], [], []>} : vector<32x256xbf16>, vector<256x256xbf16>, vector<32x256xf32> -> vector<32x256xf32>
    %306 = vector.broadcast %303 : vector<1x256xf32> to vector<32x256xf32>
    %307 = arith.addf %305, %306 : vector<32x256xf32>
    %308 = arith.truncf %307 : vector<32x256xf32> to vector<32x256xbf16>
    %cst_241 = arith.constant 0.000000e+00 : bf16
    %309 = vector.broadcast %cst_241 : bf16 to vector<32x256xbf16>
    %310 = arith.maximumf %308, %309 : vector<32x256xbf16>
    %311 = arith.addf %310, %304 : vector<32x256xbf16>
    %c0_242 = arith.constant 0 : index
    %c0_243 = arith.constant 0 : index
    %312 = vector.load %arg9[%c0_242, %c0_243] : memref<32x256xbf16, #tpu.memory_space<vmem>>, vector<32x256xbf16>
    tpu.vector_store %arg9[%c0_242, %c0_243], %311 {strides = array<i32>} : memref<32x256xbf16, #tpu.memory_space<vmem>>, vector<32x256xbf16>,
    %c0_244 = arith.constant 0 : index
    %c0_245 = arith.constant 0 : index
    %313 = vector.load %arg10[%c0_244, %c0_245] : memref<32x256xbf16, #tpu.memory_space<vmem>>, vector<32x256xbf16>
    %cst_246 = arith.constant dense<0.000000e+00> : vector<32x256xf32>
    %314 = tpu.matmul %313, %301, %cst_246 {dimension_numbers = #tpu.dot_dimension_numbers<[1], [0], [0], [1], [0, 0, 1, 1], [], []>} : vector<32x256xbf16>, vector<256x256xbf16>, vector<32x256xf32> -> vector<32x256xf32>
    %315 = vector.broadcast %303 : vector<1x256xf32> to vector<32x256xf32>
    %316 = arith.addf %314, %315 : vector<32x256xf32>
    %317 = arith.truncf %316 : vector<32x256xf32> to vector<32x256xbf16>
    %cst_247 = arith.constant 0.000000e+00 : bf16
    %318 = vector.broadcast %cst_247 : bf16 to vector<32x256xbf16>
    %319 = arith.maximumf %317, %318 : vector<32x256xbf16>
    %320 = arith.addf %319, %313 : vector<32x256xbf16>
    %c0_248 = arith.constant 0 : index
    %c0_249 = arith.constant 0 : index
    %321 = vector.load %arg10[%c0_248, %c0_249] : memref<32x256xbf16, #tpu.memory_space<vmem>>, vector<32x256xbf16>
    tpu.vector_store %arg10[%c0_248, %c0_249], %320 {strides = array<i32>} : memref<32x256xbf16, #tpu.memory_space<vmem>>, vector<32x256xbf16>,
    %c14 = arith.constant 14 : index
    %c0_250 = arith.constant 0 : index
    %c0_251 = arith.constant 0 : index
    %322 = vector.load %arg4[%c14, %c0_250, %c0_251] : memref<15x256x256xbf16, #tpu.memory_space<vmem>>, vector<1x256x256xbf16>
    %323 = vector.shape_cast %322 : vector<1x256x256xbf16> to vector<256x256xbf16>
    %c14_252 = arith.constant 14 : index
    %c0_253 = arith.constant 0 : index
    %c0_254 = arith.constant 0 : index
    %324 = vector.load %arg5[%c14_252, %c0_253, %c0_254] : memref<15x1x256xf32, #tpu.memory_space<vmem>>, vector<1x1x256xf32>
    %325 = vector.shape_cast %324 : vector<1x1x256xf32> to vector<1x256xf32>
    %c0_255 = arith.constant 0 : index
    %c0_256 = arith.constant 0 : index
    %326 = vector.load %arg9[%c0_255, %c0_256] : memref<32x256xbf16, #tpu.memory_space<vmem>>, vector<32x256xbf16>
    %cst_257 = arith.constant dense<0.000000e+00> : vector<32x256xf32>
    %327 = tpu.matmul %326, %323, %cst_257 {dimension_numbers = #tpu.dot_dimension_numbers<[1], [0], [0], [1], [0, 0, 1, 1], [], []>} : vector<32x256xbf16>, vector<256x256xbf16>, vector<32x256xf32> -> vector<32x256xf32>
    %328 = vector.broadcast %325 : vector<1x256xf32> to vector<32x256xf32>
    %329 = arith.addf %327, %328 : vector<32x256xf32>
    %330 = arith.truncf %329 : vector<32x256xf32> to vector<32x256xbf16>
    %cst_258 = arith.constant 0.000000e+00 : bf16
    %331 = vector.broadcast %cst_258 : bf16 to vector<32x256xbf16>
    %332 = arith.maximumf %330, %331 : vector<32x256xbf16>
    %333 = arith.addf %332, %326 : vector<32x256xbf16>
    %c0_259 = arith.constant 0 : index
    %c0_260 = arith.constant 0 : index
    %334 = vector.load %arg9[%c0_259, %c0_260] : memref<32x256xbf16, #tpu.memory_space<vmem>>, vector<32x256xbf16>
    tpu.vector_store %arg9[%c0_259, %c0_260], %333 {strides = array<i32>} : memref<32x256xbf16, #tpu.memory_space<vmem>>, vector<32x256xbf16>,
    %c0_261 = arith.constant 0 : index
    %c0_262 = arith.constant 0 : index
    %335 = vector.load %arg10[%c0_261, %c0_262] : memref<32x256xbf16, #tpu.memory_space<vmem>>, vector<32x256xbf16>
    %cst_263 = arith.constant dense<0.000000e+00> : vector<32x256xf32>
    %336 = tpu.matmul %335, %323, %cst_263 {dimension_numbers = #tpu.dot_dimension_numbers<[1], [0], [0], [1], [0, 0, 1, 1], [], []>} : vector<32x256xbf16>, vector<256x256xbf16>, vector<32x256xf32> -> vector<32x256xf32>
    %337 = vector.broadcast %325 : vector<1x256xf32> to vector<32x256xf32>
    %338 = arith.addf %336, %337 : vector<32x256xf32>
    %339 = arith.truncf %338 : vector<32x256xf32> to vector<32x256xbf16>
    %cst_264 = arith.constant 0.000000e+00 : bf16
    %340 = vector.broadcast %cst_264 : bf16 to vector<32x256xbf16>
    %341 = arith.maximumf %339, %340 : vector<32x256xbf16>
    %342 = arith.addf %341, %335 : vector<32x256xbf16>
    %c0_265 = arith.constant 0 : index
    %c0_266 = arith.constant 0 : index
    %343 = vector.load %arg10[%c0_265, %c0_266] : memref<32x256xbf16, #tpu.memory_space<vmem>>, vector<32x256xbf16>
    tpu.vector_store %arg10[%c0_265, %c0_266], %342 {strides = array<i32>} : memref<32x256xbf16, #tpu.memory_space<vmem>>, vector<32x256xbf16>,
    %c0_267 = arith.constant 0 : index
    %c0_268 = arith.constant 0 : index
    %344 = vector.load %arg6[%c0_267, %c0_268] : memref<1x256xf32, #tpu.memory_space<vmem>>, vector<1x256xf32>
    %c0_269 = arith.constant 0 : index
    %c0_270 = arith.constant 0 : index
    %345 = vector.load %arg7[%c0_269, %c0_270] : memref<1x1xf32, #tpu.memory_space<vmem>>, vector<1x1xf32>
    %c0_271 = arith.constant 0 : index
    %c0_272 = arith.constant 0 : index
    %346 = vector.load %arg9[%c0_271, %c0_272] : memref<32x256xbf16, #tpu.memory_space<vmem>>, vector<32x256xbf16>
    %347 = arith.extf %346 : vector<32x256xbf16> to vector<32x256xf32>
    %348 = vector.broadcast %344 : vector<1x256xf32> to vector<32x256xf32>
    %349 = arith.mulf %347, %348 : vector<32x256xf32>
    %cst_273 = arith.constant dense<0.000000e+00> : vector<32xf32>
    %350 = vector.multi_reduction <add>, %349, %cst_273 [1] : vector<32x256xf32> to vector<32xf32>
    %351 = vector.shape_cast %350 : vector<32xf32> to vector<32x1xf32>
    %352 = vector.broadcast %345 : vector<1x1xf32> to vector<32x1xf32>
    %353 = arith.addf %351, %352 : vector<32x1xf32>
    %354 = math.tanh %353 : vector<32x1xf32>
    %c0_274 = arith.constant 0 : index
    %c0_275 = arith.constant 0 : index
    %355 = vector.load %arg8[%c0_274, %c0_275] : memref<64x1xf32, #tpu.memory_space<vmem>>, vector<32x1xf32>
    tpu.vector_store %arg8[%c0_274, %c0_275], %354 {strides = array<i32>} : memref<64x1xf32, #tpu.memory_space<vmem>>, vector<32x1xf32>,
    %c0_276 = arith.constant 0 : index
    %c0_277 = arith.constant 0 : index
    %356 = vector.load %arg10[%c0_276, %c0_277] : memref<32x256xbf16, #tpu.memory_space<vmem>>, vector<32x256xbf16>
    %357 = arith.extf %356 : vector<32x256xbf16> to vector<32x256xf32>
    %358 = vector.broadcast %344 : vector<1x256xf32> to vector<32x256xf32>
    %359 = arith.mulf %357, %358 : vector<32x256xf32>
    %cst_278 = arith.constant dense<0.000000e+00> : vector<32xf32>
    %360 = vector.multi_reduction <add>, %359, %cst_278 [1] : vector<32x256xf32> to vector<32xf32>
    %361 = vector.shape_cast %360 : vector<32xf32> to vector<32x1xf32>
    %362 = vector.broadcast %345 : vector<1x1xf32> to vector<32x1xf32>
    %363 = arith.addf %361, %362 : vector<32x1xf32>
    %364 = math.tanh %363 : vector<32x1xf32>
    %c32_279 = arith.constant 32 : index
    %c0_280 = arith.constant 0 : index
    %365 = vector.load %arg8[%c32_279, %c0_280] : memref<64x1xf32, #tpu.memory_space<vmem>>, vector<32x1xf32>
    tpu.vector_store %arg8[%c32_279, %c0_280], %364 {strides = array<i32>} : memref<64x1xf32, #tpu.memory_space<vmem>>, vector<32x1xf32>,
    return
  }
  func.func @transform_0(%arg0: i32) -> (i32, i32) {
    %c0_i32 = arith.constant 0 : i32
    %c0_i32_0 = arith.constant 0 : i32
    return %arg0, %c0_i32 : i32, i32
  }
  func.func @transform_1(%arg0: i32) -> (i32, i32) {
    %c0_i32 = arith.constant 0 : i32
    %c0_i32_0 = arith.constant 0 : i32
    %c0_i32_1 = arith.constant 0 : i32
    return %c0_i32, %c0_i32_0 : i32, i32
  }
  func.func @transform_2(%arg0: i32) -> (i32, i32) {
    %c0_i32 = arith.constant 0 : i32
    %c0_i32_0 = arith.constant 0 : i32
    %c0_i32_1 = arith.constant 0 : i32
    return %c0_i32, %c0_i32_0 : i32, i32
  }
  func.func @transform_3(%arg0: i32) -> (i32, i32, i32) {
    %c0_i32 = arith.constant 0 : i32
    %c0_i32_0 = arith.constant 0 : i32
    %c0_i32_1 = arith.constant 0 : i32
    %c0_i32_2 = arith.constant 0 : i32
    return %c0_i32, %c0_i32_0, %c0_i32_1 : i32, i32, i32
  }
  func.func @transform_4(%arg0: i32) -> (i32, i32, i32) {
    %c0_i32 = arith.constant 0 : i32
    %c0_i32_0 = arith.constant 0 : i32
    %c0_i32_1 = arith.constant 0 : i32
    %c0_i32_2 = arith.constant 0 : i32
    return %c0_i32, %c0_i32_0, %c0_i32_1 : i32, i32, i32
  }
  func.func @transform_5(%arg0: i32) -> (i32, i32) {
    %c0_i32 = arith.constant 0 : i32
    %c0_i32_0 = arith.constant 0 : i32
    %c0_i32_1 = arith.constant 0 : i32
    return %c0_i32, %c0_i32_0 : i32, i32
  }
  func.func @transform_6(%arg0: i32) -> (i32, i32) {
    %c0_i32 = arith.constant 0 : i32
    %c0_i32_0 = arith.constant 0 : i32
    %c0_i32_1 = arith.constant 0 : i32
    return %c0_i32, %c0_i32_0 : i32, i32
  }
  func.func @transform_7(%arg0: i32) -> (i32, i32) {
    %c0_i32 = arith.constant 0 : i32
    %c0_i32_0 = arith.constant 0 : i32
    return %arg0, %c0_i32 : i32, i32
  }
}

</mosaic_0001>

<llo_original>
// kernel: tpu_custom_call.1
$region0: #{tpu_custom_call.1}
  #allocation0 [shape = 'u32[]', space=smem, size = 0x4, offset = 0x4, fixed_abs, tag = 'smem constant byte address 0x4 - core index']
  #allocation1 [shape = 'u32[144,128]{1,0:T(1,128)}', space=vmem, size = 0x12000, scoped, tag = 'internal scratch']
  #allocation2 [shape = 'bf16[32,256]{1,0:T(8,128)(2,1)}', space=vmem, size = 0x4000, scoped, tag = 'scratch operand']
  #allocation3 [shape = 'bf16[32,256]{1,0:T(8,128)(2,1)}', space=vmem, size = 0x4000, scoped, tag = 'scratch operand']
  #allocation4 [shape = 'f32[1,1]{1,0:T(1,128)S(1)}', space=vmem, size = 0x200, scoped, tag = 'scoped memory for tpu_custom_call.1']
  %s0 = inlined_call_operand.hbm [shape: bf16[64,264], index: 0, kind: input, shape index: {}]
  %s1 = inlined_call_operand.hbm [shape: bf16[264,256], index: 1, kind: input, shape index: {}]
  %s2 = inlined_call_operand.hbm [shape: f32[1,256], index: 2, kind: input, shape index: {}]
  %s3 = inlined_call_operand.hbm [shape: bf16[15,256,256], index: 3, kind: input, shape index: {}]
  %s4 = inlined_call_operand.hbm [shape: f32[15,1,256], index: 4, kind: input, shape index: {}]
  %s5 = inlined_call_operand.hbm [shape: f32[1,256], index: 5, kind: input, shape index: {}]
  %s6 = inlined_call_operand.<no memory space> [shape: f32[1,1], index: 6, kind: input, shape index: {}]
  %s7 = inlined_call_operand.vmem [shape: f32[64,1], index: 7, kind: output, shape index: {}]
  %s8 = sld [smem:[#allocation0]]
  $region62: #{tpu_custom_call.1} parent=0
    _
  %s10 = ssub.s32 1, %s8
  %s11 = scalar_select 0, %s10, %s8
  %v12 = vstv %s6
  %13 = vst [vmem:[#allocation4] sm:$0x1] %v12
  $region1: #{tpu_custom_call.1} parent=0
    #allocation5 [shape = 'u8[49152]{0}', space=vmem, size = 0xc000, scoped, tag = 'input window, operand 0, single buffered']
    #allocation6 [shape = 's32[1]{0}', space=sflag, size = 0x4, scoped, tag = 'scoped memory for tpu_custom_call.1']
    #allocation7 [shape = 'u8[135168]{0}', space=vmem, size = 0x21000, scoped, tag = 'input window, operand 1, single buffered']
    #allocation8 [shape = 's32[1]{0}', space=sflag, size = 0x4, scoped, tag = 'scoped memory for tpu_custom_call.1']
    #allocation9 [shape = 'u8[1024]{0}', space=vmem, size = 0x400, scoped, tag = 'input window, operand 2, single buffered']
    #allocation10 [shape = 'u8[1966080]{0}', space=vmem, size = 0x1e0000, scoped, tag = 'input window, operand 3, single buffered']
    #allocation11 [shape = 's32[1]{0}', space=sflag, size = 0x4, scoped, tag = 'scoped memory for tpu_custom_call.1']
    #allocation12 [shape = 'u8[15360]{0}', space=vmem, size = 0x3c00, scoped, tag = 'input window, operand 4, single buffered']
    #allocation13 [shape = 'u8[1024]{0}', space=vmem, size = 0x400, scoped, tag = 'input window, operand 5, single buffered']
    #allocation14 [shape = 's32[1]{0}', space=sflag, size = 0x4, scoped, tag = 'scoped memory for tpu_custom_call.1']
    %14 = vsyncpa [#allocation6], 0
    %15 = vsyncpa [#allocation8], 0
    %16 = vsyncpa [#allocation11], 0
    %17 = vsyncpa [#allocation14], 0
    // Predicated region
    $region2: #{tpu_custom_call.1} parent=1 // pred_check
      _
    $region3: #{tpu_custom_call.1} parent=1 // pred_check_branch
      %19 = sbr.rel (0) target = $region5
    $region4: #{tpu_custom_call.1} parent=1 // pred_region
      %s21 = ssub.s32 1536, 1536
      %22 = vsyncadd [#allocation6], %s21
      %s23 = sshll.u32 [#allocation5], 4
      %s24 = int_to_ptr.vmem [resolvable:$true] %s23
      %29 = dma.hbm_to_vmem [thread:$0]  %s0, 1536, %s24, [#allocation6], 192, 192, 12
    $region5: #{tpu_custom_call.1} parent=1 // pred_fallthru
      _
    // Predicated region
    $region6: #{tpu_custom_call.1} parent=1 // pred_check
      _
    $region7: #{tpu_custom_call.1} parent=1 // pred_check_branch
      %31 = sbr.rel (0) target = $region9
    $region8: #{tpu_custom_call.1} parent=1 // pred_region
      %s33 = ssub.s32 4224, 4224
      %34 = vsyncadd [#allocation8], %s33
      %s35 = sshll.u32 [#allocation7], 4
      %s36 = int_to_ptr.vmem [resolvable:$true] %s35
      %41 = dma.hbm_to_vmem [thread:$0]  %s1, 4224, %s36, [#allocation8], 128, 128, 8
    $region9: #{tpu_custom_call.1} parent=1 // pred_fallthru
      _
    // Predicated region
    $region10: #{tpu_custom_call.1} parent=1 // pred_check
      _
    $region11: #{tpu_custom_call.1} parent=1 // pred_check_branch
      %43 = sbr.rel (0) target = $region13
    $region12: #{tpu_custom_call.1} parent=1 // pred_region
      %s45 = ssub.s32 32, 32
      %46 = vsyncadd [#allocation8], %s45
      %s48 = sshll.u32 [#allocation9], 4
      %s49 = int_to_ptr.vmem [resolvable:$true] %s48
      %51 = dma.hbm_to_vmem [thread:$0]  %s2, 32, %s49, [#allocation8]
    $region13: #{tpu_custom_call.1} parent=1 // pred_fallthru
      _
    // Predicated region
    $region14: #{tpu_custom_call.1} parent=1 // pred_check
      _
    $region15: #{tpu_custom_call.1} parent=1 // pred_check_branch
      %53 = sbr.rel (0) target = $region17
    $region16: #{tpu_custom_call.1} parent=1 // pred_region
      %s55 = ssub.s32 61440, 61440
      %56 = vsyncadd [#allocation11], %s55
      %s57 = sshll.u32 [#allocation10], 4
      %s58 = int_to_ptr.vmem [resolvable:$true] %s57
      %63 = dma.hbm_to_vmem [thread:$0]  %s3, 61440, %s58, [#allocation11], 128, 128, 8
    $region17: #{tpu_custom_call.1} parent=1 // pred_fallthru
      _
    // Predicated region
    $region18: #{tpu_custom_call.1} parent=1 // pred_check
      _
    $region19: #{tpu_custom_call.1} parent=1 // pred_check_branch
      %65 = sbr.rel (0) target = $region21
    $region20: #{tpu_custom_call.1} parent=1 // pred_region
      %s67 = ssub.s32 480, 480
      %68 = vsyncadd [#allocation11], %s67
      %s69 = sshll.u32 [#allocation12], 4
      %s70 = int_to_ptr.vmem [resolvable:$true] %s69
      %75 = dma.hbm_to_vmem [thread:$0]  %s4, 480, %s70, [#allocation11], 32, 32, 2
    $region21: #{tpu_custom_call.1} parent=1 // pred_fallthru
      _
    // Predicated region
    $region22: #{tpu_custom_call.1} parent=1 // pred_check
      _
    $region23: #{tpu_custom_call.1} parent=1 // pred_check_branch
      %77 = sbr.rel (0) target = $region25
    $region24: #{tpu_custom_call.1} parent=1 // pred_region
      %s79 = ssub.s32 32, 32
      %80 = vsyncadd [#allocation14], %s79
      %s82 = sshll.u32 [#allocation13], 4
      %s83 = int_to_ptr.vmem [resolvable:$true] %s82
      %85 = dma.hbm_to_vmem [thread:$0]  %s5, 32, %s83, [#allocation14]
    $region25: #{tpu_custom_call.1} parent=1 // pred_fallthru
      _
    // Predicated region
    $region26: #{tpu_custom_call.1} parent=1 // pred_check
      _
    $region27: #{tpu_custom_call.1} parent=1 // pred_check_branch
      %87 = sbr.rel (0) target = $region29
    $region28: #{tpu_custom_call.1} parent=1 // pred_region
      _
    $region29: #{tpu_custom_call.1} parent=1 // pred_fallthru
      _
    // Predicated region
    $region30: #{tpu_custom_call.1} parent=1 // pred_check
      _
    $region31: #{tpu_custom_call.1} parent=1 // pred_check_branch
      %89 = sbr.rel (0) target = $region33
    $region32: #{tpu_custom_call.1} parent=1 // pred_region
      %90 = dma.done [#allocation6], 1536
    $region33: #{tpu_custom_call.1} parent=1 // pred_fallthru
      _
    // Predicated region
    $region34: #{tpu_custom_call.1} parent=1 // pred_check
      _
    $region35: #{tpu_custom_call.1} parent=1 // pred_check_branch
      %92 = sbr.rel (0) target = $region37
    $region36: #{tpu_custom_call.1} parent=1 // pred_region
      %93 = dma.done [#allocation8], 4224
    $region37: #{tpu_custom_call.1} parent=1 // pred_fallthru
      _
    // Predicated region
    $region38: #{tpu_custom_call.1} parent=1 // pred_check
      _
    $region39: #{tpu_custom_call.1} parent=1 // pred_check_branch
      %95 = sbr.rel (0) target = $region41
    $region40: #{tpu_custom_call.1} parent=1 // pred_region
      %96 = dma.done [#allocation8], 32
    $region41: #{tpu_custom_call.1} parent=1 // pred_fallthru
      _
    // Predicated region
    $region42: #{tpu_custom_call.1} parent=1 // pred_check
      _
    $region43: #{tpu_custom_call.1} parent=1 // pred_check_branch
      %98 = sbr.rel (0) target = $region45
    $region44: #{tpu_custom_call.1} parent=1 // pred_region
      %99 = dma.done [#allocation11], 61440
    $region45: #{tpu_custom_call.1} parent=1 // pred_fallthru
      _
    // Predicated region
    $region46: #{tpu_custom_call.1} parent=1 // pred_check
      _
    $region47: #{tpu_custom_call.1} parent=1 // pred_check_branch
      %101 = sbr.rel (0) target = $region49
    $region48: #{tpu_custom_call.1} parent=1 // pred_region
      %102 = dma.done [#allocation11], 480
    $region49: #{tpu_custom_call.1} parent=1 // pred_fallthru
      _
    // Predicated region
    $region50: #{tpu_custom_call.1} parent=1 // pred_check
      _
    $region51: #{tpu_custom_call.1} parent=1 // pred_check_branch
      %104 = sbr.rel (0) target = $region53
    $region52: #{tpu_custom_call.1} parent=1 // pred_region
      %105 = dma.done [#allocation14], 32
    $region53: #{tpu_custom_call.1} parent=1 // pred_fallthru
      _
    %v107 = vld [vmem:[#allocation7] sm:$0xff]
    %v108 = vld [vmem:[#allocation7 + $0x8] sm:$0xff]
    %v109 = vld [vmem:[#allocation7 + $0x10] sm:$0xff]
    %v110 = vld [vmem:[#allocation7 + $0x18] sm:$0xff]
    %v111 = vld [vmem:[#allocation7 + $0x20] sm:$0xff]
    %v112 = vld [vmem:[#allocation7 + $0x28] sm:$0xff]
    %v113 = vld [vmem:[#allocation7 + $0x30] sm:$0xff]
    %v114 = vld [vmem:[#allocation7 + $0x38] sm:$0xff]
    %v115 = vld [vmem:[#allocation7 + $0x40] sm:$0xff]
    %v116 = vld [vmem:[#allocation7 + $0x48] sm:$0xff]
    %v117 = vld [vmem:[#allocation7 + $0x50] sm:$0xff]
    %v118 = vld [vmem:[#allocation7 + $0x58] sm:$0xff]
    %v119 = vld [vmem:[#allocation7 + $0x60] sm:$0xff]
    %v120 = vld [vmem:[#allocation7 + $0x68] sm:$0xff]
    %v121 = vld [vmem:[#allocation7 + $0x70] sm:$0xff]
    %v122 = vld [vmem:[#allocation7 + $0x78] sm:$0xff]
    %v123 = vld [vmem:[#allocation7 + $0x80] sm:$0xff]
    %v124 = vld [vmem:[#allocation7 + $0x88] sm:$0xff]
    %v125 = vld [vmem:[#allocation7 + $0x90] sm:$0xff]
    %v126 = vld [vmem:[#allocation7 + $0x98] sm:$0xff]
    %v127 = vld [vmem:[#allocation7 + $0xa0] sm:$0xff]
    %v128 = vld [vmem:[#allocation7 + $0xa8] sm:$0xff]
    %v129 = vld [vmem:[#allocation7 + $0xb0] sm:$0xff]
    %v130 = vld [vmem:[#allocation7 + $0xb8] sm:$0xff]
    %v131 = vld [vmem:[#allocation7 + $0xc0] sm:$0xff]
    %v132 = vld [vmem:[#allocation7 + $0xc8] sm:$0xff]
    %v133 = vld [vmem:[#allocation7 + $0xd0] sm:$0xff]
    %v134 = vld [vmem:[#allocation7 + $0xd8] sm:$0xff]
    %v135 = vld [vmem:[#allocation7 + $0xe0] sm:$0xff]
    %v136 = vld [vmem:[#allocation7 + $0xe8] sm:$0xff]
    %v137 = vld [vmem:[#allocation7 + $0xf0] sm:$0xff]
    %v138 = vld [vmem:[#allocation7 + $0xf8] sm:$0xff]
    %v139 = vld [vmem:[#allocation7 + $0x100] sm:$0xff]
    %v140 = vld [vmem:[#allocation9] sm:$0x3]
    %v141 = vld [vmem:[#allocation5] sm:$0xff]
    %v142 = vld [vmem:[#allocation5 + $0x8] sm:$0xf]
    %v143 = vld [vmem:[#allocation5 + $0xc] sm:$0xff]
    %v144 = vld [vmem:[#allocation5 + $0x14] sm:$0xf]
    %v145 = vld [vmem:[#allocation5 + $0x18] sm:$0xff]
    %v146 = vld [vmem:[#allocation5 + $0x20] sm:$0xf]
    %v147 = vld [vmem:[#allocation5 + $0x24] sm:$0xff]
    %v148 = vld [vmem:[#allocation5 + $0x2c] sm:$0xf]
    %v150 = vlaneseq
    %v151 = vshrl.u32 %v150, 7
    %v152 = vsub.s32 0, %v151
    %v153 = vrot.slane %v140, %v152
    %v154 = vlaneseq
    %v155 = vshrl.u32 %v154, 7
    %v156 = vsub.s32 1, %v155
    %v157 = vrot.slane %v140, %v156
    %v168 = vunpack.c.l.b16 %v141
    %v169 = vunpack.c.h.b16 %v141
    %v170 = vunpack.c.l.b16 %v142
    %v171 = vunpack.c.l.b16 %v143
    %v172 = vunpack.c.h.b16 %v143
    %v173 = vunpack.c.l.b16 %v144
    %v174 = vunpack.c.l.b16 %v145
    %v175 = vunpack.c.h.b16 %v145
    %v176 = vunpack.c.l.b16 %v146
    %v177 = vunpack.c.l.b16 %v147
    %v178 = vunpack.c.h.b16 %v147
    %v179 = vunpack.c.l.b16 %v148
    %v180 = vpack.c.b16 %v171, %v168
    %v181 = vpack.c.b16 %v172, %v169
    %v182 = vpack.c.b16 %v173, %v170
    %v183 = vpack.c.b16 %v177, %v174
    %v184 = vpack.c.b16 %v178, %v175
    %v185 = vpack.c.b16 %v179, %v176
    %v223 = vunpack.c.l.b16 %v107
    %v224 = vunpack.c.h.b16 %v107
    %v225 = vunpack.c.l.b16 %v108
    %v226 = vunpack.c.h.b16 %v108
    %v227 = vunpack.c.l.b16 %v109
    %v228 = vunpack.c.h.b16 %v109
    %v229 = vunpack.c.l.b16 %v110
    %v230 = vunpack.c.h.b16 %v110
    %v231 = vunpack.c.l.b16 %v111
    %v232 = vunpack.c.h.b16 %v111
    %v233 = vunpack.c.l.b16 %v112
    %v234 = vunpack.c.h.b16 %v112
    %v235 = vunpack.c.l.b16 %v113
    %v236 = vunpack.c.h.b16 %v113
    %v237 = vunpack.c.l.b16 %v114
    %v238 = vunpack.c.h.b16 %v114
    %v239 = vunpack.c.l.b16 %v115
    %v240 = vunpack.c.h.b16 %v115
    %v241 = vunpack.c.l.b16 %v116
    %v242 = vunpack.c.h.b16 %v116
    %v243 = vunpack.c.l.b16 %v117
    %v244 = vunpack.c.h.b16 %v117
    %v245 = vunpack.c.l.b16 %v118
    %v246 = vunpack.c.h.b16 %v118
    %v247 = vunpack.c.l.b16 %v119
    %v248 = vunpack.c.h.b16 %v119
    %v249 = vunpack.c.l.b16 %v120
    %v250 = vunpack.c.h.b16 %v120
    %v251 = vunpack.c.l.b16 %v121
    %v252 = vunpack.c.h.b16 %v121
    %v253 = vunpack.c.l.b16 %v122
    %v254 = vunpack.c.h.b16 %v122
    %v255 = vunpack.c.l.b16 %v123
    %v256 = vunpack.c.h.b16 %v123
    %v257 = vunpack.c.l.b16 %v124
    %v258 = vunpack.c.h.b16 %v124
    %v259 = vunpack.c.l.b16 %v125
    %v260 = vunpack.c.h.b16 %v125
    %v261 = vunpack.c.l.b16 %v126
    %v262 = vunpack.c.h.b16 %v126
    %v263 = vunpack.c.l.b16 %v127
    %v264 = vunpack.c.h.b16 %v127
    %v265 = vunpack.c.l.b16 %v128
    %v266 = vunpack.c.h.b16 %v128
    %v267 = vunpack.c.l.b16 %v129
    %v268 = vunpack.c.h.b16 %v129
    %v269 = vunpack.c.l.b16 %v130
    %v270 = vunpack.c.h.b16 %v130
    %v271 = vunpack.c.l.b16 %v131
    %v272 = vunpack.c.h.b16 %v131
    %v273 = vunpack.c.l.b16 %v132
    %v274 = vunpack.c.h.b16 %v132
    %v275 = vunpack.c.l.b16 %v133
    %v276 = vunpack.c.h.b16 %v133
    %v277 = vunpack.c.l.b16 %v134
    %v278 = vunpack.c.h.b16 %v134
    %v279 = vunpack.c.l.b16 %v135
    %v280 = vunpack.c.h.b16 %v135
    %v281 = vunpack.c.l.b16 %v136
    %v282 = vunpack.c.h.b16 %v136
    %v283 = vunpack.c.l.b16 %v137
    %v284 = vunpack.c.h.b16 %v137
    %v285 = vunpack.c.l.b16 %v138
    %v286 = vunpack.c.h.b16 %v138
    %v287 = vunpack.c.l.b16 %v139
    %v288 = vunpack.c.h.b16 %v139
    %v289 = vpack.c.b16 %v225, %v223
    %v290 = vpack.c.b16 %v226, %v224
    %v291 = vpack.c.b16 %v229, %v227
    %v292 = vpack.c.b16 %v230, %v228
    %v293 = vpack.c.b16 %v233, %v231
    %v294 = vpack.c.b16 %v234, %v232
    %v295 = vpack.c.b16 %v237, %v235
    %v296 = vpack.c.b16 %v238, %v236
    %v297 = vpack.c.b16 %v241, %v239
    %v298 = vpack.c.b16 %v242, %v240
    %v299 = vpack.c.b16 %v245, %v243
    %v300 = vpack.c.b16 %v246, %v244
    %v301 = vpack.c.b16 %v249, %v247
    %v302 = vpack.c.b16 %v250, %v248
    %v303 = vpack.c.b16 %v253, %v251
    %v304 = vpack.c.b16 %v254, %v252
    %v305 = vpack.c.b16 %v257, %v255
    %v306 = vpack.c.b16 %v258, %v256
    %v307 = vpack.c.b16 %v261, %v259
    %v308 = vpack.c.b16 %v262, %v260
    %v309 = vpack.c.b16 %v265, %v263
    %v310 = vpack.c.b16 %v266, %v264
    %v311 = vpack.c.b16 %v269, %v267
    %v312 = vpack.c.b16 %v270, %v268
    %v313 = vpack.c.b16 %v273, %v271
    %v314 = vpack.c.b16 %v274, %v272
    %v315 = vpack.c.b16 %v277, %v275
    %v316 = vpack.c.b16 %v278, %v276
    %v317 = vpack.c.b16 %v281, %v279
    %v318 = vpack.c.b16 %v282, %v280
    %v319 = vpack.c.b16 %v285, %v283
    %v320 = vpack.c.b16 %v286, %v284
    %v321 = vpack.c.b16 %v287, %v287
    %v322 = vpack.c.b16 %v288, %v288
    %vm355 = vcmask 64512
    %v357 = vsel %vm355, %v182, 0
    %v360 = vsel %vm355, %v185, 0
    %vm362 = vcmask 1043456
    %v364 = vsel %vm362, %v321, 0
    %v367 = vsel %vm362, %v322, 0
    %369 = vmatprep.subr.bf16.mxu0 %v304
    %370 = vmatpush1.bf16.msra.mxu0 %v303
    %371 = vmatprep.subr.bf16.mxu0 %v302
    %372 = vmatpush1.bf16.msra.mxu0 %v301
    %373 = vmatprep.subr.bf16.mxu0 %v300
    %374 = vmatpush1.bf16.msra.mxu0 %v299
    %375 = vmatprep.subr.bf16.mxu0 %v298
    %376 = vmatpush1.bf16.msra.mxu0 %v297
    %377 = vmatprep.subr.bf16.mxu0 %v296
    %378 = vmatpush1.bf16.msra.mxu0 %v295
    %379 = vmatprep.subr.bf16.mxu0 %v294
    %380 = vmatpush1.bf16.msra.mxu0 %v293
    %381 = vmatprep.subr.bf16.mxu0 %v292
    %382 = vmatpush1.bf16.msra.mxu0 %v291
    %383 = vmatprep.subr.bf16.mxu0 %v290
    %384 = vmatpush1.bf16.msra.mxu0 %v289
    %385 = vmatprep.subr.bf16.mxu0 %v320
    %386 = vmatpush2.bf16.msra.mxu0 %v319
    %387 = vmatprep.subr.bf16.mxu0 %v318
    %388 = vmatpush2.bf16.msra.mxu0 %v317
    %389 = vmatprep.subr.bf16.mxu0 %v316
    %390 = vmatpush2.bf16.msra.mxu0 %v315
    %391 = vmatprep.subr.bf16.mxu0 %v314
    %392 = vmatpush2.bf16.msra.mxu0 %v313
    %393 = vmatprep.subr.bf16.mxu0 %v312
    %394 = vmatpush2.bf16.msra.mxu0 %v311
    %395 = vmatprep.subr.bf16.mxu0 %v310
    %396 = vmatpush2.bf16.msra.mxu0 %v309
    %397 = vmatprep.subr.bf16.mxu0 %v308
    %398 = vmatpush2.bf16.msra.mxu0 %v307
    %399 = vmatprep.subr.bf16.mxu0 %v306
    %400 = vmatpush2.bf16.msra.mxu0 %v305
    %401 = vmatprep.mubr.bf16.mxu0 %v181
    %402 = vmatmul.mubr.bf16.gmra.mxu0 %v180
    %v403 = vpop.f32.mrf.mxu0
    %v404 = vadd.f32 %v153, %v403
    %v405 = vpop.f32.mrf.mxu0
    %v406 = vadd.f32 %v157, %v405
    %v407 = vpop.f32.mrf.mxu0
    %v408 = vadd.f32 %v153, %v407
    %v409 = vpop.f32.mrf.mxu0
    %v410 = vadd.f32 %v157, %v409
    %411 = vmatprep.mubr.bf16.mxu0 %v184
    %412 = vmatmul.mubr.bf16.gmra.mxu0 %v183
    %v413 = vpop.f32.mrf.mxu0
    %v414 = vadd.f32 %v153, %v413
    %v415 = vpop.f32.mrf.mxu0
    %v416 = vadd.f32 %v157, %v415
    %v417 = vpop.f32.mrf.mxu0
    %v418 = vadd.f32 %v153, %v417
    %v419 = vpop.f32.mrf.mxu0
    %v420 = vadd.f32 %v157, %v419
    %421 = vdwg.mxu0
    %422 = vmatprep.subr.bf16.mxu0 0
    %423 = vmatpush1.bf16.msra.mxu0 0
    %424 = vmatprep.subr.bf16.mxu0 0
    %425 = vmatpush1.bf16.msra.mxu0 0
    %426 = vmatprep.subr.bf16.mxu0 0
    %427 = vmatpush1.bf16.msra.mxu0 0
    %428 = vmatprep.subr.bf16.mxu0 0
    %429 = vmatpush1.bf16.msra.mxu0 0
    %430 = vmatprep.subr.bf16.mxu0 0
    %431 = vmatpush1.bf16.msra.mxu0 0
    %432 = vmatprep.subr.bf16.mxu0 0
    %433 = vmatpush1.bf16.msra.mxu0 0
    %434 = vmatprep.subr.bf16.mxu0 0
    %435 = vmatpush1.bf16.msra.mxu0 0
    %436 = vmatprep.subr.bf16.mxu0 %v367
    %437 = vmatpush1.bf16.msra.mxu0 %v364
    %438 = vmatprep.subr.bf16.mxu0 0
    %439 = vmatpush2.bf16.msra.mxu0 0
    %440 = vmatprep.subr.bf16.mxu0 0
    %441 = vmatpush2.bf16.msra.mxu0 0
    %442 = vmatprep.subr.bf16.mxu0 0
    %443 = vmatpush2.bf16.msra.mxu0 0
    %444 = vmatprep.subr.bf16.mxu0 0
    %445 = vmatpush2.bf16.msra.mxu0 0
    %446 = vmatprep.subr.bf16.mxu0 0
    %447 = vmatpush2.bf16.msra.mxu0 0
    %448 = vmatprep.subr.bf16.mxu0 0
    %449 = vmatpush2.bf16.msra.mxu0 0
    %450 = vmatprep.subr.bf16.mxu0 0
    %451 = vmatpush2.bf16.msra.mxu0 0
    %452 = vmatprep.subr.bf16.mxu0 0
    %453 = vmatpush2.bf16.msra.mxu0 0
    %454 = vmatprep.mubr.bf16.mxu0 0
    %455 = vmatmul.mubr.bf16.gmra.mxu0 %v357
    %v456 = vpop.f32.mrf.mxu0
    %v457 = vadd.f32 %v404, %v456
    %v458 = vpop.f32.mrf.mxu0
    %v459 = vadd.f32 %v406, %v458
    %v460 = vpop.f32.mrf.mxu0
    %v461 = vadd.f32 %v408, %v460
    %v462 = vpop.f32.mrf.mxu0
    %v463 = vadd.f32 %v410, %v462
    %464 = vmatprep.mubr.bf16.mxu0 0
    %465 = vmatmul.mubr.bf16.gmra.mxu0 %v360
    %v466 = vpop.f32.mrf.mxu0
    %v467 = vadd.f32 %v414, %v466
    %v468 = vpop.f32.mrf.mxu0
    %v469 = vadd.f32 %v416, %v468
    %v470 = vpop.f32.mrf.mxu0
    %v471 = vadd.f32 %v418, %v470
    %v472 = vpop.f32.mrf.mxu0
    %v473 = vadd.f32 %v420, %v472
    %474 = vdwg.mxu0
    %v475 = vpack.c.bf16 %v461, %v457
    %v476 = vpack.c.bf16 %v463, %v459
    %v477 = vpack.c.bf16 %v471, %v467
    %v478 = vpack.c.bf16 %v473, %v469
    %v483 = vunpack.c.l.b16 %v475
    %v484 = vunpack.c.l.b16 %v476
    %v485 = vunpack.c.h.b16 %v475
    %v486 = vunpack.c.h.b16 %v476
    %v487 = vunpack.c.l.b16 %v477
    %v488 = vunpack.c.l.b16 %v478
    %v489 = vunpack.c.h.b16 %v477
    %v490 = vunpack.c.h.b16 %v478
    %v491 = vpack.c.b16 %v484, %v483
    %v492 = vpack.c.b16 %v486, %v485
    %v493 = vpack.c.b16 %v488, %v487
    %v494 = vpack.c.b16 %v490, %v489
    %499 = vst [vmem:[#allocation2] sm:$0xff] %v491
    %500 = vst [vmem:[#allocation2 + $0x8] sm:$0xff] %v492
    %501 = vst [vmem:[#allocation2 + $0x10] sm:$0xff] %v493
    %502 = vst [vmem:[#allocation2 + $0x18] sm:$0xff] %v494
    %v503 = vld [vmem:[#allocation5 + $0x30] sm:$0xff]
    %v504 = vld [vmem:[#allocation5 + $0x38] sm:$0xf]
    %v505 = vld [vmem:[#allocation5 + $0x3c] sm:$0xff]
    %v506 = vld [vmem:[#allocation5 + $0x44] sm:$0xf]
    %v507 = vld [vmem:[#allocation5 + $0x48] sm:$0xff]
    %v508 = vld [vmem:[#allocation5 + $0x50] sm:$0xf]
    %v509 = vld [vmem:[#allocation5 + $0x54] sm:$0xff]
    %v510 = vld [vmem:[#allocation5 + $0x5c] sm:$0xf]
    %v519 = vunpack.c.l.b16 %v503
    %v520 = vunpack.c.h.b16 %v503
    %v521 = vunpack.c.l.b16 %v504
    %v522 = vunpack.c.l.b16 %v505
    %v523 = vunpack.c.h.b16 %v505
    %v524 = vunpack.c.l.b16 %v506
    %v525 = vunpack.c.l.b16 %v507
    %v526 = vunpack.c.h.b16 %v507
    %v527 = vunpack.c.l.b16 %v508
    %v528 = vunpack.c.l.b16 %v509
    %v529 = vunpack.c.h.b16 %v509
    %v530 = vunpack.c.l.b16 %v510
    %v531 = vpack.c.b16 %v522, %v519
    %v532 = vpack.c.b16 %v523, %v520
    %v533 = vpack.c.b16 %v524, %v521
    %v534 = vpack.c.b16 %v528, %v525
    %v535 = vpack.c.b16 %v529, %v526
    %v536 = vpack.c.b16 %v530, %v527
    %v542 = vsel %vm355, %v533, 0
    %v545 = vsel %vm355, %v536, 0
    %547 = vmatprep.subr.bf16.mxu0 %v304
    %548 = vmatpush1.bf16.msra.mxu0 %v303
    %549 = vmatprep.subr.bf16.mxu0 %v302
    %550 = vmatpush1.bf16.msra.mxu0 %v301
    %551 = vmatprep.subr.bf16.mxu0 %v300
    %552 = vmatpush1.bf16.msra.mxu0 %v299
    %553 = vmatprep.subr.bf16.mxu0 %v298
    %554 = vmatpush1.bf16.msra.mxu0 %v297
    %555 = vmatprep.subr.bf16.mxu0 %v296
    %556 = vmatpush1.bf16.msra.mxu0 %v295
    %557 = vmatprep.subr.bf16.mxu0 %v294
    %558 = vmatpush1.bf16.msra.mxu0 %v293
    %559 = vmatprep.subr.bf16.mxu0 %v292
    %560 = vmatpush1.bf16.msra.mxu0 %v291
    %561 = vmatprep.subr.bf16.mxu0 %v290
    %562 = vmatpush1.bf16.msra.mxu0 %v289
    %563 = vmatprep.subr.bf16.mxu0 %v320
    %564 = vmatpush2.bf16.msra.mxu0 %v319
    %565 = vmatprep.subr.bf16.mxu0 %v318
    %566 = vmatpush2.bf16.msra.mxu0 %v317
    %567 = vmatprep.subr.bf16.mxu0 %v316
    %568 = vmatpush2.bf16.msra.mxu0 %v315
    %569 = vmatprep.subr.bf16.mxu0 %v314
    %570 = vmatpush2.bf16.msra.mxu0 %v313
    %571 = vmatprep.subr.bf16.mxu0 %v312
    %572 = vmatpush2.bf16.msra.mxu0 %v311
    %573 = vmatprep.subr.bf16.mxu0 %v310
    %574 = vmatpush2.bf16.msra.mxu0 %v309
    %575 = vmatprep.subr.bf16.mxu0 %v308
    %576 = vmatpush2.bf16.msra.mxu0 %v307
    %577 = vmatprep.subr.bf16.mxu0 %v306
    %578 = vmatpush2.bf16.msra.mxu0 %v305
    %579 = vmatprep.mubr.bf16.mxu0 %v532
    %580 = vmatmul.mubr.bf16.gmra.mxu0 %v531
    %v581 = vpop.f32.mrf.mxu0
    %v582 = vadd.f32 %v153, %v581
    %v583 = vpop.f32.mrf.mxu0
    %v584 = vadd.f32 %v157, %v583
    %v585 = vpop.f32.mrf.mxu0
    %v586 = vadd.f32 %v153, %v585
    %v587 = vpop.f32.mrf.mxu0
    %v588 = vadd.f32 %v157, %v587
    %589 = vmatprep.mubr.bf16.mxu0 %v535
    %590 = vmatmul.mubr.bf16.gmra.mxu0 %v534
    %v591 = vpop.f32.mrf.mxu0
    %v592 = vadd.f32 %v153, %v591
    %v593 = vpop.f32.mrf.mxu0
    %v594 = vadd.f32 %v157, %v593
    %v595 = vpop.f32.mrf.mxu0
    %v596 = vadd.f32 %v153, %v595
    %v597 = vpop.f32.mrf.mxu0
    %v598 = vadd.f32 %v157, %v597
    %599 = vdwg.mxu0
    %600 = vmatprep.subr.bf16.mxu0 0
    %601 = vmatpush1.bf16.msra.mxu0 0
    %602 = vmatprep.subr.bf16.mxu0 0
    %603 = vmatpush1.bf16.msra.mxu0 0
    %604 = vmatprep.subr.bf16.mxu0 0
    %605 = vmatpush1.bf16.msra.mxu0 0
    %606 = vmatprep.subr.bf16.mxu0 0
    %607 = vmatpush1.bf16.msra.mxu0 0
    %608 = vmatprep.subr.bf16.mxu0 0
    %609 = vmatpush1.bf16.msra.mxu0 0
    %610 = vmatprep.subr.bf16.mxu0 0
    %611 = vmatpush1.bf16.msra.mxu0 0
    %612 = vmatprep.subr.bf16.mxu0 0
    %613 = vmatpush1.bf16.msra.mxu0 0
    %614 = vmatprep.subr.bf16.mxu0 %v367
    %615 = vmatpush1.bf16.msra.mxu0 %v364
    %616 = vmatprep.subr.bf16.mxu0 0
    %617 = vmatpush2.bf16.msra.mxu0 0
    %618 = vmatprep.subr.bf16.mxu0 0
    %619 = vmatpush2.bf16.msra.mxu0 0
    %620 = vmatprep.subr.bf16.mxu0 0
    %621 = vmatpush2.bf16.msra.mxu0 0
    %622 = vmatprep.subr.bf16.mxu0 0
    %623 = vmatpush2.bf16.msra.mxu0 0
    %624 = vmatprep.subr.bf16.mxu0 0
    %625 = vmatpush2.bf16.msra.mxu0 0
    %626 = vmatprep.subr.bf16.mxu0 0
    %627 = vmatpush2.bf16.msra.mxu0 0
    %628 = vmatprep.subr.bf16.mxu0 0
    %629 = vmatpush2.bf16.msra.mxu0 0
    %630 = vmatprep.subr.bf16.mxu0 0
    %631 = vmatpush2.bf16.msra.mxu0 0
    %632 = vmatprep.mubr.bf16.mxu0 0
    %633 = vmatmul.mubr.bf16.gmra.mxu0 %v542
    %v634 = vpop.f32.mrf.mxu0
    %v635 = vadd.f32 %v582, %v634
    %v636 = vpop.f32.mrf.mxu0
    %v637 = vadd.f32 %v584, %v636
    %v638 = vpop.f32.mrf.mxu0
    %v639 = vadd.f32 %v586, %v638
    %v640 = vpop.f32.mrf.mxu0
    %v641 = vadd.f32 %v588, %v640
    %642 = vmatprep.mubr.bf16.mxu0 0
    %643 = vmatmul.mubr.bf16.gmra.mxu0 %v545
    %v644 = vpop.f32.mrf.mxu0
    %v645 = vadd.f32 %v592, %v644
    %v646 = vpop.f32.mrf.mxu0
    %v647 = vadd.f32 %v594, %v646
    %v648 = vpop.f32.mrf.mxu0
    %v649 = vadd.f32 %v596, %v648
    %v650 = vpop.f32.mrf.mxu0
    %v651 = vadd.f32 %v598, %v650
    %652 = vdwg.mxu0
    %v653 = vpack.c.bf16 %v639, %v635
    %v654 = vpack.c.bf16 %v641, %v637
    %v655 = vpack.c.bf16 %v649, %v645
    %v656 = vpack.c.bf16 %v651, %v647
    %v661 = vunpack.c.l.b16 %v653
    %v662 = vunpack.c.l.b16 %v654
    %v663 = vunpack.c.h.b16 %v653
    %v664 = vunpack.c.h.b16 %v654
    %v665 = vunpack.c.l.b16 %v655
    %v666 = vunpack.c.l.b16 %v656
    %v667 = vunpack.c.h.b16 %v655
    %v668 = vunpack.c.h.b16 %v656
    %v669 = vpack.c.b16 %v662, %v661
    %v670 = vpack.c.b16 %v664, %v663
    %v671 = vpack.c.b16 %v666, %v665
    %v672 = vpack.c.b16 %v668, %v667
    %677 = vst [vmem:[#allocation3] sm:$0xff] %v669
    %678 = vst [vmem:[#allocation3 + $0x8] sm:$0xff] %v670
    %679 = vst [vmem:[#allocation3 + $0x10] sm:$0xff] %v671
    %680 = vst [vmem:[#allocation3 + $0x18] sm:$0xff] %v672
    %v681 = vld [vmem:[#allocation10] sm:$0xff]
    %v682 = vld [vmem:[#allocation10 + $0x8] sm:$0xff]
    %v683 = vld [vmem:[#allocation10 + $0x10] sm:$0xff]
    %v684 = vld [vmem:[#allocation10 + $0x18] sm:$0xff]
    %v685 = vld [vmem:[#allocation10 + $0x20] sm:$0xff]
    %v686 = vld [vmem:[#allocation10 + $0x28] sm:$0xff]
    %v687 = vld [vmem:[#allocation10 + $0x30] sm:$0xff]
    %v688 = vld [vmem:[#allocation10 + $0x38] sm:$0xff]
    %v689 = vld [vmem:[#allocation10 + $0x40] sm:$0xff]
    %v690 = vld [vmem:[#allocation10 + $0x48] sm:$0xff]
    %v691 = vld [vmem:[#allocation10 + $0x50] sm:$0xff]
    %v692 = vld [vmem:[#allocation10 + $0x58] sm:$0xff]
    %v693 = vld [vmem:[#allocation10 + $0x60] sm:$0xff]
    %v694 = vld [vmem:[#allocation10 + $0x68] sm:$0xff]
    %v695 = vld [vmem:[#allocation10 + $0x70] sm:$0xff]
    %v696 = vld [vmem:[#allocation10 + $0x78] sm:$0xff]
    %v697 = vld [vmem:[#allocation10 + $0x80] sm:$0xff]
    %v698 = vld [vmem:[#allocation10 + $0x88] sm:$0xff]
    %v699 = vld [vmem:[#allocation10 + $0x90] sm:$0xff]
    %v700 = vld [vmem:[#allocation10 + $0x98] sm:$0xff]
    %v701 = vld [vmem:[#allocation10 + $0xa0] sm:$0xff]
    %v702 = vld [vmem:[#allocation10 + $0xa8] sm:$0xff]
    %v703 = vld [vmem:[#allocation10 + $0xb0] sm:$0xff]
    %v704 = vld [vmem:[#allocation10 + $0xb8] sm:$0xff]
    %v705 = vld [vmem:[#allocation10 + $0xc0] sm:$0xff]
    %v706 = vld [vmem:[#allocation10 + $0xc8] sm:$0xff]
    %v707 = vld [vmem:[#allocation10 + $0xd0] sm:$0xff]
    %v708 = vld [vmem:[#allocation10 + $0xd8] sm:$0xff]
    %v709 = vld [vmem:[#allocation10 + $0xe0] sm:$0xff]
    %v710 = vld [vmem:[#allocation10 + $0xe8] sm:$0xff]
    %v711 = vld [vmem:[#allocation10 + $0xf0] sm:$0xff]
    %v712 = vld [vmem:[#allocation10 + $0xf8] sm:$0xff]
    %v713 = vld [vmem:[#allocation12] sm:$0x3]
    %v714 = vld [vmem:[#allocation2] sm:$0xff]
    %v715 = vld [vmem:[#allocation2 + $0x8] sm:$0xff]
    %v716 = vld [vmem:[#allocation2 + $0x10] sm:$0xff]
    %v717 = vld [vmem:[#allocation2 + $0x18] sm:$0xff]
    %v719 = vlaneseq
    %v720 = vshrl.u32 %v719, 7
    %v721 = vsub.s32 0, %v720
    %v722 = vrot.slane %v713, %v721
    %v723 = vlaneseq
    %v724 = vshrl.u32 %v723, 7
    %v725 = vsub.s32 1, %v724
    %v726 = vrot.slane %v713, %v725
    %v733 = vunpack.c.l.b16 %v714
    %v734 = vunpack.c.h.b16 %v714
    %v735 = vunpack.c.l.b16 %v715
    %v736 = vunpack.c.h.b16 %v715
    %v737 = vunpack.c.l.b16 %v716
    %v738 = vunpack.c.h.b16 %v716
    %v739 = vunpack.c.l.b16 %v717
    %v740 = vunpack.c.h.b16 %v717
    %v741 = vpack.c.b16 %v735, %v733
    %v742 = vpack.c.b16 %v736, %v734
    %v743 = vpack.c.b16 %v739, %v737
    %v744 = vpack.c.b16 %v740, %v738
    %v781 = vunpack.c.l.b16 %v681
    %v782 = vunpack.c.h.b16 %v681
    %v783 = vunpack.c.l.b16 %v682
    %v784 = vunpack.c.h.b16 %v682
    %v785 = vunpack.c.l.b16 %v683
    %v786 = vunpack.c.h.b16 %v683
    %v787 = vunpack.c.l.b16 %v684
    %v788 = vunpack.c.h.b16 %v684
    %v789 = vunpack.c.l.b16 %v685
    %v790 = vunpack.c.h.b16 %v685
    %v791 = vunpack.c.l.b16 %v686
    %v792 = vunpack.c.h.b16 %v686
    %v793 = vunpack.c.l.b16 %v687
    %v794 = vunpack.c.h.b16 %v687
    %v795 = vunpack.c.l.b16 %v688
    %v796 = vunpack.c.h.b16 %v688
    %v797 = vunpack.c.l.b16 %v689
    %v798 = vunpack.c.h.b16 %v689
    %v799 = vunpack.c.l.b16 %v690
    %v800 = vunpack.c.h.b16 %v690
    %v801 = vunpack.c.l.b16 %v691
    %v802 = vunpack.c.h.b16 %v691
    %v803 = vunpack.c.l.b16 %v692
    %v804 = vunpack.c.h.b16 %v692
    %v805 = vunpack.c.l.b16 %v693
    %v806 = vunpack.c.h.b16 %v693
    %v807 = vunpack.c.l.b16 %v694
    %v808 = vunpack.c.h.b16 %v694
    %v809 = vunpack.c.l.b16 %v695
    %v810 = vunpack.c.h.b16 %v695
    %v811 = vunpack.c.l.b16 %v696
    %v812 = vunpack.c.h.b16 %v696
    %v813 = vunpack.c.l.b16 %v697
    %v814 = vunpack.c.h.b16 %v697
    %v815 = vunpack.c.l.b16 %v698
    %v816 = vunpack.c.h.b16 %v698
    %v817 = vunpack.c.l.b16 %v699
    %v818 = vunpack.c.h.b16 %v699
    %v819 = vunpack.c.l.b16 %v700
    %v820 = vunpack.c.h.b16 %v700
    %v821 = vunpack.c.l.b16 %v701
    %v822 = vunpack.c.h.b16 %v701
    %v823 = vunpack.c.l.b16 %v702
    %v824 = vunpack.c.h.b16 %v702
    %v825 = vunpack.c.l.b16 %v703
    %v826 = vunpack.c.h.b16 %v703
    %v827 = vunpack.c.l.b16 %v704
    %v828 = vunpack.c.h.b16 %v704
    %v829 = vunpack.c.l.b16 %v705
    %v830 = vunpack.c.h.b16 %v705
    %v831 = vunpack.c.l.b16 %v706
    %v832 = vunpack.c.h.b16 %v706
    %v833 = vunpack.c.l.b16 %v707
    %v834 = vunpack.c.h.b16 %v707
    %v835 = vunpack.c.l.b16 %v708
    %v836 = vunpack.c.h.b16 %v708
    %v837 = vunpack.c.l.b16 %v709
    %v838 = vunpack.c.h.b16 %v709
    %v839 = vunpack.c.l.b16 %v710
    %v840 = vunpack.c.h.b16 %v710
    %v841 = vunpack.c.l.b16 %v711
    %v842 = vunpack.c.h.b16 %v711
    %v843 = vunpack.c.l.b16 %v712
    %v844 = vunpack.c.h.b16 %v712
    %v845 = vpack.c.b16 %v783, %v781
    %v846 = vpack.c.b16 %v784, %v782
    %v847 = vpack.c.b16 %v787, %v785
    %v848 = vpack.c.b16 %v788, %v786
    %v849 = vpack.c.b16 %v791, %v789
    %v850 = vpack.c.b16 %v792, %v790
    %v851 = vpack.c.b16 %v795, %v793
    %v852 = vpack.c.b16 %v796, %v794
    %v853 = vpack.c.b16 %v799, %v797
    %v854 = vpack.c.b16 %v800, %v798
    %v855 = vpack.c.b16 %v803, %v801
    %v856 = vpack.c.b16 %v804, %v802
    %v857 = vpack.c.b16 %v807, %v805
    %v858 = vpack.c.b16 %v808, %v806
    %v859 = vpack.c.b16 %v811, %v809
    %v860 = vpack.c.b16 %v812, %v810
    %v861 = vpack.c.b16 %v815, %v813
    %v862 = vpack.c.b16 %v816, %v814
    %v863 = vpack.c.b16 %v819, %v817
    %v864 = vpack.c.b16 %v820, %v818
    %v865 = vpack.c.b16 %v823, %v821
    %v866 = vpack.c.b16 %v824, %v822
    %v867 = vpack.c.b16 %v827, %v825
    %v868 = vpack.c.b16 %v828, %v826
    %v869 = vpack.c.b16 %v831, %v829
    %v870 = vpack.c.b16 %v832, %v830
    %v871 = vpack.c.b16 %v835, %v833
    %v872 = vpack.c.b16 %v836, %v834
    %v873 = vpack.c.b16 %v839, %v837
    %v874 = vpack.c.b16 %v840, %v838
    %v875 = vpack.c.b16 %v843, %v841
    %v876 = vpack.c.b16 %v844, %v842
    %909 = vmatprep.subr.bf16.mxu0 %v860
    %910 = vmatpush1.bf16.msra.mxu0 %v859
    %911 = vmatprep.subr.bf16.mxu0 %v858
    %912 = vmatpush1.bf16.msra.mxu0 %v857
    %913 = vmatprep.subr.bf16.mxu0 %v856
    %914 = vmatpush1.bf16.msra.mxu0 %v855
    %915 = vmatprep.subr.bf16.mxu0 %v854
    %916 = vmatpush1.bf16.msra.mxu0 %v853
    %917 = vmatprep.subr.bf16.mxu0 %v852
    %918 = vmatpush1.bf16.msra.mxu0 %v851
    %919 = vmatprep.subr.bf16.mxu0 %v850
    %920 = vmatpush1.bf16.msra.mxu0 %v849
    %921 = vmatprep.subr.bf16.mxu0 %v848
    %922 = vmatpush1.bf16.msra.mxu0 %v847
    %923 = vmatprep.subr.bf16.mxu0 %v846
    %924 = vmatpush1.bf16.msra.mxu0 %v845
    %925 = vmatprep.subr.bf16.mxu0 %v876
    %926 = vmatpush2.bf16.msra.mxu0 %v875
    %927 = vmatprep.subr.bf16.mxu0 %v874
    %928 = vmatpush2.bf16.msra.mxu0 %v873
    %929 = vmatprep.subr.bf16.mxu0 %v872
    %930 = vmatpush2.bf16.msra.mxu0 %v871
    %931 = vmatprep.subr.bf16.mxu0 %v870
    %932 = vmatpush2.bf16.msra.mxu0 %v869
    %933 = vmatprep.subr.bf16.mxu0 %v868
    %934 = vmatpush2.bf16.msra.mxu0 %v867
    %935 = vmatprep.subr.bf16.mxu0 %v866
    %936 = vmatpush2.bf16.msra.mxu0 %v865
    %937 = vmatprep.subr.bf16.mxu0 %v864
    %938 = vmatpush2.bf16.msra.mxu0 %v863
    %939 = vmatprep.subr.bf16.mxu0 %v862
    %940 = vmatpush2.bf16.msra.mxu0 %v861
    %941 = vmatprep.mubr.bf16.mxu0 %v742
    %942 = vmatmul.mubr.bf16.gmra.mxu0 %v741
    %v943 = vpop.f32.mrf.mxu0
    %v944 = vadd.f32 %v722, %v943
    %v945 = vpop.f32.mrf.mxu0
    %v946 = vadd.f32 %v726, %v945
    %v947 = vpop.f32.mrf.mxu0
    %v948 = vadd.f32 %v722, %v947
    %v949 = vpop.f32.mrf.mxu0
    %v950 = vadd.f32 %v726, %v949
    %951 = vmatprep.mubr.bf16.mxu0 %v744
    %952 = vmatmul.mubr.bf16.gmra.mxu0 %v743
    %v953 = vpop.f32.mrf.mxu0
    %v954 = vadd.f32 %v722, %v953
    %v955 = vpop.f32.mrf.mxu0
    %v956 = vadd.f32 %v726, %v955
    %v957 = vpop.f32.mrf.mxu0
    %v958 = vadd.f32 %v722, %v957
    %v959 = vpop.f32.mrf.mxu0
    %v960 = vadd.f32 %v726, %v959
    %961 = vdwg.mxu0
    %v962 = vpack.c.bf16 %v948, %v944
    %v963 = vpack.c.bf16 %v950, %v946
    %v964 = vpack.c.bf16 %v958, %v954
    %v965 = vpack.c.bf16 %v960, %v956
    %v966 = vmax.bf16 %v962, 0
    %v967 = vmax.bf16 %v963, 0
    %v968 = vmax.bf16 %v964, 0
    %v969 = vmax.bf16 %v965, 0
    %v970 = vadd.bf16 %v966, %v741
    %v971 = vadd.bf16 %v967, %v742
    %v972 = vadd.bf16 %v968, %v743
    %v973 = vadd.bf16 %v969, %v744
    %v978 = vunpack.c.l.b16 %v970
    %v979 = vunpack.c.l.b16 %v971
    %v980 = vunpack.c.h.b16 %v970
    %v981 = vunpack.c.h.b16 %v971
    %v982 = vunpack.c.l.b16 %v972
    %v983 = vunpack.c.l.b16 %v973
    %v984 = vunpack.c.h.b16 %v972
    %v985 = vunpack.c.h.b16 %v973
    %v986 = vpack.c.b16 %v979, %v978
    %v987 = vpack.c.b16 %v981, %v980
    %v988 = vpack.c.b16 %v983, %v982
    %v989 = vpack.c.b16 %v985, %v984
    %994 = vst [vmem:[#allocation2] sm:$0xff] %v986
    %995 = vst [vmem:[#allocation2 + $0x8] sm:$0xff] %v987
    %996 = vst [vmem:[#allocation2 + $0x10] sm:$0xff] %v988
    %997 = vst [vmem:[#allocation2 + $0x18] sm:$0xff] %v989
    %v998 = vld [vmem:[#allocation3] sm:$0xff]
    %v999 = vld [vmem:[#allocation3 + $0x8] sm:$0xff]
    %v1000 = vld [vmem:[#allocation3 + $0x10] sm:$0xff]
    %v1001 = vld [vmem:[#allocation3 + $0x18] sm:$0xff]
    %v1006 = vunpack.c.l.b16 %v998
    %v1007 = vunpack.c.h.b16 %v998
    %v1008 = vunpack.c.l.b16 %v999
    %v1009 = vunpack.c.h.b16 %v999
    %v1010 = vunpack.c.l.b16 %v1000
    %v1011 = vunpack.c.h.b16 %v1000
    %v1012 = vunpack.c.l.b16 %v1001
    %v1013 = vunpack.c.h.b16 %v1001
    %v1014 = vpack.c.b16 %v1008, %v1006
    %v1015 = vpack.c.b16 %v1009, %v1007
    %v1016 = vpack.c.b16 %v1012, %v1010
    %v1017 = vpack.c.b16 %v1013, %v1011
    %1022 = vmatprep.subr.bf16.mxu0 %v860
    %1023 = vmatpush1.bf16.msra.mxu0 %v859
    %1024 = vmatprep.subr.bf16.mxu0 %v858
    %1025 = vmatpush1.bf16.msra.mxu0 %v857
    %1026 = vmatprep.subr.bf16.mxu0 %v856
    %1027 = vmatpush1.bf16.msra.mxu0 %v855
    %1028 = vmatprep.subr.bf16.mxu0 %v854
    %1029 = vmatpush1.bf16.msra.mxu0 %v853
    %1030 = vmatprep.subr.bf16.mxu0 %v852
    %1031 = vmatpush1.bf16.msra.mxu0 %v851
    %1032 = vmatprep.subr.bf16.mxu0 %v850
    %1033 = vmatpush1.bf16.msra.mxu0 %v849
    %1034 = vmatprep.subr.bf16.mxu0 %v848
    %1035 = vmatpush1.bf16.msra.mxu0 %v847
    %1036 = vmatprep.subr.bf16.mxu0 %v846
    %1037 = vmatpush1.bf16.msra.mxu0 %v845
    %1038 = vmatprep.subr.bf16.mxu0 %v876
    %1039 = vmatpush2.bf16.msra.mxu0 %v875
    %1040 = vmatprep.subr.bf16.mxu0 %v874
    %1041 = vmatpush2.bf16.msra.mxu0 %v873
    %1042 = vmatprep.subr.bf16.mxu0 %v872
    %1043 = vmatpush2.bf16.msra.mxu0 %v871
    %1044 = vmatprep.subr.bf16.mxu0 %v870
    %1045 = vmatpush2.bf16.msra.mxu0 %v869
    %1046 = vmatprep.subr.bf16.mxu0 %v868
    %1047 = vmatpush2.bf16.msra.mxu0 %v867
    %1048 = vmatprep.subr.bf16.mxu0 %v866
    %1049 = vmatpush2.bf16.msra.mxu0 %v865
    %1050 = vmatprep.subr.bf16.mxu0 %v864
    %1051 = vmatpush2.bf16.msra.mxu0 %v863
    %1052 = vmatprep.subr.bf16.mxu0 %v862
    %1053 = vmatpush2.bf16.msra.mxu0 %v861
    %1054 = vmatprep.mubr.bf16.mxu0 %v1015
    %1055 = vmatmul.mubr.bf16.gmra.mxu0 %v1014
    %v1056 = vpop.f32.mrf.mxu0
    %v1057 = vadd.f32 %v722, %v1056
    %v1058 = vpop.f32.mrf.mxu0
    %v1059 = vadd.f32 %v726, %v1058
    %v1060 = vpop.f32.mrf.mxu0
    %v1061 = vadd.f32 %v722, %v1060
    %v1062 = vpop.f32.mrf.mxu0
    %v1063 = vadd.f32 %v726, %v1062
    %1064 = vmatprep.mubr.bf16.mxu0 %v1017
    %1065 = vmatmul.mubr.bf16.gmra.mxu0 %v1016
    %v1066 = vpop.f32.mrf.mxu0
    %v1067 = vadd.f32 %v722, %v1066
    %v1068 = vpop.f32.mrf.mxu0
    %v1069 = vadd.f32 %v726, %v1068
    %v1070 = vpop.f32.mrf.mxu0
    %v1071 = vadd.f32 %v722, %v1070
    %v1072 = vpop.f32.mrf.mxu0
    %v1073 = vadd.f32 %v726, %v1072
    %1074 = vdwg.mxu0
    %v1075 = vpack.c.bf16 %v1061, %v1057
    %v1076 = vpack.c.bf16 %v1063, %v1059
    %v1077 = vpack.c.bf16 %v1071, %v1067
    %v1078 = vpack.c.bf16 %v1073, %v1069
    %v1079 = vmax.bf16 %v1075, 0
    %v1080 = vmax.bf16 %v1076, 0
    %v1081 = vmax.bf16 %v1077, 0
    %v1082 = vmax.bf16 %v1078, 0
    %v1083 = vadd.bf16 %v1079, %v1014
    %v1084 = vadd.bf16 %v1080, %v1015
    %v1085 = vadd.bf16 %v1081, %v1016
    %v1086 = vadd.bf16 %v1082, %v1017
    %v1091 = vunpack.c.l.b16 %v1083
    %v1092 = vunpack.c.l.b16 %v1084
    %v1093 = vunpack.c.h.b16 %v1083
    %v1094 = vunpack.c.h.b16 %v1084
    %v1095 = vunpack.c.l.b16 %v1085
    %v1096 = vunpack.c.l.b16 %v1086
    %v1097 = vunpack.c.h.b16 %v1085
    %v1098 = vunpack.c.h.b16 %v1086
    %v1099 = vpack.c.b16 %v1092, %v1091
    %v1100 = vpack.c.b16 %v1094, %v1093
    %v1101 = vpack.c.b16 %v1096, %v1095
    %v1102 = vpack.c.b16 %v1098, %v1097
    %1107 = vst [vmem:[#allocation3] sm:$0xff] %v1099
    %1108 = vst [vmem:[#allocation3 + $0x8] sm:$0xff] %v1100
    %1109 = vst [vmem:[#allocation3 + $0x10] sm:$0xff] %v1101
    %1110 = vst [vmem:[#allocation3 + $0x18] sm:$0xff] %v1102
    %s1111 = scalar_lea.vmem [#allocation10], 256
    %v1112 = vld [vmem:[%s1111] sm:$0xff]
    %v1113 = vld [vmem:[%s1111 + $0x8] sm:$0xff]
    %v1114 = vld [vmem:[%s1111 + $0x10] sm:$0xff]
    %v1115 = vld [vmem:[%s1111 + $0x18] sm:$0xff]
    %v1116 = vld [vmem:[%s1111 + $0x20] sm:$0xff]
    %v1117 = vld [vmem:[%s1111 + $0x28] sm:$0xff]
    %v1118 = vld [vmem:[%s1111 + $0x30] sm:$0xff]
    %v1119 = vld [vmem:[%s1111 + $0x38] sm:$0xff]
    %v1120 = vld [vmem:[%s1111 + $0x40] sm:$0xff]
    %v1121 = vld [vmem:[%s1111 + $0x48] sm:$0xff]
    %v1122 = vld [vmem:[%s1111 + $0x50] sm:$0xff]
    %v1123 = vld [vmem:[%s1111 + $0x58] sm:$0xff]
    %v1124 = vld [vmem:[%s1111 + $0x60] sm:$0xff]
    %v1125 = vld [vmem:[%s1111 + $0x68] sm:$0xff]
    %v1126 = vld [vmem:[%s1111 + $0x70] sm:$0xff]
    %v1127 = vld [vmem:[%s1111 + $0x78] sm:$0xff]
    %v1128 = vld [vmem:[%s1111 + $0x80] sm:$0xff]
    %v1129 = vld [vmem:[%s1111 + $0x88] sm:$0xff]
    %v1130 = vld [vmem:[%s1111 + $0x90] sm:$0xff]
    %v1131 = vld [vmem:[%s1111 + $0x98] sm:$0xff]
    %v1132 = vld [vmem:[%s1111 + $0xa0] sm:$0xff]
    %v1133 = vld [vmem:[%s1111 + $0xa8] sm:$0xff]
    %v1134 = vld [vmem:[%s1111 + $0xb0] sm:$0xff]
    %v1135 = vld [vmem:[%s1111 + $0xb8] sm:$0xff]
    %v1136 = vld [vmem:[%s1111 + $0xc0] sm:$0xff]
    %v1137 = vld [vmem:[%s1111 + $0xc8] sm:$0xff]
    %v1138 = vld [vmem:[%s1111 + $0xd0] sm:$0xff]
    %v1139 = vld [vmem:[%s1111 + $0xd8] sm:$0xff]
    %v1140 = vld [vmem:[%s1111 + $0xe0] sm:$0xff]
    %v1141 = vld [vmem:[%s1111 + $0xe8] sm:$0xff]
    %v1142 = vld [vmem:[%s1111 + $0xf0] sm:$0xff]
    %v1143 = vld [vmem:[%s1111 + $0xf8] sm:$0xff]
    %s1144 = scalar_lea.vmem [#allocation12], 2
    %v1145 = vld [vmem:[%s1144] sm:$0x3]
    %v1146 = vld [vmem:[#allocation2] sm:$0xff]
    %v1147 = vld [vmem:[#allocation2 + $0x8] sm:$0xff]
    %v1148 = vld [vmem:[#allocation2 + $0x10] sm:$0xff]
    %v1149 = vld [vmem:[#allocation2 + $0x18] sm:$0xff]
    %v1151 = vlaneseq
    %v1152 = vshrl.u32 %v1151, 7
    %v1153 = vsub.s32 0, %v1152
    %v1154 = vrot.slane %v1145, %v1153
    %v1155 = vlaneseq
    %v1156 = vshrl.u32 %v1155, 7
    %v1157 = vsub.s32 1, %v1156
    %v1158 = vrot.slane %v1145, %v1157
    %v1165 = vunpack.c.l.b16 %v1146
    %v1166 = vunpack.c.h.b16 %v1146
    %v1167 = vunpack.c.l.b16 %v1147
    %v1168 = vunpack.c.h.b16 %v1147
    %v1169 = vunpack.c.l.b16 %v1148
    %v1170 = vunpack.c.h.b16 %v1148
    %v1171 = vunpack.c.l.b16 %v1149
    %v1172 = vunpack.c.h.b16 %v1149
    %v1173 = vpack.c.b16 %v1167, %v1165
    %v1174 = vpack.c.b16 %v1168, %v1166
    %v1175 = vpack.c.b16 %v1171, %v1169
    %v1176 = vpack.c.b16 %v1172, %v1170
    %v1213 = vunpack.c.l.b16 %v1112
    %v1214 = vunpack.c.h.b16 %v1112
    %v1215 = vunpack.c.l.b16 %v1113
    %v1216 = vunpack.c.h.b16 %v1113
    %v1217 = vunpack.c.l.b16 %v1114
    %v1218 = vunpack.c.h.b16 %v1114
    %v1219 = vunpack.c.l.b16 %v1115
    %v1220 = vunpack.c.h.b16 %v1115
    %v1221 = vunpack.c.l.b16 %v1116
    %v1222 = vunpack.c.h.b16 %v1116
    %v1223 = vunpack.c.l.b16 %v1117
    %v1224 = vunpack.c.h.b16 %v1117
    %v1225 = vunpack.c.l.b16 %v1118
    %v1226 = vunpack.c.h.b16 %v1118
    %v1227 = vunpack.c.l.b16 %v1119
    %v1228 = vunpack.c.h.b16 %v1119
    %v1229 = vunpack.c.l.b16 %v1120
    %v1230 = vunpack.c.h.b16 %v1120
    %v1231 = vunpack.c.l.b16 %v1121
    %v1232 = vunpack.c.h.b16 %v1121
    %v1233 = vunpack.c.l.b16 %v1122
    %v1234 = vunpack.c.h.b16 %v1122
    %v1235 = vunpack.c.l.b16 %v1123
    %v1236 = vunpack.c.h.b16 %v1123
    %v1237 = vunpack.c.l.b16 %v1124
    %v1238 = vunpack.c.h.b16 %v1124
    %v1239 = vunpack.c.l.b16 %v1125
    %v1240 = vunpack.c.h.b16 %v1125
    %v1241 = vunpack.c.l.b16 %v1126
    %v1242 = vunpack.c.h.b16 %v1126
    %v1243 = vunpack.c.l.b16 %v1127
    %v1244 = vunpack.c.h.b16 %v1127
    %v1245 = vunpack.c.l.b16 %v1128
    %v1246 = vunpack.c.h.b16 %v1128
    %v1247 = vunpack.c.l.b16 %v1129
    %v1248 = vunpack.c.h.b16 %v1129
    %v1249 = vunpack.c.l.b16 %v1130
    %v1250 = vunpack.c.h.b16 %v1130
    %v1251 = vunpack.c.l.b16 %v1131
    %v1252 = vunpack.c.h.b16 %v1131
    %v1253 = vunpack.c.l.b16 %v1132
    %v1254 = vunpack.c.h.b16 %v1132
    %v1255 = vunpack.c.l.b16 %v1133
    %v1256 = vunpack.c.h.b16 %v1133
    %v1257 = vunpack.c.l.b16 %v1134
    %v1258 = vunpack.c.h.b16 %v1134
    %v1259 = vunpack.c.l.b16 %v1135
    %v1260 = vunpack.c.h.b16 %v1135
    %v1261 = vunpack.c.l.b16 %v1136
    %v1262 = vunpack.c.h.b16 %v1136
    %v1263 = vunpack.c.l.b16 %v1137
    %v1264 = vunpack.c.h.b16 %v1137
    %v1265 = vunpack.c.l.b16 %v1138
    %v1266 = vunpack.c.h.b16 %v1138
    %v1267 = vunpack.c.l.b16 %v1139
    %v1268 = vunpack.c.h.b16 %v1139
    %v1269 = vunpack.c.l.b16 %v1140
    %v1270 = vunpack.c.h.b16 %v1140
    %v1271 = vunpack.c.l.b16 %v1141
    %v1272 = vunpack.c.h.b16 %v1141
    %v1273 = vunpack.c.l.b16 %v1142
    %v1274 = vunpack.c.h.b16 %v1142
    %v1275 = vunpack.c.l.b16 %v1143
    %v1276 = vunpack.c.h.b16 %v1143
    %v1277 = vpack.c.b16 %v1215, %v1213
    %v1278 = vpack.c.b16 %v1216, %v1214
    %v1279 = vpack.c.b16 %v1219, %v1217
    %v1280 = vpack.c.b16 %v1220, %v1218
    %v1281 = vpack.c.b16 %v1223, %v1221
    %v1282 = vpack.c.b16 %v1224, %v1222
    %v1283 = vpack.c.b16 %v1227, %v1225
    %v1284 = vpack.c.b16 %v1228, %v1226
    %v1285 = vpack.c.b16 %v1231, %v1229
    %v1286 = vpack.c.b16 %v1232, %v1230
    %v1287 = vpack.c.b16 %v1235, %v1233
    %v1288 = vpack.c.b16 %v1236, %v1234
    %v1289 = vpack.c.b16 %v1239, %v1237
    %v1290 = vpack.c.b16 %v1240, %v1238
    %v1291 = vpack.c.b16 %v1243, %v1241
    %v1292 = vpack.c.b16 %v1244, %v1242
    %v1293 = vpack.c.b16 %v1247, %v1245
    %v1294 = vpack.c.b16 %v1248, %v1246
    %v1295 = vpack.c.b16 %v1251, %v1249
    %v1296 = vpack.c.b16 %v1252, %v1250
    %v1297 = vpack.c.b16 %v1255, %v1253
    %v1298 = vpack.c.b16 %v1256, %v1254
    %v1299 = vpack.c.b16 %v1259, %v1257
    %v1300 = vpack.c.b16 %v1260, %v1258
    %v1301 = vpack.c.b16 %v1263, %v1261
    %v1302 = vpack.c.b16 %v1264, %v1262
    %v1303 = vpack.c.b16 %v1267, %v1265
    %v1304 = vpack.c.b16 %v1268, %v1266
    %v1305 = vpack.c.b16 %v1271, %v1269
    %v1306 = vpack.c.b16 %v1272, %v1270
    %v1307 = vpack.c.b16 %v1275, %v1273
    %v1308 = vpack.c.b16 %v1276, %v1274
    %1341 = vmatprep.subr.bf16.mxu0 %v1292
    %1342 = vmatpush1.bf16.msra.mxu0 %v1291
    %1343 = vmatprep.subr.bf16.mxu0 %v1290
    %1344 = vmatpush1.bf16.msra.mxu0 %v1289
    %1345 = vmatprep.subr.bf16.mxu0 %v1288
    %1346 = vmatpush1.bf16.msra.mxu0 %v1287
    %1347 = vmatprep.subr.bf16.mxu0 %v1286
    %1348 = vmatpush1.bf16.msra.mxu0 %v1285
    %1349 = vmatprep.subr.bf16.mxu0 %v1284
    %1350 = vmatpush1.bf16.msra.mxu0 %v1283
    %1351 = vmatprep.subr.bf16.mxu0 %v1282
    %1352 = vmatpush1.bf16.msra.mxu0 %v1281
    %1353 = vmatprep.subr.bf16.mxu0 %v1280
    %1354 = vmatpush1.bf16.msra.mxu0 %v1279
    %1355 = vmatprep.subr.bf16.mxu0 %v1278
    %1356 = vmatpush1.bf16.msra.mxu0 %v1277
    %1357 = vmatprep.subr.bf16.mxu0 %v1308
    %1358 = vmatpush2.bf16.msra.mxu0 %v1307
    %1359 = vmatprep.subr.bf16.mxu0 %v1306
    %1360 = vmatpush2.bf16.msra.mxu0 %v1305
    %1361 = vmatprep.subr.bf16.mxu0 %v1304
    %1362 = vmatpush2.bf16.msra.mxu0 %v1303
    %1363 = vmatprep.subr.bf16.mxu0 %v1302
    %1364 = vmatpush2.bf16.msra.mxu0 %v1301
    %1365 = vmatprep.subr.bf16.mxu0 %v1300
    %1366 = vmatpush2.bf16.msra.mxu0 %v1299
    %1367 = vmatprep.subr.bf16.mxu0 %v1298
    %1368 = vmatpush2.bf16.msra.mxu0 %v1297
    %1369 = vmatprep.subr.bf16.mxu0 %v1296
    %1370 = vmatpush2.bf16.msra.mxu0 %v1295
    %1371 = vmatprep.subr.bf16.mxu0 %v1294
    %1372 = vmatpush2.bf16.msra.mxu0 %v1293
    %1373 = vmatprep.mubr.bf16.mxu0 %v1174
    %1374 = vmatmul.mubr.bf16.gmra.mxu0 %v1173
    %v1375 = vpop.f32.mrf.mxu0
    %v1376 = vadd.f32 %v1154, %v1375
    %v1377 = vpop.f32.mrf.mxu0
    %v1378 = vadd.f32 %v1158, %v1377
    %v1379 = vpop.f32.mrf.mxu0
    %v1380 = vadd.f32 %v1154, %v1379
    %v1381 = vpop.f32.mrf.mxu0
    %v1382 = vadd.f32 %v1158, %v1381
    %1383 = vmatprep.mubr.bf16.mxu0 %v1176
    %1384 = vmatmul.mubr.bf16.gmra.mxu0 %v1175
    %v1385 = vpop.f32.mrf.mxu0
    %v1386 = vadd.f32 %v1154, %v1385
    %v1387 = vpop.f32.mrf.mxu0
    %v1388 = vadd.f32 %v1158, %v1387
    %v1389 = vpop.f32.mrf.mxu0
    %v1390 = vadd.f32 %v1154, %v1389
    %v1391 = vpop.f32.mrf.mxu0
    %v1392 = vadd.f32 %v1158, %v1391
    %1393 = vdwg.mxu0
    %v1394 = vpack.c.bf16 %v1380, %v1376
    %v1395 = vpack.c.bf16 %v1382, %v1378
    %v1396 = vpack.c.bf16 %v1390, %v1386
    %v1397 = vpack.c.bf16 %v1392, %v1388
    %v1398 = vmax.bf16 %v1394, 0
    %v1399 = vmax.bf16 %v1395, 0
    %v1400 = vmax.bf16 %v1396, 0
    %v1401 = vmax.bf16 %v1397, 0
    %v1402 = vadd.bf16 %v1398, %v1173
    %v1403 = vadd.bf16 %v1399, %v1174
    %v1404 = vadd.bf16 %v1400, %v1175
    %v1405 = vadd.bf16 %v1401, %v1176
    %v1410 = vunpack.c.l.b16 %v1402
    %v1411 = vunpack.c.l.b16 %v1403
    %v1412 = vunpack.c.h.b16 %v1402
    %v1413 = vunpack.c.h.b16 %v1403
    %v1414 = vunpack.c.l.b16 %v1404
    %v1415 = vunpack.c.l.b16 %v1405
    %v1416 = vunpack.c.h.b16 %v1404
    %v1417 = vunpack.c.h.b16 %v1405
    %v1418 = vpack.c.b16 %v1411, %v1410
    %v1419 = vpack.c.b16 %v1413, %v1412
    %v1420 = vpack.c.b16 %v1415, %v1414
    %v1421 = vpack.c.b16 %v1417, %v1416
    %1426 = vst [vmem:[#allocation2] sm:$0xff] %v1418
    %1427 = vst [vmem:[#allocation2 + $0x8] sm:$0xff] %v1419
    %1428 = vst [vmem:[#allocation2 + $0x10] sm:$0xff] %v1420
    %1429 = vst [vmem:[#allocation2 + $0x18] sm:$0xff] %v1421
    %v1430 = vld [vmem:[#allocation3] sm:$0xff]
    %v1431 = vld [vmem:[#allocation3 + $0x8] sm:$0xff]
    %v1432 = vld [vmem:[#allocation3 + $0x10] sm:$0xff]
    %v1433 = vld [vmem:[#allocation3 + $0x18] sm:$0xff]
    %v1438 = vunpack.c.l.b16 %v1430
    %v1439 = vunpack.c.h.b16 %v1430
    %v1440 = vunpack.c.l.b16 %v1431
    %v1441 = vunpack.c.h.b16 %v1431
    %v1442 = vunpack.c.l.b16 %v1432
    %v1443 = vunpack.c.h.b16 %v1432
    %v1444 = vunpack.c.l.b16 %v1433
    %v1445 = vunpack.c.h.b16 %v1433
    %v1446 = vpack.c.b16 %v1440, %v1438
    %v1447 = vpack.c.b16 %v1441, %v1439
    %v1448 = vpack.c.b16 %v1444, %v1442
    %v1449 = vpack.c.b16 %v1445, %v1443
    %1454 = vmatprep.subr.bf16.mxu0 %v1292
    %1455 = vmatpush1.bf16.msra.mxu0 %v1291
    %1456 = vmatprep.subr.bf16.mxu0 %v1290
    %1457 = vmatpush1.bf16.msra.mxu0 %v1289
    %1458 = vmatprep.subr.bf16.mxu0 %v1288
    %1459 = vmatpush1.bf16.msra.mxu0 %v1287
    %1460 = vmatprep.subr.bf16.mxu0 %v1286
    %1461 = vmatpush1.bf16.msra.mxu0 %v1285
    %1462 = vmatprep.subr.bf16.mxu0 %v1284
    %1463 = vmatpush1.bf16.msra.mxu0 %v1283
    %1464 = vmatprep.subr.bf16.mxu0 %v1282
    %1465 = vmatpush1.bf16.msra.mxu0 %v1281
    %1466 = vmatprep.subr.bf16.mxu0 %v1280
    %1467 = vmatpush1.bf16.msra.mxu0 %v1279
    %1468 = vmatprep.subr.bf16.mxu0 %v1278
    %1469 = vmatpush1.bf16.msra.mxu0 %v1277
    %1470 = vmatprep.subr.bf16.mxu0 %v1308
    %1471 = vmatpush2.bf16.msra.mxu0 %v1307
    %1472 = vmatprep.subr.bf16.mxu0 %v1306
    %1473 = vmatpush2.bf16.msra.mxu0 %v1305
    %1474 = vmatprep.subr.bf16.mxu0 %v1304
    %1475 = vmatpush2.bf16.msra.mxu0 %v1303
    %1476 = vmatprep.subr.bf16.mxu0 %v1302
    %1477 = vmatpush2.bf16.msra.mxu0 %v1301
    %1478 = vmatprep.subr.bf16.mxu0 %v1300
    %1479 = vmatpush2.bf16.msra.mxu0 %v1299
    %1480 = vmatprep.subr.bf16.mxu0 %v1298
    %1481 = vmatpush2.bf16.msra.mxu0 %v1297
    %1482 = vmatprep.subr.bf16.mxu0 %v1296
    %1483 = vmatpush2.bf16.msra.mxu0 %v1295
    %1484 = vmatprep.subr.bf16.mxu0 %v1294
    %1485 = vmatpush2.bf16.msra.mxu0 %v1293
    %1486 = vmatprep.mubr.bf16.mxu0 %v1447
    %1487 = vmatmul.mubr.bf16.gmra.mxu0 %v1446
    %v1488 = vpop.f32.mrf.mxu0
    %v1489 = vadd.f32 %v1154, %v1488
    %v1490 = vpop.f32.mrf.mxu0
    %v1491 = vadd.f32 %v1158, %v1490
    %v1492 = vpop.f32.mrf.mxu0
    %v1493 = vadd.f32 %v1154, %v1492
    %v1494 = vpop.f32.mrf.mxu0
    %v1495 = vadd.f32 %v1158, %v1494
    %1496 = vmatprep.mubr.bf16.mxu0 %v1449
    %1497 = vmatmul.mubr.bf16.gmra.mxu0 %v1448
    %v1498 = vpop.f32.mrf.mxu0
    %v1499 = vadd.f32 %v1154, %v1498
    %v1500 = vpop.f32.mrf.mxu0
    %v1501 = vadd.f32 %v1158, %v1500
    %v1502 = vpop.f32.mrf.mxu0
    %v1503 = vadd.f32 %v1154, %v1502
    %v1504 = vpop.f32.mrf.mxu0
    %v1505 = vadd.f32 %v1158, %v1504
    %1506 = vdwg.mxu0
    %v1507 = vpack.c.bf16 %v1493, %v1489
    %v1508 = vpack.c.bf16 %v1495, %v1491
    %v1509 = vpack.c.bf16 %v1503, %v1499
    %v1510 = vpack.c.bf16 %v1505, %v1501
    %v1511 = vmax.bf16 %v1507, 0
    %v1512 = vmax.bf16 %v1508, 0
    %v1513 = vmax.bf16 %v1509, 0
    %v1514 = vmax.bf16 %v1510, 0
    %v1515 = vadd.bf16 %v1511, %v1446
    %v1516 = vadd.bf16 %v1512, %v1447
    %v1517 = vadd.bf16 %v1513, %v1448
    %v1518 = vadd.bf16 %v1514, %v1449
    %v1523 = vunpack.c.l.b16 %v1515
    %v1524 = vunpack.c.l.b16 %v1516
    %v1525 = vunpack.c.h.b16 %v1515
    %v1526 = vunpack.c.h.b16 %v1516
    %v1527 = vunpack.c.l.b16 %v1517
    %v1528 = vunpack.c.l.b16 %v1518
    %v1529 = vunpack.c.h.b16 %v1517
    %v1530 = vunpack.c.h.b16 %v1518
    %v1531 = vpack.c.b16 %v1524, %v1523
    %v1532 = vpack.c.b16 %v1526, %v1525
    %v1533 = vpack.c.b16 %v1528, %v1527
    %v1534 = vpack.c.b16 %v1530, %v1529
    %1539 = vst [vmem:[#allocation3] sm:$0xff] %v1531
    %1540 = vst [vmem:[#allocation3 + $0x8] sm:$0xff] %v1532
    %1541 = vst [vmem:[#allocation3 + $0x10] sm:$0xff] %v1533
    %1542 = vst [vmem:[#allocation3 + $0x18] sm:$0xff] %v1534
    %s1543 = scalar_lea.vmem [#allocation10], 512
    %v1544 = vld [vmem:[%s1543] sm:$0xff]
    %v1545 = vld [vmem:[%s1543 + $0x8] sm:$0xff]
    %v1546 = vld [vmem:[%s1543 + $0x10] sm:$0xff]
    %v1547 = vld [vmem:[%s1543 + $0x18] sm:$0xff]
    %v1548 = vld [vmem:[%s1543 + $0x20] sm:$0xff]
    %v1549 = vld [vmem:[%s1543 + $0x28] sm:$0xff]
    %v1550 = vld [vmem:[%s1543 + $0x30] sm:$0xff]
    %v1551 = vld [vmem:[%s1543 + $0x38] sm:$0xff]
    %v1552 = vld [vmem:[%s1543 + $0x40] sm:$0xff]
    %v1553 = vld [vmem:[%s1543 + $0x48] sm:$0xff]
    %v1554 = vld [vmem:[%s1543 + $0x50] sm:$0xff]
    %v1555 = vld [vmem:[%s1543 + $0x58] sm:$0xff]
    %v1556 = vld [vmem:[%s1543 + $0x60] sm:$0xff]
    %v1557 = vld [vmem:[%s1543 + $0x68] sm:$0xff]
    %v1558 = vld [vmem:[%s1543 + $0x70] sm:$0xff]
    %v1559 = vld [vmem:[%s1543 + $0x78] sm:$0xff]
    %v1560 = vld [vmem:[%s1543 + $0x80] sm:$0xff]
    %v1561 = vld [vmem:[%s1543 + $0x88] sm:$0xff]
    %v1562 = vld [vmem:[%s1543 + $0x90] sm:$0xff]
    %v1563 = vld [vmem:[%s1543 + $0x98] sm:$0xff]
    %v1564 = vld [vmem:[%s1543 + $0xa0] sm:$0xff]
    %v1565 = vld [vmem:[%s1543 + $0xa8] sm:$0xff]
    %v1566 = vld [vmem:[%s1543 + $0xb0] sm:$0xff]
    %v1567 = vld [vmem:[%s1543 + $0xb8] sm:$0xff]
    %v1568 = vld [vmem:[%s1543 + $0xc0] sm:$0xff]
    %v1569 = vld [vmem:[%s1543 + $0xc8] sm:$0xff]
    %v1570 = vld [vmem:[%s1543 + $0xd0] sm:$0xff]
    %v1571 = vld [vmem:[%s1543 + $0xd8] sm:$0xff]
    %v1572 = vld [vmem:[%s1543 + $0xe0] sm:$0xff]
    %v1573 = vld [vmem:[%s1543 + $0xe8] sm:$0xff]
    %v1574 = vld [vmem:[%s1543 + $0xf0] sm:$0xff]
    %v1575 = vld [vmem:[%s1543 + $0xf8] sm:$0xff]
    %s1576 = scalar_lea.vmem [#allocation12], 4
    %v1577 = vld [vmem:[%s1576] sm:$0x3]
    %v1578 = vld [vmem:[#allocation2] sm:$0xff]
    %v1579 = vld [vmem:[#allocation2 + $0x8] sm:$0xff]
    %v1580 = vld [vmem:[#allocation2 + $0x10] sm:$0xff]
    %v1581 = vld [vmem:[#allocation2 + $0x18] sm:$0xff]
    %v1583 = vlaneseq
    %v1584 = vshrl.u32 %v1583, 7
    %v1585 = vsub.s32 0, %v1584
    %v1586 = vrot.slane %v1577, %v1585
    %v1587 = vlaneseq
    %v1588 = vshrl.u32 %v1587, 7
    %v1589 = vsub.s32 1, %v1588
    %v1590 = vrot.slane %v1577, %v1589
    %v1597 = vunpack.c.l.b16 %v1578
    %v1598 = vunpack.c.h.b16 %v1578
    %v1599 = vunpack.c.l.b16 %v1579
    %v1600 = vunpack.c.h.b16 %v1579
    %v1601 = vunpack.c.l.b16 %v1580
    %v1602 = vunpack.c.h.b16 %v1580
    %v1603 = vunpack.c.l.b16 %v1581
    %v1604 = vunpack.c.h.b16 %v1581
    %v1605 = vpack.c.b16 %v1599, %v1597
    %v1606 = vpack.c.b16 %v1600, %v1598
    %v1607 = vpack.c.b16 %v1603, %v1601
    %v1608 = vpack.c.b16 %v1604, %v1602
    %v1645 = vunpack.c.l.b16 %v1544
    %v1646 = vunpack.c.h.b16 %v1544
    %v1647 = vunpack.c.l.b16 %v1545
    %v1648 = vunpack.c.h.b16 %v1545
    %v1649 = vunpack.c.l.b16 %v1546
    %v1650 = vunpack.c.h.b16 %v1546
    %v1651 = vunpack.c.l.b16 %v1547
    %v1652 = vunpack.c.h.b16 %v1547
    %v1653 = vunpack.c.l.b16 %v1548
    %v1654 = vunpack.c.h.b16 %v1548
    %v1655 = vunpack.c.l.b16 %v1549
    %v1656 = vunpack.c.h.b16 %v1549
    %v1657 = vunpack.c.l.b16 %v1550
    %v1658 = vunpack.c.h.b16 %v1550
    %v1659 = vunpack.c.l.b16 %v1551
    %v1660 = vunpack.c.h.b16 %v1551
    %v1661 = vunpack.c.l.b16 %v1552
    %v1662 = vunpack.c.h.b16 %v1552
    %v1663 = vunpack.c.l.b16 %v1553
    %v1664 = vunpack.c.h.b16 %v1553
    %v1665 = vunpack.c.l.b16 %v1554
    %v1666 = vunpack.c.h.b16 %v1554
    %v1667 = vunpack.c.l.b16 %v1555
    %v1668 = vunpack.c.h.b16 %v1555
    %v1669 = vunpack.c.l.b16 %v1556
    %v1670 = vunpack.c.h.b16 %v1556
    %v1671 = vunpack.c.l.b16 %v1557
    %v1672 = vunpack.c.h.b16 %v1557
    %v1673 = vunpack.c.l.b16 %v1558
    %v1674 = vunpack.c.h.b16 %v1558
    %v1675 = vunpack.c.l.b16 %v1559
    %v1676 = vunpack.c.h.b16 %v1559
    %v1677 = vunpack.c.l.b16 %v1560
    %v1678 = vunpack.c.h.b16 %v1560
    %v1679 = vunpack.c.l.b16 %v1561
    %v1680 = vunpack.c.h.b16 %v1561
    %v1681 = vunpack.c.l.b16 %v1562
    %v1682 = vunpack.c.h.b16 %v1562
    %v1683 = vunpack.c.l.b16 %v1563
    %v1684 = vunpack.c.h.b16 %v1563
    %v1685 = vunpack.c.l.b16 %v1564
    %v1686 = vunpack.c.h.b16 %v1564
    %v1687 = vunpack.c.l.b16 %v1565
    %v1688 = vunpack.c.h.b16 %v1565
    %v1689 = vunpack.c.l.b16 %v1566
    %v1690 = vunpack.c.h.b16 %v1566
    %v1691 = vunpack.c.l.b16 %v1567
    %v1692 = vunpack.c.h.b16 %v1567
    %v1693 = vunpack.c.l.b16 %v1568
    %v1694 = vunpack.c.h.b16 %v1568
    %v1695 = vunpack.c.l.b16 %v1569
    %v1696 = vunpack.c.h.b16 %v1569
    %v1697 = vunpack.c.l.b16 %v1570
    %v1698 = vunpack.c.h.b16 %v1570
    %v1699 = vunpack.c.l.b16 %v1571
    %v1700 = vunpack.c.h.b16 %v1571
    %v1701 = vunpack.c.l.b16 %v1572
    %v1702 = vunpack.c.h.b16 %v1572
    %v1703 = vunpack.c.l.b16 %v1573
    %v1704 = vunpack.c.h.b16 %v1573
    %v1705 = vunpack.c.l.b16 %v1574
    %v1706 = vunpack.c.h.b16 %v1574
    %v1707 = vunpack.c.l.b16 %v1575
    %v1708 = vunpack.c.h.b16 %v1575
    %v1709 = vpack.c.b16 %v1647, %v1645
    %v1710 = vpack.c.b16 %v1648, %v1646
    %v1711 = vpack.c.b16 %v1651, %v1649
    %v1712 = vpack.c.b16 %v1652, %v1650
    %v1713 = vpack.c.b16 %v1655, %v1653
    %v1714 = vpack.c.b16 %v1656, %v1654
    %v1715 = vpack.c.b16 %v1659, %v1657
    %v1716 = vpack.c.b16 %v1660, %v1658
    %v1717 = vpack.c.b16 %v1663, %v1661
    %v1718 = vpack.c.b16 %v1664, %v1662
    %v1719 = vpack.c.b16 %v1667, %v1665
    %v1720 = vpack.c.b16 %v1668, %v1666
    %v1721 = vpack.c.b16 %v1671, %v1669
    %v1722 = vpack.c.b16 %v1672, %v1670
    %v1723 = vpack.c.b16 %v1675, %v1673
    %v1724 = vpack.c.b16 %v1676, %v1674
    %v1725 = vpack.c.b16 %v1679, %v1677
    %v1726 = vpack.c.b16 %v1680, %v1678
    %v1727 = vpack.c.b16 %v1683, %v1681
    %v1728 = vpack.c.b16 %v1684, %v1682
    %v1729 = vpack.c.b16 %v1687, %v1685
    %v1730 = vpack.c.b16 %v1688, %v1686
    %v1731 = vpack.c.b16 %v1691, %v1689
    %v1732 = vpack.c.b16 %v1692, %v1690
    %v1733 = vpack.c.b16 %v1695, %v1693
    %v1734 = vpack.c.b16 %v1696, %v1694
    %v1735 = vpack.c.b16 %v1699, %v1697
    %v1736 = vpack.c.b16 %v1700, %v1698
    %v1737 = vpack.c.b16 %v1703, %v1701
    %v1738 = vpack.c.b16 %v1704, %v1702
    %v1739 = vpack.c.b16 %v1707, %v1705
    %v1740 = vpack.c.b16 %v1708, %v1706
    %1773 = vmatprep.subr.bf16.mxu0 %v1724
    %1774 = vmatpush1.bf16.msra.mxu0 %v1723
    %1775 = vmatprep.subr.bf16.mxu0 %v1722
    %1776 = vmatpush1.bf16.msra.mxu0 %v1721
    %1777 = vmatprep.subr.bf16.mxu0 %v1720
    %1778 = vmatpush1.bf16.msra.mxu0 %v1719
    %1779 = vmatprep.subr.bf16.mxu0 %v1718
    %1780 = vmatpush1.bf16.msra.mxu0 %v1717
    %1781 = vmatprep.subr.bf16.mxu0 %v1716
    %1782 = vmatpush1.bf16.msra.mxu0 %v1715
    %1783 = vmatprep.subr.bf16.mxu0 %v1714
    %1784 = vmatpush1.bf16.msra.mxu0 %v1713
    %1785 = vmatprep.subr.bf16.mxu0 %v1712
    %1786 = vmatpush1.bf16.msra.mxu0 %v1711
    %1787 = vmatprep.subr.bf16.mxu0 %v1710
    %1788 = vmatpush1.bf16.msra.mxu0 %v1709
    %1789 = vmatprep.subr.bf16.mxu0 %v1740
    %1790 = vmatpush2.bf16.msra.mxu0 %v1739
    %1791 = vmatprep.subr.bf16.mxu0 %v1738
    %1792 = vmatpush2.bf16.msra.mxu0 %v1737
    %1793 = vmatprep.subr.bf16.mxu0 %v1736
    %1794 = vmatpush2.bf16.msra.mxu0 %v1735
    %1795 = vmatprep.subr.bf16.mxu0 %v1734
    %1796 = vmatpush2.bf16.msra.mxu0 %v1733
    %1797 = vmatprep.subr.bf16.mxu0 %v1732
    %1798 = vmatpush2.bf16.msra.mxu0 %v1731
    %1799 = vmatprep.subr.bf16.mxu0 %v1730
    %1800 = vmatpush2.bf16.msra.mxu0 %v1729
    %1801 = vmatprep.subr.bf16.mxu0 %v1728
    %1802 = vmatpush2.bf16.msra.mxu0 %v1727
    %1803 = vmatprep.subr.bf16.mxu0 %v1726
    %1804 = vmatpush2.bf16.msra.mxu0 %v1725
    %1805 = vmatprep.mubr.bf16.mxu0 %v1606
    %1806 = vmatmul.mubr.bf16.gmra.mxu0 %v1605
    %v1807 = vpop.f32.mrf.mxu0
    %v1808 = vadd.f32 %v1586, %v1807
    %v1809 = vpop.f32.mrf.mxu0
    %v1810 = vadd.f32 %v1590, %v1809
    %v1811 = vpop.f32.mrf.mxu0
    %v1812 = vadd.f32 %v1586, %v1811
    %v1813 = vpop.f32.mrf.mxu0
    %v1814 = vadd.f32 %v1590, %v1813
    %1815 = vmatprep.mubr.bf16.mxu0 %v1608
    %1816 = vmatmul.mubr.bf16.gmra.mxu0 %v1607
    %v1817 = vpop.f32.mrf.mxu0
    %v1818 = vadd.f32 %v1586, %v1817
    %v1819 = vpop.f32.mrf.mxu0
    %v1820 = vadd.f32 %v1590, %v1819
    %v1821 = vpop.f32.mrf.mxu0
    %v1822 = vadd.f32 %v1586, %v1821
    %v1823 = vpop.f32.mrf.mxu0
    %v1824 = vadd.f32 %v1590, %v1823
    %1825 = vdwg.mxu0
    %v1826 = vpack.c.bf16 %v1812, %v1808
    %v1827 = vpack.c.bf16 %v1814, %v1810
    %v1828 = vpack.c.bf16 %v1822, %v1818
    %v1829 = vpack.c.bf16 %v1824, %v1820
    %v1830 = vmax.bf16 %v1826, 0
    %v1831 = vmax.bf16 %v1827, 0
    %v1832 = vmax.bf16 %v1828, 0
    %v1833 = vmax.bf16 %v1829, 0
    %v1834 = vadd.bf16 %v1830, %v1605
    %v1835 = vadd.bf16 %v1831, %v1606
    %v1836 = vadd.bf16 %v1832, %v1607
    %v1837 = vadd.bf16 %v1833, %v1608
    %v1842 = vunpack.c.l.b16 %v1834
    %v1843 = vunpack.c.l.b16 %v1835
    %v1844 = vunpack.c.h.b16 %v1834
    %v1845 = vunpack.c.h.b16 %v1835
    %v1846 = vunpack.c.l.b16 %v1836
    %v1847 = vunpack.c.l.b16 %v1837
    %v1848 = vunpack.c.h.b16 %v1836
    %v1849 = vunpack.c.h.b16 %v1837
    %v1850 = vpack.c.b16 %v1843, %v1842
    %v1851 = vpack.c.b16 %v1845, %v1844
    %v1852 = vpack.c.b16 %v1847, %v1846
    %v1853 = vpack.c.b16 %v1849, %v1848
    %1858 = vst [vmem:[#allocation2] sm:$0xff] %v1850
    %1859 = vst [vmem:[#allocation2 + $0x8] sm:$0xff] %v1851
    %1860 = vst [vmem:[#allocation2 + $0x10] sm:$0xff] %v1852
    %1861 = vst [vmem:[#allocation2 + $0x18] sm:$0xff] %v1853
    %v1862 = vld [vmem:[#allocation3] sm:$0xff]
    %v1863 = vld [vmem:[#allocation3 + $0x8] sm:$0xff]
    %v1864 = vld [vmem:[#allocation3 + $0x10] sm:$0xff]
    %v1865 = vld [vmem:[#allocation3 + $0x18] sm:$0xff]
    %v1870 = vunpack.c.l.b16 %v1862
    %v1871 = vunpack.c.h.b16 %v1862
    %v1872 = vunpack.c.l.b16 %v1863
    %v1873 = vunpack.c.h.b16 %v1863
    %v1874 = vunpack.c.l.b16 %v1864
    %v1875 = vunpack.c.h.b16 %v1864
    %v1876 = vunpack.c.l.b16 %v1865
    %v1877 = vunpack.c.h.b16 %v1865
    %v1878 = vpack.c.b16 %v1872, %v1870
    %v1879 = vpack.c.b16 %v1873, %v1871
    %v1880 = vpack.c.b16 %v1876, %v1874
    %v1881 = vpack.c.b16 %v1877, %v1875
    %1886 = vmatprep.subr.bf16.mxu0 %v1724
    %1887 = vmatpush1.bf16.msra.mxu0 %v1723
    %1888 = vmatprep.subr.bf16.mxu0 %v1722
    %1889 = vmatpush1.bf16.msra.mxu0 %v1721
    %1890 = vmatprep.subr.bf16.mxu0 %v1720
    %1891 = vmatpush1.bf16.msra.mxu0 %v1719
    %1892 = vmatprep.subr.bf16.mxu0 %v1718
    %1893 = vmatpush1.bf16.msra.mxu0 %v1717
    %1894 = vmatprep.subr.bf16.mxu0 %v1716
    %1895 = vmatpush1.bf16.msra.mxu0 %v1715
    %1896 = vmatprep.subr.bf16.mxu0 %v1714
    %1897 = vmatpush1.bf16.msra.mxu0 %v1713
    %1898 = vmatprep.subr.bf16.mxu0 %v1712
    %1899 = vmatpush1.bf16.msra.mxu0 %v1711
    %1900 = vmatprep.subr.bf16.mxu0 %v1710
    %1901 = vmatpush1.bf16.msra.mxu0 %v1709
    %1902 = vmatprep.subr.bf16.mxu0 %v1740
    %1903 = vmatpush2.bf16.msra.mxu0 %v1739
    %1904 = vmatprep.subr.bf16.mxu0 %v1738
    %1905 = vmatpush2.bf16.msra.mxu0 %v1737
    %1906 = vmatprep.subr.bf16.mxu0 %v1736
    %1907 = vmatpush2.bf16.msra.mxu0 %v1735
    %1908 = vmatprep.subr.bf16.mxu0 %v1734
    %1909 = vmatpush2.bf16.msra.mxu0 %v1733
    %1910 = vmatprep.subr.bf16.mxu0 %v1732
    %1911 = vmatpush2.bf16.msra.mxu0 %v1731
    %1912 = vmatprep.subr.bf16.mxu0 %v1730
    %1913 = vmatpush2.bf16.msra.mxu0 %v1729
    %1914 = vmatprep.subr.bf16.mxu0 %v1728
    %1915 = vmatpush2.bf16.msra.mxu0 %v1727
    %1916 = vmatprep.subr.bf16.mxu0 %v1726
    %1917 = vmatpush2.bf16.msra.mxu0 %v1725
    %1918 = vmatprep.mubr.bf16.mxu0 %v1879
    %1919 = vmatmul.mubr.bf16.gmra.mxu0 %v1878
    %v1920 = vpop.f32.mrf.mxu0
    %v1921 = vadd.f32 %v1586, %v1920
    %v1922 = vpop.f32.mrf.mxu0
    %v1923 = vadd.f32 %v1590, %v1922
    %v1924 = vpop.f32.mrf.mxu0
    %v1925 = vadd.f32 %v1586, %v1924
    %v1926 = vpop.f32.mrf.mxu0
    %v1927 = vadd.f32 %v1590, %v1926
    %1928 = vmatprep.mubr.bf16.mxu0 %v1881
    %1929 = vmatmul.mubr.bf16.gmra.mxu0 %v1880
    %v1930 = vpop.f32.mrf.mxu0
    %v1931 = vadd.f32 %v1586, %v1930
    %v1932 = vpop.f32.mrf.mxu0
    %v1933 = vadd.f32 %v1590, %v1932
    %v1934 = vpop.f32.mrf.mxu0
    %v1935 = vadd.f32 %v1586, %v1934
    %v1936 = vpop.f32.mrf.mxu0
    %v1937 = vadd.f32 %v1590, %v1936
    %1938 = vdwg.mxu0
    %v1939 = vpack.c.bf16 %v1925, %v1921
    %v1940 = vpack.c.bf16 %v1927, %v1923
    %v1941 = vpack.c.bf16 %v1935, %v1931
    %v1942 = vpack.c.bf16 %v1937, %v1933
    %v1943 = vmax.bf16 %v1939, 0
    %v1944 = vmax.bf16 %v1940, 0
    %v1945 = vmax.bf16 %v1941, 0
    %v1946 = vmax.bf16 %v1942, 0
    %v1947 = vadd.bf16 %v1943, %v1878
    %v1948 = vadd.bf16 %v1944, %v1879
    %v1949 = vadd.bf16 %v1945, %v1880
    %v1950 = vadd.bf16 %v1946, %v1881
    %v1955 = vunpack.c.l.b16 %v1947
    %v1956 = vunpack.c.l.b16 %v1948
    %v1957 = vunpack.c.h.b16 %v1947
    %v1958 = vunpack.c.h.b16 %v1948
    %v1959 = vunpack.c.l.b16 %v1949
    %v1960 = vunpack.c.l.b16 %v1950
    %v1961 = vunpack.c.h.b16 %v1949
    %v1962 = vunpack.c.h.b16 %v1950
    %v1963 = vpack.c.b16 %v1956, %v1955
    %v1964 = vpack.c.b16 %v1958, %v1957
    %v1965 = vpack.c.b16 %v1960, %v1959
    %v1966 = vpack.c.b16 %v1962, %v1961
    %1971 = vst [vmem:[#allocation3] sm:$0xff] %v1963
    %1972 = vst [vmem:[#allocation3 + $0x8] sm:$0xff] %v1964
    %1973 = vst [vmem:[#allocation3 + $0x10] sm:$0xff] %v1965
    %1974 = vst [vmem:[#allocation3 + $0x18] sm:$0xff] %v1966
    %s1975 = scalar_lea.vmem [#allocation10], 768
    %v1976 = vld [vmem:[%s1975] sm:$0xff]
    %v1977 = vld [vmem:[%s1975 + $0x8] sm:$0xff]
    %v1978 = vld [vmem:[%s1975 + $0x10] sm:$0xff]
    %v1979 = vld [vmem:[%s1975 + $0x18] sm:$0xff]
    %v1980 = vld [vmem:[%s1975 + $0x20] sm:$0xff]
    %v1981 = vld [vmem:[%s1975 + $0x28] sm:$0xff]
    %v1982 = vld [vmem:[%s1975 + $0x30] sm:$0xff]
    %v1983 = vld [vmem:[%s1975 + $0x38] sm:$0xff]
    %v1984 = vld [vmem:[%s1975 + $0x40] sm:$0xff]
    %v1985 = vld [vmem:[%s1975 + $0x48] sm:$0xff]
    %v1986 = vld [vmem:[%s1975 + $0x50] sm:$0xff]
    %v1987 = vld [vmem:[%s1975 + $0x58] sm:$0xff]
    %v1988 = vld [vmem:[%s1975 + $0x60] sm:$0xff]
    %v1989 = vld [vmem:[%s1975 + $0x68] sm:$0xff]
    %v1990 = vld [vmem:[%s1975 + $0x70] sm:$0xff]
    %v1991 = vld [vmem:[%s1975 + $0x78] sm:$0xff]
    %v1992 = vld [vmem:[%s1975 + $0x80] sm:$0xff]
    %v1993 = vld [vmem:[%s1975 + $0x88] sm:$0xff]
    %v1994 = vld [vmem:[%s1975 + $0x90] sm:$0xff]
    %v1995 = vld [vmem:[%s1975 + $0x98] sm:$0xff]
    %v1996 = vld [vmem:[%s1975 + $0xa0] sm:$0xff]
    %v1997 = vld [vmem:[%s1975 + $0xa8] sm:$0xff]
    %v1998 = vld [vmem:[%s1975 + $0xb0] sm:$0xff]
    %v1999 = vld [vmem:[%s1975 + $0xb8] sm:$0xff]
    %v2000 = vld [vmem:[%s1975 + $0xc0] sm:$0xff]
    %v2001 = vld [vmem:[%s1975 + $0xc8] sm:$0xff]
    %v2002 = vld [vmem:[%s1975 + $0xd0] sm:$0xff]
    %v2003 = vld [vmem:[%s1975 + $0xd8] sm:$0xff]
    %v2004 = vld [vmem:[%s1975 + $0xe0] sm:$0xff]
    %v2005 = vld [vmem:[%s1975 + $0xe8] sm:$0xff]
    %v2006 = vld [vmem:[%s1975 + $0xf0] sm:$0xff]
    %v2007 = vld [vmem:[%s1975 + $0xf8] sm:$0xff]
    %s2008 = scalar_lea.vmem [#allocation12], 6
    %v2009 = vld [vmem:[%s2008] sm:$0x3]
    %v2010 = vld [vmem:[#allocation2] sm:$0xff]
    %v2011 = vld [vmem:[#allocation2 + $0x8] sm:$0xff]
    %v2012 = vld [vmem:[#allocation2 + $0x10] sm:$0xff]
    %v2013 = vld [vmem:[#allocation2 + $0x18] sm:$0xff]
    %v2015 = vlaneseq
    %v2016 = vshrl.u32 %v2015, 7
    %v2017 = vsub.s32 0, %v2016
    %v2018 = vrot.slane %v2009, %v2017
    %v2019 = vlaneseq
    %v2020 = vshrl.u32 %v2019, 7
    %v2021 = vsub.s32 1, %v2020
    %v2022 = vrot.slane %v2009, %v2021
    %v2029 = vunpack.c.l.b16 %v2010
    %v2030 = vunpack.c.h.b16 %v2010
    %v2031 = vunpack.c.l.b16 %v2011
    %v2032 = vunpack.c.h.b16 %v2011
    %v2033 = vunpack.c.l.b16 %v2012
    %v2034 = vunpack.c.h.b16 %v2012
    %v2035 = vunpack.c.l.b16 %v2013
    %v2036 = vunpack.c.h.b16 %v2013
    %v2037 = vpack.c.b16 %v2031, %v2029
    %v2038 = vpack.c.b16 %v2032, %v2030
    %v2039 = vpack.c.b16 %v2035, %v2033
    %v2040 = vpack.c.b16 %v2036, %v2034
    %v2077 = vunpack.c.l.b16 %v1976
    %v2078 = vunpack.c.h.b16 %v1976
    %v2079 = vunpack.c.l.b16 %v1977
    %v2080 = vunpack.c.h.b16 %v1977
    %v2081 = vunpack.c.l.b16 %v1978
    %v2082 = vunpack.c.h.b16 %v1978
    %v2083 = vunpack.c.l.b16 %v1979
    %v2084 = vunpack.c.h.b16 %v1979
    %v2085 = vunpack.c.l.b16 %v1980
    %v2086 = vunpack.c.h.b16 %v1980
    %v2087 = vunpack.c.l.b16 %v1981
    %v2088 = vunpack.c.h.b16 %v1981
    %v2089 = vunpack.c.l.b16 %v1982
    %v2090 = vunpack.c.h.b16 %v1982
    %v2091 = vunpack.c.l.b16 %v1983
    %v2092 = vunpack.c.h.b16 %v1983
    %v2093 = vunpack.c.l.b16 %v1984
    %v2094 = vunpack.c.h.b16 %v1984
    %v2095 = vunpack.c.l.b16 %v1985
    %v2096 = vunpack.c.h.b16 %v1985
    %v2097 = vunpack.c.l.b16 %v1986
    %v2098 = vunpack.c.h.b16 %v1986
    %v2099 = vunpack.c.l.b16 %v1987
    %v2100 = vunpack.c.h.b16 %v1987
    %v2101 = vunpack.c.l.b16 %v1988
    %v2102 = vunpack.c.h.b16 %v1988
    %v2103 = vunpack.c.l.b16 %v1989
    %v2104 = vunpack.c.h.b16 %v1989
    %v2105 = vunpack.c.l.b16 %v1990
    %v2106 = vunpack.c.h.b16 %v1990
    %v2107 = vunpack.c.l.b16 %v1991
    %v2108 = vunpack.c.h.b16 %v1991
    %v2109 = vunpack.c.l.b16 %v1992
    %v2110 = vunpack.c.h.b16 %v1992
    %v2111 = vunpack.c.l.b16 %v1993
    %v2112 = vunpack.c.h.b16 %v1993
    %v2113 = vunpack.c.l.b16 %v1994
    %v2114 = vunpack.c.h.b16 %v1994
    %v2115 = vunpack.c.l.b16 %v1995
    %v2116 = vunpack.c.h.b16 %v1995
    %v2117 = vunpack.c.l.b16 %v1996
    %v2118 = vunpack.c.h.b16 %v1996
    %v2119 = vunpack.c.l.b16 %v1997
    %v2120 = vunpack.c.h.b16 %v1997
    %v2121 = vunpack.c.l.b16 %v1998
    %v2122 = vunpack.c.h.b16 %v1998
    %v2123 = vunpack.c.l.b16 %v1999
    %v2124 = vunpack.c.h.b16 %v1999
    %v2125 = vunpack.c.l.b16 %v2000
    %v2126 = vunpack.c.h.b16 %v2000
    %v2127 = vunpack.c.l.b16 %v2001
    %v2128 = vunpack.c.h.b16 %v2001
    %v2129 = vunpack.c.l.b16 %v2002
    %v2130 = vunpack.c.h.b16 %v2002
    %v2131 = vunpack.c.l.b16 %v2003
    %v2132 = vunpack.c.h.b16 %v2003
    %v2133 = vunpack.c.l.b16 %v2004
    %v2134 = vunpack.c.h.b16 %v2004
    %v2135 = vunpack.c.l.b16 %v2005
    %v2136 = vunpack.c.h.b16 %v2005
    %v2137 = vunpack.c.l.b16 %v2006
    %v2138 = vunpack.c.h.b16 %v2006
    %v2139 = vunpack.c.l.b16 %v2007
    %v2140 = vunpack.c.h.b16 %v2007
    %v2141 = vpack.c.b16 %v2079, %v2077
    %v2142 = vpack.c.b16 %v2080, %v2078
    %v2143 = vpack.c.b16 %v2083, %v2081
    %v2144 = vpack.c.b16 %v2084, %v2082
    %v2145 = vpack.c.b16 %v2087, %v2085
    %v2146 = vpack.c.b16 %v2088, %v2086
    %v2147 = vpack.c.b16 %v2091, %v2089
    %v2148 = vpack.c.b16 %v2092, %v2090
    %v2149 = vpack.c.b16 %v2095, %v2093
    %v2150 = vpack.c.b16 %v2096, %v2094
    %v2151 = vpack.c.b16 %v2099, %v2097
    %v2152 = vpack.c.b16 %v2100, %v2098
    %v2153 = vpack.c.b16 %v2103, %v2101
    %v2154 = vpack.c.b16 %v2104, %v2102
    %v2155 = vpack.c.b16 %v2107, %v2105
    %v2156 = vpack.c.b16 %v2108, %v2106
    %v2157 = vpack.c.b16 %v2111, %v2109
    %v2158 = vpack.c.b16 %v2112, %v2110
    %v2159 = vpack.c.b16 %v2115, %v2113
    %v2160 = vpack.c.b16 %v2116, %v2114
    %v2161 = vpack.c.b16 %v2119, %v2117
    %v2162 = vpack.c.b16 %v2120, %v2118
    %v2163 = vpack.c.b16 %v2123, %v2121
    %v2164 = vpack.c.b16 %v2124, %v2122
    %v2165 = vpack.c.b16 %v2127, %v2125
    %v2166 = vpack.c.b16 %v2128, %v2126
    %v2167 = vpack.c.b16 %v2131, %v2129
    %v2168 = vpack.c.b16 %v2132, %v2130
    %v2169 = vpack.c.b16 %v2135, %v2133
    %v2170 = vpack.c.b16 %v2136, %v2134
    %v2171 = vpack.c.b16 %v2139, %v2137
    %v2172 = vpack.c.b16 %v2140, %v2138
    %2205 = vmatprep.subr.bf16.mxu0 %v2156
    %2206 = vmatpush1.bf16.msra.mxu0 %v2155
    %2207 = vmatprep.subr.bf16.mxu0 %v2154
    %2208 = vmatpush1.bf16.msra.mxu0 %v2153
    %2209 = vmatprep.subr.bf16.mxu0 %v2152
    %2210 = vmatpush1.bf16.msra.mxu0 %v2151
    %2211 = vmatprep.subr.bf16.mxu0 %v2150
    %2212 = vmatpush1.bf16.msra.mxu0 %v2149
    %2213 = vmatprep.subr.bf16.mxu0 %v2148
    %2214 = vmatpush1.bf16.msra.mxu0 %v2147
    %2215 = vmatprep.subr.bf16.mxu0 %v2146
    %2216 = vmatpush1.bf16.msra.mxu0 %v2145
    %2217 = vmatprep.subr.bf16.mxu0 %v2144
    %2218 = vmatpush1.bf16.msra.mxu0 %v2143
    %2219 = vmatprep.subr.bf16.mxu0 %v2142
    %2220 = vmatpush1.bf16.msra.mxu0 %v2141
    %2221 = vmatprep.subr.bf16.mxu0 %v2172
    %2222 = vmatpush2.bf16.msra.mxu0 %v2171
    %2223 = vmatprep.subr.bf16.mxu0 %v2170
    %2224 = vmatpush2.bf16.msra.mxu0 %v2169
    %2225 = vmatprep.subr.bf16.mxu0 %v2168
    %2226 = vmatpush2.bf16.msra.mxu0 %v2167
    %2227 = vmatprep.subr.bf16.mxu0 %v2166
    %2228 = vmatpush2.bf16.msra.mxu0 %v2165
    %2229 = vmatprep.subr.bf16.mxu0 %v2164
    %2230 = vmatpush2.bf16.msra.mxu0 %v2163
    %2231 = vmatprep.subr.bf16.mxu0 %v2162
    %2232 = vmatpush2.bf16.msra.mxu0 %v2161
    %2233 = vmatprep.subr.bf16.mxu0 %v2160
    %2234 = vmatpush2.bf16.msra.mxu0 %v2159
    %2235 = vmatprep.subr.bf16.mxu0 %v2158
    %2236 = vmatpush2.bf16.msra.mxu0 %v2157
    %2237 = vmatprep.mubr.bf16.mxu0 %v2038
    %2238 = vmatmul.mubr.bf16.gmra.mxu0 %v2037
    %v2239 = vpop.f32.mrf.mxu0
    %v2240 = vadd.f32 %v2018, %v2239
    %v2241 = vpop.f32.mrf.mxu0
    %v2242 = vadd.f32 %v2022, %v2241
    %v2243 = vpop.f32.mrf.mxu0
    %v2244 = vadd.f32 %v2018, %v2243
    %v2245 = vpop.f32.mrf.mxu0
    %v2246 = vadd.f32 %v2022, %v2245
    %2247 = vmatprep.mubr.bf16.mxu0 %v2040
    %2248 = vmatmul.mubr.bf16.gmra.mxu0 %v2039
    %v2249 = vpop.f32.mrf.mxu0
    %v2250 = vadd.f32 %v2018, %v2249
    %v2251 = vpop.f32.mrf.mxu0
    %v2252 = vadd.f32 %v2022, %v2251
    %v2253 = vpop.f32.mrf.mxu0
    %v2254 = vadd.f32 %v2018, %v2253
    %v2255 = vpop.f32.mrf.mxu0
    %v2256 = vadd.f32 %v2022, %v2255
    %2257 = vdwg.mxu0
    %v2258 = vpack.c.bf16 %v2244, %v2240
    %v2259 = vpack.c.bf16 %v2246, %v2242
    %v2260 = vpack.c.bf16 %v2254, %v2250
    %v2261 = vpack.c.bf16 %v2256, %v2252
    %v2262 = vmax.bf16 %v2258, 0
    %v2263 = vmax.bf16 %v2259, 0
    %v2264 = vmax.bf16 %v2260, 0
    %v2265 = vmax.bf16 %v2261, 0
    %v2266 = vadd.bf16 %v2262, %v2037
    %v2267 = vadd.bf16 %v2263, %v2038
    %v2268 = vadd.bf16 %v2264, %v2039
    %v2269 = vadd.bf16 %v2265, %v2040
    %v2274 = vunpack.c.l.b16 %v2266
    %v2275 = vunpack.c.l.b16 %v2267
    %v2276 = vunpack.c.h.b16 %v2266
    %v2277 = vunpack.c.h.b16 %v2267
    %v2278 = vunpack.c.l.b16 %v2268
    %v2279 = vunpack.c.l.b16 %v2269
    %v2280 = vunpack.c.h.b16 %v2268
    %v2281 = vunpack.c.h.b16 %v2269
    %v2282 = vpack.c.b16 %v2275, %v2274
    %v2283 = vpack.c.b16 %v2277, %v2276
    %v2284 = vpack.c.b16 %v2279, %v2278
    %v2285 = vpack.c.b16 %v2281, %v2280
    %2290 = vst [vmem:[#allocation2] sm:$0xff] %v2282
    %2291 = vst [vmem:[#allocation2 + $0x8] sm:$0xff] %v2283
    %2292 = vst [vmem:[#allocation2 + $0x10] sm:$0xff] %v2284
    %2293 = vst [vmem:[#allocation2 + $0x18] sm:$0xff] %v2285
    %v2294 = vld [vmem:[#allocation3] sm:$0xff]
    %v2295 = vld [vmem:[#allocation3 + $0x8] sm:$0xff]
    %v2296 = vld [vmem:[#allocation3 + $0x10] sm:$0xff]
    %v2297 = vld [vmem:[#allocation3 + $0x18] sm:$0xff]
    %v2302 = vunpack.c.l.b16 %v2294
    %v2303 = vunpack.c.h.b16 %v2294
    %v2304 = vunpack.c.l.b16 %v2295
    %v2305 = vunpack.c.h.b16 %v2295
    %v2306 = vunpack.c.l.b16 %v2296
    %v2307 = vunpack.c.h.b16 %v2296
    %v2308 = vunpack.c.l.b16 %v2297
    %v2309 = vunpack.c.h.b16 %v2297
    %v2310 = vpack.c.b16 %v2304, %v2302
    %v2311 = vpack.c.b16 %v2305, %v2303
    %v2312 = vpack.c.b16 %v2308, %v2306
    %v2313 = vpack.c.b16 %v2309, %v2307
    %2318 = vmatprep.subr.bf16.mxu0 %v2156
    %2319 = vmatpush1.bf16.msra.mxu0 %v2155
    %2320 = vmatprep.subr.bf16.mxu0 %v2154
    %2321 = vmatpush1.bf16.msra.mxu0 %v2153
    %2322 = vmatprep.subr.bf16.mxu0 %v2152
    %2323 = vmatpush1.bf16.msra.mxu0 %v2151
    %2324 = vmatprep.subr.bf16.mxu0 %v2150
    %2325 = vmatpush1.bf16.msra.mxu0 %v2149
    %2326 = vmatprep.subr.bf16.mxu0 %v2148
    %2327 = vmatpush1.bf16.msra.mxu0 %v2147
    %2328 = vmatprep.subr.bf16.mxu0 %v2146
    %2329 = vmatpush1.bf16.msra.mxu0 %v2145
    %2330 = vmatprep.subr.bf16.mxu0 %v2144
    %2331 = vmatpush1.bf16.msra.mxu0 %v2143
    %2332 = vmatprep.subr.bf16.mxu0 %v2142
    %2333 = vmatpush1.bf16.msra.mxu0 %v2141
    %2334 = vmatprep.subr.bf16.mxu0 %v2172
    %2335 = vmatpush2.bf16.msra.mxu0 %v2171
    %2336 = vmatprep.subr.bf16.mxu0 %v2170
    %2337 = vmatpush2.bf16.msra.mxu0 %v2169
    %2338 = vmatprep.subr.bf16.mxu0 %v2168
    %2339 = vmatpush2.bf16.msra.mxu0 %v2167
    %2340 = vmatprep.subr.bf16.mxu0 %v2166
    %2341 = vmatpush2.bf16.msra.mxu0 %v2165
    %2342 = vmatprep.subr.bf16.mxu0 %v2164
    %2343 = vmatpush2.bf16.msra.mxu0 %v2163
    %2344 = vmatprep.subr.bf16.mxu0 %v2162
    %2345 = vmatpush2.bf16.msra.mxu0 %v2161
    %2346 = vmatprep.subr.bf16.mxu0 %v2160
    %2347 = vmatpush2.bf16.msra.mxu0 %v2159
    %2348 = vmatprep.subr.bf16.mxu0 %v2158
    %2349 = vmatpush2.bf16.msra.mxu0 %v2157
    %2350 = vmatprep.mubr.bf16.mxu0 %v2311
    %2351 = vmatmul.mubr.bf16.gmra.mxu0 %v2310
    %v2352 = vpop.f32.mrf.mxu0
    %v2353 = vadd.f32 %v2018, %v2352
    %v2354 = vpop.f32.mrf.mxu0
    %v2355 = vadd.f32 %v2022, %v2354
    %v2356 = vpop.f32.mrf.mxu0
    %v2357 = vadd.f32 %v2018, %v2356
    %v2358 = vpop.f32.mrf.mxu0
    %v2359 = vadd.f32 %v2022, %v2358
    %2360 = vmatprep.mubr.bf16.mxu0 %v2313
    %2361 = vmatmul.mubr.bf16.gmra.mxu0 %v2312
    %v2362 = vpop.f32.mrf.mxu0
    %v2363 = vadd.f32 %v2018, %v2362
    %v2364 = vpop.f32.mrf.mxu0
    %v2365 = vadd.f32 %v2022, %v2364
    %v2366 = vpop.f32.mrf.mxu0
    %v2367 = vadd.f32 %v2018, %v2366
    %v2368 = vpop.f32.mrf.mxu0
    %v2369 = vadd.f32 %v2022, %v2368
    %2370 = vdwg.mxu0
    %v2371 = vpack.c.bf16 %v2357, %v2353
    %v2372 = vpack.c.bf16 %v2359, %v2355
    %v2373 = vpack.c.bf16 %v2367, %v2363
    %v2374 = vpack.c.bf16 %v2369, %v2365
    %v2375 = vmax.bf16 %v2371, 0
    %v2376 = vmax.bf16 %v2372, 0
    %v2377 = vmax.bf16 %v2373, 0
    %v2378 = vmax.bf16 %v2374, 0
    %v2379 = vadd.bf16 %v2375, %v2310
    %v2380 = vadd.bf16 %v2376, %v2311
    %v2381 = vadd.bf16 %v2377, %v2312
    %v2382 = vadd.bf16 %v2378, %v2313
    %v2387 = vunpack.c.l.b16 %v2379
    %v2388 = vunpack.c.l.b16 %v2380
    %v2389 = vunpack.c.h.b16 %v2379
    %v2390 = vunpack.c.h.b16 %v2380
    %v2391 = vunpack.c.l.b16 %v2381
    %v2392 = vunpack.c.l.b16 %v2382
    %v2393 = vunpack.c.h.b16 %v2381
    %v2394 = vunpack.c.h.b16 %v2382
    %v2395 = vpack.c.b16 %v2388, %v2387
    %v2396 = vpack.c.b16 %v2390, %v2389
    %v2397 = vpack.c.b16 %v2392, %v2391
    %v2398 = vpack.c.b16 %v2394, %v2393
    %2403 = vst [vmem:[#allocation3] sm:$0xff] %v2395
    %2404 = vst [vmem:[#allocation3 + $0x8] sm:$0xff] %v2396
    %2405 = vst [vmem:[#allocation3 + $0x10] sm:$0xff] %v2397
    %2406 = vst [vmem:[#allocation3 + $0x18] sm:$0xff] %v2398
    %s2407 = scalar_lea.vmem [#allocation10], 1024
    %v2408 = vld [vmem:[%s2407] sm:$0xff]
    %v2409 = vld [vmem:[%s2407 + $0x8] sm:$0xff]
    %v2410 = vld [vmem:[%s2407 + $0x10] sm:$0xff]
    %v2411 = vld [vmem:[%s2407 + $0x18] sm:$0xff]
    %v2412 = vld [vmem:[%s2407 + $0x20] sm:$0xff]
    %v2413 = vld [vmem:[%s2407 + $0x28] sm:$0xff]
    %v2414 = vld [vmem:[%s2407 + $0x30] sm:$0xff]
    %v2415 = vld [vmem:[%s2407 + $0x38] sm:$0xff]
    %v2416 = vld [vmem:[%s2407 + $0x40] sm:$0xff]
    %v2417 = vld [vmem:[%s2407 + $0x48] sm:$0xff]
    %v2418 = vld [vmem:[%s2407 + $0x50] sm:$0xff]
    %v2419 = vld [vmem:[%s2407 + $0x58] sm:$0xff]
    %v2420 = vld [vmem:[%s2407 + $0x60] sm:$0xff]
    %v2421 = vld [vmem:[%s2407 + $0x68] sm:$0xff]
    %v2422 = vld [vmem:[%s2407 + $0x70] sm:$0xff]
    %v2423 = vld [vmem:[%s2407 + $0x78] sm:$0xff]
    %v2424 = vld [vmem:[%s2407 + $0x80] sm:$0xff]
    %v2425 = vld [vmem:[%s2407 + $0x88] sm:$0xff]
    %v2426 = vld [vmem:[%s2407 + $0x90] sm:$0xff]
    %v2427 = vld [vmem:[%s2407 + $0x98] sm:$0xff]
    %v2428 = vld [vmem:[%s2407 + $0xa0] sm:$0xff]
    %v2429 = vld [vmem:[%s2407 + $0xa8] sm:$0xff]
    %v2430 = vld [vmem:[%s2407 + $0xb0] sm:$0xff]
    %v2431 = vld [vmem:[%s2407 + $0xb8] sm:$0xff]
    %v2432 = vld [vmem:[%s2407 + $0xc0] sm:$0xff]
    %v2433 = vld [vmem:[%s2407 + $0xc8] sm:$0xff]
    %v2434 = vld [vmem:[%s2407 + $0xd0] sm:$0xff]
    %v2435 = vld [vmem:[%s2407 + $0xd8] sm:$0xff]
    %v2436 = vld [vmem:[%s2407 + $0xe0] sm:$0xff]
    %v2437 = vld [vmem:[%s2407 + $0xe8] sm:$0xff]
    %v2438 = vld [vmem:[%s2407 + $0xf0] sm:$0xff]
    %v2439 = vld [vmem:[%s2407 + $0xf8] sm:$0xff]
    %s2440 = scalar_lea.vmem [#allocation12], 8
    %v2441 = vld [vmem:[%s2440] sm:$0x3]
    %v2442 = vld [vmem:[#allocation2] sm:$0xff]
    %v2443 = vld [vmem:[#allocation2 + $0x8] sm:$0xff]
    %v2444 = vld [vmem:[#allocation2 + $0x10] sm:$0xff]
    %v2445 = vld [vmem:[#allocation2 + $0x18] sm:$0xff]
    %v2447 = vlaneseq
    %v2448 = vshrl.u32 %v2447, 7
    %v2449 = vsub.s32 0, %v2448
    %v2450 = vrot.slane %v2441, %v2449
    %v2451 = vlaneseq
    %v2452 = vshrl.u32 %v2451, 7
    %v2453 = vsub.s32 1, %v2452
    %v2454 = vrot.slane %v2441, %v2453
    %v2461 = vunpack.c.l.b16 %v2442
    %v2462 = vunpack.c.h.b16 %v2442
    %v2463 = vunpack.c.l.b16 %v2443
    %v2464 = vunpack.c.h.b16 %v2443
    %v2465 = vunpack.c.l.b16 %v2444
    %v2466 = vunpack.c.h.b16 %v2444
    %v2467 = vunpack.c.l.b16 %v2445
    %v2468 = vunpack.c.h.b16 %v2445
    %v2469 = vpack.c.b16 %v2463, %v2461
    %v2470 = vpack.c.b16 %v2464, %v2462
    %v2471 = vpack.c.b16 %v2467, %v2465
    %v2472 = vpack.c.b16 %v2468, %v2466
    %v2509 = vunpack.c.l.b16 %v2408
    %v2510 = vunpack.c.h.b16 %v2408
    %v2511 = vunpack.c.l.b16 %v2409
    %v2512 = vunpack.c.h.b16 %v2409
    %v2513 = vunpack.c.l.b16 %v2410
    %v2514 = vunpack.c.h.b16 %v2410
    %v2515 = vunpack.c.l.b16 %v2411
    %v2516 = vunpack.c.h.b16 %v2411
    %v2517 = vunpack.c.l.b16 %v2412
    %v2518 = vunpack.c.h.b16 %v2412
    %v2519 = vunpack.c.l.b16 %v2413
    %v2520 = vunpack.c.h.b16 %v2413
    %v2521 = vunpack.c.l.b16 %v2414
    %v2522 = vunpack.c.h.b16 %v2414
    %v2523 = vunpack.c.l.b16 %v2415
    %v2524 = vunpack.c.h.b16 %v2415
    %v2525 = vunpack.c.l.b16 %v2416
    %v2526 = vunpack.c.h.b16 %v2416
    %v2527 = vunpack.c.l.b16 %v2417
    %v2528 = vunpack.c.h.b16 %v2417
    %v2529 = vunpack.c.l.b16 %v2418
    %v2530 = vunpack.c.h.b16 %v2418
    %v2531 = vunpack.c.l.b16 %v2419
    %v2532 = vunpack.c.h.b16 %v2419
    %v2533 = vunpack.c.l.b16 %v2420
    %v2534 = vunpack.c.h.b16 %v2420
    %v2535 = vunpack.c.l.b16 %v2421
    %v2536 = vunpack.c.h.b16 %v2421
    %v2537 = vunpack.c.l.b16 %v2422
    %v2538 = vunpack.c.h.b16 %v2422
    %v2539 = vunpack.c.l.b16 %v2423
    %v2540 = vunpack.c.h.b16 %v2423
    %v2541 = vunpack.c.l.b16 %v2424
    %v2542 = vunpack.c.h.b16 %v2424
    %v2543 = vunpack.c.l.b16 %v2425
    %v2544 = vunpack.c.h.b16 %v2425
    %v2545 = vunpack.c.l.b16 %v2426
    %v2546 = vunpack.c.h.b16 %v2426
    %v2547 = vunpack.c.l.b16 %v2427
    %v2548 = vunpack.c.h.b16 %v2427
    %v2549 = vunpack.c.l.b16 %v2428
    %v2550 = vunpack.c.h.b16 %v2428
    %v2551 = vunpack.c.l.b16 %v2429
    %v2552 = vunpack.c.h.b16 %v2429
    %v2553 = vunpack.c.l.b16 %v2430
    %v2554 = vunpack.c.h.b16 %v2430
    %v2555 = vunpack.c.l.b16 %v2431
    %v2556 = vunpack.c.h.b16 %v2431
    %v2557 = vunpack.c.l.b16 %v2432
    %v2558 = vunpack.c.h.b16 %v2432
    %v2559 = vunpack.c.l.b16 %v2433
    %v2560 = vunpack.c.h.b16 %v2433
    %v2561 = vunpack.c.l.b16 %v2434
    %v2562 = vunpack.c.h.b16 %v2434
    %v2563 = vunpack.c.l.b16 %v2435
    %v2564 = vunpack.c.h.b16 %v2435
    %v2565 = vunpack.c.l.b16 %v2436
    %v2566 = vunpack.c.h.b16 %v2436
    %v2567 = vunpack.c.l.b16 %v2437
    %v2568 = vunpack.c.h.b16 %v2437
    %v2569 = vunpack.c.l.b16 %v2438
    %v2570 = vunpack.c.h.b16 %v2438
    %v2571 = vunpack.c.l.b16 %v2439
    %v2572 = vunpack.c.h.b16 %v2439
    %v2573 = vpack.c.b16 %v2511, %v2509
    %v2574 = vpack.c.b16 %v2512, %v2510
    %v2575 = vpack.c.b16 %v2515, %v2513
    %v2576 = vpack.c.b16 %v2516, %v2514
    %v2577 = vpack.c.b16 %v2519, %v2517
    %v2578 = vpack.c.b16 %v2520, %v2518
    %v2579 = vpack.c.b16 %v2523, %v2521
    %v2580 = vpack.c.b16 %v2524, %v2522
    %v2581 = vpack.c.b16 %v2527, %v2525
    %v2582 = vpack.c.b16 %v2528, %v2526
    %v2583 = vpack.c.b16 %v2531, %v2529
    %v2584 = vpack.c.b16 %v2532, %v2530
    %v2585 = vpack.c.b16 %v2535, %v2533
    %v2586 = vpack.c.b16 %v2536, %v2534
    %v2587 = vpack.c.b16 %v2539, %v2537
    %v2588 = vpack.c.b16 %v2540, %v2538
    %v2589 = vpack.c.b16 %v2543, %v2541
    %v2590 = vpack.c.b16 %v2544, %v2542
    %v2591 = vpack.c.b16 %v2547, %v2545
    %v2592 = vpack.c.b16 %v2548, %v2546
    %v2593 = vpack.c.b16 %v2551, %v2549
    %v2594 = vpack.c.b16 %v2552, %v2550
    %v2595 = vpack.c.b16 %v2555, %v2553
    %v2596 = vpack.c.b16 %v2556, %v2554
    %v2597 = vpack.c.b16 %v2559, %v2557
    %v2598 = vpack.c.b16 %v2560, %v2558
    %v2599 = vpack.c.b16 %v2563, %v2561
    %v2600 = vpack.c.b16 %v2564, %v2562
    %v2601 = vpack.c.b16 %v2567, %v2565
    %v2602 = vpack.c.b16 %v2568, %v2566
    %v2603 = vpack.c.b16 %v2571, %v2569
    %v2604 = vpack.c.b16 %v2572, %v2570
    %2637 = vmatprep.subr.bf16.mxu0 %v2588
    %2638 = vmatpush1.bf16.msra.mxu0 %v2587
    %2639 = vmatprep.subr.bf16.mxu0 %v2586
    %2640 = vmatpush1.bf16.msra.mxu0 %v2585
    %2641 = vmatprep.subr.bf16.mxu0 %v2584
    %2642 = vmatpush1.bf16.msra.mxu0 %v2583
    %2643 = vmatprep.subr.bf16.mxu0 %v2582
    %2644 = vmatpush1.bf16.msra.mxu0 %v2581
    %2645 = vmatprep.subr.bf16.mxu0 %v2580
    %2646 = vmatpush1.bf16.msra.mxu0 %v2579
    %2647 = vmatprep.subr.bf16.mxu0 %v2578
    %2648 = vmatpush1.bf16.msra.mxu0 %v2577
    %2649 = vmatprep.subr.bf16.mxu0 %v2576
    %2650 = vmatpush1.bf16.msra.mxu0 %v2575
    %2651 = vmatprep.subr.bf16.mxu0 %v2574
    %2652 = vmatpush1.bf16.msra.mxu0 %v2573
    %2653 = vmatprep.subr.bf16.mxu0 %v2604
    %2654 = vmatpush2.bf16.msra.mxu0 %v2603
    %2655 = vmatprep.subr.bf16.mxu0 %v2602
    %2656 = vmatpush2.bf16.msra.mxu0 %v2601
    %2657 = vmatprep.subr.bf16.mxu0 %v2600
    %2658 = vmatpush2.bf16.msra.mxu0 %v2599
    %2659 = vmatprep.subr.bf16.mxu0 %v2598
    %2660 = vmatpush2.bf16.msra.mxu0 %v2597
    %2661 = vmatprep.subr.bf16.mxu0 %v2596
    %2662 = vmatpush2.bf16.msra.mxu0 %v2595
    %2663 = vmatprep.subr.bf16.mxu0 %v2594
    %2664 = vmatpush2.bf16.msra.mxu0 %v2593
    %2665 = vmatprep.subr.bf16.mxu0 %v2592
    %2666 = vmatpush2.bf16.msra.mxu0 %v2591
    %2667 = vmatprep.subr.bf16.mxu0 %v2590
    %2668 = vmatpush2.bf16.msra.mxu0 %v2589
    %2669 = vmatprep.mubr.bf16.mxu0 %v2470
    %2670 = vmatmul.mubr.bf16.gmra.mxu0 %v2469
    %v2671 = vpop.f32.mrf.mxu0
    %v2672 = vadd.f32 %v2450, %v2671
    %v2673 = vpop.f32.mrf.mxu0
    %v2674 = vadd.f32 %v2454, %v2673
    %v2675 = vpop.f32.mrf.mxu0
    %v2676 = vadd.f32 %v2450, %v2675
    %v2677 = vpop.f32.mrf.mxu0
    %v2678 = vadd.f32 %v2454, %v2677
    %2679 = vmatprep.mubr.bf16.mxu0 %v2472
    %2680 = vmatmul.mubr.bf16.gmra.mxu0 %v2471
    %v2681 = vpop.f32.mrf.mxu0
    %v2682 = vadd.f32 %v2450, %v2681
    %v2683 = vpop.f32.mrf.mxu0
    %v2684 = vadd.f32 %v2454, %v2683
    %v2685 = vpop.f32.mrf.mxu0
    %v2686 = vadd.f32 %v2450, %v2685
    %v2687 = vpop.f32.mrf.mxu0
    %v2688 = vadd.f32 %v2454, %v2687
    %2689 = vdwg.mxu0
    %v2690 = vpack.c.bf16 %v2676, %v2672
    %v2691 = vpack.c.bf16 %v2678, %v2674
    %v2692 = vpack.c.bf16 %v2686, %v2682
    %v2693 = vpack.c.bf16 %v2688, %v2684
    %v2694 = vmax.bf16 %v2690, 0
    %v2695 = vmax.bf16 %v2691, 0
    %v2696 = vmax.bf16 %v2692, 0
    %v2697 = vmax.bf16 %v2693, 0
    %v2698 = vadd.bf16 %v2694, %v2469
    %v2699 = vadd.bf16 %v2695, %v2470
    %v2700 = vadd.bf16 %v2696, %v2471
    %v2701 = vadd.bf16 %v2697, %v2472
    %v2706 = vunpack.c.l.b16 %v2698
    %v2707 = vunpack.c.l.b16 %v2699
    %v2708 = vunpack.c.h.b16 %v2698
    %v2709 = vunpack.c.h.b16 %v2699
    %v2710 = vunpack.c.l.b16 %v2700
    %v2711 = vunpack.c.l.b16 %v2701
    %v2712 = vunpack.c.h.b16 %v2700
    %v2713 = vunpack.c.h.b16 %v2701
    %v2714 = vpack.c.b16 %v2707, %v2706
    %v2715 = vpack.c.b16 %v2709, %v2708
    %v2716 = vpack.c.b16 %v2711, %v2710
    %v2717 = vpack.c.b16 %v2713, %v2712
    %2722 = vst [vmem:[#allocation2] sm:$0xff] %v2714
    %2723 = vst [vmem:[#allocation2 + $0x8] sm:$0xff] %v2715
    %2724 = vst [vmem:[#allocation2 + $0x10] sm:$0xff] %v2716
    %2725 = vst [vmem:[#allocation2 + $0x18] sm:$0xff] %v2717
    %v2726 = vld [vmem:[#allocation3] sm:$0xff]
    %v2727 = vld [vmem:[#allocation3 + $0x8] sm:$0xff]
    %v2728 = vld [vmem:[#allocation3 + $0x10] sm:$0xff]
    %v2729 = vld [vmem:[#allocation3 + $0x18] sm:$0xff]
    %v2734 = vunpack.c.l.b16 %v2726
    %v2735 = vunpack.c.h.b16 %v2726
    %v2736 = vunpack.c.l.b16 %v2727
    %v2737 = vunpack.c.h.b16 %v2727
    %v2738 = vunpack.c.l.b16 %v2728
    %v2739 = vunpack.c.h.b16 %v2728
    %v2740 = vunpack.c.l.b16 %v2729
    %v2741 = vunpack.c.h.b16 %v2729
    %v2742 = vpack.c.b16 %v2736, %v2734
    %v2743 = vpack.c.b16 %v2737, %v2735
    %v2744 = vpack.c.b16 %v2740, %v2738
    %v2745 = vpack.c.b16 %v2741, %v2739
    %2750 = vmatprep.subr.bf16.mxu0 %v2588
    %2751 = vmatpush1.bf16.msra.mxu0 %v2587
    %2752 = vmatprep.subr.bf16.mxu0 %v2586
    %2753 = vmatpush1.bf16.msra.mxu0 %v2585
    %2754 = vmatprep.subr.bf16.mxu0 %v2584
    %2755 = vmatpush1.bf16.msra.mxu0 %v2583
    %2756 = vmatprep.subr.bf16.mxu0 %v2582
    %2757 = vmatpush1.bf16.msra.mxu0 %v2581
    %2758 = vmatprep.subr.bf16.mxu0 %v2580
    %2759 = vmatpush1.bf16.msra.mxu0 %v2579
    %2760 = vmatprep.subr.bf16.mxu0 %v2578
    %2761 = vmatpush1.bf16.msra.mxu0 %v2577
    %2762 = vmatprep.subr.bf16.mxu0 %v2576
    %2763 = vmatpush1.bf16.msra.mxu0 %v2575
    %2764 = vmatprep.subr.bf16.mxu0 %v2574
    %2765 = vmatpush1.bf16.msra.mxu0 %v2573
    %2766 = vmatprep.subr.bf16.mxu0 %v2604
    %2767 = vmatpush2.bf16.msra.mxu0 %v2603
    %2768 = vmatprep.subr.bf16.mxu0 %v2602
    %2769 = vmatpush2.bf16.msra.mxu0 %v2601
    %2770 = vmatprep.subr.bf16.mxu0 %v2600
    %2771 = vmatpush2.bf16.msra.mxu0 %v2599
    %2772 = vmatprep.subr.bf16.mxu0 %v2598
    %2773 = vmatpush2.bf16.msra.mxu0 %v2597
    %2774 = vmatprep.subr.bf16.mxu0 %v2596
    %2775 = vmatpush2.bf16.msra.mxu0 %v2595
    %2776 = vmatprep.subr.bf16.mxu0 %v2594
    %2777 = vmatpush2.bf16.msra.mxu0 %v2593
    %2778 = vmatprep.subr.bf16.mxu0 %v2592
    %2779 = vmatpush2.bf16.msra.mxu0 %v2591
    %2780 = vmatprep.subr.bf16.mxu0 %v2590
    %2781 = vmatpush2.bf16.msra.mxu0 %v2589
    %2782 = vmatprep.mubr.bf16.mxu0 %v2743
    %2783 = vmatmul.mubr.bf16.gmra.mxu0 %v2742
    %v2784 = vpop.f32.mrf.mxu0
    %v2785 = vadd.f32 %v2450, %v2784
    %v2786 = vpop.f32.mrf.mxu0
    %v2787 = vadd.f32 %v2454, %v2786
    %v2788 = vpop.f32.mrf.mxu0
    %v2789 = vadd.f32 %v2450, %v2788
    %v2790 = vpop.f32.mrf.mxu0
    %v2791 = vadd.f32 %v2454, %v2790
    %2792 = vmatprep.mubr.bf16.mxu0 %v2745
    %2793 = vmatmul.mubr.bf16.gmra.mxu0 %v2744
    %v2794 = vpop.f32.mrf.mxu0
    %v2795 = vadd.f32 %v2450, %v2794
    %v2796 = vpop.f32.mrf.mxu0
    %v2797 = vadd.f32 %v2454, %v2796
    %v2798 = vpop.f32.mrf.mxu0
    %v2799 = vadd.f32 %v2450, %v2798
    %v2800 = vpop.f32.mrf.mxu0
    %v2801 = vadd.f32 %v2454, %v2800
    %2802 = vdwg.mxu0
    %v2803 = vpack.c.bf16 %v2789, %v2785
    %v2804 = vpack.c.bf16 %v2791, %v2787
    %v2805 = vpack.c.bf16 %v2799, %v2795
    %v2806 = vpack.c.bf16 %v2801, %v2797
    %v2807 = vmax.bf16 %v2803, 0
    %v2808 = vmax.bf16 %v2804, 0
    %v2809 = vmax.bf16 %v2805, 0
    %v2810 = vmax.bf16 %v2806, 0
    %v2811 = vadd.bf16 %v2807, %v2742
    %v2812 = vadd.bf16 %v2808, %v2743
    %v2813 = vadd.bf16 %v2809, %v2744
    %v2814 = vadd.bf16 %v2810, %v2745
    %v2819 = vunpack.c.l.b16 %v2811
    %v2820 = vunpack.c.l.b16 %v2812
    %v2821 = vunpack.c.h.b16 %v2811
    %v2822 = vunpack.c.h.b16 %v2812
    %v2823 = vunpack.c.l.b16 %v2813
    %v2824 = vunpack.c.l.b16 %v2814
    %v2825 = vunpack.c.h.b16 %v2813
    %v2826 = vunpack.c.h.b16 %v2814
    %v2827 = vpack.c.b16 %v2820, %v2819
    %v2828 = vpack.c.b16 %v2822, %v2821
    %v2829 = vpack.c.b16 %v2824, %v2823
    %v2830 = vpack.c.b16 %v2826, %v2825
    %2835 = vst [vmem:[#allocation3] sm:$0xff] %v2827
    %2836 = vst [vmem:[#allocation3 + $0x8] sm:$0xff] %v2828
    %2837 = vst [vmem:[#allocation3 + $0x10] sm:$0xff] %v2829
    %2838 = vst [vmem:[#allocation3 + $0x18] sm:$0xff] %v2830
    %s2839 = scalar_lea.vmem [#allocation10], 1280
    %v2840 = vld [vmem:[%s2839] sm:$0xff]
    %v2841 = vld [vmem:[%s2839 + $0x8] sm:$0xff]
    %v2842 = vld [vmem:[%s2839 + $0x10] sm:$0xff]
    %v2843 = vld [vmem:[%s2839 + $0x18] sm:$0xff]
    %v2844 = vld [vmem:[%s2839 + $0x20] sm:$0xff]
    %v2845 = vld [vmem:[%s2839 + $0x28] sm:$0xff]
    %v2846 = vld [vmem:[%s2839 + $0x30] sm:$0xff]
    %v2847 = vld [vmem:[%s2839 + $0x38] sm:$0xff]
    %v2848 = vld [vmem:[%s2839 + $0x40] sm:$0xff]
    %v2849 = vld [vmem:[%s2839 + $0x48] sm:$0xff]
    %v2850 = vld [vmem:[%s2839 + $0x50] sm:$0xff]
    %v2851 = vld [vmem:[%s2839 + $0x58] sm:$0xff]
    %v2852 = vld [vmem:[%s2839 + $0x60] sm:$0xff]
    %v2853 = vld [vmem:[%s2839 + $0x68] sm:$0xff]
    %v2854 = vld [vmem:[%s2839 + $0x70] sm:$0xff]
    %v2855 = vld [vmem:[%s2839 + $0x78] sm:$0xff]
    %v2856 = vld [vmem:[%s2839 + $0x80] sm:$0xff]
    %v2857 = vld [vmem:[%s2839 + $0x88] sm:$0xff]
    %v2858 = vld [vmem:[%s2839 + $0x90] sm:$0xff]
    %v2859 = vld [vmem:[%s2839 + $0x98] sm:$0xff]
    %v2860 = vld [vmem:[%s2839 + $0xa0] sm:$0xff]
    %v2861 = vld [vmem:[%s2839 + $0xa8] sm:$0xff]
    %v2862 = vld [vmem:[%s2839 + $0xb0] sm:$0xff]
    %v2863 = vld [vmem:[%s2839 + $0xb8] sm:$0xff]
    %v2864 = vld [vmem:[%s2839 + $0xc0] sm:$0xff]
    %v2865 = vld [vmem:[%s2839 + $0xc8] sm:$0xff]
    %v2866 = vld [vmem:[%s2839 + $0xd0] sm:$0xff]
    %v2867 = vld [vmem:[%s2839 + $0xd8] sm:$0xff]
    %v2868 = vld [vmem:[%s2839 + $0xe0] sm:$0xff]
    %v2869 = vld [vmem:[%s2839 + $0xe8] sm:$0xff]
    %v2870 = vld [vmem:[%s2839 + $0xf0] sm:$0xff]
    %v2871 = vld [vmem:[%s2839 + $0xf8] sm:$0xff]
    %s2872 = scalar_lea.vmem [#allocation12], 10
    %v2873 = vld [vmem:[%s2872] sm:$0x3]
    %v2874 = vld [vmem:[#allocation2] sm:$0xff]
    %v2875 = vld [vmem:[#allocation2 + $0x8] sm:$0xff]
    %v2876 = vld [vmem:[#allocation2 + $0x10] sm:$0xff]
    %v2877 = vld [vmem:[#allocation2 + $0x18] sm:$0xff]
    %v2879 = vlaneseq
    %v2880 = vshrl.u32 %v2879, 7
    %v2881 = vsub.s32 0, %v2880
    %v2882 = vrot.slane %v2873, %v2881
    %v2883 = vlaneseq
    %v2884 = vshrl.u32 %v2883, 7
    %v2885 = vsub.s32 1, %v2884
    %v2886 = vrot.slane %v2873, %v2885
    %v2893 = vunpack.c.l.b16 %v2874
    %v2894 = vunpack.c.h.b16 %v2874
    %v2895 = vunpack.c.l.b16 %v2875
    %v2896 = vunpack.c.h.b16 %v2875
    %v2897 = vunpack.c.l.b16 %v2876
    %v2898 = vunpack.c.h.b16 %v2876
    %v2899 = vunpack.c.l.b16 %v2877
    %v2900 = vunpack.c.h.b16 %v2877
    %v2901 = vpack.c.b16 %v2895, %v2893
    %v2902 = vpack.c.b16 %v2896, %v2894
    %v2903 = vpack.c.b16 %v2899, %v2897
    %v2904 = vpack.c.b16 %v2900, %v2898
    %v2941 = vunpack.c.l.b16 %v2840
    %v2942 = vunpack.c.h.b16 %v2840
    %v2943 = vunpack.c.l.b16 %v2841
    %v2944 = vunpack.c.h.b16 %v2841
    %v2945 = vunpack.c.l.b16 %v2842
    %v2946 = vunpack.c.h.b16 %v2842
    %v2947 = vunpack.c.l.b16 %v2843
    %v2948 = vunpack.c.h.b16 %v2843
    %v2949 = vunpack.c.l.b16 %v2844
    %v2950 = vunpack.c.h.b16 %v2844
    %v2951 = vunpack.c.l.b16 %v2845
    %v2952 = vunpack.c.h.b16 %v2845
    %v2953 = vunpack.c.l.b16 %v2846
    %v2954 = vunpack.c.h.b16 %v2846
    %v2955 = vunpack.c.l.b16 %v2847
    %v2956 = vunpack.c.h.b16 %v2847
    %v2957 = vunpack.c.l.b16 %v2848
    %v2958 = vunpack.c.h.b16 %v2848
    %v2959 = vunpack.c.l.b16 %v2849
    %v2960 = vunpack.c.h.b16 %v2849
    %v2961 = vunpack.c.l.b16 %v2850
    %v2962 = vunpack.c.h.b16 %v2850
    %v2963 = vunpack.c.l.b16 %v2851
    %v2964 = vunpack.c.h.b16 %v2851
    %v2965 = vunpack.c.l.b16 %v2852
    %v2966 = vunpack.c.h.b16 %v2852
    %v2967 = vunpack.c.l.b16 %v2853
    %v2968 = vunpack.c.h.b16 %v2853
    %v2969 = vunpack.c.l.b16 %v2854
    %v2970 = vunpack.c.h.b16 %v2854
    %v2971 = vunpack.c.l.b16 %v2855
    %v2972 = vunpack.c.h.b16 %v2855
    %v2973 = vunpack.c.l.b16 %v2856
    %v2974 = vunpack.c.h.b16 %v2856
    %v2975 = vunpack.c.l.b16 %v2857
    %v2976 = vunpack.c.h.b16 %v2857
    %v2977 = vunpack.c.l.b16 %v2858
    %v2978 = vunpack.c.h.b16 %v2858
    %v2979 = vunpack.c.l.b16 %v2859
    %v2980 = vunpack.c.h.b16 %v2859
    %v2981 = vunpack.c.l.b16 %v2860
    %v2982 = vunpack.c.h.b16 %v2860
    %v2983 = vunpack.c.l.b16 %v2861
    %v2984 = vunpack.c.h.b16 %v2861
    %v2985 = vunpack.c.l.b16 %v2862
    %v2986 = vunpack.c.h.b16 %v2862
    %v2987 = vunpack.c.l.b16 %v2863
    %v2988 = vunpack.c.h.b16 %v2863
    %v2989 = vunpack.c.l.b16 %v2864
    %v2990 = vunpack.c.h.b16 %v2864
    %v2991 = vunpack.c.l.b16 %v2865
    %v2992 = vunpack.c.h.b16 %v2865
    %v2993 = vunpack.c.l.b16 %v2866
    %v2994 = vunpack.c.h.b16 %v2866
    %v2995 = vunpack.c.l.b16 %v2867
    %v2996 = vunpack.c.h.b16 %v2867
    %v2997 = vunpack.c.l.b16 %v2868
    %v2998 = vunpack.c.h.b16 %v2868
    %v2999 = vunpack.c.l.b16 %v2869
    %v3000 = vunpack.c.h.b16 %v2869
    %v3001 = vunpack.c.l.b16 %v2870
    %v3002 = vunpack.c.h.b16 %v2870
    %v3003 = vunpack.c.l.b16 %v2871
    %v3004 = vunpack.c.h.b16 %v2871
    %v3005 = vpack.c.b16 %v2943, %v2941
    %v3006 = vpack.c.b16 %v2944, %v2942
    %v3007 = vpack.c.b16 %v2947, %v2945
    %v3008 = vpack.c.b16 %v2948, %v2946
    %v3009 = vpack.c.b16 %v2951, %v2949
    %v3010 = vpack.c.b16 %v2952, %v2950
    %v3011 = vpack.c.b16 %v2955, %v2953
    %v3012 = vpack.c.b16 %v2956, %v2954
    %v3013 = vpack.c.b16 %v2959, %v2957
    %v3014 = vpack.c.b16 %v2960, %v2958
    %v3015 = vpack.c.b16 %v2963, %v2961
    %v3016 = vpack.c.b16 %v2964, %v2962
    %v3017 = vpack.c.b16 %v2967, %v2965
    %v3018 = vpack.c.b16 %v2968, %v2966
    %v3019 = vpack.c.b16 %v2971, %v2969
    %v3020 = vpack.c.b16 %v2972, %v2970
    %v3021 = vpack.c.b16 %v2975, %v2973
    %v3022 = vpack.c.b16 %v2976, %v2974
    %v3023 = vpack.c.b16 %v2979, %v2977
    %v3024 = vpack.c.b16 %v2980, %v2978
    %v3025 = vpack.c.b16 %v2983, %v2981
    %v3026 = vpack.c.b16 %v2984, %v2982
    %v3027 = vpack.c.b16 %v2987, %v2985
    %v3028 = vpack.c.b16 %v2988, %v2986
    %v3029 = vpack.c.b16 %v2991, %v2989
    %v3030 = vpack.c.b16 %v2992, %v2990
    %v3031 = vpack.c.b16 %v2995, %v2993
    %v3032 = vpack.c.b16 %v2996, %v2994
    %v3033 = vpack.c.b16 %v2999, %v2997
    %v3034 = vpack.c.b16 %v3000, %v2998
    %v3035 = vpack.c.b16 %v3003, %v3001
    %v3036 = vpack.c.b16 %v3004, %v3002
    %3069 = vmatprep.subr.bf16.mxu0 %v3020
    %3070 = vmatpush1.bf16.msra.mxu0 %v3019
    %3071 = vmatprep.subr.bf16.mxu0 %v3018
    %3072 = vmatpush1.bf16.msra.mxu0 %v3017
    %3073 = vmatprep.subr.bf16.mxu0 %v3016
    %3074 = vmatpush1.bf16.msra.mxu0 %v3015
    %3075 = vmatprep.subr.bf16.mxu0 %v3014
    %3076 = vmatpush1.bf16.msra.mxu0 %v3013
    %3077 = vmatprep.subr.bf16.mxu0 %v3012
    %3078 = vmatpush1.bf16.msra.mxu0 %v3011
    %3079 = vmatprep.subr.bf16.mxu0 %v3010
    %3080 = vmatpush1.bf16.msra.mxu0 %v3009
    %3081 = vmatprep.subr.bf16.mxu0 %v3008
    %3082 = vmatpush1.bf16.msra.mxu0 %v3007
    %3083 = vmatprep.subr.bf16.mxu0 %v3006
    %3084 = vmatpush1.bf16.msra.mxu0 %v3005
    %3085 = vmatprep.subr.bf16.mxu0 %v3036
    %3086 = vmatpush2.bf16.msra.mxu0 %v3035
    %3087 = vmatprep.subr.bf16.mxu0 %v3034
    %3088 = vmatpush2.bf16.msra.mxu0 %v3033
    %3089 = vmatprep.subr.bf16.mxu0 %v3032
    %3090 = vmatpush2.bf16.msra.mxu0 %v3031
    %3091 = vmatprep.subr.bf16.mxu0 %v3030
    %3092 = vmatpush2.bf16.msra.mxu0 %v3029
    %3093 = vmatprep.subr.bf16.mxu0 %v3028
    %3094 = vmatpush2.bf16.msra.mxu0 %v3027
    %3095 = vmatprep.subr.bf16.mxu0 %v3026
    %3096 = vmatpush2.bf16.msra.mxu0 %v3025
    %3097 = vmatprep.subr.bf16.mxu0 %v3024
    %3098 = vmatpush2.bf16.msra.mxu0 %v3023
    %3099 = vmatprep.subr.bf16.mxu0 %v3022
    %3100 = vmatpush2.bf16.msra.mxu0 %v3021
    %3101 = vmatprep.mubr.bf16.mxu0 %v2902
    %3102 = vmatmul.mubr.bf16.gmra.mxu0 %v2901
    %v3103 = vpop.f32.mrf.mxu0
    %v3104 = vadd.f32 %v2882, %v3103
    %v3105 = vpop.f32.mrf.mxu0
    %v3106 = vadd.f32 %v2886, %v3105
    %v3107 = vpop.f32.mrf.mxu0
    %v3108 = vadd.f32 %v2882, %v3107
    %v3109 = vpop.f32.mrf.mxu0
    %v3110 = vadd.f32 %v2886, %v3109
    %3111 = vmatprep.mubr.bf16.mxu0 %v2904
    %3112 = vmatmul.mubr.bf16.gmra.mxu0 %v2903
    %v3113 = vpop.f32.mrf.mxu0
    %v3114 = vadd.f32 %v2882, %v3113
    %v3115 = vpop.f32.mrf.mxu0
    %v3116 = vadd.f32 %v2886, %v3115
    %v3117 = vpop.f32.mrf.mxu0
    %v3118 = vadd.f32 %v2882, %v3117
    %v3119 = vpop.f32.mrf.mxu0
    %v3120 = vadd.f32 %v2886, %v3119
    %3121 = vdwg.mxu0
    %v3122 = vpack.c.bf16 %v3108, %v3104
    %v3123 = vpack.c.bf16 %v3110, %v3106
    %v3124 = vpack.c.bf16 %v3118, %v3114
    %v3125 = vpack.c.bf16 %v3120, %v3116
    %v3126 = vmax.bf16 %v3122, 0
    %v3127 = vmax.bf16 %v3123, 0
    %v3128 = vmax.bf16 %v3124, 0
    %v3129 = vmax.bf16 %v3125, 0
    %v3130 = vadd.bf16 %v3126, %v2901
    %v3131 = vadd.bf16 %v3127, %v2902
    %v3132 = vadd.bf16 %v3128, %v2903
    %v3133 = vadd.bf16 %v3129, %v2904
    %v3138 = vunpack.c.l.b16 %v3130
    %v3139 = vunpack.c.l.b16 %v3131
    %v3140 = vunpack.c.h.b16 %v3130
    %v3141 = vunpack.c.h.b16 %v3131
    %v3142 = vunpack.c.l.b16 %v3132
    %v3143 = vunpack.c.l.b16 %v3133
    %v3144 = vunpack.c.h.b16 %v3132
    %v3145 = vunpack.c.h.b16 %v3133
    %v3146 = vpack.c.b16 %v3139, %v3138
    %v3147 = vpack.c.b16 %v3141, %v3140
    %v3148 = vpack.c.b16 %v3143, %v3142
    %v3149 = vpack.c.b16 %v3145, %v3144
    %3154 = vst [vmem:[#allocation2] sm:$0xff] %v3146
    %3155 = vst [vmem:[#allocation2 + $0x8] sm:$0xff] %v3147
    %3156 = vst [vmem:[#allocation2 + $0x10] sm:$0xff] %v3148
    %3157 = vst [vmem:[#allocation2 + $0x18] sm:$0xff] %v3149
    %v3158 = vld [vmem:[#allocation3] sm:$0xff]
    %v3159 = vld [vmem:[#allocation3 + $0x8] sm:$0xff]
    %v3160 = vld [vmem:[#allocation3 + $0x10] sm:$0xff]
    %v3161 = vld [vmem:[#allocation3 + $0x18] sm:$0xff]
    %v3166 = vunpack.c.l.b16 %v3158
    %v3167 = vunpack.c.h.b16 %v3158
    %v3168 = vunpack.c.l.b16 %v3159
    %v3169 = vunpack.c.h.b16 %v3159
    %v3170 = vunpack.c.l.b16 %v3160
    %v3171 = vunpack.c.h.b16 %v3160
    %v3172 = vunpack.c.l.b16 %v3161
    %v3173 = vunpack.c.h.b16 %v3161
    %v3174 = vpack.c.b16 %v3168, %v3166
    %v3175 = vpack.c.b16 %v3169, %v3167
    %v3176 = vpack.c.b16 %v3172, %v3170
    %v3177 = vpack.c.b16 %v3173, %v3171
    %3182 = vmatprep.subr.bf16.mxu0 %v3020
    %3183 = vmatpush1.bf16.msra.mxu0 %v3019
    %3184 = vmatprep.subr.bf16.mxu0 %v3018
    %3185 = vmatpush1.bf16.msra.mxu0 %v3017
    %3186 = vmatprep.subr.bf16.mxu0 %v3016
    %3187 = vmatpush1.bf16.msra.mxu0 %v3015
    %3188 = vmatprep.subr.bf16.mxu0 %v3014
    %3189 = vmatpush1.bf16.msra.mxu0 %v3013
    %3190 = vmatprep.subr.bf16.mxu0 %v3012
    %3191 = vmatpush1.bf16.msra.mxu0 %v3011
    %3192 = vmatprep.subr.bf16.mxu0 %v3010
    %3193 = vmatpush1.bf16.msra.mxu0 %v3009
    %3194 = vmatprep.subr.bf16.mxu0 %v3008
    %3195 = vmatpush1.bf16.msra.mxu0 %v3007
    %3196 = vmatprep.subr.bf16.mxu0 %v3006
    %3197 = vmatpush1.bf16.msra.mxu0 %v3005
    %3198 = vmatprep.subr.bf16.mxu0 %v3036
    %3199 = vmatpush2.bf16.msra.mxu0 %v3035
    %3200 = vmatprep.subr.bf16.mxu0 %v3034
    %3201 = vmatpush2.bf16.msra.mxu0 %v3033
    %3202 = vmatprep.subr.bf16.mxu0 %v3032
    %3203 = vmatpush2.bf16.msra.mxu0 %v3031
    %3204 = vmatprep.subr.bf16.mxu0 %v3030
    %3205 = vmatpush2.bf16.msra.mxu0 %v3029
    %3206 = vmatprep.subr.bf16.mxu0 %v3028
    %3207 = vmatpush2.bf16.msra.mxu0 %v3027
    %3208 = vmatprep.subr.bf16.mxu0 %v3026
    %3209 = vmatpush2.bf16.msra.mxu0 %v3025
    %3210 = vmatprep.subr.bf16.mxu0 %v3024
    %3211 = vmatpush2.bf16.msra.mxu0 %v3023
    %3212 = vmatprep.subr.bf16.mxu0 %v3022
    %3213 = vmatpush2.bf16.msra.mxu0 %v3021
    %3214 = vmatprep.mubr.bf16.mxu0 %v3175
    %3215 = vmatmul.mubr.bf16.gmra.mxu0 %v3174
    %v3216 = vpop.f32.mrf.mxu0
    %v3217 = vadd.f32 %v2882, %v3216
    %v3218 = vpop.f32.mrf.mxu0
    %v3219 = vadd.f32 %v2886, %v3218
    %v3220 = vpop.f32.mrf.mxu0
    %v3221 = vadd.f32 %v2882, %v3220
    %v3222 = vpop.f32.mrf.mxu0
    %v3223 = vadd.f32 %v2886, %v3222
    %3224 = vmatprep.mubr.bf16.mxu0 %v3177
    %3225 = vmatmul.mubr.bf16.gmra.mxu0 %v3176
    %v3226 = vpop.f32.mrf.mxu0
    %v3227 = vadd.f32 %v2882, %v3226
    %v3228 = vpop.f32.mrf.mxu0
    %v3229 = vadd.f32 %v2886, %v3228
    %v3230 = vpop.f32.mrf.mxu0
    %v3231 = vadd.f32 %v2882, %v3230
    %v3232 = vpop.f32.mrf.mxu0
    %v3233 = vadd.f32 %v2886, %v3232
    %3234 = vdwg.mxu0
    %v3235 = vpack.c.bf16 %v3221, %v3217
    %v3236 = vpack.c.bf16 %v3223, %v3219
    %v3237 = vpack.c.bf16 %v3231, %v3227
    %v3238 = vpack.c.bf16 %v3233, %v3229
    %v3239 = vmax.bf16 %v3235, 0
    %v3240 = vmax.bf16 %v3236, 0
    %v3241 = vmax.bf16 %v3237, 0
    %v3242 = vmax.bf16 %v3238, 0
    %v3243 = vadd.bf16 %v3239, %v3174
    %v3244 = vadd.bf16 %v3240, %v3175
    %v3245 = vadd.bf16 %v3241, %v3176
    %v3246 = vadd.bf16 %v3242, %v3177
    %v3251 = vunpack.c.l.b16 %v3243
    %v3252 = vunpack.c.l.b16 %v3244
    %v3253 = vunpack.c.h.b16 %v3243
    %v3254 = vunpack.c.h.b16 %v3244
    %v3255 = vunpack.c.l.b16 %v3245
    %v3256 = vunpack.c.l.b16 %v3246
    %v3257 = vunpack.c.h.b16 %v3245
    %v3258 = vunpack.c.h.b16 %v3246
    %v3259 = vpack.c.b16 %v3252, %v3251
    %v3260 = vpack.c.b16 %v3254, %v3253
    %v3261 = vpack.c.b16 %v3256, %v3255
    %v3262 = vpack.c.b16 %v3258, %v3257
    %3267 = vst [vmem:[#allocation3] sm:$0xff] %v3259
    %3268 = vst [vmem:[#allocation3 + $0x8] sm:$0xff] %v3260
    %3269 = vst [vmem:[#allocation3 + $0x10] sm:$0xff] %v3261
    %3270 = vst [vmem:[#allocation3 + $0x18] sm:$0xff] %v3262
    %s3271 = scalar_lea.vmem [#allocation10], 1536
    %v3272 = vld [vmem:[%s3271] sm:$0xff]
    %v3273 = vld [vmem:[%s3271 + $0x8] sm:$0xff]
    %v3274 = vld [vmem:[%s3271 + $0x10] sm:$0xff]
    %v3275 = vld [vmem:[%s3271 + $0x18] sm:$0xff]
    %v3276 = vld [vmem:[%s3271 + $0x20] sm:$0xff]
    %v3277 = vld [vmem:[%s3271 + $0x28] sm:$0xff]
    %v3278 = vld [vmem:[%s3271 + $0x30] sm:$0xff]
    %v3279 = vld [vmem:[%s3271 + $0x38] sm:$0xff]
    %v3280 = vld [vmem:[%s3271 + $0x40] sm:$0xff]
    %v3281 = vld [vmem:[%s3271 + $0x48] sm:$0xff]
    %v3282 = vld [vmem:[%s3271 + $0x50] sm:$0xff]
    %v3283 = vld [vmem:[%s3271 + $0x58] sm:$0xff]
    %v3284 = vld [vmem:[%s3271 + $0x60] sm:$0xff]
    %v3285 = vld [vmem:[%s3271 + $0x68] sm:$0xff]
    %v3286 = vld [vmem:[%s3271 + $0x70] sm:$0xff]
    %v3287 = vld [vmem:[%s3271 + $0x78] sm:$0xff]
    %v3288 = vld [vmem:[%s3271 + $0x80] sm:$0xff]
    %v3289 = vld [vmem:[%s3271 + $0x88] sm:$0xff]
    %v3290 = vld [vmem:[%s3271 + $0x90] sm:$0xff]
    %v3291 = vld [vmem:[%s3271 + $0x98] sm:$0xff]
    %v3292 = vld [vmem:[%s3271 + $0xa0] sm:$0xff]
    %v3293 = vld [vmem:[%s3271 + $0xa8] sm:$0xff]
    %v3294 = vld [vmem:[%s3271 + $0xb0] sm:$0xff]
    %v3295 = vld [vmem:[%s3271 + $0xb8] sm:$0xff]
    %v3296 = vld [vmem:[%s3271 + $0xc0] sm:$0xff]
    %v3297 = vld [vmem:[%s3271 + $0xc8] sm:$0xff]
    %v3298 = vld [vmem:[%s3271 + $0xd0] sm:$0xff]
    %v3299 = vld [vmem:[%s3271 + $0xd8] sm:$0xff]
    %v3300 = vld [vmem:[%s3271 + $0xe0] sm:$0xff]
    %v3301 = vld [vmem:[%s3271 + $0xe8] sm:$0xff]
    %v3302 = vld [vmem:[%s3271 + $0xf0] sm:$0xff]
    %v3303 = vld [vmem:[%s3271 + $0xf8] sm:$0xff]
    %s3304 = scalar_lea.vmem [#allocation12], 12
    %v3305 = vld [vmem:[%s3304] sm:$0x3]
    %v3306 = vld [vmem:[#allocation2] sm:$0xff]
    %v3307 = vld [vmem:[#allocation2 + $0x8] sm:$0xff]
    %v3308 = vld [vmem:[#allocation2 + $0x10] sm:$0xff]
    %v3309 = vld [vmem:[#allocation2 + $0x18] sm:$0xff]
    %v3311 = vlaneseq
    %v3312 = vshrl.u32 %v3311, 7
    %v3313 = vsub.s32 0, %v3312
    %v3314 = vrot.slane %v3305, %v3313
    %v3315 = vlaneseq
    %v3316 = vshrl.u32 %v3315, 7
    %v3317 = vsub.s32 1, %v3316
    %v3318 = vrot.slane %v3305, %v3317
    %v3325 = vunpack.c.l.b16 %v3306
    %v3326 = vunpack.c.h.b16 %v3306
    %v3327 = vunpack.c.l.b16 %v3307
    %v3328 = vunpack.c.h.b16 %v3307
    %v3329 = vunpack.c.l.b16 %v3308
    %v3330 = vunpack.c.h.b16 %v3308
    %v3331 = vunpack.c.l.b16 %v3309
    %v3332 = vunpack.c.h.b16 %v3309
    %v3333 = vpack.c.b16 %v3327, %v3325
    %v3334 = vpack.c.b16 %v3328, %v3326
    %v3335 = vpack.c.b16 %v3331, %v3329
    %v3336 = vpack.c.b16 %v3332, %v3330
    %v3373 = vunpack.c.l.b16 %v3272
    %v3374 = vunpack.c.h.b16 %v3272
    %v3375 = vunpack.c.l.b16 %v3273
    %v3376 = vunpack.c.h.b16 %v3273
    %v3377 = vunpack.c.l.b16 %v3274
    %v3378 = vunpack.c.h.b16 %v3274
    %v3379 = vunpack.c.l.b16 %v3275
    %v3380 = vunpack.c.h.b16 %v3275
    %v3381 = vunpack.c.l.b16 %v3276
    %v3382 = vunpack.c.h.b16 %v3276
    %v3383 = vunpack.c.l.b16 %v3277
    %v3384 = vunpack.c.h.b16 %v3277
    %v3385 = vunpack.c.l.b16 %v3278
    %v3386 = vunpack.c.h.b16 %v3278
    %v3387 = vunpack.c.l.b16 %v3279
    %v3388 = vunpack.c.h.b16 %v3279
    %v3389 = vunpack.c.l.b16 %v3280
    %v3390 = vunpack.c.h.b16 %v3280
    %v3391 = vunpack.c.l.b16 %v3281
    %v3392 = vunpack.c.h.b16 %v3281
    %v3393 = vunpack.c.l.b16 %v3282
    %v3394 = vunpack.c.h.b16 %v3282
    %v3395 = vunpack.c.l.b16 %v3283
    %v3396 = vunpack.c.h.b16 %v3283
    %v3397 = vunpack.c.l.b16 %v3284
    %v3398 = vunpack.c.h.b16 %v3284
    %v3399 = vunpack.c.l.b16 %v3285
    %v3400 = vunpack.c.h.b16 %v3285
    %v3401 = vunpack.c.l.b16 %v3286
    %v3402 = vunpack.c.h.b16 %v3286
    %v3403 = vunpack.c.l.b16 %v3287
    %v3404 = vunpack.c.h.b16 %v3287
    %v3405 = vunpack.c.l.b16 %v3288
    %v3406 = vunpack.c.h.b16 %v3288
    %v3407 = vunpack.c.l.b16 %v3289
    %v3408 = vunpack.c.h.b16 %v3289
    %v3409 = vunpack.c.l.b16 %v3290
    %v3410 = vunpack.c.h.b16 %v3290
    %v3411 = vunpack.c.l.b16 %v3291
    %v3412 = vunpack.c.h.b16 %v3291
    %v3413 = vunpack.c.l.b16 %v3292
    %v3414 = vunpack.c.h.b16 %v3292
    %v3415 = vunpack.c.l.b16 %v3293
    %v3416 = vunpack.c.h.b16 %v3293
    %v3417 = vunpack.c.l.b16 %v3294
    %v3418 = vunpack.c.h.b16 %v3294
    %v3419 = vunpack.c.l.b16 %v3295
    %v3420 = vunpack.c.h.b16 %v3295
    %v3421 = vunpack.c.l.b16 %v3296
    %v3422 = vunpack.c.h.b16 %v3296
    %v3423 = vunpack.c.l.b16 %v3297
    %v3424 = vunpack.c.h.b16 %v3297
    %v3425 = vunpack.c.l.b16 %v3298
    %v3426 = vunpack.c.h.b16 %v3298
    %v3427 = vunpack.c.l.b16 %v3299
    %v3428 = vunpack.c.h.b16 %v3299
    %v3429 = vunpack.c.l.b16 %v3300
    %v3430 = vunpack.c.h.b16 %v3300
    %v3431 = vunpack.c.l.b16 %v3301
    %v3432 = vunpack.c.h.b16 %v3301
    %v3433 = vunpack.c.l.b16 %v3302
    %v3434 = vunpack.c.h.b16 %v3302
    %v3435 = vunpack.c.l.b16 %v3303
    %v3436 = vunpack.c.h.b16 %v3303
    %v3437 = vpack.c.b16 %v3375, %v3373
    %v3438 = vpack.c.b16 %v3376, %v3374
    %v3439 = vpack.c.b16 %v3379, %v3377
    %v3440 = vpack.c.b16 %v3380, %v3378
    %v3441 = vpack.c.b16 %v3383, %v3381
    %v3442 = vpack.c.b16 %v3384, %v3382
    %v3443 = vpack.c.b16 %v3387, %v3385
    %v3444 = vpack.c.b16 %v3388, %v3386
    %v3445 = vpack.c.b16 %v3391, %v3389
    %v3446 = vpack.c.b16 %v3392, %v3390
    %v3447 = vpack.c.b16 %v3395, %v3393
    %v3448 = vpack.c.b16 %v3396, %v3394
    %v3449 = vpack.c.b16 %v3399, %v3397
    %v3450 = vpack.c.b16 %v3400, %v3398
    %v3451 = vpack.c.b16 %v3403, %v3401
    %v3452 = vpack.c.b16 %v3404, %v3402
    %v3453 = vpack.c.b16 %v3407, %v3405
    %v3454 = vpack.c.b16 %v3408, %v3406
    %v3455 = vpack.c.b16 %v3411, %v3409
    %v3456 = vpack.c.b16 %v3412, %v3410
    %v3457 = vpack.c.b16 %v3415, %v3413
    %v3458 = vpack.c.b16 %v3416, %v3414
    %v3459 = vpack.c.b16 %v3419, %v3417
    %v3460 = vpack.c.b16 %v3420, %v3418
    %v3461 = vpack.c.b16 %v3423, %v3421
    %v3462 = vpack.c.b16 %v3424, %v3422
    %v3463 = vpack.c.b16 %v3427, %v3425
    %v3464 = vpack.c.b16 %v3428, %v3426
    %v3465 = vpack.c.b16 %v3431, %v3429
    %v3466 = vpack.c.b16 %v3432, %v3430
    %v3467 = vpack.c.b16 %v3435, %v3433
    %v3468 = vpack.c.b16 %v3436, %v3434
    %3501 = vmatprep.subr.bf16.mxu0 %v3452
    %3502 = vmatpush1.bf16.msra.mxu0 %v3451
    %3503 = vmatprep.subr.bf16.mxu0 %v3450
    %3504 = vmatpush1.bf16.msra.mxu0 %v3449
    %3505 = vmatprep.subr.bf16.mxu0 %v3448
    %3506 = vmatpush1.bf16.msra.mxu0 %v3447
    %3507 = vmatprep.subr.bf16.mxu0 %v3446
    %3508 = vmatpush1.bf16.msra.mxu0 %v3445
    %3509 = vmatprep.subr.bf16.mxu0 %v3444
    %3510 = vmatpush1.bf16.msra.mxu0 %v3443
    %3511 = vmatprep.subr.bf16.mxu0 %v3442
    %3512 = vmatpush1.bf16.msra.mxu0 %v3441
    %3513 = vmatprep.subr.bf16.mxu0 %v3440
    %3514 = vmatpush1.bf16.msra.mxu0 %v3439
    %3515 = vmatprep.subr.bf16.mxu0 %v3438
    %3516 = vmatpush1.bf16.msra.mxu0 %v3437
    %3517 = vmatprep.subr.bf16.mxu0 %v3468
    %3518 = vmatpush2.bf16.msra.mxu0 %v3467
    %3519 = vmatprep.subr.bf16.mxu0 %v3466
    %3520 = vmatpush2.bf16.msra.mxu0 %v3465
    %3521 = vmatprep.subr.bf16.mxu0 %v3464
    %3522 = vmatpush2.bf16.msra.mxu0 %v3463
    %3523 = vmatprep.subr.bf16.mxu0 %v3462
    %3524 = vmatpush2.bf16.msra.mxu0 %v3461
    %3525 = vmatprep.subr.bf16.mxu0 %v3460
    %3526 = vmatpush2.bf16.msra.mxu0 %v3459
    %3527 = vmatprep.subr.bf16.mxu0 %v3458
    %3528 = vmatpush2.bf16.msra.mxu0 %v3457
    %3529 = vmatprep.subr.bf16.mxu0 %v3456
    %3530 = vmatpush2.bf16.msra.mxu0 %v3455
    %3531 = vmatprep.subr.bf16.mxu0 %v3454
    %3532 = vmatpush2.bf16.msra.mxu0 %v3453
    %3533 = vmatprep.mubr.bf16.mxu0 %v3334
    %3534 = vmatmul.mubr.bf16.gmra.mxu0 %v3333
    %v3535 = vpop.f32.mrf.mxu0
    %v3536 = vadd.f32 %v3314, %v3535
    %v3537 = vpop.f32.mrf.mxu0
    %v3538 = vadd.f32 %v3318, %v3537
    %v3539 = vpop.f32.mrf.mxu0
    %v3540 = vadd.f32 %v3314, %v3539
    %v3541 = vpop.f32.mrf.mxu0
    %v3542 = vadd.f32 %v3318, %v3541
    %3543 = vmatprep.mubr.bf16.mxu0 %v3336
    %3544 = vmatmul.mubr.bf16.gmra.mxu0 %v3335
    %v3545 = vpop.f32.mrf.mxu0
    %v3546 = vadd.f32 %v3314, %v3545
    %v3547 = vpop.f32.mrf.mxu0
    %v3548 = vadd.f32 %v3318, %v3547
    %v3549 = vpop.f32.mrf.mxu0
    %v3550 = vadd.f32 %v3314, %v3549
    %v3551 = vpop.f32.mrf.mxu0
    %v3552 = vadd.f32 %v3318, %v3551
    %3553 = vdwg.mxu0
    %v3554 = vpack.c.bf16 %v3540, %v3536
    %v3555 = vpack.c.bf16 %v3542, %v3538
    %v3556 = vpack.c.bf16 %v3550, %v3546
    %v3557 = vpack.c.bf16 %v3552, %v3548
    %v3558 = vmax.bf16 %v3554, 0
    %v3559 = vmax.bf16 %v3555, 0
    %v3560 = vmax.bf16 %v3556, 0
    %v3561 = vmax.bf16 %v3557, 0
    %v3562 = vadd.bf16 %v3558, %v3333
    %v3563 = vadd.bf16 %v3559, %v3334
    %v3564 = vadd.bf16 %v3560, %v3335
    %v3565 = vadd.bf16 %v3561, %v3336
    %v3570 = vunpack.c.l.b16 %v3562
    %v3571 = vunpack.c.l.b16 %v3563
    %v3572 = vunpack.c.h.b16 %v3562
    %v3573 = vunpack.c.h.b16 %v3563
    %v3574 = vunpack.c.l.b16 %v3564
    %v3575 = vunpack.c.l.b16 %v3565
    %v3576 = vunpack.c.h.b16 %v3564
    %v3577 = vunpack.c.h.b16 %v3565
    %v3578 = vpack.c.b16 %v3571, %v3570
    %v3579 = vpack.c.b16 %v3573, %v3572
    %v3580 = vpack.c.b16 %v3575, %v3574
    %v3581 = vpack.c.b16 %v3577, %v3576
    %3586 = vst [vmem:[#allocation2] sm:$0xff] %v3578
    %3587 = vst [vmem:[#allocation2 + $0x8] sm:$0xff] %v3579
    %3588 = vst [vmem:[#allocation2 + $0x10] sm:$0xff] %v3580
    %3589 = vst [vmem:[#allocation2 + $0x18] sm:$0xff] %v3581
    %v3590 = vld [vmem:[#allocation3] sm:$0xff]
    %v3591 = vld [vmem:[#allocation3 + $0x8] sm:$0xff]
    %v3592 = vld [vmem:[#allocation3 + $0x10] sm:$0xff]
    %v3593 = vld [vmem:[#allocation3 + $0x18] sm:$0xff]
    %v3598 = vunpack.c.l.b16 %v3590
    %v3599 = vunpack.c.h.b16 %v3590
    %v3600 = vunpack.c.l.b16 %v3591
    %v3601 = vunpack.c.h.b16 %v3591
    %v3602 = vunpack.c.l.b16 %v3592
    %v3603 = vunpack.c.h.b16 %v3592
    %v3604 = vunpack.c.l.b16 %v3593
    %v3605 = vunpack.c.h.b16 %v3593
    %v3606 = vpack.c.b16 %v3600, %v3598
    %v3607 = vpack.c.b16 %v3601, %v3599
    %v3608 = vpack.c.b16 %v3604, %v3602
    %v3609 = vpack.c.b16 %v3605, %v3603
    %3614 = vmatprep.subr.bf16.mxu0 %v3452
    %3615 = vmatpush1.bf16.msra.mxu0 %v3451
    %3616 = vmatprep.subr.bf16.mxu0 %v3450
    %3617 = vmatpush1.bf16.msra.mxu0 %v3449
    %3618 = vmatprep.subr.bf16.mxu0 %v3448
    %3619 = vmatpush1.bf16.msra.mxu0 %v3447
    %3620 = vmatprep.subr.bf16.mxu0 %v3446
    %3621 = vmatpush1.bf16.msra.mxu0 %v3445
    %3622 = vmatprep.subr.bf16.mxu0 %v3444
    %3623 = vmatpush1.bf16.msra.mxu0 %v3443
    %3624 = vmatprep.subr.bf16.mxu0 %v3442
    %3625 = vmatpush1.bf16.msra.mxu0 %v3441
    %3626 = vmatprep.subr.bf16.mxu0 %v3440
    %3627 = vmatpush1.bf16.msra.mxu0 %v3439
    %3628 = vmatprep.subr.bf16.mxu0 %v3438
    %3629 = vmatpush1.bf16.msra.mxu0 %v3437
    %3630 = vmatprep.subr.bf16.mxu0 %v3468
    %3631 = vmatpush2.bf16.msra.mxu0 %v3467
    %3632 = vmatprep.subr.bf16.mxu0 %v3466
    %3633 = vmatpush2.bf16.msra.mxu0 %v3465
    %3634 = vmatprep.subr.bf16.mxu0 %v3464
    %3635 = vmatpush2.bf16.msra.mxu0 %v3463
    %3636 = vmatprep.subr.bf16.mxu0 %v3462
    %3637 = vmatpush2.bf16.msra.mxu0 %v3461
    %3638 = vmatprep.subr.bf16.mxu0 %v3460
    %3639 = vmatpush2.bf16.msra.mxu0 %v3459
    %3640 = vmatprep.subr.bf16.mxu0 %v3458
    %3641 = vmatpush2.bf16.msra.mxu0 %v3457
    %3642 = vmatprep.subr.bf16.mxu0 %v3456
    %3643 = vmatpush2.bf16.msra.mxu0 %v3455
    %3644 = vmatprep.subr.bf16.mxu0 %v3454
    %3645 = vmatpush2.bf16.msra.mxu0 %v3453
    %3646 = vmatprep.mubr.bf16.mxu0 %v3607
    %3647 = vmatmul.mubr.bf16.gmra.mxu0 %v3606
    %v3648 = vpop.f32.mrf.mxu0
    %v3649 = vadd.f32 %v3314, %v3648
    %v3650 = vpop.f32.mrf.mxu0
    %v3651 = vadd.f32 %v3318, %v3650
    %v3652 = vpop.f32.mrf.mxu0
    %v3653 = vadd.f32 %v3314, %v3652
    %v3654 = vpop.f32.mrf.mxu0
    %v3655 = vadd.f32 %v3318, %v3654
    %3656 = vmatprep.mubr.bf16.mxu0 %v3609
    %3657 = vmatmul.mubr.bf16.gmra.mxu0 %v3608
    %v3658 = vpop.f32.mrf.mxu0
    %v3659 = vadd.f32 %v3314, %v3658
    %v3660 = vpop.f32.mrf.mxu0
    %v3661 = vadd.f32 %v3318, %v3660
    %v3662 = vpop.f32.mrf.mxu0
    %v3663 = vadd.f32 %v3314, %v3662
    %v3664 = vpop.f32.mrf.mxu0
    %v3665 = vadd.f32 %v3318, %v3664
    %3666 = vdwg.mxu0
    %v3667 = vpack.c.bf16 %v3653, %v3649
    %v3668 = vpack.c.bf16 %v3655, %v3651
    %v3669 = vpack.c.bf16 %v3663, %v3659
    %v3670 = vpack.c.bf16 %v3665, %v3661
    %v3671 = vmax.bf16 %v3667, 0
    %v3672 = vmax.bf16 %v3668, 0
    %v3673 = vmax.bf16 %v3669, 0
    %v3674 = vmax.bf16 %v3670, 0
    %v3675 = vadd.bf16 %v3671, %v3606
    %v3676 = vadd.bf16 %v3672, %v3607
    %v3677 = vadd.bf16 %v3673, %v3608
    %v3678 = vadd.bf16 %v3674, %v3609
    %v3683 = vunpack.c.l.b16 %v3675
    %v3684 = vunpack.c.l.b16 %v3676
    %v3685 = vunpack.c.h.b16 %v3675
    %v3686 = vunpack.c.h.b16 %v3676
    %v3687 = vunpack.c.l.b16 %v3677
    %v3688 = vunpack.c.l.b16 %v3678
    %v3689 = vunpack.c.h.b16 %v3677
    %v3690 = vunpack.c.h.b16 %v3678
    %v3691 = vpack.c.b16 %v3684, %v3683
    %v3692 = vpack.c.b16 %v3686, %v3685
    %v3693 = vpack.c.b16 %v3688, %v3687
    %v3694 = vpack.c.b16 %v3690, %v3689
    %3699 = vst [vmem:[#allocation3] sm:$0xff] %v3691
    %3700 = vst [vmem:[#allocation3 + $0x8] sm:$0xff] %v3692
    %3701 = vst [vmem:[#allocation3 + $0x10] sm:$0xff] %v3693
    %3702 = vst [vmem:[#allocation3 + $0x18] sm:$0xff] %v3694
    %s3703 = scalar_lea.vmem [#allocation10], 1792
    %v3704 = vld [vmem:[%s3703] sm:$0xff]
    %v3705 = vld [vmem:[%s3703 + $0x8] sm:$0xff]
    %v3706 = vld [vmem:[%s3703 + $0x10] sm:$0xff]
    %v3707 = vld [vmem:[%s3703 + $0x18] sm:$0xff]
    %v3708 = vld [vmem:[%s3703 + $0x20] sm:$0xff]
    %v3709 = vld [vmem:[%s3703 + $0x28] sm:$0xff]
    %v3710 = vld [vmem:[%s3703 + $0x30] sm:$0xff]
    %v3711 = vld [vmem:[%s3703 + $0x38] sm:$0xff]
    %v3712 = vld [vmem:[%s3703 + $0x40] sm:$0xff]
    %v3713 = vld [vmem:[%s3703 + $0x48] sm:$0xff]
    %v3714 = vld [vmem:[%s3703 + $0x50] sm:$0xff]
    %v3715 = vld [vmem:[%s3703 + $0x58] sm:$0xff]
    %v3716 = vld [vmem:[%s3703 + $0x60] sm:$0xff]
    %v3717 = vld [vmem:[%s3703 + $0x68] sm:$0xff]
    %v3718 = vld [vmem:[%s3703 + $0x70] sm:$0xff]
    %v3719 = vld [vmem:[%s3703 + $0x78] sm:$0xff]
    %v3720 = vld [vmem:[%s3703 + $0x80] sm:$0xff]
    %v3721 = vld [vmem:[%s3703 + $0x88] sm:$0xff]
    %v3722 = vld [vmem:[%s3703 + $0x90] sm:$0xff]
    %v3723 = vld [vmem:[%s3703 + $0x98] sm:$0xff]
    %v3724 = vld [vmem:[%s3703 + $0xa0] sm:$0xff]
    %v3725 = vld [vmem:[%s3703 + $0xa8] sm:$0xff]
    %v3726 = vld [vmem:[%s3703 + $0xb0] sm:$0xff]
    %v3727 = vld [vmem:[%s3703 + $0xb8] sm:$0xff]
    %v3728 = vld [vmem:[%s3703 + $0xc0] sm:$0xff]
    %v3729 = vld [vmem:[%s3703 + $0xc8] sm:$0xff]
    %v3730 = vld [vmem:[%s3703 + $0xd0] sm:$0xff]
    %v3731 = vld [vmem:[%s3703 + $0xd8] sm:$0xff]
    %v3732 = vld [vmem:[%s3703 + $0xe0] sm:$0xff]
    %v3733 = vld [vmem:[%s3703 + $0xe8] sm:$0xff]
    %v3734 = vld [vmem:[%s3703 + $0xf0] sm:$0xff]
    %v3735 = vld [vmem:[%s3703 + $0xf8] sm:$0xff]
    %s3736 = scalar_lea.vmem [#allocation12], 14
    %v3737 = vld [vmem:[%s3736] sm:$0x3]
    %v3738 = vld [vmem:[#allocation2] sm:$0xff]
    %v3739 = vld [vmem:[#allocation2 + $0x8] sm:$0xff]
    %v3740 = vld [vmem:[#allocation2 + $0x10] sm:$0xff]
    %v3741 = vld [vmem:[#allocation2 + $0x18] sm:$0xff]
    %v3743 = vlaneseq
    %v3744 = vshrl.u32 %v3743, 7
    %v3745 = vsub.s32 0, %v3744
    %v3746 = vrot.slane %v3737, %v3745
    %v3747 = vlaneseq
    %v3748 = vshrl.u32 %v3747, 7
    %v3749 = vsub.s32 1, %v3748
    %v3750 = vrot.slane %v3737, %v3749
    %v3757 = vunpack.c.l.b16 %v3738
    %v3758 = vunpack.c.h.b16 %v3738
    %v3759 = vunpack.c.l.b16 %v3739
    %v3760 = vunpack.c.h.b16 %v3739
    %v3761 = vunpack.c.l.b16 %v3740
    %v3762 = vunpack.c.h.b16 %v3740
    %v3763 = vunpack.c.l.b16 %v3741
    %v3764 = vunpack.c.h.b16 %v3741
    %v3765 = vpack.c.b16 %v3759, %v3757
    %v3766 = vpack.c.b16 %v3760, %v3758
    %v3767 = vpack.c.b16 %v3763, %v3761
    %v3768 = vpack.c.b16 %v3764, %v3762
    %v3805 = vunpack.c.l.b16 %v3704
    %v3806 = vunpack.c.h.b16 %v3704
    %v3807 = vunpack.c.l.b16 %v3705
    %v3808 = vunpack.c.h.b16 %v3705
    %v3809 = vunpack.c.l.b16 %v3706
    %v3810 = vunpack.c.h.b16 %v3706
    %v3811 = vunpack.c.l.b16 %v3707
    %v3812 = vunpack.c.h.b16 %v3707
    %v3813 = vunpack.c.l.b16 %v3708
    %v3814 = vunpack.c.h.b16 %v3708
    %v3815 = vunpack.c.l.b16 %v3709
    %v3816 = vunpack.c.h.b16 %v3709
    %v3817 = vunpack.c.l.b16 %v3710
    %v3818 = vunpack.c.h.b16 %v3710
    %v3819 = vunpack.c.l.b16 %v3711
    %v3820 = vunpack.c.h.b16 %v3711
    %v3821 = vunpack.c.l.b16 %v3712
    %v3822 = vunpack.c.h.b16 %v3712
    %v3823 = vunpack.c.l.b16 %v3713
    %v3824 = vunpack.c.h.b16 %v3713
    %v3825 = vunpack.c.l.b16 %v3714
    %v3826 = vunpack.c.h.b16 %v3714
    %v3827 = vunpack.c.l.b16 %v3715
    %v3828 = vunpack.c.h.b16 %v3715
    %v3829 = vunpack.c.l.b16 %v3716
    %v3830 = vunpack.c.h.b16 %v3716
    %v3831 = vunpack.c.l.b16 %v3717
    %v3832 = vunpack.c.h.b16 %v3717
    %v3833 = vunpack.c.l.b16 %v3718
    %v3834 = vunpack.c.h.b16 %v3718
    %v3835 = vunpack.c.l.b16 %v3719
    %v3836 = vunpack.c.h.b16 %v3719
    %v3837 = vunpack.c.l.b16 %v3720
    %v3838 = vunpack.c.h.b16 %v3720
    %v3839 = vunpack.c.l.b16 %v3721
    %v3840 = vunpack.c.h.b16 %v3721
    %v3841 = vunpack.c.l.b16 %v3722
    %v3842 = vunpack.c.h.b16 %v3722
    %v3843 = vunpack.c.l.b16 %v3723
    %v3844 = vunpack.c.h.b16 %v3723
    %v3845 = vunpack.c.l.b16 %v3724
    %v3846 = vunpack.c.h.b16 %v3724
    %v3847 = vunpack.c.l.b16 %v3725
    %v3848 = vunpack.c.h.b16 %v3725
    %v3849 = vunpack.c.l.b16 %v3726
    %v3850 = vunpack.c.h.b16 %v3726
    %v3851 = vunpack.c.l.b16 %v3727
    %v3852 = vunpack.c.h.b16 %v3727
    %v3853 = vunpack.c.l.b16 %v3728
    %v3854 = vunpack.c.h.b16 %v3728
    %v3855 = vunpack.c.l.b16 %v3729
    %v3856 = vunpack.c.h.b16 %v3729
    %v3857 = vunpack.c.l.b16 %v3730
    %v3858 = vunpack.c.h.b16 %v3730
    %v3859 = vunpack.c.l.b16 %v3731
    %v3860 = vunpack.c.h.b16 %v3731
    %v3861 = vunpack.c.l.b16 %v3732
    %v3862 = vunpack.c.h.b16 %v3732
    %v3863 = vunpack.c.l.b16 %v3733
    %v3864 = vunpack.c.h.b16 %v3733
    %v3865 = vunpack.c.l.b16 %v3734
    %v3866 = vunpack.c.h.b16 %v3734
    %v3867 = vunpack.c.l.b16 %v3735
    %v3868 = vunpack.c.h.b16 %v3735
    %v3869 = vpack.c.b16 %v3807, %v3805
    %v3870 = vpack.c.b16 %v3808, %v3806
    %v3871 = vpack.c.b16 %v3811, %v3809
    %v3872 = vpack.c.b16 %v3812, %v3810
    %v3873 = vpack.c.b16 %v3815, %v3813
    %v3874 = vpack.c.b16 %v3816, %v3814
    %v3875 = vpack.c.b16 %v3819, %v3817
    %v3876 = vpack.c.b16 %v3820, %v3818
    %v3877 = vpack.c.b16 %v3823, %v3821
    %v3878 = vpack.c.b16 %v3824, %v3822
    %v3879 = vpack.c.b16 %v3827, %v3825
    %v3880 = vpack.c.b16 %v3828, %v3826
    %v3881 = vpack.c.b16 %v3831, %v3829
    %v3882 = vpack.c.b16 %v3832, %v3830
    %v3883 = vpack.c.b16 %v3835, %v3833
    %v3884 = vpack.c.b16 %v3836, %v3834
    %v3885 = vpack.c.b16 %v3839, %v3837
    %v3886 = vpack.c.b16 %v3840, %v3838
    %v3887 = vpack.c.b16 %v3843, %v3841
    %v3888 = vpack.c.b16 %v3844, %v3842
    %v3889 = vpack.c.b16 %v3847, %v3845
    %v3890 = vpack.c.b16 %v3848, %v3846
    %v3891 = vpack.c.b16 %v3851, %v3849
    %v3892 = vpack.c.b16 %v3852, %v3850
    %v3893 = vpack.c.b16 %v3855, %v3853
    %v3894 = vpack.c.b16 %v3856, %v3854
    %v3895 = vpack.c.b16 %v3859, %v3857
    %v3896 = vpack.c.b16 %v3860, %v3858
    %v3897 = vpack.c.b16 %v3863, %v3861
    %v3898 = vpack.c.b16 %v3864, %v3862
    %v3899 = vpack.c.b16 %v3867, %v3865
    %v3900 = vpack.c.b16 %v3868, %v3866
    %3933 = vmatprep.subr.bf16.mxu0 %v3884
    %3934 = vmatpush1.bf16.msra.mxu0 %v3883
    %3935 = vmatprep.subr.bf16.mxu0 %v3882
    %3936 = vmatpush1.bf16.msra.mxu0 %v3881
    %3937 = vmatprep.subr.bf16.mxu0 %v3880
    %3938 = vmatpush1.bf16.msra.mxu0 %v3879
    %3939 = vmatprep.subr.bf16.mxu0 %v3878
    %3940 = vmatpush1.bf16.msra.mxu0 %v3877
    %3941 = vmatprep.subr.bf16.mxu0 %v3876
    %3942 = vmatpush1.bf16.msra.mxu0 %v3875
    %3943 = vmatprep.subr.bf16.mxu0 %v3874
    %3944 = vmatpush1.bf16.msra.mxu0 %v3873
    %3945 = vmatprep.subr.bf16.mxu0 %v3872
    %3946 = vmatpush1.bf16.msra.mxu0 %v3871
    %3947 = vmatprep.subr.bf16.mxu0 %v3870
    %3948 = vmatpush1.bf16.msra.mxu0 %v3869
    %3949 = vmatprep.subr.bf16.mxu0 %v3900
    %3950 = vmatpush2.bf16.msra.mxu0 %v3899
    %3951 = vmatprep.subr.bf16.mxu0 %v3898
    %3952 = vmatpush2.bf16.msra.mxu0 %v3897
    %3953 = vmatprep.subr.bf16.mxu0 %v3896
    %3954 = vmatpush2.bf16.msra.mxu0 %v3895
    %3955 = vmatprep.subr.bf16.mxu0 %v3894
    %3956 = vmatpush2.bf16.msra.mxu0 %v3893
    %3957 = vmatprep.subr.bf16.mxu0 %v3892
    %3958 = vmatpush2.bf16.msra.mxu0 %v3891
    %3959 = vmatprep.subr.bf16.mxu0 %v3890
    %3960 = vmatpush2.bf16.msra.mxu0 %v3889
    %3961 = vmatprep.subr.bf16.mxu0 %v3888
    %3962 = vmatpush2.bf16.msra.mxu0 %v3887
    %3963 = vmatprep.subr.bf16.mxu0 %v3886
    %3964 = vmatpush2.bf16.msra.mxu0 %v3885
    %3965 = vmatprep.mubr.bf16.mxu0 %v3766
    %3966 = vmatmul.mubr.bf16.gmra.mxu0 %v3765
    %v3967 = vpop.f32.mrf.mxu0
    %v3968 = vadd.f32 %v3746, %v3967
    %v3969 = vpop.f32.mrf.mxu0
    %v3970 = vadd.f32 %v3750, %v3969
    %v3971 = vpop.f32.mrf.mxu0
    %v3972 = vadd.f32 %v3746, %v3971
    %v3973 = vpop.f32.mrf.mxu0
    %v3974 = vadd.f32 %v3750, %v3973
    %3975 = vmatprep.mubr.bf16.mxu0 %v3768
    %3976 = vmatmul.mubr.bf16.gmra.mxu0 %v3767
    %v3977 = vpop.f32.mrf.mxu0
    %v3978 = vadd.f32 %v3746, %v3977
    %v3979 = vpop.f32.mrf.mxu0
    %v3980 = vadd.f32 %v3750, %v3979
    %v3981 = vpop.f32.mrf.mxu0
    %v3982 = vadd.f32 %v3746, %v3981
    %v3983 = vpop.f32.mrf.mxu0
    %v3984 = vadd.f32 %v3750, %v3983
    %3985 = vdwg.mxu0
    %v3986 = vpack.c.bf16 %v3972, %v3968
    %v3987 = vpack.c.bf16 %v3974, %v3970
    %v3988 = vpack.c.bf16 %v3982, %v3978
    %v3989 = vpack.c.bf16 %v3984, %v3980
    %v3990 = vmax.bf16 %v3986, 0
    %v3991 = vmax.bf16 %v3987, 0
    %v3992 = vmax.bf16 %v3988, 0
    %v3993 = vmax.bf16 %v3989, 0
    %v3994 = vadd.bf16 %v3990, %v3765
    %v3995 = vadd.bf16 %v3991, %v3766
    %v3996 = vadd.bf16 %v3992, %v3767
    %v3997 = vadd.bf16 %v3993, %v3768
    %v4002 = vunpack.c.l.b16 %v3994
    %v4003 = vunpack.c.l.b16 %v3995
    %v4004 = vunpack.c.h.b16 %v3994
    %v4005 = vunpack.c.h.b16 %v3995
    %v4006 = vunpack.c.l.b16 %v3996
    %v4007 = vunpack.c.l.b16 %v3997
    %v4008 = vunpack.c.h.b16 %v3996
    %v4009 = vunpack.c.h.b16 %v3997
    %v4010 = vpack.c.b16 %v4003, %v4002
    %v4011 = vpack.c.b16 %v4005, %v4004
    %v4012 = vpack.c.b16 %v4007, %v4006
    %v4013 = vpack.c.b16 %v4009, %v4008
    %4018 = vst [vmem:[#allocation2] sm:$0xff] %v4010
    %4019 = vst [vmem:[#allocation2 + $0x8] sm:$0xff] %v4011
    %4020 = vst [vmem:[#allocation2 + $0x10] sm:$0xff] %v4012
    %4021 = vst [vmem:[#allocation2 + $0x18] sm:$0xff] %v4013
    %v4022 = vld [vmem:[#allocation3] sm:$0xff]
    %v4023 = vld [vmem:[#allocation3 + $0x8] sm:$0xff]
    %v4024 = vld [vmem:[#allocation3 + $0x10] sm:$0xff]
    %v4025 = vld [vmem:[#allocation3 + $0x18] sm:$0xff]
    %v4030 = vunpack.c.l.b16 %v4022
    %v4031 = vunpack.c.h.b16 %v4022
    %v4032 = vunpack.c.l.b16 %v4023
    %v4033 = vunpack.c.h.b16 %v4023
    %v4034 = vunpack.c.l.b16 %v4024
    %v4035 = vunpack.c.h.b16 %v4024
    %v4036 = vunpack.c.l.b16 %v4025
    %v4037 = vunpack.c.h.b16 %v4025
    %v4038 = vpack.c.b16 %v4032, %v4030
    %v4039 = vpack.c.b16 %v4033, %v4031
    %v4040 = vpack.c.b16 %v4036, %v4034
    %v4041 = vpack.c.b16 %v4037, %v4035
    %4046 = vmatprep.subr.bf16.mxu0 %v3884
    %4047 = vmatpush1.bf16.msra.mxu0 %v3883
    %4048 = vmatprep.subr.bf16.mxu0 %v3882
    %4049 = vmatpush1.bf16.msra.mxu0 %v3881
    %4050 = vmatprep.subr.bf16.mxu0 %v3880
    %4051 = vmatpush1.bf16.msra.mxu0 %v3879
    %4052 = vmatprep.subr.bf16.mxu0 %v3878
    %4053 = vmatpush1.bf16.msra.mxu0 %v3877
    %4054 = vmatprep.subr.bf16.mxu0 %v3876
    %4055 = vmatpush1.bf16.msra.mxu0 %v3875
    %4056 = vmatprep.subr.bf16.mxu0 %v3874
    %4057 = vmatpush1.bf16.msra.mxu0 %v3873
    %4058 = vmatprep.subr.bf16.mxu0 %v3872
    %4059 = vmatpush1.bf16.msra.mxu0 %v3871
    %4060 = vmatprep.subr.bf16.mxu0 %v3870
    %4061 = vmatpush1.bf16.msra.mxu0 %v3869
    %4062 = vmatprep.subr.bf16.mxu0 %v3900
    %4063 = vmatpush2.bf16.msra.mxu0 %v3899
    %4064 = vmatprep.subr.bf16.mxu0 %v3898
    %4065 = vmatpush2.bf16.msra.mxu0 %v3897
    %4066 = vmatprep.subr.bf16.mxu0 %v3896
    %4067 = vmatpush2.bf16.msra.mxu0 %v3895
    %4068 = vmatprep.subr.bf16.mxu0 %v3894
    %4069 = vmatpush2.bf16.msra.mxu0 %v3893
    %4070 = vmatprep.subr.bf16.mxu0 %v3892
    %4071 = vmatpush2.bf16.msra.mxu0 %v3891
    %4072 = vmatprep.subr.bf16.mxu0 %v3890
    %4073 = vmatpush2.bf16.msra.mxu0 %v3889
    %4074 = vmatprep.subr.bf16.mxu0 %v3888
    %4075 = vmatpush2.bf16.msra.mxu0 %v3887
    %4076 = vmatprep.subr.bf16.mxu0 %v3886
    %4077 = vmatpush2.bf16.msra.mxu0 %v3885
    %4078 = vmatprep.mubr.bf16.mxu0 %v4039
    %4079 = vmatmul.mubr.bf16.gmra.mxu0 %v4038
    %v4080 = vpop.f32.mrf.mxu0
    %v4081 = vadd.f32 %v3746, %v4080
    %v4082 = vpop.f32.mrf.mxu0
    %v4083 = vadd.f32 %v3750, %v4082
    %v4084 = vpop.f32.mrf.mxu0
    %v4085 = vadd.f32 %v3746, %v4084
    %v4086 = vpop.f32.mrf.mxu0
    %v4087 = vadd.f32 %v3750, %v4086
    %4088 = vmatprep.mubr.bf16.mxu0 %v4041
    %4089 = vmatmul.mubr.bf16.gmra.mxu0 %v4040
    %v4090 = vpop.f32.mrf.mxu0
    %v4091 = vadd.f32 %v3746, %v4090
    %v4092 = vpop.f32.mrf.mxu0
    %v4093 = vadd.f32 %v3750, %v4092
    %v4094 = vpop.f32.mrf.mxu0
    %v4095 = vadd.f32 %v3746, %v4094
    %v4096 = vpop.f32.mrf.mxu0
    %v4097 = vadd.f32 %v3750, %v4096
    %4098 = vdwg.mxu0
    %v4099 = vpack.c.bf16 %v4085, %v4081
    %v4100 = vpack.c.bf16 %v4087, %v4083
    %v4101 = vpack.c.bf16 %v4095, %v4091
    %v4102 = vpack.c.bf16 %v4097, %v4093
    %v4103 = vmax.bf16 %v4099, 0
    %v4104 = vmax.bf16 %v4100, 0
    %v4105 = vmax.bf16 %v4101, 0
    %v4106 = vmax.bf16 %v4102, 0
    %v4107 = vadd.bf16 %v4103, %v4038
    %v4108 = vadd.bf16 %v4104, %v4039
    %v4109 = vadd.bf16 %v4105, %v4040
    %v4110 = vadd.bf16 %v4106, %v4041
    %v4115 = vunpack.c.l.b16 %v4107
    %v4116 = vunpack.c.l.b16 %v4108
    %v4117 = vunpack.c.h.b16 %v4107
    %v4118 = vunpack.c.h.b16 %v4108
    %v4119 = vunpack.c.l.b16 %v4109
    %v4120 = vunpack.c.l.b16 %v4110
    %v4121 = vunpack.c.h.b16 %v4109
    %v4122 = vunpack.c.h.b16 %v4110
    %v4123 = vpack.c.b16 %v4116, %v4115
    %v4124 = vpack.c.b16 %v4118, %v4117
    %v4125 = vpack.c.b16 %v4120, %v4119
    %v4126 = vpack.c.b16 %v4122, %v4121
    %4131 = vst [vmem:[#allocation3] sm:$0xff] %v4123
    %4132 = vst [vmem:[#allocation3 + $0x8] sm:$0xff] %v4124
    %4133 = vst [vmem:[#allocation3 + $0x10] sm:$0xff] %v4125
    %4134 = vst [vmem:[#allocation3 + $0x18] sm:$0xff] %v4126
    %s4135 = scalar_lea.vmem [#allocation10], 2048
    %v4136 = vld [vmem:[%s4135] sm:$0xff]
    %v4137 = vld [vmem:[%s4135 + $0x8] sm:$0xff]
    %v4138 = vld [vmem:[%s4135 + $0x10] sm:$0xff]
    %v4139 = vld [vmem:[%s4135 + $0x18] sm:$0xff]
    %v4140 = vld [vmem:[%s4135 + $0x20] sm:$0xff]
    %v4141 = vld [vmem:[%s4135 + $0x28] sm:$0xff]
    %v4142 = vld [vmem:[%s4135 + $0x30] sm:$0xff]
    %v4143 = vld [vmem:[%s4135 + $0x38] sm:$0xff]
    %v4144 = vld [vmem:[%s4135 + $0x40] sm:$0xff]
    %v4145 = vld [vmem:[%s4135 + $0x48] sm:$0xff]
    %v4146 = vld [vmem:[%s4135 + $0x50] sm:$0xff]
    %v4147 = vld [vmem:[%s4135 + $0x58] sm:$0xff]
    %v4148 = vld [vmem:[%s4135 + $0x60] sm:$0xff]
    %v4149 = vld [vmem:[%s4135 + $0x68] sm:$0xff]
    %v4150 = vld [vmem:[%s4135 + $0x70] sm:$0xff]
    %v4151 = vld [vmem:[%s4135 + $0x78] sm:$0xff]
    %v4152 = vld [vmem:[%s4135 + $0x80] sm:$0xff]
    %v4153 = vld [vmem:[%s4135 + $0x88] sm:$0xff]
    %v4154 = vld [vmem:[%s4135 + $0x90] sm:$0xff]
    %v4155 = vld [vmem:[%s4135 + $0x98] sm:$0xff]
    %v4156 = vld [vmem:[%s4135 + $0xa0] sm:$0xff]
    %v4157 = vld [vmem:[%s4135 + $0xa8] sm:$0xff]
    %v4158 = vld [vmem:[%s4135 + $0xb0] sm:$0xff]
    %v4159 = vld [vmem:[%s4135 + $0xb8] sm:$0xff]
    %v4160 = vld [vmem:[%s4135 + $0xc0] sm:$0xff]
    %v4161 = vld [vmem:[%s4135 + $0xc8] sm:$0xff]
    %v4162 = vld [vmem:[%s4135 + $0xd0] sm:$0xff]
    %v4163 = vld [vmem:[%s4135 + $0xd8] sm:$0xff]
    %v4164 = vld [vmem:[%s4135 + $0xe0] sm:$0xff]
    %v4165 = vld [vmem:[%s4135 + $0xe8] sm:$0xff]
    %v4166 = vld [vmem:[%s4135 + $0xf0] sm:$0xff]
    %v4167 = vld [vmem:[%s4135 + $0xf8] sm:$0xff]
    %s4168 = scalar_lea.vmem [#allocation12], 16
    %v4169 = vld [vmem:[%s4168] sm:$0x3]
    %v4170 = vld [vmem:[#allocation2] sm:$0xff]
    %v4171 = vld [vmem:[#allocation2 + $0x8] sm:$0xff]
    %v4172 = vld [vmem:[#allocation2 + $0x10] sm:$0xff]
    %v4173 = vld [vmem:[#allocation2 + $0x18] sm:$0xff]
    %v4175 = vlaneseq
    %v4176 = vshrl.u32 %v4175, 7
    %v4177 = vsub.s32 0, %v4176
    %v4178 = vrot.slane %v4169, %v4177
    %v4179 = vlaneseq
    %v4180 = vshrl.u32 %v4179, 7
    %v4181 = vsub.s32 1, %v4180
    %v4182 = vrot.slane %v4169, %v4181
    %v4189 = vunpack.c.l.b16 %v4170
    %v4190 = vunpack.c.h.b16 %v4170
    %v4191 = vunpack.c.l.b16 %v4171
    %v4192 = vunpack.c.h.b16 %v4171
    %v4193 = vunpack.c.l.b16 %v4172
    %v4194 = vunpack.c.h.b16 %v4172
    %v4195 = vunpack.c.l.b16 %v4173
    %v4196 = vunpack.c.h.b16 %v4173
    %v4197 = vpack.c.b16 %v4191, %v4189
    %v4198 = vpack.c.b16 %v4192, %v4190
    %v4199 = vpack.c.b16 %v4195, %v4193
    %v4200 = vpack.c.b16 %v4196, %v4194
    %v4237 = vunpack.c.l.b16 %v4136
    %v4238 = vunpack.c.h.b16 %v4136
    %v4239 = vunpack.c.l.b16 %v4137
    %v4240 = vunpack.c.h.b16 %v4137
    %v4241 = vunpack.c.l.b16 %v4138
    %v4242 = vunpack.c.h.b16 %v4138
    %v4243 = vunpack.c.l.b16 %v4139
    %v4244 = vunpack.c.h.b16 %v4139
    %v4245 = vunpack.c.l.b16 %v4140
    %v4246 = vunpack.c.h.b16 %v4140
    %v4247 = vunpack.c.l.b16 %v4141
    %v4248 = vunpack.c.h.b16 %v4141
    %v4249 = vunpack.c.l.b16 %v4142
    %v4250 = vunpack.c.h.b16 %v4142
    %v4251 = vunpack.c.l.b16 %v4143
    %v4252 = vunpack.c.h.b16 %v4143
    %v4253 = vunpack.c.l.b16 %v4144
    %v4254 = vunpack.c.h.b16 %v4144
    %v4255 = vunpack.c.l.b16 %v4145
    %v4256 = vunpack.c.h.b16 %v4145
    %v4257 = vunpack.c.l.b16 %v4146
    %v4258 = vunpack.c.h.b16 %v4146
    %v4259 = vunpack.c.l.b16 %v4147
    %v4260 = vunpack.c.h.b16 %v4147
    %v4261 = vunpack.c.l.b16 %v4148
    %v4262 = vunpack.c.h.b16 %v4148
    %v4263 = vunpack.c.l.b16 %v4149
    %v4264 = vunpack.c.h.b16 %v4149
    %v4265 = vunpack.c.l.b16 %v4150
    %v4266 = vunpack.c.h.b16 %v4150
    %v4267 = vunpack.c.l.b16 %v4151
    %v4268 = vunpack.c.h.b16 %v4151
    %v4269 = vunpack.c.l.b16 %v4152
    %v4270 = vunpack.c.h.b16 %v4152
    %v4271 = vunpack.c.l.b16 %v4153
    %v4272 = vunpack.c.h.b16 %v4153
    %v4273 = vunpack.c.l.b16 %v4154
    %v4274 = vunpack.c.h.b16 %v4154
    %v4275 = vunpack.c.l.b16 %v4155
    %v4276 = vunpack.c.h.b16 %v4155
    %v4277 = vunpack.c.l.b16 %v4156
    %v4278 = vunpack.c.h.b16 %v4156
    %v4279 = vunpack.c.l.b16 %v4157
    %v4280 = vunpack.c.h.b16 %v4157
    %v4281 = vunpack.c.l.b16 %v4158
    %v4282 = vunpack.c.h.b16 %v4158
    %v4283 = vunpack.c.l.b16 %v4159
    %v4284 = vunpack.c.h.b16 %v4159
    %v4285 = vunpack.c.l.b16 %v4160
    %v4286 = vunpack.c.h.b16 %v4160
    %v4287 = vunpack.c.l.b16 %v4161
    %v4288 = vunpack.c.h.b16 %v4161
    %v4289 = vunpack.c.l.b16 %v4162
    %v4290 = vunpack.c.h.b16 %v4162
    %v4291 = vunpack.c.l.b16 %v4163
    %v4292 = vunpack.c.h.b16 %v4163
    %v4293 = vunpack.c.l.b16 %v4164
    %v4294 = vunpack.c.h.b16 %v4164
    %v4295 = vunpack.c.l.b16 %v4165
    %v4296 = vunpack.c.h.b16 %v4165
    %v4297 = vunpack.c.l.b16 %v4166
    %v4298 = vunpack.c.h.b16 %v4166
    %v4299 = vunpack.c.l.b16 %v4167
    %v4300 = vunpack.c.h.b16 %v4167
    %v4301 = vpack.c.b16 %v4239, %v4237
    %v4302 = vpack.c.b16 %v4240, %v4238
    %v4303 = vpack.c.b16 %v4243, %v4241
    %v4304 = vpack.c.b16 %v4244, %v4242
    %v4305 = vpack.c.b16 %v4247, %v4245
    %v4306 = vpack.c.b16 %v4248, %v4246
    %v4307 = vpack.c.b16 %v4251, %v4249
    %v4308 = vpack.c.b16 %v4252, %v4250
    %v4309 = vpack.c.b16 %v4255, %v4253
    %v4310 = vpack.c.b16 %v4256, %v4254
    %v4311 = vpack.c.b16 %v4259, %v4257
    %v4312 = vpack.c.b16 %v4260, %v4258
    %v4313 = vpack.c.b16 %v4263, %v4261
    %v4314 = vpack.c.b16 %v4264, %v4262
    %v4315 = vpack.c.b16 %v4267, %v4265
    %v4316 = vpack.c.b16 %v4268, %v4266
    %v4317 = vpack.c.b16 %v4271, %v4269
    %v4318 = vpack.c.b16 %v4272, %v4270
    %v4319 = vpack.c.b16 %v4275, %v4273
    %v4320 = vpack.c.b16 %v4276, %v4274
    %v4321 = vpack.c.b16 %v4279, %v4277
    %v4322 = vpack.c.b16 %v4280, %v4278
    %v4323 = vpack.c.b16 %v4283, %v4281
    %v4324 = vpack.c.b16 %v4284, %v4282
    %v4325 = vpack.c.b16 %v4287, %v4285
    %v4326 = vpack.c.b16 %v4288, %v4286
    %v4327 = vpack.c.b16 %v4291, %v4289
    %v4328 = vpack.c.b16 %v4292, %v4290
    %v4329 = vpack.c.b16 %v4295, %v4293
    %v4330 = vpack.c.b16 %v4296, %v4294
    %v4331 = vpack.c.b16 %v4299, %v4297
    %v4332 = vpack.c.b16 %v4300, %v4298
    %4365 = vmatprep.subr.bf16.mxu0 %v4316
    %4366 = vmatpush1.bf16.msra.mxu0 %v4315
    %4367 = vmatprep.subr.bf16.mxu0 %v4314
    %4368 = vmatpush1.bf16.msra.mxu0 %v4313
    %4369 = vmatprep.subr.bf16.mxu0 %v4312
    %4370 = vmatpush1.bf16.msra.mxu0 %v4311
    %4371 = vmatprep.subr.bf16.mxu0 %v4310
    %4372 = vmatpush1.bf16.msra.mxu0 %v4309
    %4373 = vmatprep.subr.bf16.mxu0 %v4308
    %4374 = vmatpush1.bf16.msra.mxu0 %v4307
    %4375 = vmatprep.subr.bf16.mxu0 %v4306
    %4376 = vmatpush1.bf16.msra.mxu0 %v4305
    %4377 = vmatprep.subr.bf16.mxu0 %v4304
    %4378 = vmatpush1.bf16.msra.mxu0 %v4303
    %4379 = vmatprep.subr.bf16.mxu0 %v4302
    %4380 = vmatpush1.bf16.msra.mxu0 %v4301
    %4381 = vmatprep.subr.bf16.mxu0 %v4332
    %4382 = vmatpush2.bf16.msra.mxu0 %v4331
    %4383 = vmatprep.subr.bf16.mxu0 %v4330
    %4384 = vmatpush2.bf16.msra.mxu0 %v4329
    %4385 = vmatprep.subr.bf16.mxu0 %v4328
    %4386 = vmatpush2.bf16.msra.mxu0 %v4327
    %4387 = vmatprep.subr.bf16.mxu0 %v4326
    %4388 = vmatpush2.bf16.msra.mxu0 %v4325
    %4389 = vmatprep.subr.bf16.mxu0 %v4324
    %4390 = vmatpush2.bf16.msra.mxu0 %v4323
    %4391 = vmatprep.subr.bf16.mxu0 %v4322
    %4392 = vmatpush2.bf16.msra.mxu0 %v4321
    %4393 = vmatprep.subr.bf16.mxu0 %v4320
    %4394 = vmatpush2.bf16.msra.mxu0 %v4319
    %4395 = vmatprep.subr.bf16.mxu0 %v4318
    %4396 = vmatpush2.bf16.msra.mxu0 %v4317
    %4397 = vmatprep.mubr.bf16.mxu0 %v4198
    %4398 = vmatmul.mubr.bf16.gmra.mxu0 %v4197
    %v4399 = vpop.f32.mrf.mxu0
    %v4400 = vadd.f32 %v4178, %v4399
    %v4401 = vpop.f32.mrf.mxu0
    %v4402 = vadd.f32 %v4182, %v4401
    %v4403 = vpop.f32.mrf.mxu0
    %v4404 = vadd.f32 %v4178, %v4403
    %v4405 = vpop.f32.mrf.mxu0
    %v4406 = vadd.f32 %v4182, %v4405
    %4407 = vmatprep.mubr.bf16.mxu0 %v4200
    %4408 = vmatmul.mubr.bf16.gmra.mxu0 %v4199
    %v4409 = vpop.f32.mrf.mxu0
    %v4410 = vadd.f32 %v4178, %v4409
    %v4411 = vpop.f32.mrf.mxu0
    %v4412 = vadd.f32 %v4182, %v4411
    %v4413 = vpop.f32.mrf.mxu0
    %v4414 = vadd.f32 %v4178, %v4413
    %v4415 = vpop.f32.mrf.mxu0
    %v4416 = vadd.f32 %v4182, %v4415
    %4417 = vdwg.mxu0
    %v4418 = vpack.c.bf16 %v4404, %v4400
    %v4419 = vpack.c.bf16 %v4406, %v4402
    %v4420 = vpack.c.bf16 %v4414, %v4410
    %v4421 = vpack.c.bf16 %v4416, %v4412
    %v4422 = vmax.bf16 %v4418, 0
    %v4423 = vmax.bf16 %v4419, 0
    %v4424 = vmax.bf16 %v4420, 0
    %v4425 = vmax.bf16 %v4421, 0
    %v4426 = vadd.bf16 %v4422, %v4197
    %v4427 = vadd.bf16 %v4423, %v4198
    %v4428 = vadd.bf16 %v4424, %v4199
    %v4429 = vadd.bf16 %v4425, %v4200
    %v4434 = vunpack.c.l.b16 %v4426
    %v4435 = vunpack.c.l.b16 %v4427
    %v4436 = vunpack.c.h.b16 %v4426
    %v4437 = vunpack.c.h.b16 %v4427
    %v4438 = vunpack.c.l.b16 %v4428
    %v4439 = vunpack.c.l.b16 %v4429
    %v4440 = vunpack.c.h.b16 %v4428
    %v4441 = vunpack.c.h.b16 %v4429
    %v4442 = vpack.c.b16 %v4435, %v4434
    %v4443 = vpack.c.b16 %v4437, %v4436
    %v4444 = vpack.c.b16 %v4439, %v4438
    %v4445 = vpack.c.b16 %v4441, %v4440
    %4450 = vst [vmem:[#allocation2] sm:$0xff] %v4442
    %4451 = vst [vmem:[#allocation2 + $0x8] sm:$0xff] %v4443
    %4452 = vst [vmem:[#allocation2 + $0x10] sm:$0xff] %v4444
    %4453 = vst [vmem:[#allocation2 + $0x18] sm:$0xff] %v4445
    %v4454 = vld [vmem:[#allocation3] sm:$0xff]
    %v4455 = vld [vmem:[#allocation3 + $0x8] sm:$0xff]
    %v4456 = vld [vmem:[#allocation3 + $0x10] sm:$0xff]
    %v4457 = vld [vmem:[#allocation3 + $0x18] sm:$0xff]
    %v4462 = vunpack.c.l.b16 %v4454
    %v4463 = vunpack.c.h.b16 %v4454
    %v4464 = vunpack.c.l.b16 %v4455
    %v4465 = vunpack.c.h.b16 %v4455
    %v4466 = vunpack.c.l.b16 %v4456
    %v4467 = vunpack.c.h.b16 %v4456
    %v4468 = vunpack.c.l.b16 %v4457
    %v4469 = vunpack.c.h.b16 %v4457
    %v4470 = vpack.c.b16 %v4464, %v4462
    %v4471 = vpack.c.b16 %v4465, %v4463
    %v4472 = vpack.c.b16 %v4468, %v4466
    %v4473 = vpack.c.b16 %v4469, %v4467
    %4478 = vmatprep.subr.bf16.mxu0 %v4316
    %4479 = vmatpush1.bf16.msra.mxu0 %v4315
    %4480 = vmatprep.subr.bf16.mxu0 %v4314
    %4481 = vmatpush1.bf16.msra.mxu0 %v4313
    %4482 = vmatprep.subr.bf16.mxu0 %v4312
    %4483 = vmatpush1.bf16.msra.mxu0 %v4311
    %4484 = vmatprep.subr.bf16.mxu0 %v4310
    %4485 = vmatpush1.bf16.msra.mxu0 %v4309
    %4486 = vmatprep.subr.bf16.mxu0 %v4308
    %4487 = vmatpush1.bf16.msra.mxu0 %v4307
    %4488 = vmatprep.subr.bf16.mxu0 %v4306
    %4489 = vmatpush1.bf16.msra.mxu0 %v4305
    %4490 = vmatprep.subr.bf16.mxu0 %v4304
    %4491 = vmatpush1.bf16.msra.mxu0 %v4303
    %4492 = vmatprep.subr.bf16.mxu0 %v4302
    %4493 = vmatpush1.bf16.msra.mxu0 %v4301
    %4494 = vmatprep.subr.bf16.mxu0 %v4332
    %4495 = vmatpush2.bf16.msra.mxu0 %v4331
    %4496 = vmatprep.subr.bf16.mxu0 %v4330
    %4497 = vmatpush2.bf16.msra.mxu0 %v4329
    %4498 = vmatprep.subr.bf16.mxu0 %v4328
    %4499 = vmatpush2.bf16.msra.mxu0 %v4327
    %4500 = vmatprep.subr.bf16.mxu0 %v4326
    %4501 = vmatpush2.bf16.msra.mxu0 %v4325
    %4502 = vmatprep.subr.bf16.mxu0 %v4324
    %4503 = vmatpush2.bf16.msra.mxu0 %v4323
    %4504 = vmatprep.subr.bf16.mxu0 %v4322
    %4505 = vmatpush2.bf16.msra.mxu0 %v4321
    %4506 = vmatprep.subr.bf16.mxu0 %v4320
    %4507 = vmatpush2.bf16.msra.mxu0 %v4319
    %4508 = vmatprep.subr.bf16.mxu0 %v4318
    %4509 = vmatpush2.bf16.msra.mxu0 %v4317
    %4510 = vmatprep.mubr.bf16.mxu0 %v4471
    %4511 = vmatmul.mubr.bf16.gmra.mxu0 %v4470
    %v4512 = vpop.f32.mrf.mxu0
    %v4513 = vadd.f32 %v4178, %v4512
    %v4514 = vpop.f32.mrf.mxu0
    %v4515 = vadd.f32 %v4182, %v4514
    %v4516 = vpop.f32.mrf.mxu0
    %v4517 = vadd.f32 %v4178, %v4516
    %v4518 = vpop.f32.mrf.mxu0
    %v4519 = vadd.f32 %v4182, %v4518
    %4520 = vmatprep.mubr.bf16.mxu0 %v4473
    %4521 = vmatmul.mubr.bf16.gmra.mxu0 %v4472
    %v4522 = vpop.f32.mrf.mxu0
    %v4523 = vadd.f32 %v4178, %v4522
    %v4524 = vpop.f32.mrf.mxu0
    %v4525 = vadd.f32 %v4182, %v4524
    %v4526 = vpop.f32.mrf.mxu0
    %v4527 = vadd.f32 %v4178, %v4526
    %v4528 = vpop.f32.mrf.mxu0
    %v4529 = vadd.f32 %v4182, %v4528
    %4530 = vdwg.mxu0
    %v4531 = vpack.c.bf16 %v4517, %v4513
    %v4532 = vpack.c.bf16 %v4519, %v4515
    %v4533 = vpack.c.bf16 %v4527, %v4523
    %v4534 = vpack.c.bf16 %v4529, %v4525
    %v4535 = vmax.bf16 %v4531, 0
    %v4536 = vmax.bf16 %v4532, 0
    %v4537 = vmax.bf16 %v4533, 0
    %v4538 = vmax.bf16 %v4534, 0
    %v4539 = vadd.bf16 %v4535, %v4470
    %v4540 = vadd.bf16 %v4536, %v4471
    %v4541 = vadd.bf16 %v4537, %v4472
    %v4542 = vadd.bf16 %v4538, %v4473
    %v4547 = vunpack.c.l.b16 %v4539
    %v4548 = vunpack.c.l.b16 %v4540
    %v4549 = vunpack.c.h.b16 %v4539
    %v4550 = vunpack.c.h.b16 %v4540
    %v4551 = vunpack.c.l.b16 %v4541
    %v4552 = vunpack.c.l.b16 %v4542
    %v4553 = vunpack.c.h.b16 %v4541
    %v4554 = vunpack.c.h.b16 %v4542
    %v4555 = vpack.c.b16 %v4548, %v4547
    %v4556 = vpack.c.b16 %v4550, %v4549
    %v4557 = vpack.c.b16 %v4552, %v4551
    %v4558 = vpack.c.b16 %v4554, %v4553
    %4563 = vst [vmem:[#allocation3] sm:$0xff] %v4555
    %4564 = vst [vmem:[#allocation3 + $0x8] sm:$0xff] %v4556
    %4565 = vst [vmem:[#allocation3 + $0x10] sm:$0xff] %v4557
    %4566 = vst [vmem:[#allocation3 + $0x18] sm:$0xff] %v4558
    %s4567 = scalar_lea.vmem [#allocation10], 2304
    %v4568 = vld [vmem:[%s4567] sm:$0xff]
    %v4569 = vld [vmem:[%s4567 + $0x8] sm:$0xff]
    %v4570 = vld [vmem:[%s4567 + $0x10] sm:$0xff]
    %v4571 = vld [vmem:[%s4567 + $0x18] sm:$0xff]
    %v4572 = vld [vmem:[%s4567 + $0x20] sm:$0xff]
    %v4573 = vld [vmem:[%s4567 + $0x28] sm:$0xff]
    %v4574 = vld [vmem:[%s4567 + $0x30] sm:$0xff]
    %v4575 = vld [vmem:[%s4567 + $0x38] sm:$0xff]
    %v4576 = vld [vmem:[%s4567 + $0x40] sm:$0xff]
    %v4577 = vld [vmem:[%s4567 + $0x48] sm:$0xff]
    %v4578 = vld [vmem:[%s4567 + $0x50] sm:$0xff]
    %v4579 = vld [vmem:[%s4567 + $0x58] sm:$0xff]
    %v4580 = vld [vmem:[%s4567 + $0x60] sm:$0xff]
    %v4581 = vld [vmem:[%s4567 + $0x68] sm:$0xff]
    %v4582 = vld [vmem:[%s4567 + $0x70] sm:$0xff]
    %v4583 = vld [vmem:[%s4567 + $0x78] sm:$0xff]
    %v4584 = vld [vmem:[%s4567 + $0x80] sm:$0xff]
    %v4585 = vld [vmem:[%s4567 + $0x88] sm:$0xff]
    %v4586 = vld [vmem:[%s4567 + $0x90] sm:$0xff]
    %v4587 = vld [vmem:[%s4567 + $0x98] sm:$0xff]
    %v4588 = vld [vmem:[%s4567 + $0xa0] sm:$0xff]
    %v4589 = vld [vmem:[%s4567 + $0xa8] sm:$0xff]
    %v4590 = vld [vmem:[%s4567 + $0xb0] sm:$0xff]
    %v4591 = vld [vmem:[%s4567 + $0xb8] sm:$0xff]
    %v4592 = vld [vmem:[%s4567 + $0xc0] sm:$0xff]
    %v4593 = vld [vmem:[%s4567 + $0xc8] sm:$0xff]
    %v4594 = vld [vmem:[%s4567 + $0xd0] sm:$0xff]
    %v4595 = vld [vmem:[%s4567 + $0xd8] sm:$0xff]
    %v4596 = vld [vmem:[%s4567 + $0xe0] sm:$0xff]
    %v4597 = vld [vmem:[%s4567 + $0xe8] sm:$0xff]
    %v4598 = vld [vmem:[%s4567 + $0xf0] sm:$0xff]
    %v4599 = vld [vmem:[%s4567 + $0xf8] sm:$0xff]
    %s4600 = scalar_lea.vmem [#allocation12], 18
    %v4601 = vld [vmem:[%s4600] sm:$0x3]
    %v4602 = vld [vmem:[#allocation2] sm:$0xff]
    %v4603 = vld [vmem:[#allocation2 + $0x8] sm:$0xff]
    %v4604 = vld [vmem:[#allocation2 + $0x10] sm:$0xff]
    %v4605 = vld [vmem:[#allocation2 + $0x18] sm:$0xff]
    %v4607 = vlaneseq
    %v4608 = vshrl.u32 %v4607, 7
    %v4609 = vsub.s32 0, %v4608
    %v4610 = vrot.slane %v4601, %v4609
    %v4611 = vlaneseq
    %v4612 = vshrl.u32 %v4611, 7
    %v4613 = vsub.s32 1, %v4612
    %v4614 = vrot.slane %v4601, %v4613
    %v4621 = vunpack.c.l.b16 %v4602
    %v4622 = vunpack.c.h.b16 %v4602
    %v4623 = vunpack.c.l.b16 %v4603
    %v4624 = vunpack.c.h.b16 %v4603
    %v4625 = vunpack.c.l.b16 %v4604
    %v4626 = vunpack.c.h.b16 %v4604
    %v4627 = vunpack.c.l.b16 %v4605
    %v4628 = vunpack.c.h.b16 %v4605
    %v4629 = vpack.c.b16 %v4623, %v4621
    %v4630 = vpack.c.b16 %v4624, %v4622
    %v4631 = vpack.c.b16 %v4627, %v4625
    %v4632 = vpack.c.b16 %v4628, %v4626
    %v4669 = vunpack.c.l.b16 %v4568
    %v4670 = vunpack.c.h.b16 %v4568
    %v4671 = vunpack.c.l.b16 %v4569
    %v4672 = vunpack.c.h.b16 %v4569
    %v4673 = vunpack.c.l.b16 %v4570
    %v4674 = vunpack.c.h.b16 %v4570
    %v4675 = vunpack.c.l.b16 %v4571
    %v4676 = vunpack.c.h.b16 %v4571
    %v4677 = vunpack.c.l.b16 %v4572
    %v4678 = vunpack.c.h.b16 %v4572
    %v4679 = vunpack.c.l.b16 %v4573
    %v4680 = vunpack.c.h.b16 %v4573
    %v4681 = vunpack.c.l.b16 %v4574
    %v4682 = vunpack.c.h.b16 %v4574
    %v4683 = vunpack.c.l.b16 %v4575
    %v4684 = vunpack.c.h.b16 %v4575
    %v4685 = vunpack.c.l.b16 %v4576
    %v4686 = vunpack.c.h.b16 %v4576
    %v4687 = vunpack.c.l.b16 %v4577
    %v4688 = vunpack.c.h.b16 %v4577
    %v4689 = vunpack.c.l.b16 %v4578
    %v4690 = vunpack.c.h.b16 %v4578
    %v4691 = vunpack.c.l.b16 %v4579
    %v4692 = vunpack.c.h.b16 %v4579
    %v4693 = vunpack.c.l.b16 %v4580
    %v4694 = vunpack.c.h.b16 %v4580
    %v4695 = vunpack.c.l.b16 %v4581
    %v4696 = vunpack.c.h.b16 %v4581
    %v4697 = vunpack.c.l.b16 %v4582
    %v4698 = vunpack.c.h.b16 %v4582
    %v4699 = vunpack.c.l.b16 %v4583
    %v4700 = vunpack.c.h.b16 %v4583
    %v4701 = vunpack.c.l.b16 %v4584
    %v4702 = vunpack.c.h.b16 %v4584
    %v4703 = vunpack.c.l.b16 %v4585
    %v4704 = vunpack.c.h.b16 %v4585
    %v4705 = vunpack.c.l.b16 %v4586
    %v4706 = vunpack.c.h.b16 %v4586
    %v4707 = vunpack.c.l.b16 %v4587
    %v4708 = vunpack.c.h.b16 %v4587
    %v4709 = vunpack.c.l.b16 %v4588
    %v4710 = vunpack.c.h.b16 %v4588
    %v4711 = vunpack.c.l.b16 %v4589
    %v4712 = vunpack.c.h.b16 %v4589
    %v4713 = vunpack.c.l.b16 %v4590
    %v4714 = vunpack.c.h.b16 %v4590
    %v4715 = vunpack.c.l.b16 %v4591
    %v4716 = vunpack.c.h.b16 %v4591
    %v4717 = vunpack.c.l.b16 %v4592
    %v4718 = vunpack.c.h.b16 %v4592
    %v4719 = vunpack.c.l.b16 %v4593
    %v4720 = vunpack.c.h.b16 %v4593
    %v4721 = vunpack.c.l.b16 %v4594
    %v4722 = vunpack.c.h.b16 %v4594
    %v4723 = vunpack.c.l.b16 %v4595
    %v4724 = vunpack.c.h.b16 %v4595
    %v4725 = vunpack.c.l.b16 %v4596
    %v4726 = vunpack.c.h.b16 %v4596
    %v4727 = vunpack.c.l.b16 %v4597
    %v4728 = vunpack.c.h.b16 %v4597
    %v4729 = vunpack.c.l.b16 %v4598
    %v4730 = vunpack.c.h.b16 %v4598
    %v4731 = vunpack.c.l.b16 %v4599
    %v4732 = vunpack.c.h.b16 %v4599
    %v4733 = vpack.c.b16 %v4671, %v4669
    %v4734 = vpack.c.b16 %v4672, %v4670
    %v4735 = vpack.c.b16 %v4675, %v4673
    %v4736 = vpack.c.b16 %v4676, %v4674
    %v4737 = vpack.c.b16 %v4679, %v4677
    %v4738 = vpack.c.b16 %v4680, %v4678
    %v4739 = vpack.c.b16 %v4683, %v4681
    %v4740 = vpack.c.b16 %v4684, %v4682
    %v4741 = vpack.c.b16 %v4687, %v4685
    %v4742 = vpack.c.b16 %v4688, %v4686
    %v4743 = vpack.c.b16 %v4691, %v4689
    %v4744 = vpack.c.b16 %v4692, %v4690
    %v4745 = vpack.c.b16 %v4695, %v4693
    %v4746 = vpack.c.b16 %v4696, %v4694
    %v4747 = vpack.c.b16 %v4699, %v4697
    %v4748 = vpack.c.b16 %v4700, %v4698
    %v4749 = vpack.c.b16 %v4703, %v4701
    %v4750 = vpack.c.b16 %v4704, %v4702
    %v4751 = vpack.c.b16 %v4707, %v4705
    %v4752 = vpack.c.b16 %v4708, %v4706
    %v4753 = vpack.c.b16 %v4711, %v4709
    %v4754 = vpack.c.b16 %v4712, %v4710
    %v4755 = vpack.c.b16 %v4715, %v4713
    %v4756 = vpack.c.b16 %v4716, %v4714
    %v4757 = vpack.c.b16 %v4719, %v4717
    %v4758 = vpack.c.b16 %v4720, %v4718
    %v4759 = vpack.c.b16 %v4723, %v4721
    %v4760 = vpack.c.b16 %v4724, %v4722
    %v4761 = vpack.c.b16 %v4727, %v4725
    %v4762 = vpack.c.b16 %v4728, %v4726
    %v4763 = vpack.c.b16 %v4731, %v4729
    %v4764 = vpack.c.b16 %v4732, %v4730
    %4797 = vmatprep.subr.bf16.mxu0 %v4748
    %4798 = vmatpush1.bf16.msra.mxu0 %v4747
    %4799 = vmatprep.subr.bf16.mxu0 %v4746
    %4800 = vmatpush1.bf16.msra.mxu0 %v4745
    %4801 = vmatprep.subr.bf16.mxu0 %v4744
    %4802 = vmatpush1.bf16.msra.mxu0 %v4743
    %4803 = vmatprep.subr.bf16.mxu0 %v4742
    %4804 = vmatpush1.bf16.msra.mxu0 %v4741
    %4805 = vmatprep.subr.bf16.mxu0 %v4740
    %4806 = vmatpush1.bf16.msra.mxu0 %v4739
    %4807 = vmatprep.subr.bf16.mxu0 %v4738
    %4808 = vmatpush1.bf16.msra.mxu0 %v4737
    %4809 = vmatprep.subr.bf16.mxu0 %v4736
    %4810 = vmatpush1.bf16.msra.mxu0 %v4735
    %4811 = vmatprep.subr.bf16.mxu0 %v4734
    %4812 = vmatpush1.bf16.msra.mxu0 %v4733
    %4813 = vmatprep.subr.bf16.mxu0 %v4764
    %4814 = vmatpush2.bf16.msra.mxu0 %v4763
    %4815 = vmatprep.subr.bf16.mxu0 %v4762
    %4816 = vmatpush2.bf16.msra.mxu0 %v4761
    %4817 = vmatprep.subr.bf16.mxu0 %v4760
    %4818 = vmatpush2.bf16.msra.mxu0 %v4759
    %4819 = vmatprep.subr.bf16.mxu0 %v4758
    %4820 = vmatpush2.bf16.msra.mxu0 %v4757
    %4821 = vmatprep.subr.bf16.mxu0 %v4756
    %4822 = vmatpush2.bf16.msra.mxu0 %v4755
    %4823 = vmatprep.subr.bf16.mxu0 %v4754
    %4824 = vmatpush2.bf16.msra.mxu0 %v4753
    %4825 = vmatprep.subr.bf16.mxu0 %v4752
    %4826 = vmatpush2.bf16.msra.mxu0 %v4751
    %4827 = vmatprep.subr.bf16.mxu0 %v4750
    %4828 = vmatpush2.bf16.msra.mxu0 %v4749
    %4829 = vmatprep.mubr.bf16.mxu0 %v4630
    %4830 = vmatmul.mubr.bf16.gmra.mxu0 %v4629
    %v4831 = vpop.f32.mrf.mxu0
    %v4832 = vadd.f32 %v4610, %v4831
    %v4833 = vpop.f32.mrf.mxu0
    %v4834 = vadd.f32 %v4614, %v4833
    %v4835 = vpop.f32.mrf.mxu0
    %v4836 = vadd.f32 %v4610, %v4835
    %v4837 = vpop.f32.mrf.mxu0
    %v4838 = vadd.f32 %v4614, %v4837
    %4839 = vmatprep.mubr.bf16.mxu0 %v4632
    %4840 = vmatmul.mubr.bf16.gmra.mxu0 %v4631
    %v4841 = vpop.f32.mrf.mxu0
    %v4842 = vadd.f32 %v4610, %v4841
    %v4843 = vpop.f32.mrf.mxu0
    %v4844 = vadd.f32 %v4614, %v4843
    %v4845 = vpop.f32.mrf.mxu0
    %v4846 = vadd.f32 %v4610, %v4845
    %v4847 = vpop.f32.mrf.mxu0
    %v4848 = vadd.f32 %v4614, %v4847
    %4849 = vdwg.mxu0
    %v4850 = vpack.c.bf16 %v4836, %v4832
    %v4851 = vpack.c.bf16 %v4838, %v4834
    %v4852 = vpack.c.bf16 %v4846, %v4842
    %v4853 = vpack.c.bf16 %v4848, %v4844
    %v4854 = vmax.bf16 %v4850, 0
    %v4855 = vmax.bf16 %v4851, 0
    %v4856 = vmax.bf16 %v4852, 0
    %v4857 = vmax.bf16 %v4853, 0
    %v4858 = vadd.bf16 %v4854, %v4629
    %v4859 = vadd.bf16 %v4855, %v4630
    %v4860 = vadd.bf16 %v4856, %v4631
    %v4861 = vadd.bf16 %v4857, %v4632
    %v4866 = vunpack.c.l.b16 %v4858
    %v4867 = vunpack.c.l.b16 %v4859
    %v4868 = vunpack.c.h.b16 %v4858
    %v4869 = vunpack.c.h.b16 %v4859
    %v4870 = vunpack.c.l.b16 %v4860
    %v4871 = vunpack.c.l.b16 %v4861
    %v4872 = vunpack.c.h.b16 %v4860
    %v4873 = vunpack.c.h.b16 %v4861
    %v4874 = vpack.c.b16 %v4867, %v4866
    %v4875 = vpack.c.b16 %v4869, %v4868
    %v4876 = vpack.c.b16 %v4871, %v4870
    %v4877 = vpack.c.b16 %v4873, %v4872
    %4882 = vst [vmem:[#allocation2] sm:$0xff] %v4874
    %4883 = vst [vmem:[#allocation2 + $0x8] sm:$0xff] %v4875
    %4884 = vst [vmem:[#allocation2 + $0x10] sm:$0xff] %v4876
    %4885 = vst [vmem:[#allocation2 + $0x18] sm:$0xff] %v4877
    %v4886 = vld [vmem:[#allocation3] sm:$0xff]
    %v4887 = vld [vmem:[#allocation3 + $0x8] sm:$0xff]
    %v4888 = vld [vmem:[#allocation3 + $0x10] sm:$0xff]
    %v4889 = vld [vmem:[#allocation3 + $0x18] sm:$0xff]
    %v4894 = vunpack.c.l.b16 %v4886
    %v4895 = vunpack.c.h.b16 %v4886
    %v4896 = vunpack.c.l.b16 %v4887
    %v4897 = vunpack.c.h.b16 %v4887
    %v4898 = vunpack.c.l.b16 %v4888
    %v4899 = vunpack.c.h.b16 %v4888
    %v4900 = vunpack.c.l.b16 %v4889
    %v4901 = vunpack.c.h.b16 %v4889
    %v4902 = vpack.c.b16 %v4896, %v4894
    %v4903 = vpack.c.b16 %v4897, %v4895
    %v4904 = vpack.c.b16 %v4900, %v4898
    %v4905 = vpack.c.b16 %v4901, %v4899
    %4910 = vmatprep.subr.bf16.mxu0 %v4748
    %4911 = vmatpush1.bf16.msra.mxu0 %v4747
    %4912 = vmatprep.subr.bf16.mxu0 %v4746
    %4913 = vmatpush1.bf16.msra.mxu0 %v4745
    %4914 = vmatprep.subr.bf16.mxu0 %v4744
    %4915 = vmatpush1.bf16.msra.mxu0 %v4743
    %4916 = vmatprep.subr.bf16.mxu0 %v4742
    %4917 = vmatpush1.bf16.msra.mxu0 %v4741
    %4918 = vmatprep.subr.bf16.mxu0 %v4740
    %4919 = vmatpush1.bf16.msra.mxu0 %v4739
    %4920 = vmatprep.subr.bf16.mxu0 %v4738
    %4921 = vmatpush1.bf16.msra.mxu0 %v4737
    %4922 = vmatprep.subr.bf16.mxu0 %v4736
    %4923 = vmatpush1.bf16.msra.mxu0 %v4735
    %4924 = vmatprep.subr.bf16.mxu0 %v4734
    %4925 = vmatpush1.bf16.msra.mxu0 %v4733
    %4926 = vmatprep.subr.bf16.mxu0 %v4764
    %4927 = vmatpush2.bf16.msra.mxu0 %v4763
    %4928 = vmatprep.subr.bf16.mxu0 %v4762
    %4929 = vmatpush2.bf16.msra.mxu0 %v4761
    %4930 = vmatprep.subr.bf16.mxu0 %v4760
    %4931 = vmatpush2.bf16.msra.mxu0 %v4759
    %4932 = vmatprep.subr.bf16.mxu0 %v4758
    %4933 = vmatpush2.bf16.msra.mxu0 %v4757
    %4934 = vmatprep.subr.bf16.mxu0 %v4756
    %4935 = vmatpush2.bf16.msra.mxu0 %v4755
    %4936 = vmatprep.subr.bf16.mxu0 %v4754
    %4937 = vmatpush2.bf16.msra.mxu0 %v4753
    %4938 = vmatprep.subr.bf16.mxu0 %v4752
    %4939 = vmatpush2.bf16.msra.mxu0 %v4751
    %4940 = vmatprep.subr.bf16.mxu0 %v4750
    %4941 = vmatpush2.bf16.msra.mxu0 %v4749
    %4942 = vmatprep.mubr.bf16.mxu0 %v4903
    %4943 = vmatmul.mubr.bf16.gmra.mxu0 %v4902
    %v4944 = vpop.f32.mrf.mxu0
    %v4945 = vadd.f32 %v4610, %v4944
    %v4946 = vpop.f32.mrf.mxu0
    %v4947 = vadd.f32 %v4614, %v4946
    %v4948 = vpop.f32.mrf.mxu0
    %v4949 = vadd.f32 %v4610, %v4948
    %v4950 = vpop.f32.mrf.mxu0
    %v4951 = vadd.f32 %v4614, %v4950
    %4952 = vmatprep.mubr.bf16.mxu0 %v4905
    %4953 = vmatmul.mubr.bf16.gmra.mxu0 %v4904
    %v4954 = vpop.f32.mrf.mxu0
    %v4955 = vadd.f32 %v4610, %v4954
    %v4956 = vpop.f32.mrf.mxu0
    %v4957 = vadd.f32 %v4614, %v4956
    %v4958 = vpop.f32.mrf.mxu0
    %v4959 = vadd.f32 %v4610, %v4958
    %v4960 = vpop.f32.mrf.mxu0
    %v4961 = vadd.f32 %v4614, %v4960
    %4962 = vdwg.mxu0
    %v4963 = vpack.c.bf16 %v4949, %v4945
    %v4964 = vpack.c.bf16 %v4951, %v4947
    %v4965 = vpack.c.bf16 %v4959, %v4955
    %v4966 = vpack.c.bf16 %v4961, %v4957
    %v4967 = vmax.bf16 %v4963, 0
    %v4968 = vmax.bf16 %v4964, 0
    %v4969 = vmax.bf16 %v4965, 0
    %v4970 = vmax.bf16 %v4966, 0
    %v4971 = vadd.bf16 %v4967, %v4902
    %v4972 = vadd.bf16 %v4968, %v4903
    %v4973 = vadd.bf16 %v4969, %v4904
    %v4974 = vadd.bf16 %v4970, %v4905
    %v4979 = vunpack.c.l.b16 %v4971
    %v4980 = vunpack.c.l.b16 %v4972
    %v4981 = vunpack.c.h.b16 %v4971
    %v4982 = vunpack.c.h.b16 %v4972
    %v4983 = vunpack.c.l.b16 %v4973
    %v4984 = vunpack.c.l.b16 %v4974
    %v4985 = vunpack.c.h.b16 %v4973
    %v4986 = vunpack.c.h.b16 %v4974
    %v4987 = vpack.c.b16 %v4980, %v4979
    %v4988 = vpack.c.b16 %v4982, %v4981
    %v4989 = vpack.c.b16 %v4984, %v4983
    %v4990 = vpack.c.b16 %v4986, %v4985
    %4995 = vst [vmem:[#allocation3] sm:$0xff] %v4987
    %4996 = vst [vmem:[#allocation3 + $0x8] sm:$0xff] %v4988
    %4997 = vst [vmem:[#allocation3 + $0x10] sm:$0xff] %v4989
    %4998 = vst [vmem:[#allocation3 + $0x18] sm:$0xff] %v4990
    %s4999 = scalar_lea.vmem [#allocation10], 2560
    %v5000 = vld [vmem:[%s4999] sm:$0xff]
    %v5001 = vld [vmem:[%s4999 + $0x8] sm:$0xff]
    %v5002 = vld [vmem:[%s4999 + $0x10] sm:$0xff]
    %v5003 = vld [vmem:[%s4999 + $0x18] sm:$0xff]
    %v5004 = vld [vmem:[%s4999 + $0x20] sm:$0xff]
    %v5005 = vld [vmem:[%s4999 + $0x28] sm:$0xff]
    %v5006 = vld [vmem:[%s4999 + $0x30] sm:$0xff]
    %v5007 = vld [vmem:[%s4999 + $0x38] sm:$0xff]
    %v5008 = vld [vmem:[%s4999 + $0x40] sm:$0xff]
    %v5009 = vld [vmem:[%s4999 + $0x48] sm:$0xff]
    %v5010 = vld [vmem:[%s4999 + $0x50] sm:$0xff]
    %v5011 = vld [vmem:[%s4999 + $0x58] sm:$0xff]
    %v5012 = vld [vmem:[%s4999 + $0x60] sm:$0xff]
    %v5013 = vld [vmem:[%s4999 + $0x68] sm:$0xff]
    %v5014 = vld [vmem:[%s4999 + $0x70] sm:$0xff]
    %v5015 = vld [vmem:[%s4999 + $0x78] sm:$0xff]
    %v5016 = vld [vmem:[%s4999 + $0x80] sm:$0xff]
    %v5017 = vld [vmem:[%s4999 + $0x88] sm:$0xff]
    %v5018 = vld [vmem:[%s4999 + $0x90] sm:$0xff]
    %v5019 = vld [vmem:[%s4999 + $0x98] sm:$0xff]
    %v5020 = vld [vmem:[%s4999 + $0xa0] sm:$0xff]
    %v5021 = vld [vmem:[%s4999 + $0xa8] sm:$0xff]
    %v5022 = vld [vmem:[%s4999 + $0xb0] sm:$0xff]
    %v5023 = vld [vmem:[%s4999 + $0xb8] sm:$0xff]
    %v5024 = vld [vmem:[%s4999 + $0xc0] sm:$0xff]
    %v5025 = vld [vmem:[%s4999 + $0xc8] sm:$0xff]
    %v5026 = vld [vmem:[%s4999 + $0xd0] sm:$0xff]
    %v5027 = vld [vmem:[%s4999 + $0xd8] sm:$0xff]
    %v5028 = vld [vmem:[%s4999 + $0xe0] sm:$0xff]
    %v5029 = vld [vmem:[%s4999 + $0xe8] sm:$0xff]
    %v5030 = vld [vmem:[%s4999 + $0xf0] sm:$0xff]
    %v5031 = vld [vmem:[%s4999 + $0xf8] sm:$0xff]
    %s5032 = scalar_lea.vmem [#allocation12], 20
    %v5033 = vld [vmem:[%s5032] sm:$0x3]
    %v5034 = vld [vmem:[#allocation2] sm:$0xff]
    %v5035 = vld [vmem:[#allocation2 + $0x8] sm:$0xff]
    %v5036 = vld [vmem:[#allocation2 + $0x10] sm:$0xff]
    %v5037 = vld [vmem:[#allocation2 + $0x18] sm:$0xff]
    %v5039 = vlaneseq
    %v5040 = vshrl.u32 %v5039, 7
    %v5041 = vsub.s32 0, %v5040
    %v5042 = vrot.slane %v5033, %v5041
    %v5043 = vlaneseq
    %v5044 = vshrl.u32 %v5043, 7
    %v5045 = vsub.s32 1, %v5044
    %v5046 = vrot.slane %v5033, %v5045
    %v5053 = vunpack.c.l.b16 %v5034
    %v5054 = vunpack.c.h.b16 %v5034
    %v5055 = vunpack.c.l.b16 %v5035
    %v5056 = vunpack.c.h.b16 %v5035
    %v5057 = vunpack.c.l.b16 %v5036
    %v5058 = vunpack.c.h.b16 %v5036
    %v5059 = vunpack.c.l.b16 %v5037
    %v5060 = vunpack.c.h.b16 %v5037
    %v5061 = vpack.c.b16 %v5055, %v5053
    %v5062 = vpack.c.b16 %v5056, %v5054
    %v5063 = vpack.c.b16 %v5059, %v5057
    %v5064 = vpack.c.b16 %v5060, %v5058
    %v5101 = vunpack.c.l.b16 %v5000
    %v5102 = vunpack.c.h.b16 %v5000
    %v5103 = vunpack.c.l.b16 %v5001
    %v5104 = vunpack.c.h.b16 %v5001
    %v5105 = vunpack.c.l.b16 %v5002
    %v5106 = vunpack.c.h.b16 %v5002
    %v5107 = vunpack.c.l.b16 %v5003
    %v5108 = vunpack.c.h.b16 %v5003
    %v5109 = vunpack.c.l.b16 %v5004
    %v5110 = vunpack.c.h.b16 %v5004
    %v5111 = vunpack.c.l.b16 %v5005
    %v5112 = vunpack.c.h.b16 %v5005
    %v5113 = vunpack.c.l.b16 %v5006
    %v5114 = vunpack.c.h.b16 %v5006
    %v5115 = vunpack.c.l.b16 %v5007
    %v5116 = vunpack.c.h.b16 %v5007
    %v5117 = vunpack.c.l.b16 %v5008
    %v5118 = vunpack.c.h.b16 %v5008
    %v5119 = vunpack.c.l.b16 %v5009
    %v5120 = vunpack.c.h.b16 %v5009
    %v5121 = vunpack.c.l.b16 %v5010
    %v5122 = vunpack.c.h.b16 %v5010
    %v5123 = vunpack.c.l.b16 %v5011
    %v5124 = vunpack.c.h.b16 %v5011
    %v5125 = vunpack.c.l.b16 %v5012
    %v5126 = vunpack.c.h.b16 %v5012
    %v5127 = vunpack.c.l.b16 %v5013
    %v5128 = vunpack.c.h.b16 %v5013
    %v5129 = vunpack.c.l.b16 %v5014
    %v5130 = vunpack.c.h.b16 %v5014
    %v5131 = vunpack.c.l.b16 %v5015
    %v5132 = vunpack.c.h.b16 %v5015
    %v5133 = vunpack.c.l.b16 %v5016
    %v5134 = vunpack.c.h.b16 %v5016
    %v5135 = vunpack.c.l.b16 %v5017
    %v5136 = vunpack.c.h.b16 %v5017
    %v5137 = vunpack.c.l.b16 %v5018
    %v5138 = vunpack.c.h.b16 %v5018
    %v5139 = vunpack.c.l.b16 %v5019
    %v5140 = vunpack.c.h.b16 %v5019
    %v5141 = vunpack.c.l.b16 %v5020
    %v5142 = vunpack.c.h.b16 %v5020
    %v5143 = vunpack.c.l.b16 %v5021
    %v5144 = vunpack.c.h.b16 %v5021
    %v5145 = vunpack.c.l.b16 %v5022
    %v5146 = vunpack.c.h.b16 %v5022
    %v5147 = vunpack.c.l.b16 %v5023
    %v5148 = vunpack.c.h.b16 %v5023
    %v5149 = vunpack.c.l.b16 %v5024
    %v5150 = vunpack.c.h.b16 %v5024
    %v5151 = vunpack.c.l.b16 %v5025
    %v5152 = vunpack.c.h.b16 %v5025
    %v5153 = vunpack.c.l.b16 %v5026
    %v5154 = vunpack.c.h.b16 %v5026
    %v5155 = vunpack.c.l.b16 %v5027
    %v5156 = vunpack.c.h.b16 %v5027
    %v5157 = vunpack.c.l.b16 %v5028
    %v5158 = vunpack.c.h.b16 %v5028
    %v5159 = vunpack.c.l.b16 %v5029
    %v5160 = vunpack.c.h.b16 %v5029
    %v5161 = vunpack.c.l.b16 %v5030
    %v5162 = vunpack.c.h.b16 %v5030
    %v5163 = vunpack.c.l.b16 %v5031
    %v5164 = vunpack.c.h.b16 %v5031
    %v5165 = vpack.c.b16 %v5103, %v5101
    %v5166 = vpack.c.b16 %v5104, %v5102
    %v5167 = vpack.c.b16 %v5107, %v5105
    %v5168 = vpack.c.b16 %v5108, %v5106
    %v5169 = vpack.c.b16 %v5111, %v5109
    %v5170 = vpack.c.b16 %v5112, %v5110
    %v5171 = vpack.c.b16 %v5115, %v5113
    %v5172 = vpack.c.b16 %v5116, %v5114
    %v5173 = vpack.c.b16 %v5119, %v5117
    %v5174 = vpack.c.b16 %v5120, %v5118
    %v5175 = vpack.c.b16 %v5123, %v5121
    %v5176 = vpack.c.b16 %v5124, %v5122
    %v5177 = vpack.c.b16 %v5127, %v5125
    %v5178 = vpack.c.b16 %v5128, %v5126
    %v5179 = vpack.c.b16 %v5131, %v5129
    %v5180 = vpack.c.b16 %v5132, %v5130
    %v5181 = vpack.c.b16 %v5135, %v5133
    %v5182 = vpack.c.b16 %v5136, %v5134
    %v5183 = vpack.c.b16 %v5139, %v5137
    %v5184 = vpack.c.b16 %v5140, %v5138
    %v5185 = vpack.c.b16 %v5143, %v5141
    %v5186 = vpack.c.b16 %v5144, %v5142
    %v5187 = vpack.c.b16 %v5147, %v5145
    %v5188 = vpack.c.b16 %v5148, %v5146
    %v5189 = vpack.c.b16 %v5151, %v5149
    %v5190 = vpack.c.b16 %v5152, %v5150
    %v5191 = vpack.c.b16 %v5155, %v5153
    %v5192 = vpack.c.b16 %v5156, %v5154
    %v5193 = vpack.c.b16 %v5159, %v5157
    %v5194 = vpack.c.b16 %v5160, %v5158
    %v5195 = vpack.c.b16 %v5163, %v5161
    %v5196 = vpack.c.b16 %v5164, %v5162
    %5229 = vmatprep.subr.bf16.mxu0 %v5180
    %5230 = vmatpush1.bf16.msra.mxu0 %v5179
    %5231 = vmatprep.subr.bf16.mxu0 %v5178
    %5232 = vmatpush1.bf16.msra.mxu0 %v5177
    %5233 = vmatprep.subr.bf16.mxu0 %v5176
    %5234 = vmatpush1.bf16.msra.mxu0 %v5175
    %5235 = vmatprep.subr.bf16.mxu0 %v5174
    %5236 = vmatpush1.bf16.msra.mxu0 %v5173
    %5237 = vmatprep.subr.bf16.mxu0 %v5172
    %5238 = vmatpush1.bf16.msra.mxu0 %v5171
    %5239 = vmatprep.subr.bf16.mxu0 %v5170
    %5240 = vmatpush1.bf16.msra.mxu0 %v5169
    %5241 = vmatprep.subr.bf16.mxu0 %v5168
    %5242 = vmatpush1.bf16.msra.mxu0 %v5167
    %5243 = vmatprep.subr.bf16.mxu0 %v5166
    %5244 = vmatpush1.bf16.msra.mxu0 %v5165
    %5245 = vmatprep.subr.bf16.mxu0 %v5196
    %5246 = vmatpush2.bf16.msra.mxu0 %v5195
    %5247 = vmatprep.subr.bf16.mxu0 %v5194
    %5248 = vmatpush2.bf16.msra.mxu0 %v5193
    %5249 = vmatprep.subr.bf16.mxu0 %v5192
    %5250 = vmatpush2.bf16.msra.mxu0 %v5191
    %5251 = vmatprep.subr.bf16.mxu0 %v5190
    %5252 = vmatpush2.bf16.msra.mxu0 %v5189
    %5253 = vmatprep.subr.bf16.mxu0 %v5188
    %5254 = vmatpush2.bf16.msra.mxu0 %v5187
    %5255 = vmatprep.subr.bf16.mxu0 %v5186
    %5256 = vmatpush2.bf16.msra.mxu0 %v5185
    %5257 = vmatprep.subr.bf16.mxu0 %v5184
    %5258 = vmatpush2.bf16.msra.mxu0 %v5183
    %5259 = vmatprep.subr.bf16.mxu0 %v5182
    %5260 = vmatpush2.bf16.msra.mxu0 %v5181
    %5261 = vmatprep.mubr.bf16.mxu0 %v5062
    %5262 = vmatmul.mubr.bf16.gmra.mxu0 %v5061
    %v5263 = vpop.f32.mrf.mxu0
    %v5264 = vadd.f32 %v5042, %v5263
    %v5265 = vpop.f32.mrf.mxu0
    %v5266 = vadd.f32 %v5046, %v5265
    %v5267 = vpop.f32.mrf.mxu0
    %v5268 = vadd.f32 %v5042, %v5267
    %v5269 = vpop.f32.mrf.mxu0
    %v5270 = vadd.f32 %v5046, %v5269
    %5271 = vmatprep.mubr.bf16.mxu0 %v5064
    %5272 = vmatmul.mubr.bf16.gmra.mxu0 %v5063
    %v5273 = vpop.f32.mrf.mxu0
    %v5274 = vadd.f32 %v5042, %v5273
    %v5275 = vpop.f32.mrf.mxu0
    %v5276 = vadd.f32 %v5046, %v5275
    %v5277 = vpop.f32.mrf.mxu0
    %v5278 = vadd.f32 %v5042, %v5277
    %v5279 = vpop.f32.mrf.mxu0
    %v5280 = vadd.f32 %v5046, %v5279
    %5281 = vdwg.mxu0
    %v5282 = vpack.c.bf16 %v5268, %v5264
    %v5283 = vpack.c.bf16 %v5270, %v5266
    %v5284 = vpack.c.bf16 %v5278, %v5274
    %v5285 = vpack.c.bf16 %v5280, %v5276
    %v5286 = vmax.bf16 %v5282, 0
    %v5287 = vmax.bf16 %v5283, 0
    %v5288 = vmax.bf16 %v5284, 0
    %v5289 = vmax.bf16 %v5285, 0
    %v5290 = vadd.bf16 %v5286, %v5061
    %v5291 = vadd.bf16 %v5287, %v5062
    %v5292 = vadd.bf16 %v5288, %v5063
    %v5293 = vadd.bf16 %v5289, %v5064
    %v5298 = vunpack.c.l.b16 %v5290
    %v5299 = vunpack.c.l.b16 %v5291
    %v5300 = vunpack.c.h.b16 %v5290
    %v5301 = vunpack.c.h.b16 %v5291
    %v5302 = vunpack.c.l.b16 %v5292
    %v5303 = vunpack.c.l.b16 %v5293
    %v5304 = vunpack.c.h.b16 %v5292
    %v5305 = vunpack.c.h.b16 %v5293
    %v5306 = vpack.c.b16 %v5299, %v5298
    %v5307 = vpack.c.b16 %v5301, %v5300
    %v5308 = vpack.c.b16 %v5303, %v5302
    %v5309 = vpack.c.b16 %v5305, %v5304
    %5314 = vst [vmem:[#allocation2] sm:$0xff] %v5306
    %5315 = vst [vmem:[#allocation2 + $0x8] sm:$0xff] %v5307
    %5316 = vst [vmem:[#allocation2 + $0x10] sm:$0xff] %v5308
    %5317 = vst [vmem:[#allocation2 + $0x18] sm:$0xff] %v5309
    %v5318 = vld [vmem:[#allocation3] sm:$0xff]
    %v5319 = vld [vmem:[#allocation3 + $0x8] sm:$0xff]
    %v5320 = vld [vmem:[#allocation3 + $0x10] sm:$0xff]
    %v5321 = vld [vmem:[#allocation3 + $0x18] sm:$0xff]
    %v5326 = vunpack.c.l.b16 %v5318
    %v5327 = vunpack.c.h.b16 %v5318
    %v5328 = vunpack.c.l.b16 %v5319
    %v5329 = vunpack.c.h.b16 %v5319
    %v5330 = vunpack.c.l.b16 %v5320
    %v5331 = vunpack.c.h.b16 %v5320
    %v5332 = vunpack.c.l.b16 %v5321
    %v5333 = vunpack.c.h.b16 %v5321
    %v5334 = vpack.c.b16 %v5328, %v5326
    %v5335 = vpack.c.b16 %v5329, %v5327
    %v5336 = vpack.c.b16 %v5332, %v5330
    %v5337 = vpack.c.b16 %v5333, %v5331
    %5342 = vmatprep.subr.bf16.mxu0 %v5180
    %5343 = vmatpush1.bf16.msra.mxu0 %v5179
    %5344 = vmatprep.subr.bf16.mxu0 %v5178
    %5345 = vmatpush1.bf16.msra.mxu0 %v5177
    %5346 = vmatprep.subr.bf16.mxu0 %v5176
    %5347 = vmatpush1.bf16.msra.mxu0 %v5175
    %5348 = vmatprep.subr.bf16.mxu0 %v5174
    %5349 = vmatpush1.bf16.msra.mxu0 %v5173
    %5350 = vmatprep.subr.bf16.mxu0 %v5172
    %5351 = vmatpush1.bf16.msra.mxu0 %v5171
    %5352 = vmatprep.subr.bf16.mxu0 %v5170
    %5353 = vmatpush1.bf16.msra.mxu0 %v5169
    %5354 = vmatprep.subr.bf16.mxu0 %v5168
    %5355 = vmatpush1.bf16.msra.mxu0 %v5167
    %5356 = vmatprep.subr.bf16.mxu0 %v5166
    %5357 = vmatpush1.bf16.msra.mxu0 %v5165
    %5358 = vmatprep.subr.bf16.mxu0 %v5196
    %5359 = vmatpush2.bf16.msra.mxu0 %v5195
    %5360 = vmatprep.subr.bf16.mxu0 %v5194
    %5361 = vmatpush2.bf16.msra.mxu0 %v5193
    %5362 = vmatprep.subr.bf16.mxu0 %v5192
    %5363 = vmatpush2.bf16.msra.mxu0 %v5191
    %5364 = vmatprep.subr.bf16.mxu0 %v5190
    %5365 = vmatpush2.bf16.msra.mxu0 %v5189
    %5366 = vmatprep.subr.bf16.mxu0 %v5188
    %5367 = vmatpush2.bf16.msra.mxu0 %v5187
    %5368 = vmatprep.subr.bf16.mxu0 %v5186
    %5369 = vmatpush2.bf16.msra.mxu0 %v5185
    %5370 = vmatprep.subr.bf16.mxu0 %v5184
    %5371 = vmatpush2.bf16.msra.mxu0 %v5183
    %5372 = vmatprep.subr.bf16.mxu0 %v5182
    %5373 = vmatpush2.bf16.msra.mxu0 %v5181
    %5374 = vmatprep.mubr.bf16.mxu0 %v5335
    %5375 = vmatmul.mubr.bf16.gmra.mxu0 %v5334
    %v5376 = vpop.f32.mrf.mxu0
    %v5377 = vadd.f32 %v5042, %v5376
    %v5378 = vpop.f32.mrf.mxu0
    %v5379 = vadd.f32 %v5046, %v5378
    %v5380 = vpop.f32.mrf.mxu0
    %v5381 = vadd.f32 %v5042, %v5380
    %v5382 = vpop.f32.mrf.mxu0
    %v5383 = vadd.f32 %v5046, %v5382
    %5384 = vmatprep.mubr.bf16.mxu0 %v5337
    %5385 = vmatmul.mubr.bf16.gmra.mxu0 %v5336
    %v5386 = vpop.f32.mrf.mxu0
    %v5387 = vadd.f32 %v5042, %v5386
    %v5388 = vpop.f32.mrf.mxu0
    %v5389 = vadd.f32 %v5046, %v5388
    %v5390 = vpop.f32.mrf.mxu0
    %v5391 = vadd.f32 %v5042, %v5390
    %v5392 = vpop.f32.mrf.mxu0
    %v5393 = vadd.f32 %v5046, %v5392
    %5394 = vdwg.mxu0
    %v5395 = vpack.c.bf16 %v5381, %v5377
    %v5396 = vpack.c.bf16 %v5383, %v5379
    %v5397 = vpack.c.bf16 %v5391, %v5387
    %v5398 = vpack.c.bf16 %v5393, %v5389
    %v5399 = vmax.bf16 %v5395, 0
    %v5400 = vmax.bf16 %v5396, 0
    %v5401 = vmax.bf16 %v5397, 0
    %v5402 = vmax.bf16 %v5398, 0
    %v5403 = vadd.bf16 %v5399, %v5334
    %v5404 = vadd.bf16 %v5400, %v5335
    %v5405 = vadd.bf16 %v5401, %v5336
    %v5406 = vadd.bf16 %v5402, %v5337
    %v5411 = vunpack.c.l.b16 %v5403
    %v5412 = vunpack.c.l.b16 %v5404
    %v5413 = vunpack.c.h.b16 %v5403
    %v5414 = vunpack.c.h.b16 %v5404
    %v5415 = vunpack.c.l.b16 %v5405
    %v5416 = vunpack.c.l.b16 %v5406
    %v5417 = vunpack.c.h.b16 %v5405
    %v5418 = vunpack.c.h.b16 %v5406
    %v5419 = vpack.c.b16 %v5412, %v5411
    %v5420 = vpack.c.b16 %v5414, %v5413
    %v5421 = vpack.c.b16 %v5416, %v5415
    %v5422 = vpack.c.b16 %v5418, %v5417
    %5427 = vst [vmem:[#allocation3] sm:$0xff] %v5419
    %5428 = vst [vmem:[#allocation3 + $0x8] sm:$0xff] %v5420
    %5429 = vst [vmem:[#allocation3 + $0x10] sm:$0xff] %v5421
    %5430 = vst [vmem:[#allocation3 + $0x18] sm:$0xff] %v5422
    %s5431 = scalar_lea.vmem [#allocation10], 2816
    %v5432 = vld [vmem:[%s5431] sm:$0xff]
    %v5433 = vld [vmem:[%s5431 + $0x8] sm:$0xff]
    %v5434 = vld [vmem:[%s5431 + $0x10] sm:$0xff]
    %v5435 = vld [vmem:[%s5431 + $0x18] sm:$0xff]
    %v5436 = vld [vmem:[%s5431 + $0x20] sm:$0xff]
    %v5437 = vld [vmem:[%s5431 + $0x28] sm:$0xff]
    %v5438 = vld [vmem:[%s5431 + $0x30] sm:$0xff]
    %v5439 = vld [vmem:[%s5431 + $0x38] sm:$0xff]
    %v5440 = vld [vmem:[%s5431 + $0x40] sm:$0xff]
    %v5441 = vld [vmem:[%s5431 + $0x48] sm:$0xff]
    %v5442 = vld [vmem:[%s5431 + $0x50] sm:$0xff]
    %v5443 = vld [vmem:[%s5431 + $0x58] sm:$0xff]
    %v5444 = vld [vmem:[%s5431 + $0x60] sm:$0xff]
    %v5445 = vld [vmem:[%s5431 + $0x68] sm:$0xff]
    %v5446 = vld [vmem:[%s5431 + $0x70] sm:$0xff]
    %v5447 = vld [vmem:[%s5431 + $0x78] sm:$0xff]
    %v5448 = vld [vmem:[%s5431 + $0x80] sm:$0xff]
    %v5449 = vld [vmem:[%s5431 + $0x88] sm:$0xff]
    %v5450 = vld [vmem:[%s5431 + $0x90] sm:$0xff]
    %v5451 = vld [vmem:[%s5431 + $0x98] sm:$0xff]
    %v5452 = vld [vmem:[%s5431 + $0xa0] sm:$0xff]
    %v5453 = vld [vmem:[%s5431 + $0xa8] sm:$0xff]
    %v5454 = vld [vmem:[%s5431 + $0xb0] sm:$0xff]
    %v5455 = vld [vmem:[%s5431 + $0xb8] sm:$0xff]
    %v5456 = vld [vmem:[%s5431 + $0xc0] sm:$0xff]
    %v5457 = vld [vmem:[%s5431 + $0xc8] sm:$0xff]
    %v5458 = vld [vmem:[%s5431 + $0xd0] sm:$0xff]
    %v5459 = vld [vmem:[%s5431 + $0xd8] sm:$0xff]
    %v5460 = vld [vmem:[%s5431 + $0xe0] sm:$0xff]
    %v5461 = vld [vmem:[%s5431 + $0xe8] sm:$0xff]
    %v5462 = vld [vmem:[%s5431 + $0xf0] sm:$0xff]
    %v5463 = vld [vmem:[%s5431 + $0xf8] sm:$0xff]
    %s5464 = scalar_lea.vmem [#allocation12], 22
    %v5465 = vld [vmem:[%s5464] sm:$0x3]
    %v5466 = vld [vmem:[#allocation2] sm:$0xff]
    %v5467 = vld [vmem:[#allocation2 + $0x8] sm:$0xff]
    %v5468 = vld [vmem:[#allocation2 + $0x10] sm:$0xff]
    %v5469 = vld [vmem:[#allocation2 + $0x18] sm:$0xff]
    %v5471 = vlaneseq
    %v5472 = vshrl.u32 %v5471, 7
    %v5473 = vsub.s32 0, %v5472
    %v5474 = vrot.slane %v5465, %v5473
    %v5475 = vlaneseq
    %v5476 = vshrl.u32 %v5475, 7
    %v5477 = vsub.s32 1, %v5476
    %v5478 = vrot.slane %v5465, %v5477
    %v5485 = vunpack.c.l.b16 %v5466
    %v5486 = vunpack.c.h.b16 %v5466
    %v5487 = vunpack.c.l.b16 %v5467
    %v5488 = vunpack.c.h.b16 %v5467
    %v5489 = vunpack.c.l.b16 %v5468
    %v5490 = vunpack.c.h.b16 %v5468
    %v5491 = vunpack.c.l.b16 %v5469
    %v5492 = vunpack.c.h.b16 %v5469
    %v5493 = vpack.c.b16 %v5487, %v5485
    %v5494 = vpack.c.b16 %v5488, %v5486
    %v5495 = vpack.c.b16 %v5491, %v5489
    %v5496 = vpack.c.b16 %v5492, %v5490
    %v5533 = vunpack.c.l.b16 %v5432
    %v5534 = vunpack.c.h.b16 %v5432
    %v5535 = vunpack.c.l.b16 %v5433
    %v5536 = vunpack.c.h.b16 %v5433
    %v5537 = vunpack.c.l.b16 %v5434
    %v5538 = vunpack.c.h.b16 %v5434
    %v5539 = vunpack.c.l.b16 %v5435
    %v5540 = vunpack.c.h.b16 %v5435
    %v5541 = vunpack.c.l.b16 %v5436
    %v5542 = vunpack.c.h.b16 %v5436
    %v5543 = vunpack.c.l.b16 %v5437
    %v5544 = vunpack.c.h.b16 %v5437
    %v5545 = vunpack.c.l.b16 %v5438
    %v5546 = vunpack.c.h.b16 %v5438
    %v5547 = vunpack.c.l.b16 %v5439
    %v5548 = vunpack.c.h.b16 %v5439
    %v5549 = vunpack.c.l.b16 %v5440
    %v5550 = vunpack.c.h.b16 %v5440
    %v5551 = vunpack.c.l.b16 %v5441
    %v5552 = vunpack.c.h.b16 %v5441
    %v5553 = vunpack.c.l.b16 %v5442
    %v5554 = vunpack.c.h.b16 %v5442
    %v5555 = vunpack.c.l.b16 %v5443
    %v5556 = vunpack.c.h.b16 %v5443
    %v5557 = vunpack.c.l.b16 %v5444
    %v5558 = vunpack.c.h.b16 %v5444
    %v5559 = vunpack.c.l.b16 %v5445
    %v5560 = vunpack.c.h.b16 %v5445
    %v5561 = vunpack.c.l.b16 %v5446
    %v5562 = vunpack.c.h.b16 %v5446
    %v5563 = vunpack.c.l.b16 %v5447
    %v5564 = vunpack.c.h.b16 %v5447
    %v5565 = vunpack.c.l.b16 %v5448
    %v5566 = vunpack.c.h.b16 %v5448
    %v5567 = vunpack.c.l.b16 %v5449
    %v5568 = vunpack.c.h.b16 %v5449
    %v5569 = vunpack.c.l.b16 %v5450
    %v5570 = vunpack.c.h.b16 %v5450
    %v5571 = vunpack.c.l.b16 %v5451
    %v5572 = vunpack.c.h.b16 %v5451
    %v5573 = vunpack.c.l.b16 %v5452
    %v5574 = vunpack.c.h.b16 %v5452
    %v5575 = vunpack.c.l.b16 %v5453
    %v5576 = vunpack.c.h.b16 %v5453
    %v5577 = vunpack.c.l.b16 %v5454
    %v5578 = vunpack.c.h.b16 %v5454
    %v5579 = vunpack.c.l.b16 %v5455
    %v5580 = vunpack.c.h.b16 %v5455
    %v5581 = vunpack.c.l.b16 %v5456
    %v5582 = vunpack.c.h.b16 %v5456
    %v5583 = vunpack.c.l.b16 %v5457
    %v5584 = vunpack.c.h.b16 %v5457
    %v5585 = vunpack.c.l.b16 %v5458
    %v5586 = vunpack.c.h.b16 %v5458
    %v5587 = vunpack.c.l.b16 %v5459
    %v5588 = vunpack.c.h.b16 %v5459
    %v5589 = vunpack.c.l.b16 %v5460
    %v5590 = vunpack.c.h.b16 %v5460
    %v5591 = vunpack.c.l.b16 %v5461
    %v5592 = vunpack.c.h.b16 %v5461
    %v5593 = vunpack.c.l.b16 %v5462
    %v5594 = vunpack.c.h.b16 %v5462
    %v5595 = vunpack.c.l.b16 %v5463
    %v5596 = vunpack.c.h.b16 %v5463
    %v5597 = vpack.c.b16 %v5535, %v5533
    %v5598 = vpack.c.b16 %v5536, %v5534
    %v5599 = vpack.c.b16 %v5539, %v5537
    %v5600 = vpack.c.b16 %v5540, %v5538
    %v5601 = vpack.c.b16 %v5543, %v5541
    %v5602 = vpack.c.b16 %v5544, %v5542
    %v5603 = vpack.c.b16 %v5547, %v5545
    %v5604 = vpack.c.b16 %v5548, %v5546
    %v5605 = vpack.c.b16 %v5551, %v5549
    %v5606 = vpack.c.b16 %v5552, %v5550
    %v5607 = vpack.c.b16 %v5555, %v5553
    %v5608 = vpack.c.b16 %v5556, %v5554
    %v5609 = vpack.c.b16 %v5559, %v5557
    %v5610 = vpack.c.b16 %v5560, %v5558
    %v5611 = vpack.c.b16 %v5563, %v5561
    %v5612 = vpack.c.b16 %v5564, %v5562
    %v5613 = vpack.c.b16 %v5567, %v5565
    %v5614 = vpack.c.b16 %v5568, %v5566
    %v5615 = vpack.c.b16 %v5571, %v5569
    %v5616 = vpack.c.b16 %v5572, %v5570
    %v5617 = vpack.c.b16 %v5575, %v5573
    %v5618 = vpack.c.b16 %v5576, %v5574
    %v5619 = vpack.c.b16 %v5579, %v5577
    %v5620 = vpack.c.b16 %v5580, %v5578
    %v5621 = vpack.c.b16 %v5583, %v5581
    %v5622 = vpack.c.b16 %v5584, %v5582
    %v5623 = vpack.c.b16 %v5587, %v5585
    %v5624 = vpack.c.b16 %v5588, %v5586
    %v5625 = vpack.c.b16 %v5591, %v5589
    %v5626 = vpack.c.b16 %v5592, %v5590
    %v5627 = vpack.c.b16 %v5595, %v5593
    %v5628 = vpack.c.b16 %v5596, %v5594
    %5661 = vmatprep.subr.bf16.mxu0 %v5612
    %5662 = vmatpush1.bf16.msra.mxu0 %v5611
    %5663 = vmatprep.subr.bf16.mxu0 %v5610
    %5664 = vmatpush1.bf16.msra.mxu0 %v5609
    %5665 = vmatprep.subr.bf16.mxu0 %v5608
    %5666 = vmatpush1.bf16.msra.mxu0 %v5607
    %5667 = vmatprep.subr.bf16.mxu0 %v5606
    %5668 = vmatpush1.bf16.msra.mxu0 %v5605
    %5669 = vmatprep.subr.bf16.mxu0 %v5604
    %5670 = vmatpush1.bf16.msra.mxu0 %v5603
    %5671 = vmatprep.subr.bf16.mxu0 %v5602
    %5672 = vmatpush1.bf16.msra.mxu0 %v5601
    %5673 = vmatprep.subr.bf16.mxu0 %v5600
    %5674 = vmatpush1.bf16.msra.mxu0 %v5599
    %5675 = vmatprep.subr.bf16.mxu0 %v5598
    %5676 = vmatpush1.bf16.msra.mxu0 %v5597
    %5677 = vmatprep.subr.bf16.mxu0 %v5628
    %5678 = vmatpush2.bf16.msra.mxu0 %v5627
    %5679 = vmatprep.subr.bf16.mxu0 %v5626
    %5680 = vmatpush2.bf16.msra.mxu0 %v5625
    %5681 = vmatprep.subr.bf16.mxu0 %v5624
    %5682 = vmatpush2.bf16.msra.mxu0 %v5623
    %5683 = vmatprep.subr.bf16.mxu0 %v5622
    %5684 = vmatpush2.bf16.msra.mxu0 %v5621
    %5685 = vmatprep.subr.bf16.mxu0 %v5620
    %5686 = vmatpush2.bf16.msra.mxu0 %v5619
    %5687 = vmatprep.subr.bf16.mxu0 %v5618
    %5688 = vmatpush2.bf16.msra.mxu0 %v5617
    %5689 = vmatprep.subr.bf16.mxu0 %v5616
    %5690 = vmatpush2.bf16.msra.mxu0 %v5615
    %5691 = vmatprep.subr.bf16.mxu0 %v5614
    %5692 = vmatpush2.bf16.msra.mxu0 %v5613
    %5693 = vmatprep.mubr.bf16.mxu0 %v5494
    %5694 = vmatmul.mubr.bf16.gmra.mxu0 %v5493
    %v5695 = vpop.f32.mrf.mxu0
    %v5696 = vadd.f32 %v5474, %v5695
    %v5697 = vpop.f32.mrf.mxu0
    %v5698 = vadd.f32 %v5478, %v5697
    %v5699 = vpop.f32.mrf.mxu0
    %v5700 = vadd.f32 %v5474, %v5699
    %v5701 = vpop.f32.mrf.mxu0
    %v5702 = vadd.f32 %v5478, %v5701
    %5703 = vmatprep.mubr.bf16.mxu0 %v5496
    %5704 = vmatmul.mubr.bf16.gmra.mxu0 %v5495
    %v5705 = vpop.f32.mrf.mxu0
    %v5706 = vadd.f32 %v5474, %v5705
    %v5707 = vpop.f32.mrf.mxu0
    %v5708 = vadd.f32 %v5478, %v5707
    %v5709 = vpop.f32.mrf.mxu0
    %v5710 = vadd.f32 %v5474, %v5709
    %v5711 = vpop.f32.mrf.mxu0
    %v5712 = vadd.f32 %v5478, %v5711
    %5713 = vdwg.mxu0
    %v5714 = vpack.c.bf16 %v5700, %v5696
    %v5715 = vpack.c.bf16 %v5702, %v5698
    %v5716 = vpack.c.bf16 %v5710, %v5706
    %v5717 = vpack.c.bf16 %v5712, %v5708
    %v5718 = vmax.bf16 %v5714, 0
    %v5719 = vmax.bf16 %v5715, 0
    %v5720 = vmax.bf16 %v5716, 0
    %v5721 = vmax.bf16 %v5717, 0
    %v5722 = vadd.bf16 %v5718, %v5493
    %v5723 = vadd.bf16 %v5719, %v5494
    %v5724 = vadd.bf16 %v5720, %v5495
    %v5725 = vadd.bf16 %v5721, %v5496
    %v5730 = vunpack.c.l.b16 %v5722
    %v5731 = vunpack.c.l.b16 %v5723
    %v5732 = vunpack.c.h.b16 %v5722
    %v5733 = vunpack.c.h.b16 %v5723
    %v5734 = vunpack.c.l.b16 %v5724
    %v5735 = vunpack.c.l.b16 %v5725
    %v5736 = vunpack.c.h.b16 %v5724
    %v5737 = vunpack.c.h.b16 %v5725
    %v5738 = vpack.c.b16 %v5731, %v5730
    %v5739 = vpack.c.b16 %v5733, %v5732
    %v5740 = vpack.c.b16 %v5735, %v5734
    %v5741 = vpack.c.b16 %v5737, %v5736
    %5746 = vst [vmem:[#allocation2] sm:$0xff] %v5738
    %5747 = vst [vmem:[#allocation2 + $0x8] sm:$0xff] %v5739
    %5748 = vst [vmem:[#allocation2 + $0x10] sm:$0xff] %v5740
    %5749 = vst [vmem:[#allocation2 + $0x18] sm:$0xff] %v5741
    %v5750 = vld [vmem:[#allocation3] sm:$0xff]
    %v5751 = vld [vmem:[#allocation3 + $0x8] sm:$0xff]
    %v5752 = vld [vmem:[#allocation3 + $0x10] sm:$0xff]
    %v5753 = vld [vmem:[#allocation3 + $0x18] sm:$0xff]
    %v5758 = vunpack.c.l.b16 %v5750
    %v5759 = vunpack.c.h.b16 %v5750
    %v5760 = vunpack.c.l.b16 %v5751
    %v5761 = vunpack.c.h.b16 %v5751
    %v5762 = vunpack.c.l.b16 %v5752
    %v5763 = vunpack.c.h.b16 %v5752
    %v5764 = vunpack.c.l.b16 %v5753
    %v5765 = vunpack.c.h.b16 %v5753
    %v5766 = vpack.c.b16 %v5760, %v5758
    %v5767 = vpack.c.b16 %v5761, %v5759
    %v5768 = vpack.c.b16 %v5764, %v5762
    %v5769 = vpack.c.b16 %v5765, %v5763
    %5774 = vmatprep.subr.bf16.mxu0 %v5612
    %5775 = vmatpush1.bf16.msra.mxu0 %v5611
    %5776 = vmatprep.subr.bf16.mxu0 %v5610
    %5777 = vmatpush1.bf16.msra.mxu0 %v5609
    %5778 = vmatprep.subr.bf16.mxu0 %v5608
    %5779 = vmatpush1.bf16.msra.mxu0 %v5607
    %5780 = vmatprep.subr.bf16.mxu0 %v5606
    %5781 = vmatpush1.bf16.msra.mxu0 %v5605
    %5782 = vmatprep.subr.bf16.mxu0 %v5604
    %5783 = vmatpush1.bf16.msra.mxu0 %v5603
    %5784 = vmatprep.subr.bf16.mxu0 %v5602
    %5785 = vmatpush1.bf16.msra.mxu0 %v5601
    %5786 = vmatprep.subr.bf16.mxu0 %v5600
    %5787 = vmatpush1.bf16.msra.mxu0 %v5599
    %5788 = vmatprep.subr.bf16.mxu0 %v5598
    %5789 = vmatpush1.bf16.msra.mxu0 %v5597
    %5790 = vmatprep.subr.bf16.mxu0 %v5628
    %5791 = vmatpush2.bf16.msra.mxu0 %v5627
    %5792 = vmatprep.subr.bf16.mxu0 %v5626
    %5793 = vmatpush2.bf16.msra.mxu0 %v5625
    %5794 = vmatprep.subr.bf16.mxu0 %v5624
    %5795 = vmatpush2.bf16.msra.mxu0 %v5623
    %5796 = vmatprep.subr.bf16.mxu0 %v5622
    %5797 = vmatpush2.bf16.msra.mxu0 %v5621
    %5798 = vmatprep.subr.bf16.mxu0 %v5620
    %5799 = vmatpush2.bf16.msra.mxu0 %v5619
    %5800 = vmatprep.subr.bf16.mxu0 %v5618
    %5801 = vmatpush2.bf16.msra.mxu0 %v5617
    %5802 = vmatprep.subr.bf16.mxu0 %v5616
    %5803 = vmatpush2.bf16.msra.mxu0 %v5615
    %5804 = vmatprep.subr.bf16.mxu0 %v5614
    %5805 = vmatpush2.bf16.msra.mxu0 %v5613
    %5806 = vmatprep.mubr.bf16.mxu0 %v5767
    %5807 = vmatmul.mubr.bf16.gmra.mxu0 %v5766
    %v5808 = vpop.f32.mrf.mxu0
    %v5809 = vadd.f32 %v5474, %v5808
    %v5810 = vpop.f32.mrf.mxu0
    %v5811 = vadd.f32 %v5478, %v5810
    %v5812 = vpop.f32.mrf.mxu0
    %v5813 = vadd.f32 %v5474, %v5812
    %v5814 = vpop.f32.mrf.mxu0
    %v5815 = vadd.f32 %v5478, %v5814
    %5816 = vmatprep.mubr.bf16.mxu0 %v5769
    %5817 = vmatmul.mubr.bf16.gmra.mxu0 %v5768
    %v5818 = vpop.f32.mrf.mxu0
    %v5819 = vadd.f32 %v5474, %v5818
    %v5820 = vpop.f32.mrf.mxu0
    %v5821 = vadd.f32 %v5478, %v5820
    %v5822 = vpop.f32.mrf.mxu0
    %v5823 = vadd.f32 %v5474, %v5822
    %v5824 = vpop.f32.mrf.mxu0
    %v5825 = vadd.f32 %v5478, %v5824
    %5826 = vdwg.mxu0
    %v5827 = vpack.c.bf16 %v5813, %v5809
    %v5828 = vpack.c.bf16 %v5815, %v5811
    %v5829 = vpack.c.bf16 %v5823, %v5819
    %v5830 = vpack.c.bf16 %v5825, %v5821
    %v5831 = vmax.bf16 %v5827, 0
    %v5832 = vmax.bf16 %v5828, 0
    %v5833 = vmax.bf16 %v5829, 0
    %v5834 = vmax.bf16 %v5830, 0
    %v5835 = vadd.bf16 %v5831, %v5766
    %v5836 = vadd.bf16 %v5832, %v5767
    %v5837 = vadd.bf16 %v5833, %v5768
    %v5838 = vadd.bf16 %v5834, %v5769
    %v5843 = vunpack.c.l.b16 %v5835
    %v5844 = vunpack.c.l.b16 %v5836
    %v5845 = vunpack.c.h.b16 %v5835
    %v5846 = vunpack.c.h.b16 %v5836
    %v5847 = vunpack.c.l.b16 %v5837
    %v5848 = vunpack.c.l.b16 %v5838
    %v5849 = vunpack.c.h.b16 %v5837
    %v5850 = vunpack.c.h.b16 %v5838
    %v5851 = vpack.c.b16 %v5844, %v5843
    %v5852 = vpack.c.b16 %v5846, %v5845
    %v5853 = vpack.c.b16 %v5848, %v5847
    %v5854 = vpack.c.b16 %v5850, %v5849
    %5859 = vst [vmem:[#allocation3] sm:$0xff] %v5851
    %5860 = vst [vmem:[#allocation3 + $0x8] sm:$0xff] %v5852
    %5861 = vst [vmem:[#allocation3 + $0x10] sm:$0xff] %v5853
    %5862 = vst [vmem:[#allocation3 + $0x18] sm:$0xff] %v5854
    %s5863 = scalar_lea.vmem [#allocation10], 3072
    %v5864 = vld [vmem:[%s5863] sm:$0xff]
    %v5865 = vld [vmem:[%s5863 + $0x8] sm:$0xff]
    %v5866 = vld [vmem:[%s5863 + $0x10] sm:$0xff]
    %v5867 = vld [vmem:[%s5863 + $0x18] sm:$0xff]
    %v5868 = vld [vmem:[%s5863 + $0x20] sm:$0xff]
    %v5869 = vld [vmem:[%s5863 + $0x28] sm:$0xff]
    %v5870 = vld [vmem:[%s5863 + $0x30] sm:$0xff]
    %v5871 = vld [vmem:[%s5863 + $0x38] sm:$0xff]
    %v5872 = vld [vmem:[%s5863 + $0x40] sm:$0xff]
    %v5873 = vld [vmem:[%s5863 + $0x48] sm:$0xff]
    %v5874 = vld [vmem:[%s5863 + $0x50] sm:$0xff]
    %v5875 = vld [vmem:[%s5863 + $0x58] sm:$0xff]
    %v5876 = vld [vmem:[%s5863 + $0x60] sm:$0xff]
    %v5877 = vld [vmem:[%s5863 + $0x68] sm:$0xff]
    %v5878 = vld [vmem:[%s5863 + $0x70] sm:$0xff]
    %v5879 = vld [vmem:[%s5863 + $0x78] sm:$0xff]
    %v5880 = vld [vmem:[%s5863 + $0x80] sm:$0xff]
    %v5881 = vld [vmem:[%s5863 + $0x88] sm:$0xff]
    %v5882 = vld [vmem:[%s5863 + $0x90] sm:$0xff]
    %v5883 = vld [vmem:[%s5863 + $0x98] sm:$0xff]
    %v5884 = vld [vmem:[%s5863 + $0xa0] sm:$0xff]
    %v5885 = vld [vmem:[%s5863 + $0xa8] sm:$0xff]
    %v5886 = vld [vmem:[%s5863 + $0xb0] sm:$0xff]
    %v5887 = vld [vmem:[%s5863 + $0xb8] sm:$0xff]
    %v5888 = vld [vmem:[%s5863 + $0xc0] sm:$0xff]
    %v5889 = vld [vmem:[%s5863 + $0xc8] sm:$0xff]
    %v5890 = vld [vmem:[%s5863 + $0xd0] sm:$0xff]
    %v5891 = vld [vmem:[%s5863 + $0xd8] sm:$0xff]
    %v5892 = vld [vmem:[%s5863 + $0xe0] sm:$0xff]
    %v5893 = vld [vmem:[%s5863 + $0xe8] sm:$0xff]
    %v5894 = vld [vmem:[%s5863 + $0xf0] sm:$0xff]
    %v5895 = vld [vmem:[%s5863 + $0xf8] sm:$0xff]
    %s5896 = scalar_lea.vmem [#allocation12], 24
    %v5897 = vld [vmem:[%s5896] sm:$0x3]
    %v5898 = vld [vmem:[#allocation2] sm:$0xff]
    %v5899 = vld [vmem:[#allocation2 + $0x8] sm:$0xff]
    %v5900 = vld [vmem:[#allocation2 + $0x10] sm:$0xff]
    %v5901 = vld [vmem:[#allocation2 + $0x18] sm:$0xff]
    %v5903 = vlaneseq
    %v5904 = vshrl.u32 %v5903, 7
    %v5905 = vsub.s32 0, %v5904
    %v5906 = vrot.slane %v5897, %v5905
    %v5907 = vlaneseq
    %v5908 = vshrl.u32 %v5907, 7
    %v5909 = vsub.s32 1, %v5908
    %v5910 = vrot.slane %v5897, %v5909
    %v5917 = vunpack.c.l.b16 %v5898
    %v5918 = vunpack.c.h.b16 %v5898
    %v5919 = vunpack.c.l.b16 %v5899
    %v5920 = vunpack.c.h.b16 %v5899
    %v5921 = vunpack.c.l.b16 %v5900
    %v5922 = vunpack.c.h.b16 %v5900
    %v5923 = vunpack.c.l.b16 %v5901
    %v5924 = vunpack.c.h.b16 %v5901
    %v5925 = vpack.c.b16 %v5919, %v5917
    %v5926 = vpack.c.b16 %v5920, %v5918
    %v5927 = vpack.c.b16 %v5923, %v5921
    %v5928 = vpack.c.b16 %v5924, %v5922
    %v5965 = vunpack.c.l.b16 %v5864
    %v5966 = vunpack.c.h.b16 %v5864
    %v5967 = vunpack.c.l.b16 %v5865
    %v5968 = vunpack.c.h.b16 %v5865
    %v5969 = vunpack.c.l.b16 %v5866
    %v5970 = vunpack.c.h.b16 %v5866
    %v5971 = vunpack.c.l.b16 %v5867
    %v5972 = vunpack.c.h.b16 %v5867
    %v5973 = vunpack.c.l.b16 %v5868
    %v5974 = vunpack.c.h.b16 %v5868
    %v5975 = vunpack.c.l.b16 %v5869
    %v5976 = vunpack.c.h.b16 %v5869
    %v5977 = vunpack.c.l.b16 %v5870
    %v5978 = vunpack.c.h.b16 %v5870
    %v5979 = vunpack.c.l.b16 %v5871
    %v5980 = vunpack.c.h.b16 %v5871
    %v5981 = vunpack.c.l.b16 %v5872
    %v5982 = vunpack.c.h.b16 %v5872
    %v5983 = vunpack.c.l.b16 %v5873
    %v5984 = vunpack.c.h.b16 %v5873
    %v5985 = vunpack.c.l.b16 %v5874
    %v5986 = vunpack.c.h.b16 %v5874
    %v5987 = vunpack.c.l.b16 %v5875
    %v5988 = vunpack.c.h.b16 %v5875
    %v5989 = vunpack.c.l.b16 %v5876
    %v5990 = vunpack.c.h.b16 %v5876
    %v5991 = vunpack.c.l.b16 %v5877
    %v5992 = vunpack.c.h.b16 %v5877
    %v5993 = vunpack.c.l.b16 %v5878
    %v5994 = vunpack.c.h.b16 %v5878
    %v5995 = vunpack.c.l.b16 %v5879
    %v5996 = vunpack.c.h.b16 %v5879
    %v5997 = vunpack.c.l.b16 %v5880
    %v5998 = vunpack.c.h.b16 %v5880
    %v5999 = vunpack.c.l.b16 %v5881
    %v6000 = vunpack.c.h.b16 %v5881
    %v6001 = vunpack.c.l.b16 %v5882
    %v6002 = vunpack.c.h.b16 %v5882
    %v6003 = vunpack.c.l.b16 %v5883
    %v6004 = vunpack.c.h.b16 %v5883
    %v6005 = vunpack.c.l.b16 %v5884
    %v6006 = vunpack.c.h.b16 %v5884
    %v6007 = vunpack.c.l.b16 %v5885
    %v6008 = vunpack.c.h.b16 %v5885
    %v6009 = vunpack.c.l.b16 %v5886
    %v6010 = vunpack.c.h.b16 %v5886
    %v6011 = vunpack.c.l.b16 %v5887
    %v6012 = vunpack.c.h.b16 %v5887
    %v6013 = vunpack.c.l.b16 %v5888
    %v6014 = vunpack.c.h.b16 %v5888
    %v6015 = vunpack.c.l.b16 %v5889
    %v6016 = vunpack.c.h.b16 %v5889
    %v6017 = vunpack.c.l.b16 %v5890
    %v6018 = vunpack.c.h.b16 %v5890
    %v6019 = vunpack.c.l.b16 %v5891
    %v6020 = vunpack.c.h.b16 %v5891
    %v6021 = vunpack.c.l.b16 %v5892
    %v6022 = vunpack.c.h.b16 %v5892
    %v6023 = vunpack.c.l.b16 %v5893
    %v6024 = vunpack.c.h.b16 %v5893
    %v6025 = vunpack.c.l.b16 %v5894
    %v6026 = vunpack.c.h.b16 %v5894
    %v6027 = vunpack.c.l.b16 %v5895
    %v6028 = vunpack.c.h.b16 %v5895
    %v6029 = vpack.c.b16 %v5967, %v5965
    %v6030 = vpack.c.b16 %v5968, %v5966
    %v6031 = vpack.c.b16 %v5971, %v5969
    %v6032 = vpack.c.b16 %v5972, %v5970
    %v6033 = vpack.c.b16 %v5975, %v5973
    %v6034 = vpack.c.b16 %v5976, %v5974
    %v6035 = vpack.c.b16 %v5979, %v5977
    %v6036 = vpack.c.b16 %v5980, %v5978
    %v6037 = vpack.c.b16 %v5983, %v5981
    %v6038 = vpack.c.b16 %v5984, %v5982
    %v6039 = vpack.c.b16 %v5987, %v5985
    %v6040 = vpack.c.b16 %v5988, %v5986
    %v6041 = vpack.c.b16 %v5991, %v5989
    %v6042 = vpack.c.b16 %v5992, %v5990
    %v6043 = vpack.c.b16 %v5995, %v5993
    %v6044 = vpack.c.b16 %v5996, %v5994
    %v6045 = vpack.c.b16 %v5999, %v5997
    %v6046 = vpack.c.b16 %v6000, %v5998
    %v6047 = vpack.c.b16 %v6003, %v6001
    %v6048 = vpack.c.b16 %v6004, %v6002
    %v6049 = vpack.c.b16 %v6007, %v6005
    %v6050 = vpack.c.b16 %v6008, %v6006
    %v6051 = vpack.c.b16 %v6011, %v6009
    %v6052 = vpack.c.b16 %v6012, %v6010
    %v6053 = vpack.c.b16 %v6015, %v6013
    %v6054 = vpack.c.b16 %v6016, %v6014
    %v6055 = vpack.c.b16 %v6019, %v6017
    %v6056 = vpack.c.b16 %v6020, %v6018
    %v6057 = vpack.c.b16 %v6023, %v6021
    %v6058 = vpack.c.b16 %v6024, %v6022
    %v6059 = vpack.c.b16 %v6027, %v6025
    %v6060 = vpack.c.b16 %v6028, %v6026
    %6093 = vmatprep.subr.bf16.mxu0 %v6044
    %6094 = vmatpush1.bf16.msra.mxu0 %v6043
    %6095 = vmatprep.subr.bf16.mxu0 %v6042
    %6096 = vmatpush1.bf16.msra.mxu0 %v6041
    %6097 = vmatprep.subr.bf16.mxu0 %v6040
    %6098 = vmatpush1.bf16.msra.mxu0 %v6039
    %6099 = vmatprep.subr.bf16.mxu0 %v6038
    %6100 = vmatpush1.bf16.msra.mxu0 %v6037
    %6101 = vmatprep.subr.bf16.mxu0 %v6036
    %6102 = vmatpush1.bf16.msra.mxu0 %v6035
    %6103 = vmatprep.subr.bf16.mxu0 %v6034
    %6104 = vmatpush1.bf16.msra.mxu0 %v6033
    %6105 = vmatprep.subr.bf16.mxu0 %v6032
    %6106 = vmatpush1.bf16.msra.mxu0 %v6031
    %6107 = vmatprep.subr.bf16.mxu0 %v6030
    %6108 = vmatpush1.bf16.msra.mxu0 %v6029
    %6109 = vmatprep.subr.bf16.mxu0 %v6060
    %6110 = vmatpush2.bf16.msra.mxu0 %v6059
    %6111 = vmatprep.subr.bf16.mxu0 %v6058
    %6112 = vmatpush2.bf16.msra.mxu0 %v6057
    %6113 = vmatprep.subr.bf16.mxu0 %v6056
    %6114 = vmatpush2.bf16.msra.mxu0 %v6055
    %6115 = vmatprep.subr.bf16.mxu0 %v6054
    %6116 = vmatpush2.bf16.msra.mxu0 %v6053
    %6117 = vmatprep.subr.bf16.mxu0 %v6052
    %6118 = vmatpush2.bf16.msra.mxu0 %v6051
    %6119 = vmatprep.subr.bf16.mxu0 %v6050
    %6120 = vmatpush2.bf16.msra.mxu0 %v6049
    %6121 = vmatprep.subr.bf16.mxu0 %v6048
    %6122 = vmatpush2.bf16.msra.mxu0 %v6047
    %6123 = vmatprep.subr.bf16.mxu0 %v6046
    %6124 = vmatpush2.bf16.msra.mxu0 %v6045
    %6125 = vmatprep.mubr.bf16.mxu0 %v5926
    %6126 = vmatmul.mubr.bf16.gmra.mxu0 %v5925
    %v6127 = vpop.f32.mrf.mxu0
    %v6128 = vadd.f32 %v5906, %v6127
    %v6129 = vpop.f32.mrf.mxu0
    %v6130 = vadd.f32 %v5910, %v6129
    %v6131 = vpop.f32.mrf.mxu0
    %v6132 = vadd.f32 %v5906, %v6131
    %v6133 = vpop.f32.mrf.mxu0
    %v6134 = vadd.f32 %v5910, %v6133
    %6135 = vmatprep.mubr.bf16.mxu0 %v5928
    %6136 = vmatmul.mubr.bf16.gmra.mxu0 %v5927
    %v6137 = vpop.f32.mrf.mxu0
    %v6138 = vadd.f32 %v5906, %v6137
    %v6139 = vpop.f32.mrf.mxu0
    %v6140 = vadd.f32 %v5910, %v6139
    %v6141 = vpop.f32.mrf.mxu0
    %v6142 = vadd.f32 %v5906, %v6141
    %v6143 = vpop.f32.mrf.mxu0
    %v6144 = vadd.f32 %v5910, %v6143
    %6145 = vdwg.mxu0
    %v6146 = vpack.c.bf16 %v6132, %v6128
    %v6147 = vpack.c.bf16 %v6134, %v6130
    %v6148 = vpack.c.bf16 %v6142, %v6138
    %v6149 = vpack.c.bf16 %v6144, %v6140
    %v6150 = vmax.bf16 %v6146, 0
    %v6151 = vmax.bf16 %v6147, 0
    %v6152 = vmax.bf16 %v6148, 0
    %v6153 = vmax.bf16 %v6149, 0
    %v6154 = vadd.bf16 %v6150, %v5925
    %v6155 = vadd.bf16 %v6151, %v5926
    %v6156 = vadd.bf16 %v6152, %v5927
    %v6157 = vadd.bf16 %v6153, %v5928
    %v6162 = vunpack.c.l.b16 %v6154
    %v6163 = vunpack.c.l.b16 %v6155
    %v6164 = vunpack.c.h.b16 %v6154
    %v6165 = vunpack.c.h.b16 %v6155
    %v6166 = vunpack.c.l.b16 %v6156
    %v6167 = vunpack.c.l.b16 %v6157
    %v6168 = vunpack.c.h.b16 %v6156
    %v6169 = vunpack.c.h.b16 %v6157
    %v6170 = vpack.c.b16 %v6163, %v6162
    %v6171 = vpack.c.b16 %v6165, %v6164
    %v6172 = vpack.c.b16 %v6167, %v6166
    %v6173 = vpack.c.b16 %v6169, %v6168
    %6178 = vst [vmem:[#allocation2] sm:$0xff] %v6170
    %6179 = vst [vmem:[#allocation2 + $0x8] sm:$0xff] %v6171
    %6180 = vst [vmem:[#allocation2 + $0x10] sm:$0xff] %v6172
    %6181 = vst [vmem:[#allocation2 + $0x18] sm:$0xff] %v6173
    %v6182 = vld [vmem:[#allocation3] sm:$0xff]
    %v6183 = vld [vmem:[#allocation3 + $0x8] sm:$0xff]
    %v6184 = vld [vmem:[#allocation3 + $0x10] sm:$0xff]
    %v6185 = vld [vmem:[#allocation3 + $0x18] sm:$0xff]
    %v6190 = vunpack.c.l.b16 %v6182
    %v6191 = vunpack.c.h.b16 %v6182
    %v6192 = vunpack.c.l.b16 %v6183
    %v6193 = vunpack.c.h.b16 %v6183
    %v6194 = vunpack.c.l.b16 %v6184
    %v6195 = vunpack.c.h.b16 %v6184
    %v6196 = vunpack.c.l.b16 %v6185
    %v6197 = vunpack.c.h.b16 %v6185
    %v6198 = vpack.c.b16 %v6192, %v6190
    %v6199 = vpack.c.b16 %v6193, %v6191
    %v6200 = vpack.c.b16 %v6196, %v6194
    %v6201 = vpack.c.b16 %v6197, %v6195
    %6206 = vmatprep.subr.bf16.mxu0 %v6044
    %6207 = vmatpush1.bf16.msra.mxu0 %v6043
    %6208 = vmatprep.subr.bf16.mxu0 %v6042
    %6209 = vmatpush1.bf16.msra.mxu0 %v6041
    %6210 = vmatprep.subr.bf16.mxu0 %v6040
    %6211 = vmatpush1.bf16.msra.mxu0 %v6039
    %6212 = vmatprep.subr.bf16.mxu0 %v6038
    %6213 = vmatpush1.bf16.msra.mxu0 %v6037
    %6214 = vmatprep.subr.bf16.mxu0 %v6036
    %6215 = vmatpush1.bf16.msra.mxu0 %v6035
    %6216 = vmatprep.subr.bf16.mxu0 %v6034
    %6217 = vmatpush1.bf16.msra.mxu0 %v6033
    %6218 = vmatprep.subr.bf16.mxu0 %v6032
    %6219 = vmatpush1.bf16.msra.mxu0 %v6031
    %6220 = vmatprep.subr.bf16.mxu0 %v6030
    %6221 = vmatpush1.bf16.msra.mxu0 %v6029
    %6222 = vmatprep.subr.bf16.mxu0 %v6060
    %6223 = vmatpush2.bf16.msra.mxu0 %v6059
    %6224 = vmatprep.subr.bf16.mxu0 %v6058
    %6225 = vmatpush2.bf16.msra.mxu0 %v6057
    %6226 = vmatprep.subr.bf16.mxu0 %v6056
    %6227 = vmatpush2.bf16.msra.mxu0 %v6055
    %6228 = vmatprep.subr.bf16.mxu0 %v6054
    %6229 = vmatpush2.bf16.msra.mxu0 %v6053
    %6230 = vmatprep.subr.bf16.mxu0 %v6052
    %6231 = vmatpush2.bf16.msra.mxu0 %v6051
    %6232 = vmatprep.subr.bf16.mxu0 %v6050
    %6233 = vmatpush2.bf16.msra.mxu0 %v6049
    %6234 = vmatprep.subr.bf16.mxu0 %v6048
    %6235 = vmatpush2.bf16.msra.mxu0 %v6047
    %6236 = vmatprep.subr.bf16.mxu0 %v6046
    %6237 = vmatpush2.bf16.msra.mxu0 %v6045
    %6238 = vmatprep.mubr.bf16.mxu0 %v6199
    %6239 = vmatmul.mubr.bf16.gmra.mxu0 %v6198
    %v6240 = vpop.f32.mrf.mxu0
    %v6241 = vadd.f32 %v5906, %v6240
    %v6242 = vpop.f32.mrf.mxu0
    %v6243 = vadd.f32 %v5910, %v6242
    %v6244 = vpop.f32.mrf.mxu0
    %v6245 = vadd.f32 %v5906, %v6244
    %v6246 = vpop.f32.mrf.mxu0
    %v6247 = vadd.f32 %v5910, %v6246
    %6248 = vmatprep.mubr.bf16.mxu0 %v6201
    %6249 = vmatmul.mubr.bf16.gmra.mxu0 %v6200
    %v6250 = vpop.f32.mrf.mxu0
    %v6251 = vadd.f32 %v5906, %v6250
    %v6252 = vpop.f32.mrf.mxu0
    %v6253 = vadd.f32 %v5910, %v6252
    %v6254 = vpop.f32.mrf.mxu0
    %v6255 = vadd.f32 %v5906, %v6254
    %v6256 = vpop.f32.mrf.mxu0
    %v6257 = vadd.f32 %v5910, %v6256
    %6258 = vdwg.mxu0
    %v6259 = vpack.c.bf16 %v6245, %v6241
    %v6260 = vpack.c.bf16 %v6247, %v6243
    %v6261 = vpack.c.bf16 %v6255, %v6251
    %v6262 = vpack.c.bf16 %v6257, %v6253
    %v6263 = vmax.bf16 %v6259, 0
    %v6264 = vmax.bf16 %v6260, 0
    %v6265 = vmax.bf16 %v6261, 0
    %v6266 = vmax.bf16 %v6262, 0
    %v6267 = vadd.bf16 %v6263, %v6198
    %v6268 = vadd.bf16 %v6264, %v6199
    %v6269 = vadd.bf16 %v6265, %v6200
    %v6270 = vadd.bf16 %v6266, %v6201
    %v6275 = vunpack.c.l.b16 %v6267
    %v6276 = vunpack.c.l.b16 %v6268
    %v6277 = vunpack.c.h.b16 %v6267
    %v6278 = vunpack.c.h.b16 %v6268
    %v6279 = vunpack.c.l.b16 %v6269
    %v6280 = vunpack.c.l.b16 %v6270
    %v6281 = vunpack.c.h.b16 %v6269
    %v6282 = vunpack.c.h.b16 %v6270
    %v6283 = vpack.c.b16 %v6276, %v6275
    %v6284 = vpack.c.b16 %v6278, %v6277
    %v6285 = vpack.c.b16 %v6280, %v6279
    %v6286 = vpack.c.b16 %v6282, %v6281
    %6291 = vst [vmem:[#allocation3] sm:$0xff] %v6283
    %6292 = vst [vmem:[#allocation3 + $0x8] sm:$0xff] %v6284
    %6293 = vst [vmem:[#allocation3 + $0x10] sm:$0xff] %v6285
    %6294 = vst [vmem:[#allocation3 + $0x18] sm:$0xff] %v6286
    %s6295 = scalar_lea.vmem [#allocation10], 3328
    %v6296 = vld [vmem:[%s6295] sm:$0xff]
    %v6297 = vld [vmem:[%s6295 + $0x8] sm:$0xff]
    %v6298 = vld [vmem:[%s6295 + $0x10] sm:$0xff]
    %v6299 = vld [vmem:[%s6295 + $0x18] sm:$0xff]
    %v6300 = vld [vmem:[%s6295 + $0x20] sm:$0xff]
    %v6301 = vld [vmem:[%s6295 + $0x28] sm:$0xff]
    %v6302 = vld [vmem:[%s6295 + $0x30] sm:$0xff]
    %v6303 = vld [vmem:[%s6295 + $0x38] sm:$0xff]
    %v6304 = vld [vmem:[%s6295 + $0x40] sm:$0xff]
    %v6305 = vld [vmem:[%s6295 + $0x48] sm:$0xff]
    %v6306 = vld [vmem:[%s6295 + $0x50] sm:$0xff]
    %v6307 = vld [vmem:[%s6295 + $0x58] sm:$0xff]
    %v6308 = vld [vmem:[%s6295 + $0x60] sm:$0xff]
    %v6309 = vld [vmem:[%s6295 + $0x68] sm:$0xff]
    %v6310 = vld [vmem:[%s6295 + $0x70] sm:$0xff]
    %v6311 = vld [vmem:[%s6295 + $0x78] sm:$0xff]
    %v6312 = vld [vmem:[%s6295 + $0x80] sm:$0xff]
    %v6313 = vld [vmem:[%s6295 + $0x88] sm:$0xff]
    %v6314 = vld [vmem:[%s6295 + $0x90] sm:$0xff]
    %v6315 = vld [vmem:[%s6295 + $0x98] sm:$0xff]
    %v6316 = vld [vmem:[%s6295 + $0xa0] sm:$0xff]
    %v6317 = vld [vmem:[%s6295 + $0xa8] sm:$0xff]
    %v6318 = vld [vmem:[%s6295 + $0xb0] sm:$0xff]
    %v6319 = vld [vmem:[%s6295 + $0xb8] sm:$0xff]
    %v6320 = vld [vmem:[%s6295 + $0xc0] sm:$0xff]
    %v6321 = vld [vmem:[%s6295 + $0xc8] sm:$0xff]
    %v6322 = vld [vmem:[%s6295 + $0xd0] sm:$0xff]
    %v6323 = vld [vmem:[%s6295 + $0xd8] sm:$0xff]
    %v6324 = vld [vmem:[%s6295 + $0xe0] sm:$0xff]
    %v6325 = vld [vmem:[%s6295 + $0xe8] sm:$0xff]
    %v6326 = vld [vmem:[%s6295 + $0xf0] sm:$0xff]
    %v6327 = vld [vmem:[%s6295 + $0xf8] sm:$0xff]
    %s6328 = scalar_lea.vmem [#allocation12], 26
    %v6329 = vld [vmem:[%s6328] sm:$0x3]
    %v6330 = vld [vmem:[#allocation2] sm:$0xff]
    %v6331 = vld [vmem:[#allocation2 + $0x8] sm:$0xff]
    %v6332 = vld [vmem:[#allocation2 + $0x10] sm:$0xff]
    %v6333 = vld [vmem:[#allocation2 + $0x18] sm:$0xff]
    %v6335 = vlaneseq
    %v6336 = vshrl.u32 %v6335, 7
    %v6337 = vsub.s32 0, %v6336
    %v6338 = vrot.slane %v6329, %v6337
    %v6339 = vlaneseq
    %v6340 = vshrl.u32 %v6339, 7
    %v6341 = vsub.s32 1, %v6340
    %v6342 = vrot.slane %v6329, %v6341
    %v6349 = vunpack.c.l.b16 %v6330
    %v6350 = vunpack.c.h.b16 %v6330
    %v6351 = vunpack.c.l.b16 %v6331
    %v6352 = vunpack.c.h.b16 %v6331
    %v6353 = vunpack.c.l.b16 %v6332
    %v6354 = vunpack.c.h.b16 %v6332
    %v6355 = vunpack.c.l.b16 %v6333
    %v6356 = vunpack.c.h.b16 %v6333
    %v6357 = vpack.c.b16 %v6351, %v6349
    %v6358 = vpack.c.b16 %v6352, %v6350
    %v6359 = vpack.c.b16 %v6355, %v6353
    %v6360 = vpack.c.b16 %v6356, %v6354
    %v6397 = vunpack.c.l.b16 %v6296
    %v6398 = vunpack.c.h.b16 %v6296
    %v6399 = vunpack.c.l.b16 %v6297
    %v6400 = vunpack.c.h.b16 %v6297
    %v6401 = vunpack.c.l.b16 %v6298
    %v6402 = vunpack.c.h.b16 %v6298
    %v6403 = vunpack.c.l.b16 %v6299
    %v6404 = vunpack.c.h.b16 %v6299
    %v6405 = vunpack.c.l.b16 %v6300
    %v6406 = vunpack.c.h.b16 %v6300
    %v6407 = vunpack.c.l.b16 %v6301
    %v6408 = vunpack.c.h.b16 %v6301
    %v6409 = vunpack.c.l.b16 %v6302
    %v6410 = vunpack.c.h.b16 %v6302
    %v6411 = vunpack.c.l.b16 %v6303
    %v6412 = vunpack.c.h.b16 %v6303
    %v6413 = vunpack.c.l.b16 %v6304
    %v6414 = vunpack.c.h.b16 %v6304
    %v6415 = vunpack.c.l.b16 %v6305
    %v6416 = vunpack.c.h.b16 %v6305
    %v6417 = vunpack.c.l.b16 %v6306
    %v6418 = vunpack.c.h.b16 %v6306
    %v6419 = vunpack.c.l.b16 %v6307
    %v6420 = vunpack.c.h.b16 %v6307
    %v6421 = vunpack.c.l.b16 %v6308
    %v6422 = vunpack.c.h.b16 %v6308
    %v6423 = vunpack.c.l.b16 %v6309
    %v6424 = vunpack.c.h.b16 %v6309
    %v6425 = vunpack.c.l.b16 %v6310
    %v6426 = vunpack.c.h.b16 %v6310
    %v6427 = vunpack.c.l.b16 %v6311
    %v6428 = vunpack.c.h.b16 %v6311
    %v6429 = vunpack.c.l.b16 %v6312
    %v6430 = vunpack.c.h.b16 %v6312
    %v6431 = vunpack.c.l.b16 %v6313
    %v6432 = vunpack.c.h.b16 %v6313
    %v6433 = vunpack.c.l.b16 %v6314
    %v6434 = vunpack.c.h.b16 %v6314
    %v6435 = vunpack.c.l.b16 %v6315
    %v6436 = vunpack.c.h.b16 %v6315
    %v6437 = vunpack.c.l.b16 %v6316
    %v6438 = vunpack.c.h.b16 %v6316
    %v6439 = vunpack.c.l.b16 %v6317
    %v6440 = vunpack.c.h.b16 %v6317
    %v6441 = vunpack.c.l.b16 %v6318
    %v6442 = vunpack.c.h.b16 %v6318
    %v6443 = vunpack.c.l.b16 %v6319
    %v6444 = vunpack.c.h.b16 %v6319
    %v6445 = vunpack.c.l.b16 %v6320
    %v6446 = vunpack.c.h.b16 %v6320
    %v6447 = vunpack.c.l.b16 %v6321
    %v6448 = vunpack.c.h.b16 %v6321
    %v6449 = vunpack.c.l.b16 %v6322
    %v6450 = vunpack.c.h.b16 %v6322
    %v6451 = vunpack.c.l.b16 %v6323
    %v6452 = vunpack.c.h.b16 %v6323
    %v6453 = vunpack.c.l.b16 %v6324
    %v6454 = vunpack.c.h.b16 %v6324
    %v6455 = vunpack.c.l.b16 %v6325
    %v6456 = vunpack.c.h.b16 %v6325
    %v6457 = vunpack.c.l.b16 %v6326
    %v6458 = vunpack.c.h.b16 %v6326
    %v6459 = vunpack.c.l.b16 %v6327
    %v6460 = vunpack.c.h.b16 %v6327
    %v6461 = vpack.c.b16 %v6399, %v6397
    %v6462 = vpack.c.b16 %v6400, %v6398
    %v6463 = vpack.c.b16 %v6403, %v6401
    %v6464 = vpack.c.b16 %v6404, %v6402
    %v6465 = vpack.c.b16 %v6407, %v6405
    %v6466 = vpack.c.b16 %v6408, %v6406
    %v6467 = vpack.c.b16 %v6411, %v6409
    %v6468 = vpack.c.b16 %v6412, %v6410
    %v6469 = vpack.c.b16 %v6415, %v6413
    %v6470 = vpack.c.b16 %v6416, %v6414
    %v6471 = vpack.c.b16 %v6419, %v6417
    %v6472 = vpack.c.b16 %v6420, %v6418
    %v6473 = vpack.c.b16 %v6423, %v6421
    %v6474 = vpack.c.b16 %v6424, %v6422
    %v6475 = vpack.c.b16 %v6427, %v6425
    %v6476 = vpack.c.b16 %v6428, %v6426
    %v6477 = vpack.c.b16 %v6431, %v6429
    %v6478 = vpack.c.b16 %v6432, %v6430
    %v6479 = vpack.c.b16 %v6435, %v6433
    %v6480 = vpack.c.b16 %v6436, %v6434
    %v6481 = vpack.c.b16 %v6439, %v6437
    %v6482 = vpack.c.b16 %v6440, %v6438
    %v6483 = vpack.c.b16 %v6443, %v6441
    %v6484 = vpack.c.b16 %v6444, %v6442
    %v6485 = vpack.c.b16 %v6447, %v6445
    %v6486 = vpack.c.b16 %v6448, %v6446
    %v6487 = vpack.c.b16 %v6451, %v6449
    %v6488 = vpack.c.b16 %v6452, %v6450
    %v6489 = vpack.c.b16 %v6455, %v6453
    %v6490 = vpack.c.b16 %v6456, %v6454
    %v6491 = vpack.c.b16 %v6459, %v6457
    %v6492 = vpack.c.b16 %v6460, %v6458
    %6525 = vmatprep.subr.bf16.mxu0 %v6476
    %6526 = vmatpush1.bf16.msra.mxu0 %v6475
    %6527 = vmatprep.subr.bf16.mxu0 %v6474
    %6528 = vmatpush1.bf16.msra.mxu0 %v6473
    %6529 = vmatprep.subr.bf16.mxu0 %v6472
    %6530 = vmatpush1.bf16.msra.mxu0 %v6471
    %6531 = vmatprep.subr.bf16.mxu0 %v6470
    %6532 = vmatpush1.bf16.msra.mxu0 %v6469
    %6533 = vmatprep.subr.bf16.mxu0 %v6468
    %6534 = vmatpush1.bf16.msra.mxu0 %v6467
    %6535 = vmatprep.subr.bf16.mxu0 %v6466
    %6536 = vmatpush1.bf16.msra.mxu0 %v6465
    %6537 = vmatprep.subr.bf16.mxu0 %v6464
    %6538 = vmatpush1.bf16.msra.mxu0 %v6463
    %6539 = vmatprep.subr.bf16.mxu0 %v6462
    %6540 = vmatpush1.bf16.msra.mxu0 %v6461
    %6541 = vmatprep.subr.bf16.mxu0 %v6492
    %6542 = vmatpush2.bf16.msra.mxu0 %v6491
    %6543 = vmatprep.subr.bf16.mxu0 %v6490
    %6544 = vmatpush2.bf16.msra.mxu0 %v6489
    %6545 = vmatprep.subr.bf16.mxu0 %v6488
    %6546 = vmatpush2.bf16.msra.mxu0 %v6487
    %6547 = vmatprep.subr.bf16.mxu0 %v6486
    %6548 = vmatpush2.bf16.msra.mxu0 %v6485
    %6549 = vmatprep.subr.bf16.mxu0 %v6484
    %6550 = vmatpush2.bf16.msra.mxu0 %v6483
    %6551 = vmatprep.subr.bf16.mxu0 %v6482
    %6552 = vmatpush2.bf16.msra.mxu0 %v6481
    %6553 = vmatprep.subr.bf16.mxu0 %v6480
    %6554 = vmatpush2.bf16.msra.mxu0 %v6479
    %6555 = vmatprep.subr.bf16.mxu0 %v6478
    %6556 = vmatpush2.bf16.msra.mxu0 %v6477
    %6557 = vmatprep.mubr.bf16.mxu0 %v6358
    %6558 = vmatmul.mubr.bf16.gmra.mxu0 %v6357
    %v6559 = vpop.f32.mrf.mxu0
    %v6560 = vadd.f32 %v6338, %v6559
    %v6561 = vpop.f32.mrf.mxu0
    %v6562 = vadd.f32 %v6342, %v6561
    %v6563 = vpop.f32.mrf.mxu0
    %v6564 = vadd.f32 %v6338, %v6563
    %v6565 = vpop.f32.mrf.mxu0
    %v6566 = vadd.f32 %v6342, %v6565
    %6567 = vmatprep.mubr.bf16.mxu0 %v6360
    %6568 = vmatmul.mubr.bf16.gmra.mxu0 %v6359
    %v6569 = vpop.f32.mrf.mxu0
    %v6570 = vadd.f32 %v6338, %v6569
    %v6571 = vpop.f32.mrf.mxu0
    %v6572 = vadd.f32 %v6342, %v6571
    %v6573 = vpop.f32.mrf.mxu0
    %v6574 = vadd.f32 %v6338, %v6573
    %v6575 = vpop.f32.mrf.mxu0
    %v6576 = vadd.f32 %v6342, %v6575
    %6577 = vdwg.mxu0
    %v6578 = vpack.c.bf16 %v6564, %v6560
    %v6579 = vpack.c.bf16 %v6566, %v6562
    %v6580 = vpack.c.bf16 %v6574, %v6570
    %v6581 = vpack.c.bf16 %v6576, %v6572
    %v6582 = vmax.bf16 %v6578, 0
    %v6583 = vmax.bf16 %v6579, 0
    %v6584 = vmax.bf16 %v6580, 0
    %v6585 = vmax.bf16 %v6581, 0
    %v6586 = vadd.bf16 %v6582, %v6357
    %v6587 = vadd.bf16 %v6583, %v6358
    %v6588 = vadd.bf16 %v6584, %v6359
    %v6589 = vadd.bf16 %v6585, %v6360
    %v6594 = vunpack.c.l.b16 %v6586
    %v6595 = vunpack.c.l.b16 %v6587
    %v6596 = vunpack.c.h.b16 %v6586
    %v6597 = vunpack.c.h.b16 %v6587
    %v6598 = vunpack.c.l.b16 %v6588
    %v6599 = vunpack.c.l.b16 %v6589
    %v6600 = vunpack.c.h.b16 %v6588
    %v6601 = vunpack.c.h.b16 %v6589
    %v6602 = vpack.c.b16 %v6595, %v6594
    %v6603 = vpack.c.b16 %v6597, %v6596
    %v6604 = vpack.c.b16 %v6599, %v6598
    %v6605 = vpack.c.b16 %v6601, %v6600
    %6610 = vst [vmem:[#allocation2] sm:$0xff] %v6602
    %6611 = vst [vmem:[#allocation2 + $0x8] sm:$0xff] %v6603
    %6612 = vst [vmem:[#allocation2 + $0x10] sm:$0xff] %v6604
    %6613 = vst [vmem:[#allocation2 + $0x18] sm:$0xff] %v6605
    %v6614 = vld [vmem:[#allocation3] sm:$0xff]
    %v6615 = vld [vmem:[#allocation3 + $0x8] sm:$0xff]
    %v6616 = vld [vmem:[#allocation3 + $0x10] sm:$0xff]
    %v6617 = vld [vmem:[#allocation3 + $0x18] sm:$0xff]
    %v6622 = vunpack.c.l.b16 %v6614
    %v6623 = vunpack.c.h.b16 %v6614
    %v6624 = vunpack.c.l.b16 %v6615
    %v6625 = vunpack.c.h.b16 %v6615
    %v6626 = vunpack.c.l.b16 %v6616
    %v6627 = vunpack.c.h.b16 %v6616
    %v6628 = vunpack.c.l.b16 %v6617
    %v6629 = vunpack.c.h.b16 %v6617
    %v6630 = vpack.c.b16 %v6624, %v6622
    %v6631 = vpack.c.b16 %v6625, %v6623
    %v6632 = vpack.c.b16 %v6628, %v6626
    %v6633 = vpack.c.b16 %v6629, %v6627
    %6638 = vmatprep.subr.bf16.mxu0 %v6476
    %6639 = vmatpush1.bf16.msra.mxu0 %v6475
    %6640 = vmatprep.subr.bf16.mxu0 %v6474
    %6641 = vmatpush1.bf16.msra.mxu0 %v6473
    %6642 = vmatprep.subr.bf16.mxu0 %v6472
    %6643 = vmatpush1.bf16.msra.mxu0 %v6471
    %6644 = vmatprep.subr.bf16.mxu0 %v6470
    %6645 = vmatpush1.bf16.msra.mxu0 %v6469
    %6646 = vmatprep.subr.bf16.mxu0 %v6468
    %6647 = vmatpush1.bf16.msra.mxu0 %v6467
    %6648 = vmatprep.subr.bf16.mxu0 %v6466
    %6649 = vmatpush1.bf16.msra.mxu0 %v6465
    %6650 = vmatprep.subr.bf16.mxu0 %v6464
    %6651 = vmatpush1.bf16.msra.mxu0 %v6463
    %6652 = vmatprep.subr.bf16.mxu0 %v6462
    %6653 = vmatpush1.bf16.msra.mxu0 %v6461
    %6654 = vmatprep.subr.bf16.mxu0 %v6492
    %6655 = vmatpush2.bf16.msra.mxu0 %v6491
    %6656 = vmatprep.subr.bf16.mxu0 %v6490
    %6657 = vmatpush2.bf16.msra.mxu0 %v6489
    %6658 = vmatprep.subr.bf16.mxu0 %v6488
    %6659 = vmatpush2.bf16.msra.mxu0 %v6487
    %6660 = vmatprep.subr.bf16.mxu0 %v6486
    %6661 = vmatpush2.bf16.msra.mxu0 %v6485
    %6662 = vmatprep.subr.bf16.mxu0 %v6484
    %6663 = vmatpush2.bf16.msra.mxu0 %v6483
    %6664 = vmatprep.subr.bf16.mxu0 %v6482
    %6665 = vmatpush2.bf16.msra.mxu0 %v6481
    %6666 = vmatprep.subr.bf16.mxu0 %v6480
    %6667 = vmatpush2.bf16.msra.mxu0 %v6479
    %6668 = vmatprep.subr.bf16.mxu0 %v6478
    %6669 = vmatpush2.bf16.msra.mxu0 %v6477
    %6670 = vmatprep.mubr.bf16.mxu0 %v6631
    %6671 = vmatmul.mubr.bf16.gmra.mxu0 %v6630
    %v6672 = vpop.f32.mrf.mxu0
    %v6673 = vadd.f32 %v6338, %v6672
    %v6674 = vpop.f32.mrf.mxu0
    %v6675 = vadd.f32 %v6342, %v6674
    %v6676 = vpop.f32.mrf.mxu0
    %v6677 = vadd.f32 %v6338, %v6676
    %v6678 = vpop.f32.mrf.mxu0
    %v6679 = vadd.f32 %v6342, %v6678
    %6680 = vmatprep.mubr.bf16.mxu0 %v6633
    %6681 = vmatmul.mubr.bf16.gmra.mxu0 %v6632
    %v6682 = vpop.f32.mrf.mxu0
    %v6683 = vadd.f32 %v6338, %v6682
    %v6684 = vpop.f32.mrf.mxu0
    %v6685 = vadd.f32 %v6342, %v6684
    %v6686 = vpop.f32.mrf.mxu0
    %v6687 = vadd.f32 %v6338, %v6686
    %v6688 = vpop.f32.mrf.mxu0
    %v6689 = vadd.f32 %v6342, %v6688
    %6690 = vdwg.mxu0
    %v6691 = vpack.c.bf16 %v6677, %v6673
    %v6692 = vpack.c.bf16 %v6679, %v6675
    %v6693 = vpack.c.bf16 %v6687, %v6683
    %v6694 = vpack.c.bf16 %v6689, %v6685
    %v6695 = vmax.bf16 %v6691, 0
    %v6696 = vmax.bf16 %v6692, 0
    %v6697 = vmax.bf16 %v6693, 0
    %v6698 = vmax.bf16 %v6694, 0
    %v6699 = vadd.bf16 %v6695, %v6630
    %v6700 = vadd.bf16 %v6696, %v6631
    %v6701 = vadd.bf16 %v6697, %v6632
    %v6702 = vadd.bf16 %v6698, %v6633
    %v6707 = vunpack.c.l.b16 %v6699
    %v6708 = vunpack.c.l.b16 %v6700
    %v6709 = vunpack.c.h.b16 %v6699
    %v6710 = vunpack.c.h.b16 %v6700
    %v6711 = vunpack.c.l.b16 %v6701
    %v6712 = vunpack.c.l.b16 %v6702
    %v6713 = vunpack.c.h.b16 %v6701
    %v6714 = vunpack.c.h.b16 %v6702
    %v6715 = vpack.c.b16 %v6708, %v6707
    %v6716 = vpack.c.b16 %v6710, %v6709
    %v6717 = vpack.c.b16 %v6712, %v6711
    %v6718 = vpack.c.b16 %v6714, %v6713
    %6723 = vst [vmem:[#allocation3] sm:$0xff] %v6715
    %6724 = vst [vmem:[#allocation3 + $0x8] sm:$0xff] %v6716
    %6725 = vst [vmem:[#allocation3 + $0x10] sm:$0xff] %v6717
    %6726 = vst [vmem:[#allocation3 + $0x18] sm:$0xff] %v6718
    %s6727 = scalar_lea.vmem [#allocation10], 3584
    %v6728 = vld [vmem:[%s6727] sm:$0xff]
    %v6729 = vld [vmem:[%s6727 + $0x8] sm:$0xff]
    %v6730 = vld [vmem:[%s6727 + $0x10] sm:$0xff]
    %v6731 = vld [vmem:[%s6727 + $0x18] sm:$0xff]
    %v6732 = vld [vmem:[%s6727 + $0x20] sm:$0xff]
    %v6733 = vld [vmem:[%s6727 + $0x28] sm:$0xff]
    %v6734 = vld [vmem:[%s6727 + $0x30] sm:$0xff]
    %v6735 = vld [vmem:[%s6727 + $0x38] sm:$0xff]
    %v6736 = vld [vmem:[%s6727 + $0x40] sm:$0xff]
    %v6737 = vld [vmem:[%s6727 + $0x48] sm:$0xff]
    %v6738 = vld [vmem:[%s6727 + $0x50] sm:$0xff]
    %v6739 = vld [vmem:[%s6727 + $0x58] sm:$0xff]
    %v6740 = vld [vmem:[%s6727 + $0x60] sm:$0xff]
    %v6741 = vld [vmem:[%s6727 + $0x68] sm:$0xff]
    %v6742 = vld [vmem:[%s6727 + $0x70] sm:$0xff]
    %v6743 = vld [vmem:[%s6727 + $0x78] sm:$0xff]
    %v6744 = vld [vmem:[%s6727 + $0x80] sm:$0xff]
    %v6745 = vld [vmem:[%s6727 + $0x88] sm:$0xff]
    %v6746 = vld [vmem:[%s6727 + $0x90] sm:$0xff]
    %v6747 = vld [vmem:[%s6727 + $0x98] sm:$0xff]
    %v6748 = vld [vmem:[%s6727 + $0xa0] sm:$0xff]
    %v6749 = vld [vmem:[%s6727 + $0xa8] sm:$0xff]
    %v6750 = vld [vmem:[%s6727 + $0xb0] sm:$0xff]
    %v6751 = vld [vmem:[%s6727 + $0xb8] sm:$0xff]
    %v6752 = vld [vmem:[%s6727 + $0xc0] sm:$0xff]
    %v6753 = vld [vmem:[%s6727 + $0xc8] sm:$0xff]
    %v6754 = vld [vmem:[%s6727 + $0xd0] sm:$0xff]
    %v6755 = vld [vmem:[%s6727 + $0xd8] sm:$0xff]
    %v6756 = vld [vmem:[%s6727 + $0xe0] sm:$0xff]
    %v6757 = vld [vmem:[%s6727 + $0xe8] sm:$0xff]
    %v6758 = vld [vmem:[%s6727 + $0xf0] sm:$0xff]
    %v6759 = vld [vmem:[%s6727 + $0xf8] sm:$0xff]
    %s6760 = scalar_lea.vmem [#allocation12], 28
    %v6761 = vld [vmem:[%s6760] sm:$0x3]
    %v6762 = vld [vmem:[#allocation2] sm:$0xff]
    %v6763 = vld [vmem:[#allocation2 + $0x8] sm:$0xff]
    %v6764 = vld [vmem:[#allocation2 + $0x10] sm:$0xff]
    %v6765 = vld [vmem:[#allocation2 + $0x18] sm:$0xff]
    %v6767 = vlaneseq
    %v6768 = vshrl.u32 %v6767, 7
    %v6769 = vsub.s32 0, %v6768
    %v6770 = vrot.slane %v6761, %v6769
    %v6771 = vlaneseq
    %v6772 = vshrl.u32 %v6771, 7
    %v6773 = vsub.s32 1, %v6772
    %v6774 = vrot.slane %v6761, %v6773
    %v6781 = vunpack.c.l.b16 %v6762
    %v6782 = vunpack.c.h.b16 %v6762
    %v6783 = vunpack.c.l.b16 %v6763
    %v6784 = vunpack.c.h.b16 %v6763
    %v6785 = vunpack.c.l.b16 %v6764
    %v6786 = vunpack.c.h.b16 %v6764
    %v6787 = vunpack.c.l.b16 %v6765
    %v6788 = vunpack.c.h.b16 %v6765
    %v6789 = vpack.c.b16 %v6783, %v6781
    %v6790 = vpack.c.b16 %v6784, %v6782
    %v6791 = vpack.c.b16 %v6787, %v6785
    %v6792 = vpack.c.b16 %v6788, %v6786
    %v6829 = vunpack.c.l.b16 %v6728
    %v6830 = vunpack.c.h.b16 %v6728
    %v6831 = vunpack.c.l.b16 %v6729
    %v6832 = vunpack.c.h.b16 %v6729
    %v6833 = vunpack.c.l.b16 %v6730
    %v6834 = vunpack.c.h.b16 %v6730
    %v6835 = vunpack.c.l.b16 %v6731
    %v6836 = vunpack.c.h.b16 %v6731
    %v6837 = vunpack.c.l.b16 %v6732
    %v6838 = vunpack.c.h.b16 %v6732
    %v6839 = vunpack.c.l.b16 %v6733
    %v6840 = vunpack.c.h.b16 %v6733
    %v6841 = vunpack.c.l.b16 %v6734
    %v6842 = vunpack.c.h.b16 %v6734
    %v6843 = vunpack.c.l.b16 %v6735
    %v6844 = vunpack.c.h.b16 %v6735
    %v6845 = vunpack.c.l.b16 %v6736
    %v6846 = vunpack.c.h.b16 %v6736
    %v6847 = vunpack.c.l.b16 %v6737
    %v6848 = vunpack.c.h.b16 %v6737
    %v6849 = vunpack.c.l.b16 %v6738
    %v6850 = vunpack.c.h.b16 %v6738
    %v6851 = vunpack.c.l.b16 %v6739
    %v6852 = vunpack.c.h.b16 %v6739
    %v6853 = vunpack.c.l.b16 %v6740
    %v6854 = vunpack.c.h.b16 %v6740
    %v6855 = vunpack.c.l.b16 %v6741
    %v6856 = vunpack.c.h.b16 %v6741
    %v6857 = vunpack.c.l.b16 %v6742
    %v6858 = vunpack.c.h.b16 %v6742
    %v6859 = vunpack.c.l.b16 %v6743
    %v6860 = vunpack.c.h.b16 %v6743
    %v6861 = vunpack.c.l.b16 %v6744
    %v6862 = vunpack.c.h.b16 %v6744
    %v6863 = vunpack.c.l.b16 %v6745
    %v6864 = vunpack.c.h.b16 %v6745
    %v6865 = vunpack.c.l.b16 %v6746
    %v6866 = vunpack.c.h.b16 %v6746
    %v6867 = vunpack.c.l.b16 %v6747
    %v6868 = vunpack.c.h.b16 %v6747
    %v6869 = vunpack.c.l.b16 %v6748
    %v6870 = vunpack.c.h.b16 %v6748
    %v6871 = vunpack.c.l.b16 %v6749
    %v6872 = vunpack.c.h.b16 %v6749
    %v6873 = vunpack.c.l.b16 %v6750
    %v6874 = vunpack.c.h.b16 %v6750
    %v6875 = vunpack.c.l.b16 %v6751
    %v6876 = vunpack.c.h.b16 %v6751
    %v6877 = vunpack.c.l.b16 %v6752
    %v6878 = vunpack.c.h.b16 %v6752
    %v6879 = vunpack.c.l.b16 %v6753
    %v6880 = vunpack.c.h.b16 %v6753
    %v6881 = vunpack.c.l.b16 %v6754
    %v6882 = vunpack.c.h.b16 %v6754
    %v6883 = vunpack.c.l.b16 %v6755
    %v6884 = vunpack.c.h.b16 %v6755
    %v6885 = vunpack.c.l.b16 %v6756
    %v6886 = vunpack.c.h.b16 %v6756
    %v6887 = vunpack.c.l.b16 %v6757
    %v6888 = vunpack.c.h.b16 %v6757
    %v6889 = vunpack.c.l.b16 %v6758
    %v6890 = vunpack.c.h.b16 %v6758
    %v6891 = vunpack.c.l.b16 %v6759
    %v6892 = vunpack.c.h.b16 %v6759
    %v6893 = vpack.c.b16 %v6831, %v6829
    %v6894 = vpack.c.b16 %v6832, %v6830
    %v6895 = vpack.c.b16 %v6835, %v6833
    %v6896 = vpack.c.b16 %v6836, %v6834
    %v6897 = vpack.c.b16 %v6839, %v6837
    %v6898 = vpack.c.b16 %v6840, %v6838
    %v6899 = vpack.c.b16 %v6843, %v6841
    %v6900 = vpack.c.b16 %v6844, %v6842
    %v6901 = vpack.c.b16 %v6847, %v6845
    %v6902 = vpack.c.b16 %v6848, %v6846
    %v6903 = vpack.c.b16 %v6851, %v6849
    %v6904 = vpack.c.b16 %v6852, %v6850
    %v6905 = vpack.c.b16 %v6855, %v6853
    %v6906 = vpack.c.b16 %v6856, %v6854
    %v6907 = vpack.c.b16 %v6859, %v6857
    %v6908 = vpack.c.b16 %v6860, %v6858
    %v6909 = vpack.c.b16 %v6863, %v6861
    %v6910 = vpack.c.b16 %v6864, %v6862
    %v6911 = vpack.c.b16 %v6867, %v6865
    %v6912 = vpack.c.b16 %v6868, %v6866
    %v6913 = vpack.c.b16 %v6871, %v6869
    %v6914 = vpack.c.b16 %v6872, %v6870
    %v6915 = vpack.c.b16 %v6875, %v6873
    %v6916 = vpack.c.b16 %v6876, %v6874
    %v6917 = vpack.c.b16 %v6879, %v6877
    %v6918 = vpack.c.b16 %v6880, %v6878
    %v6919 = vpack.c.b16 %v6883, %v6881
    %v6920 = vpack.c.b16 %v6884, %v6882
    %v6921 = vpack.c.b16 %v6887, %v6885
    %v6922 = vpack.c.b16 %v6888, %v6886
    %v6923 = vpack.c.b16 %v6891, %v6889
    %v6924 = vpack.c.b16 %v6892, %v6890
    %6957 = vmatprep.subr.bf16.mxu0 %v6908
    %6958 = vmatpush1.bf16.msra.mxu0 %v6907
    %6959 = vmatprep.subr.bf16.mxu0 %v6906
    %6960 = vmatpush1.bf16.msra.mxu0 %v6905
    %6961 = vmatprep.subr.bf16.mxu0 %v6904
    %6962 = vmatpush1.bf16.msra.mxu0 %v6903
    %6963 = vmatprep.subr.bf16.mxu0 %v6902
    %6964 = vmatpush1.bf16.msra.mxu0 %v6901
    %6965 = vmatprep.subr.bf16.mxu0 %v6900
    %6966 = vmatpush1.bf16.msra.mxu0 %v6899
    %6967 = vmatprep.subr.bf16.mxu0 %v6898
    %6968 = vmatpush1.bf16.msra.mxu0 %v6897
    %6969 = vmatprep.subr.bf16.mxu0 %v6896
    %6970 = vmatpush1.bf16.msra.mxu0 %v6895
    %6971 = vmatprep.subr.bf16.mxu0 %v6894
    %6972 = vmatpush1.bf16.msra.mxu0 %v6893
    %6973 = vmatprep.subr.bf16.mxu0 %v6924
    %6974 = vmatpush2.bf16.msra.mxu0 %v6923
    %6975 = vmatprep.subr.bf16.mxu0 %v6922
    %6976 = vmatpush2.bf16.msra.mxu0 %v6921
    %6977 = vmatprep.subr.bf16.mxu0 %v6920
    %6978 = vmatpush2.bf16.msra.mxu0 %v6919
    %6979 = vmatprep.subr.bf16.mxu0 %v6918
    %6980 = vmatpush2.bf16.msra.mxu0 %v6917
    %6981 = vmatprep.subr.bf16.mxu0 %v6916
    %6982 = vmatpush2.bf16.msra.mxu0 %v6915
    %6983 = vmatprep.subr.bf16.mxu0 %v6914
    %6984 = vmatpush2.bf16.msra.mxu0 %v6913
    %6985 = vmatprep.subr.bf16.mxu0 %v6912
    %6986 = vmatpush2.bf16.msra.mxu0 %v6911
    %6987 = vmatprep.subr.bf16.mxu0 %v6910
    %6988 = vmatpush2.bf16.msra.mxu0 %v6909
    %6989 = vmatprep.mubr.bf16.mxu0 %v6790
    %6990 = vmatmul.mubr.bf16.gmra.mxu0 %v6789
    %v6991 = vpop.f32.mrf.mxu0
    %v6992 = vadd.f32 %v6770, %v6991
    %v6993 = vpop.f32.mrf.mxu0
    %v6994 = vadd.f32 %v6774, %v6993
    %v6995 = vpop.f32.mrf.mxu0
    %v6996 = vadd.f32 %v6770, %v6995
    %v6997 = vpop.f32.mrf.mxu0
    %v6998 = vadd.f32 %v6774, %v6997
    %6999 = vmatprep.mubr.bf16.mxu0 %v6792
    %7000 = vmatmul.mubr.bf16.gmra.mxu0 %v6791
    %v7001 = vpop.f32.mrf.mxu0
    %v7002 = vadd.f32 %v6770, %v7001
    %v7003 = vpop.f32.mrf.mxu0
    %v7004 = vadd.f32 %v6774, %v7003
    %v7005 = vpop.f32.mrf.mxu0
    %v7006 = vadd.f32 %v6770, %v7005
    %v7007 = vpop.f32.mrf.mxu0
    %v7008 = vadd.f32 %v6774, %v7007
    %7009 = vdwg.mxu0
    %v7010 = vpack.c.bf16 %v6996, %v6992
    %v7011 = vpack.c.bf16 %v6998, %v6994
    %v7012 = vpack.c.bf16 %v7006, %v7002
    %v7013 = vpack.c.bf16 %v7008, %v7004
    %v7014 = vmax.bf16 %v7010, 0
    %v7015 = vmax.bf16 %v7011, 0
    %v7016 = vmax.bf16 %v7012, 0
    %v7017 = vmax.bf16 %v7013, 0
    %v7018 = vadd.bf16 %v7014, %v6789
    %v7019 = vadd.bf16 %v7015, %v6790
    %v7020 = vadd.bf16 %v7016, %v6791
    %v7021 = vadd.bf16 %v7017, %v6792
    %v7026 = vunpack.c.l.b16 %v7018
    %v7027 = vunpack.c.l.b16 %v7019
    %v7028 = vunpack.c.h.b16 %v7018
    %v7029 = vunpack.c.h.b16 %v7019
    %v7030 = vunpack.c.l.b16 %v7020
    %v7031 = vunpack.c.l.b16 %v7021
    %v7032 = vunpack.c.h.b16 %v7020
    %v7033 = vunpack.c.h.b16 %v7021
    %v7034 = vpack.c.b16 %v7027, %v7026
    %v7035 = vpack.c.b16 %v7029, %v7028
    %v7036 = vpack.c.b16 %v7031, %v7030
    %v7037 = vpack.c.b16 %v7033, %v7032
    %7042 = vst [vmem:[#allocation2] sm:$0xff] %v7034
    %7043 = vst [vmem:[#allocation2 + $0x8] sm:$0xff] %v7035
    %7044 = vst [vmem:[#allocation2 + $0x10] sm:$0xff] %v7036
    %7045 = vst [vmem:[#allocation2 + $0x18] sm:$0xff] %v7037
    %v7046 = vld [vmem:[#allocation3] sm:$0xff]
    %v7047 = vld [vmem:[#allocation3 + $0x8] sm:$0xff]
    %v7048 = vld [vmem:[#allocation3 + $0x10] sm:$0xff]
    %v7049 = vld [vmem:[#allocation3 + $0x18] sm:$0xff]
    %v7054 = vunpack.c.l.b16 %v7046
    %v7055 = vunpack.c.h.b16 %v7046
    %v7056 = vunpack.c.l.b16 %v7047
    %v7057 = vunpack.c.h.b16 %v7047
    %v7058 = vunpack.c.l.b16 %v7048
    %v7059 = vunpack.c.h.b16 %v7048
    %v7060 = vunpack.c.l.b16 %v7049
    %v7061 = vunpack.c.h.b16 %v7049
    %v7062 = vpack.c.b16 %v7056, %v7054
    %v7063 = vpack.c.b16 %v7057, %v7055
    %v7064 = vpack.c.b16 %v7060, %v7058
    %v7065 = vpack.c.b16 %v7061, %v7059
    %7070 = vmatprep.subr.bf16.mxu0 %v6908
    %7071 = vmatpush1.bf16.msra.mxu0 %v6907
    %7072 = vmatprep.subr.bf16.mxu0 %v6906
    %7073 = vmatpush1.bf16.msra.mxu0 %v6905
    %7074 = vmatprep.subr.bf16.mxu0 %v6904
    %7075 = vmatpush1.bf16.msra.mxu0 %v6903
    %7076 = vmatprep.subr.bf16.mxu0 %v6902
    %7077 = vmatpush1.bf16.msra.mxu0 %v6901
    %7078 = vmatprep.subr.bf16.mxu0 %v6900
    %7079 = vmatpush1.bf16.msra.mxu0 %v6899
    %7080 = vmatprep.subr.bf16.mxu0 %v6898
    %7081 = vmatpush1.bf16.msra.mxu0 %v6897
    %7082 = vmatprep.subr.bf16.mxu0 %v6896
    %7083 = vmatpush1.bf16.msra.mxu0 %v6895
    %7084 = vmatprep.subr.bf16.mxu0 %v6894
    %7085 = vmatpush1.bf16.msra.mxu0 %v6893
    %7086 = vmatprep.subr.bf16.mxu0 %v6924
    %7087 = vmatpush2.bf16.msra.mxu0 %v6923
    %7088 = vmatprep.subr.bf16.mxu0 %v6922
    %7089 = vmatpush2.bf16.msra.mxu0 %v6921
    %7090 = vmatprep.subr.bf16.mxu0 %v6920
    %7091 = vmatpush2.bf16.msra.mxu0 %v6919
    %7092 = vmatprep.subr.bf16.mxu0 %v6918
    %7093 = vmatpush2.bf16.msra.mxu0 %v6917
    %7094 = vmatprep.subr.bf16.mxu0 %v6916
    %7095 = vmatpush2.bf16.msra.mxu0 %v6915
    %7096 = vmatprep.subr.bf16.mxu0 %v6914
    %7097 = vmatpush2.bf16.msra.mxu0 %v6913
    %7098 = vmatprep.subr.bf16.mxu0 %v6912
    %7099 = vmatpush2.bf16.msra.mxu0 %v6911
    %7100 = vmatprep.subr.bf16.mxu0 %v6910
    %7101 = vmatpush2.bf16.msra.mxu0 %v6909
    %7102 = vmatprep.mubr.bf16.mxu0 %v7063
    %7103 = vmatmul.mubr.bf16.gmra.mxu0 %v7062
    %v7104 = vpop.f32.mrf.mxu0
    %v7105 = vadd.f32 %v6770, %v7104
    %v7106 = vpop.f32.mrf.mxu0
    %v7107 = vadd.f32 %v6774, %v7106
    %v7108 = vpop.f32.mrf.mxu0
    %v7109 = vadd.f32 %v6770, %v7108
    %v7110 = vpop.f32.mrf.mxu0
    %v7111 = vadd.f32 %v6774, %v7110
    %7112 = vmatprep.mubr.bf16.mxu0 %v7065
    %7113 = vmatmul.mubr.bf16.gmra.mxu0 %v7064
    %v7114 = vpop.f32.mrf.mxu0
    %v7115 = vadd.f32 %v6770, %v7114
    %v7116 = vpop.f32.mrf.mxu0
    %v7117 = vadd.f32 %v6774, %v7116
    %v7118 = vpop.f32.mrf.mxu0
    %v7119 = vadd.f32 %v6770, %v7118
    %v7120 = vpop.f32.mrf.mxu0
    %v7121 = vadd.f32 %v6774, %v7120
    %7122 = vdwg.mxu0
    %v7123 = vpack.c.bf16 %v7109, %v7105
    %v7124 = vpack.c.bf16 %v7111, %v7107
    %v7125 = vpack.c.bf16 %v7119, %v7115
    %v7126 = vpack.c.bf16 %v7121, %v7117
    %v7127 = vmax.bf16 %v7123, 0
    %v7128 = vmax.bf16 %v7124, 0
    %v7129 = vmax.bf16 %v7125, 0
    %v7130 = vmax.bf16 %v7126, 0
    %v7131 = vadd.bf16 %v7127, %v7062
    %v7132 = vadd.bf16 %v7128, %v7063
    %v7133 = vadd.bf16 %v7129, %v7064
    %v7134 = vadd.bf16 %v7130, %v7065
    %v7139 = vunpack.c.l.b16 %v7131
    %v7140 = vunpack.c.l.b16 %v7132
    %v7141 = vunpack.c.h.b16 %v7131
    %v7142 = vunpack.c.h.b16 %v7132
    %v7143 = vunpack.c.l.b16 %v7133
    %v7144 = vunpack.c.l.b16 %v7134
    %v7145 = vunpack.c.h.b16 %v7133
    %v7146 = vunpack.c.h.b16 %v7134
    %v7147 = vpack.c.b16 %v7140, %v7139
    %v7148 = vpack.c.b16 %v7142, %v7141
    %v7149 = vpack.c.b16 %v7144, %v7143
    %v7150 = vpack.c.b16 %v7146, %v7145
    %7155 = vst [vmem:[#allocation3] sm:$0xff] %v7147
    %7156 = vst [vmem:[#allocation3 + $0x8] sm:$0xff] %v7148
    %7157 = vst [vmem:[#allocation3 + $0x10] sm:$0xff] %v7149
    %7158 = vst [vmem:[#allocation3 + $0x18] sm:$0xff] %v7150
    %v7159 = vld [vmem:[#allocation13] sm:$0x3]
    %v7160 = vld [vmem:[#allocation4] sm:$0x1]
    %v7161 = vld [vmem:[#allocation2] sm:$0xff]
    %v7162 = vld [vmem:[#allocation2 + $0x8] sm:$0xff]
    %v7163 = vld [vmem:[#allocation2 + $0x10] sm:$0xff]
    %v7164 = vld [vmem:[#allocation2 + $0x18] sm:$0xff]
    %v7165 = vunpack.c.l.bf16 %v7161
    %v7166 = vunpack.c.h.bf16 %v7161
    %v7167 = vunpack.c.l.bf16 %v7162
    %v7168 = vunpack.c.h.bf16 %v7162
    %v7169 = vunpack.c.l.bf16 %v7163
    %v7170 = vunpack.c.h.bf16 %v7163
    %v7171 = vunpack.c.l.bf16 %v7164
    %v7172 = vunpack.c.h.bf16 %v7164
    %v7174 = vlaneseq
    %v7175 = vshrl.u32 %v7174, 7
    %v7176 = vsub.s32 0, %v7175
    %v7177 = vrot.slane %v7159, %v7176
    %v7178 = vlaneseq
    %v7179 = vshrl.u32 %v7178, 7
    %v7180 = vsub.s32 1, %v7179
    %v7181 = vrot.slane %v7159, %v7180
    %v7184 = vmul.f32 %v7165, %v7177
    %v7185 = vmul.f32 %v7166, %v7181
    %v7186 = vmul.f32 %v7167, %v7177
    %v7187 = vmul.f32 %v7168, %v7181
    %v7188 = vmul.f32 %v7169, %v7177
    %v7189 = vmul.f32 %v7170, %v7181
    %v7190 = vmul.f32 %v7171, %v7177
    %v7191 = vmul.f32 %v7172, %v7181
    %v7192 = vadd.f32 %v7184, %v7185
    %7193 = vadd.xlane.f32.xlu0 %v7192
    %v7194 = vpop.xlane.xlu0 %7193
    %v7195 = vadd.f32 %v7186, %v7187
    %7196 = vadd.xlane.f32.xlu0 %v7195
    %v7197 = vpop.xlane.xlu0 %7196
    %v7198 = vadd.f32 %v7188, %v7189
    %7199 = vadd.xlane.f32.xlu0 %v7198
    %v7200 = vpop.xlane.xlu0 %7199
    %v7201 = vadd.f32 %v7190, %v7191
    %7202 = vadd.xlane.f32.xlu0 %v7201
    %v7203 = vpop.xlane.xlu0 %7202
    %v7205 = vlaneseq
    %v7206 = vshrl.u32 %v7205, 7
    %v7207 = vsub.s32 0, %v7206
    %v7208 = vrot.slane %v7160, %v7207
    %v7210 = vadd.f32 %v7194, %v7208
    %v7211 = vadd.f32 %v7197, %v7208
    %v7212 = vadd.f32 %v7200, %v7208
    %v7213 = vadd.f32 %v7203, %v7208
    %v7214 = vtanh.pop %v7210
    %v7215 = vtanh.pop %v7211
    %v7216 = vtanh.pop %v7212
    %v7217 = vtanh.pop %v7213
    %vm7218 = vcmask 7168
    %7219 = vst.msk [vmem:[%s7] sm:$0xff] %vm7218, %v7214
    %7220 = vst.msk [vmem:[%s7 + $0x8] sm:$0xff] %vm7218, %v7215
    %7221 = vst.msk [vmem:[%s7 + $0x10] sm:$0xff] %vm7218, %v7216
    %7222 = vst.msk [vmem:[%s7 + $0x18] sm:$0xff] %vm7218, %v7217
    %v7223 = vld [vmem:[#allocation3] sm:$0xff]
    %v7224 = vld [vmem:[#allocation3 + $0x8] sm:$0xff]
    %v7225 = vld [vmem:[#allocation3 + $0x10] sm:$0xff]
    %v7226 = vld [vmem:[#allocation3 + $0x18] sm:$0xff]
    %v7227 = vunpack.c.l.bf16 %v7223
    %v7228 = vunpack.c.h.bf16 %v7223
    %v7229 = vunpack.c.l.bf16 %v7224
    %v7230 = vunpack.c.h.bf16 %v7224
    %v7231 = vunpack.c.l.bf16 %v7225
    %v7232 = vunpack.c.h.bf16 %v7225
    %v7233 = vunpack.c.l.bf16 %v7226
    %v7234 = vunpack.c.h.bf16 %v7226
    %v7235 = vmul.f32 %v7227, %v7177
    %v7236 = vmul.f32 %v7228, %v7181
    %v7237 = vmul.f32 %v7229, %v7177
    %v7238 = vmul.f32 %v7230, %v7181
    %v7239 = vmul.f32 %v7231, %v7177
    %v7240 = vmul.f32 %v7232, %v7181
    %v7241 = vmul.f32 %v7233, %v7177
    %v7242 = vmul.f32 %v7234, %v7181
    %v7243 = vadd.f32 %v7235, %v7236
    %7244 = vadd.xlane.f32.xlu0 %v7243
    %v7245 = vpop.xlane.xlu0 %7244
    %v7246 = vadd.f32 %v7237, %v7238
    %7247 = vadd.xlane.f32.xlu0 %v7246
    %v7248 = vpop.xlane.xlu0 %7247
    %v7249 = vadd.f32 %v7239, %v7240
    %7250 = vadd.xlane.f32.xlu0 %v7249
    %v7251 = vpop.xlane.xlu0 %7250
    %v7252 = vadd.f32 %v7241, %v7242
    %7253 = vadd.xlane.f32.xlu0 %v7252
    %v7254 = vpop.xlane.xlu0 %7253
    %v7255 = vadd.f32 %v7245, %v7208
    %v7256 = vadd.f32 %v7248, %v7208
    %v7257 = vadd.f32 %v7251, %v7208
    %v7258 = vadd.f32 %v7254, %v7208
    %v7259 = vtanh.pop %v7255
    %v7260 = vtanh.pop %v7256
    %v7261 = vtanh.pop %v7257
    %v7262 = vtanh.pop %v7258
    %7263 = vst.msk [vmem:[%s7 + $0x20] sm:$0xff] %vm7218, %v7259
    %7264 = vst.msk [vmem:[%s7 + $0x28] sm:$0xff] %vm7218, %v7260
    %7265 = vst.msk [vmem:[%s7 + $0x30] sm:$0xff] %vm7218, %v7261
    %7266 = vst.msk [vmem:[%s7 + $0x38] sm:$0xff] %vm7218, %v7262
    // Predicated region
    $region54: #{tpu_custom_call.1} parent=1 // pred_check
      _
    $region55: #{tpu_custom_call.1} parent=1 // pred_check_branch
      %7268 = sbr.rel (0) target = $region57
    $region56: #{tpu_custom_call.1} parent=1 // pred_region
      _
    $region57: #{tpu_custom_call.1} parent=1 // pred_fallthru
      _
    // Predicated region
    $region58: #{tpu_custom_call.1} parent=1 // pred_check
      _
    $region59: #{tpu_custom_call.1} parent=1 // pred_check_branch
      %7270 = sbr.rel (0) target = $region61
    $region60: #{tpu_custom_call.1} parent=1 // pred_region
      _
    $region61: #{tpu_custom_call.1} parent=1 // pred_fallthru
      _
    %7271 = vsyncpa [#allocation6], 1
    %7272 = vsyncpa [#allocation8], 1
    %7273 = vsyncpa [#allocation11], 1
    %7274 = vsyncpa [#allocation14], 1

</llo_original>
